<compile_context>
chip_gen: v7x
topology: tpu7x:2x2x1
jax: 0.10.0
libtpu: 0.0.40
codegen_flags: <defaults>
</compile_context>

<pallas_src>
import functools

import jax
import jax.numpy as jnp
from jax import lax
from jax.experimental import pallas as pl
from jax.experimental.pallas import tpu as pltpu

LANE = 128  # TPU lane width; kernel-facing channel/feature dims are padded to this.


def _vmem_spec():
    # Whole-array block resident in VMEM (all operands here are small).
    return pl.BlockSpec(memory_space=pltpu.MemorySpace.VMEM)


def _pad_to_lane(v):
    return ((v + LANE - 1) // LANE) * LANE


# ------------------------------ kernel body ----------------------------------

def _conv_bn_relu_pool(x, w_ref, g_ref, b_ref, xcat_ref, acc_ref, *, pad):
    """Fused Conv2d -> BatchNorm2d(batch stats) -> ReLU -> MaxPool2d(2,2).

    x:        (N, H, W, Ci)      bf16 NHWC value
    w_ref:    (k, k*Ci, Co)      bf16 conv weight, index (dy, dx*Ci + ci, co)
    g/b_ref:  (1, Co)            f32 BN affine
    xcat_ref: (N, H+2p, Wo, k*Ci) bf16 scratch — dx-merged shifted input
    acc_ref:  (>=N*Ho*Wo, >=Co)  f32 scratch accumulator
    returns   (N, Ho//2, Wo//2, Co) bf16 value
    """
    n, h, w, ci = x.shape
    k = w_ref.shape[0]
    co = w_ref.shape[-1]
    hp, wp = h + 2 * pad, w + 2 * pad
    ho, wo = hp - k + 1, wp - k + 1
    m = n * ho * wo

    # Spatial zero-pad computed in vregs (single pass, no scratch double-write).
    if pad > 0:
        zw = jnp.zeros((n, h, pad, ci), x.dtype)
        x = jnp.concatenate([zw, x, zw], axis=2)          # (n, h, wp, ci)
        zh = jnp.zeros((n, pad, wp, ci), x.dtype)
        x = jnp.concatenate([zh, x, zh], axis=1)          # (n, hp, wp, ci)

    # Merge the k dx-shifted slices along the lane (channel) axis: only k sublane
    # shifts per stage (not k*k); every xcat element is written exactly once and
    # the stage-2 lane ranges are 128-aligned (unmasked stores).
    for dx in range(k):
        xcat_ref[:, :, :, dx * ci:(dx + 1) * ci] = x[:, :, dx:dx + wo, :]

    # Conv = k fat matmuls (K = k*Ci) accumulated into a VMEM scratch so the f32
    # accumulator never pins the vreg file.  Per-dy slices are free (H axis).
    # Conv bias intentionally omitted: zero-init and cancels under batch-stat BN.
    for dy in range(k):
        xs = xcat_ref[:, dy:dy + ho, :, :].reshape(m, k * ci)
        contrib = jnp.dot(xs, w_ref[dy], preferred_element_type=jnp.float32)
        if dy == 0:
            acc_ref[0:m, 0:co] = contrib
        else:
            acc_ref[0:m, 0:co] += contrib

    # BatchNorm2d training-mode forward: batch stats over (N,Ho,Wo), biased
    # two-pass variance, eps=1e-5, folded into per-channel scale/shift, + ReLU.
    acc = acc_ref[0:m, 0:co]
    mean = jnp.mean(acc, axis=0, keepdims=True)
    var = jnp.mean((acc - mean) ** 2, axis=0, keepdims=True)
    scale = g_ref[...] * lax.rsqrt(var + 1e-5)
    shift = b_ref[...] - mean * scale
    y = jnp.maximum(acc_ref[0:m, 0:co] * scale + shift, 0.0)

    # Fused 2x2 stride-2 max-pool on the VMEM-resident activations.
    y = y.reshape(n * ho, wo // 2, 2, co)
    y = jnp.maximum(y[:, :, 0, :], y[:, :, 1, :])          # pool along W
    y = y.reshape(n * (ho // 2), 2, wo // 2, co)
    y = jnp.maximum(y[:, 0, :, :], y[:, 1, :, :])          # pool along H
    return y.reshape(n, ho // 2, wo // 2, co).astype(jnp.bfloat16)


def cnn_kernel(*refs, num_conv, num_fc, pads):
    """Entire CNN forward in one kernel: conv stages, flatten, dense stack."""
    x_ref = refs[0]
    conv_refs = [refs[1 + 3 * i: 4 + 3 * i] for i in range(num_conv)]
    fc_off = 1 + 3 * num_conv
    fc_refs = [refs[fc_off + 2 * i: fc_off + 2 * (i + 1)] for i in range(num_fc)]
    o_ref = refs[fc_off + 2 * num_fc]
    scr = fc_off + 2 * num_fc + 1
    xcat_refs = refs[scr: scr + num_conv]
    acc_ref = refs[scr + num_conv]

    x = x_ref[...]
    for (w_ref, g_ref, b_ref), xcat_ref, pad in zip(conv_refs, xcat_refs, pads):
        x = _conv_bn_relu_pool(x, w_ref, g_ref, b_ref, xcat_ref, acc_ref, pad=pad)

    # Flatten in NHWC(+channel-pad) order; FC1 weight rows are stored in this
    # order so no runtime transpose is needed.
    h = x.reshape(x.shape[0], -1)
    for i, (w_ref, b_ref) in enumerate(fc_refs):
        y = jnp.dot(h, w_ref[...], preferred_element_type=jnp.float32) + b_ref[...]
        if i + 1 < num_fc:
            # TODO(synk): nn.Dropout after the hidden ReLU is identity (eval mode).
            h = jnp.maximum(y, 0.0).astype(jnp.bfloat16)
        else:
            o_ref[...] = y


# -------------------------------- wrapper ------------------------------------

def cnn_forward(x_nchw, params):
    """x_nchw: (N, 3, H, W) float32 — same convention as the PyTorch module."""
    # NHWC (C -> lanes) + bf16 operands for the MXU; accumulation stays f32.
    x = jnp.transpose(x_nchw, (0, 2, 3, 1)).astype(jnp.bfloat16)
    n, h, w, _ = x.shape

    conv_args, pads, xcat_shapes = [], [], []
    m_max, co_max = 8, LANE
    hh, ww = h, w
    for (wk, gamma, beta, k, pad) in params["convs"]:
        conv_args += [wk, gamma, beta]
        pads.append(pad)
        ci = wk.shape[1] // k
        co = wk.shape[2]
        hp, wp = hh + 2 * pad, ww + 2 * pad
        ho, wo = hp - k + 1, wp - k + 1
        # TODO(synk): PyTorch MaxPool2d(2,2) truncates odd spatial dims; unsupported.
        assert ho % 2 == 0 and wo % 2 == 0, "odd post-conv spatial dims unsupported"
        xcat_shapes.append((n, hp, wo, k * ci))
        m_max = max(m_max, n * ho * wo)
        co_max = max(co_max, co)
        hh, ww = ho // 2, wo // 2

    fc_args = []
    for (wgt, bias) in params["fcs"]:
        fc_args += [wgt, bias]
    d_out = params["fcs"][-1][0].shape[1]          # lane-padded number of classes

    kernel = functools.partial(cnn_kernel, num_conv=len(params["convs"]),
                               num_fc=len(params["fcs"]), pads=tuple(pads))
    logits_pad = pl.pallas_call(
        kernel,
        out_shape=jax.ShapeDtypeStruct((n, d_out), jnp.float32),
        in_specs=[_vmem_spec()] * (1 + len(conv_args) + len(fc_args)),
        out_specs=_vmem_spec(),
        scratch_shapes=[pltpu.VMEM(s, jnp.bfloat16) for s in xcat_shapes]
                     + [pltpu.VMEM((m_max, co_max), jnp.float32)],
        compiler_params=pltpu.CompilerParams(vmem_limit_bytes=32 * 1024 * 1024),
    )(x, *conv_args, *fc_args)
    return logits_pad[:, :params["num_classes"]]


# ---------------------------- deterministic init ------------------------------

def init_params(key, *, num_filters, kernel_size, num_dense, num_classes,
                in_channels, img_size, padding):
    """He init for convs, constants for BN, Xavier for FCs (matching the module).

    Kernel-facing channel/feature dims are zero-padded to the 128-lane width; the
    padding is folded into the weights so padded slots stay exactly zero.
    """
    params = {"convs": [], "fcs": [], "num_classes": num_classes}
    c_in, c_in_pad = in_channels, in_channels   # first conv keeps true Cin
    h = w = img_size
    for nf, k in zip(num_filters, kernel_size):
        pad = k // 2 if padding is None else padding
        nf_pad = _pad_to_lane(nf)
        key, sub = jax.random.split(key)
        std = (2.0 / (nf * k * k)) ** 0.5                     # He, mode='fan_out'
        wgt = jax.random.normal(sub, (k, k, c_in, nf), jnp.float32) * std
        wgt = jnp.pad(wgt, ((0, 0), (0, 0),
                            (0, c_in_pad - c_in), (0, nf_pad - nf)))
        # (dy, dx*Ci + ci, co) layout expected by the kernel.
        wgt = wgt.reshape(k, k * c_in_pad, nf_pad).astype(jnp.bfloat16)
        gamma = jnp.pad(jnp.ones((1, nf), jnp.float32), ((0, 0), (0, nf_pad - nf)))
        beta = jnp.zeros((1, nf_pad), jnp.float32)
        params["convs"].append((wgt, gamma, beta, k, pad))
        c_in, c_in_pad = nf, nf_pad
        h = (h + 2 * pad - k + 1) // 2
        w = (w + 2 * pad - k + 1) // 2

    d_real_in = c_in * h * w                    # torch's flattened_size
    d_pad_in = c_in_pad * h * w                 # kernel-facing flattened size
    first = True
    for d in list(num_dense) + [num_classes]:
        d_pad = _pad_to_lane(d)
        key, sub = jax.random.split(key)
        std = (2.0 / (d_real_in + d)) ** 0.5                  # Xavier normal
        if first:
            # Stored in (H, W, C) order with zero rows for padded channels so the
            # kernel can flatten NHWC directly (no runtime transpose).
            wgt = jax.random.normal(sub, (h, w, c_in, d), jnp.float32) * std
            wgt = jnp.pad(wgt, ((0, 0), (0, 0),
                                (0, c_in_pad - c_in), (0, d_pad - d)))
            wgt = wgt.reshape(d_pad_in, d_pad)
            first = False
        else:
            wgt = jax.random.normal(sub, (d_real_in, d), jnp.float32) * std
            wgt = jnp.pad(wgt, ((0, d_pad_in - d_real_in), (0, d_pad - d)))
        params["fcs"].append((wgt.astype(jnp.bfloat16),
                              jnp.zeros((1, d_pad), jnp.float32)))
        d_real_in, d_pad_in = d, d_pad
    return params


if __name__ == "__main__":
    key = jax.random.PRNGKey(0)
    key, xkey = jax.random.split(key)

    # Small shapes consistent with the module (configurable ctor args).
    N, C, H, W = 2, 3, 16, 16
    x = jax.random.normal(xkey, (N, C, H, W), jnp.float32)

    params = init_params(
        key,
        num_filters=[32, 64], kernel_size=[3, 3],
        num_dense=[128], num_classes=10,
        in_channels=C, img_size=H, padding=1,
    )

    logits = jax.jit(lambda inp: cnn_forward(inp, params))(x)
    logits = jax.block_until_ready(logits)
    assert logits.shape == (N, 10) and logits.dtype == jnp.float32
    print("KERNEL_OK")
</pallas_src>

<mosaic_0001>
module attributes {stable_mosaic.version = 11 : i64} {
  func.func @cnn_kernel(%arg0: memref<2x16x16x3xbf16, #tpu.memory_space<vmem>>, %arg1: memref<3x9x128xbf16, #tpu.memory_space<vmem>>, %arg2: memref<1x128xf32, #tpu.memory_space<vmem>>, %arg3: memref<1x128xf32, #tpu.memory_space<vmem>>, %arg4: memref<3x384x128xbf16, #tpu.memory_space<vmem>>, %arg5: memref<1x128xf32, #tpu.memory_space<vmem>>, %arg6: memref<1x128xf32, #tpu.memory_space<vmem>>, %arg7: memref<2048x128xbf16, #tpu.memory_space<vmem>>, %arg8: memref<1x128xf32, #tpu.memory_space<vmem>>, %arg9: memref<128x128xbf16, #tpu.memory_space<vmem>>, %arg10: memref<1x128xf32, #tpu.memory_space<vmem>>, %arg11: memref<2x128xf32, #tpu.memory_space<vmem>>, %arg12: memref<2x18x16x9xbf16, #tpu.memory_space<vmem>>, %arg13: memref<2x10x8x384xbf16, #tpu.memory_space<vmem>>, %arg14: memref<512x128xf32, #tpu.memory_space<vmem>>) attributes {dimension_semantics = [], scalar_prefetch = 0 : i64, scratch_operands = 3 : i64, tpu.core_type = #tpu.core_type<tc>} {
    %c0 = arith.constant 0 : index
    %c0_0 = arith.constant 0 : index
    %c0_1 = arith.constant 0 : index
    %c0_2 = arith.constant 0 : index
    %0 = vector.load %arg0[%c0, %c0_0, %c0_1, %c0_2] : memref<2x16x16x3xbf16, #tpu.memory_space<vmem>>, vector<2x16x16x3xbf16>
    %cst = arith.constant 0.000000e+00 : bf16
    %1 = vector.broadcast %cst : bf16 to vector<2x16x1x3xbf16>
    %2 = tpu.concatenate %1, %0, %1 in 2 : vector<2x16x1x3xbf16>, vector<2x16x16x3xbf16>, vector<2x16x1x3xbf16> -> vector<2x16x18x3xbf16>
    %cst_3 = arith.constant 0.000000e+00 : bf16
    %3 = vector.broadcast %cst_3 : bf16 to vector<2x1x18x3xbf16>
    %4 = tpu.concatenate %3, %2, %3 in 1 : vector<2x1x18x3xbf16>, vector<2x16x18x3xbf16>, vector<2x1x18x3xbf16> -> vector<2x18x18x3xbf16>
    %5 = vector.extract_strided_slice %4 {offsets = [0, 0, 0, 0], sizes = [2, 18, 16, 3], strides = [1, 1, 1, 1]} : vector<2x18x18x3xbf16> to vector<2x18x16x3xbf16>
    %c0_4 = arith.constant 0 : index
    %c0_5 = arith.constant 0 : index
    %c0_6 = arith.constant 0 : index
    %c0_7 = arith.constant 0 : index
    %6 = vector.load %arg12[%c0_4, %c0_5, %c0_6, %c0_7] : memref<2x18x16x9xbf16, #tpu.memory_space<vmem>>, vector<2x18x16x3xbf16>
    tpu.vector_store %arg12[%c0_4, %c0_5, %c0_6, %c0_7], %5 {strides = array<i32>} : memref<2x18x16x9xbf16, #tpu.memory_space<vmem>>, vector<2x18x16x3xbf16>,
    %7 = vector.extract_strided_slice %4 {offsets = [0, 0, 1, 0], sizes = [2, 18, 16, 3], strides = [1, 1, 1, 1]} : vector<2x18x18x3xbf16> to vector<2x18x16x3xbf16>
    %c0_8 = arith.constant 0 : index
    %c0_9 = arith.constant 0 : index
    %c0_10 = arith.constant 0 : index
    %c3 = arith.constant 3 : index
    %8 = vector.load %arg12[%c0_8, %c0_9, %c0_10, %c3] : memref<2x18x16x9xbf16, #tpu.memory_space<vmem>>, vector<2x18x16x3xbf16>
    tpu.vector_store %arg12[%c0_8, %c0_9, %c0_10, %c3], %7 {strides = array<i32>} : memref<2x18x16x9xbf16, #tpu.memory_space<vmem>>, vector<2x18x16x3xbf16>,
    %9 = vector.extract_strided_slice %4 {offsets = [0, 0, 2, 0], sizes = [2, 18, 16, 3], strides = [1, 1, 1, 1]} : vector<2x18x18x3xbf16> to vector<2x18x16x3xbf16>
    %c0_11 = arith.constant 0 : index
    %c0_12 = arith.constant 0 : index
    %c0_13 = arith.constant 0 : index
    %c6 = arith.constant 6 : index
    %10 = vector.load %arg12[%c0_11, %c0_12, %c0_13, %c6] : memref<2x18x16x9xbf16, #tpu.memory_space<vmem>>, vector<2x18x16x3xbf16>
    tpu.vector_store %arg12[%c0_11, %c0_12, %c0_13, %c6], %9 {strides = array<i32>} : memref<2x18x16x9xbf16, #tpu.memory_space<vmem>>, vector<2x18x16x3xbf16>,
    %c0_14 = arith.constant 0 : index
    %c0_15 = arith.constant 0 : index
    %c0_16 = arith.constant 0 : index
    %c0_17 = arith.constant 0 : index
    %11 = vector.load %arg12[%c0_14, %c0_15, %c0_16, %c0_17] : memref<2x18x16x9xbf16, #tpu.memory_space<vmem>>, vector<2x16x16x9xbf16>
    %12 = vector.shape_cast %11 : vector<2x16x16x9xbf16> to vector<512x9xbf16>
    %c0_18 = arith.constant 0 : index
    %c0_19 = arith.constant 0 : index
    %c0_20 = arith.constant 0 : index
    %13 = vector.load %arg1[%c0_18, %c0_19, %c0_20] : memref<3x9x128xbf16, #tpu.memory_space<vmem>>, vector<1x9x128xbf16>
    %14 = vector.shape_cast %13 : vector<1x9x128xbf16> to vector<9x128xbf16>
    %cst_21 = arith.constant dense<0.000000e+00> : vector<512x128xf32>
    %15 = tpu.matmul %12, %14, %cst_21 {dimension_numbers = #tpu.dot_dimension_numbers<[1], [0], [0], [1], [0, 0, 1, 1], [], []>} : vector<512x9xbf16>, vector<9x128xbf16>, vector<512x128xf32> -> vector<512x128xf32>
    %c0_22 = arith.constant 0 : index
    %c0_23 = arith.constant 0 : index
    %16 = vector.load %arg14[%c0_22, %c0_23] : memref<512x128xf32, #tpu.memory_space<vmem>>, vector<512x128xf32>
    tpu.vector_store %arg14[%c0_22, %c0_23], %15 {strides = array<i32>} : memref<512x128xf32, #tpu.memory_space<vmem>>, vector<512x128xf32>,
    %c0_24 = arith.constant 0 : index
    %c1 = arith.constant 1 : index
    %c0_25 = arith.constant 0 : index
    %c0_26 = arith.constant 0 : index
    %17 = vector.load %arg12[%c0_24, %c1, %c0_25, %c0_26] : memref<2x18x16x9xbf16, #tpu.memory_space<vmem>>, vector<2x16x16x9xbf16>
    %18 = vector.shape_cast %17 : vector<2x16x16x9xbf16> to vector<512x9xbf16>
    %c1_27 = arith.constant 1 : index
    %c0_28 = arith.constant 0 : index
    %c0_29 = arith.constant 0 : index
    %19 = vector.load %arg1[%c1_27, %c0_28, %c0_29] : memref<3x9x128xbf16, #tpu.memory_space<vmem>>, vector<1x9x128xbf16>
    %20 = vector.shape_cast %19 : vector<1x9x128xbf16> to vector<9x128xbf16>
    %cst_30 = arith.constant dense<0.000000e+00> : vector<512x128xf32>
    %21 = tpu.matmul %18, %20, %cst_30 {dimension_numbers = #tpu.dot_dimension_numbers<[1], [0], [0], [1], [0, 0, 1, 1], [], []>} : vector<512x9xbf16>, vector<9x128xbf16>, vector<512x128xf32> -> vector<512x128xf32>
    %c0_31 = arith.constant 0 : index
    %c0_32 = arith.constant 0 : index
    %22 = vector.load %arg14[%c0_31, %c0_32] : memref<512x128xf32, #tpu.memory_space<vmem>>, vector<512x128xf32>
    %23 = arith.addf %22, %21 : vector<512x128xf32>
    %c0_33 = arith.constant 0 : index
    %c0_34 = arith.constant 0 : index
    %24 = vector.load %arg14[%c0_33, %c0_34] : memref<512x128xf32, #tpu.memory_space<vmem>>, vector<512x128xf32>
    tpu.vector_store %arg14[%c0_33, %c0_34], %23 {strides = array<i32>} : memref<512x128xf32, #tpu.memory_space<vmem>>, vector<512x128xf32>,
    %c0_35 = arith.constant 0 : index
    %c2 = arith.constant 2 : index
    %c0_36 = arith.constant 0 : index
    %c0_37 = arith.constant 0 : index
    %25 = vector.load %arg12[%c0_35, %c2, %c0_36, %c0_37] : memref<2x18x16x9xbf16, #tpu.memory_space<vmem>>, vector<2x16x16x9xbf16>
    %26 = vector.shape_cast %25 : vector<2x16x16x9xbf16> to vector<512x9xbf16>
    %c2_38 = arith.constant 2 : index
    %c0_39 = arith.constant 0 : index
    %c0_40 = arith.constant 0 : index
    %27 = vector.load %arg1[%c2_38, %c0_39, %c0_40] : memref<3x9x128xbf16, #tpu.memory_space<vmem>>, vector<1x9x128xbf16>
    %28 = vector.shape_cast %27 : vector<1x9x128xbf16> to vector<9x128xbf16>
    %cst_41 = arith.constant dense<0.000000e+00> : vector<512x128xf32>
    %29 = tpu.matmul %26, %28, %cst_41 {dimension_numbers = #tpu.dot_dimension_numbers<[1], [0], [0], [1], [0, 0, 1, 1], [], []>} : vector<512x9xbf16>, vector<9x128xbf16>, vector<512x128xf32> -> vector<512x128xf32>
    %c0_42 = arith.constant 0 : index
    %c0_43 = arith.constant 0 : index
    %30 = vector.load %arg14[%c0_42, %c0_43] : memref<512x128xf32, #tpu.memory_space<vmem>>, vector<512x128xf32>
    %31 = arith.addf %30, %29 : vector<512x128xf32>
    %c0_44 = arith.constant 0 : index
    %c0_45 = arith.constant 0 : index
    %32 = vector.load %arg14[%c0_44, %c0_45] : memref<512x128xf32, #tpu.memory_space<vmem>>, vector<512x128xf32>
    tpu.vector_store %arg14[%c0_44, %c0_45], %31 {strides = array<i32>} : memref<512x128xf32, #tpu.memory_space<vmem>>, vector<512x128xf32>,
    %c0_46 = arith.constant 0 : index
    %c0_47 = arith.constant 0 : index
    %33 = vector.load %arg14[%c0_46, %c0_47] : memref<512x128xf32, #tpu.memory_space<vmem>>, vector<512x128xf32>
    %cst_48 = arith.constant dense<0.000000e+00> : vector<128xf32>
    %34 = vector.multi_reduction <add>, %33, %cst_48 [0] : vector<512x128xf32> to vector<128xf32>
    %35 = vector.shape_cast %34 : vector<128xf32> to vector<1x128xf32>
    %cst_49 = arith.constant 5.120000e+02 : f32
    %36 = vector.broadcast %cst_49 : f32 to vector<1x128xf32>
    %37 = arith.divf %35, %36 : vector<1x128xf32>
    %38 = vector.broadcast %37 : vector<1x128xf32> to vector<512x128xf32>
    %39 = arith.subf %33, %38 : vector<512x128xf32>
    %40 = arith.mulf %39, %39 : vector<512x128xf32>
    %cst_50 = arith.constant dense<0.000000e+00> : vector<128xf32>
    %41 = vector.multi_reduction <add>, %40, %cst_50 [0] : vector<512x128xf32> to vector<128xf32>
    %42 = vector.shape_cast %41 : vector<128xf32> to vector<1x128xf32>
    %cst_51 = arith.constant 5.120000e+02 : f32
    %43 = vector.broadcast %cst_51 : f32 to vector<1x128xf32>
    %44 = arith.divf %42, %43 : vector<1x128xf32>
    %c0_52 = arith.constant 0 : index
    %c0_53 = arith.constant 0 : index
    %45 = vector.load %arg2[%c0_52, %c0_53] : memref<1x128xf32, #tpu.memory_space<vmem>>, vector<1x128xf32>
    %cst_54 = arith.constant 9.99999974E-6 : f32
    %46 = vector.broadcast %cst_54 : f32 to vector<1x128xf32>
    %47 = arith.addf %44, %46 : vector<1x128xf32>
    %48 = math.rsqrt %47 : vector<1x128xf32>
    %49 = arith.mulf %45, %48 : vector<1x128xf32>
    %c0_55 = arith.constant 0 : index
    %c0_56 = arith.constant 0 : index
    %50 = vector.load %arg3[%c0_55, %c0_56] : memref<1x128xf32, #tpu.memory_space<vmem>>, vector<1x128xf32>
    %51 = arith.mulf %37, %49 : vector<1x128xf32>
    %52 = arith.subf %50, %51 : vector<1x128xf32>
    %c0_57 = arith.constant 0 : index
    %c0_58 = arith.constant 0 : index
    %53 = vector.load %arg14[%c0_57, %c0_58] : memref<512x128xf32, #tpu.memory_space<vmem>>, vector<512x128xf32>
    %54 = vector.broadcast %49 : vector<1x128xf32> to vector<512x128xf32>
    %55 = arith.mulf %53, %54 : vector<512x128xf32>
    %56 = vector.broadcast %52 : vector<1x128xf32> to vector<512x128xf32>
    %57 = arith.addf %55, %56 : vector<512x128xf32>
    %cst_59 = arith.constant 0.000000e+00 : f32
    %58 = vector.broadcast %cst_59 : f32 to vector<512x128xf32>
    %59 = arith.maximumf %57, %58 : vector<512x128xf32>
    %60 = vector.shape_cast %59 : vector<512x128xf32> to vector<32x8x2x128xf32>
    %61 = vector.extract_strided_slice %60 {offsets = [0, 0, 0, 0], sizes = [32, 8, 1, 128], strides = [1, 1, 1, 1]} : vector<32x8x2x128xf32> to vector<32x8x1x128xf32>
    %62 = vector.shape_cast %61 : vector<32x8x1x128xf32> to vector<32x8x128xf32>
    %63 = vector.extract_strided_slice %60 {offsets = [0, 0, 1, 0], sizes = [32, 8, 1, 128], strides = [1, 1, 1, 1]} : vector<32x8x2x128xf32> to vector<32x8x1x128xf32>
    %64 = vector.shape_cast %63 : vector<32x8x1x128xf32> to vector<32x8x128xf32>
    %65 = arith.maximumf %62, %64 : vector<32x8x128xf32>
    %66 = vector.shape_cast %65 : vector<32x8x128xf32> to vector<16x2x8x128xf32>
    %67 = vector.extract_strided_slice %66 {offsets = [0, 0, 0, 0], sizes = [16, 1, 8, 128], strides = [1, 1, 1, 1]} : vector<16x2x8x128xf32> to vector<16x1x8x128xf32>
    %68 = vector.shape_cast %67 : vector<16x1x8x128xf32> to vector<16x8x128xf32>
    %69 = vector.extract_strided_slice %66 {offsets = [0, 1, 0, 0], sizes = [16, 1, 8, 128], strides = [1, 1, 1, 1]} : vector<16x2x8x128xf32> to vector<16x1x8x128xf32>
    %70 = vector.shape_cast %69 : vector<16x1x8x128xf32> to vector<16x8x128xf32>
    %71 = arith.maximumf %68, %70 : vector<16x8x128xf32>
    %72 = vector.shape_cast %71 : vector<16x8x128xf32> to vector<2x8x8x128xf32>
    %73 = arith.truncf %72 : vector<2x8x8x128xf32> to vector<2x8x8x128xbf16>
    %cst_60 = arith.constant 0.000000e+00 : bf16
    %74 = vector.broadcast %cst_60 : bf16 to vector<2x8x1x128xbf16>
    %75 = tpu.concatenate %74, %73, %74 in 2 : vector<2x8x1x128xbf16>, vector<2x8x8x128xbf16>, vector<2x8x1x128xbf16> -> vector<2x8x10x128xbf16>
    %cst_61 = arith.constant 0.000000e+00 : bf16
    %76 = vector.broadcast %cst_61 : bf16 to vector<2x1x10x128xbf16>
    %77 = tpu.concatenate %76, %75, %76 in 1 : vector<2x1x10x128xbf16>, vector<2x8x10x128xbf16>, vector<2x1x10x128xbf16> -> vector<2x10x10x128xbf16>
    %78 = vector.extract_strided_slice %77 {offsets = [0, 0, 0, 0], sizes = [2, 10, 8, 128], strides = [1, 1, 1, 1]} : vector<2x10x10x128xbf16> to vector<2x10x8x128xbf16>
    %c0_62 = arith.constant 0 : index
    %c0_63 = arith.constant 0 : index
    %c0_64 = arith.constant 0 : index
    %c0_65 = arith.constant 0 : index
    %79 = vector.load %arg13[%c0_62, %c0_63, %c0_64, %c0_65] : memref<2x10x8x384xbf16, #tpu.memory_space<vmem>>, vector<2x10x8x128xbf16>
    tpu.vector_store %arg13[%c0_62, %c0_63, %c0_64, %c0_65], %78 {strides = array<i32>} : memref<2x10x8x384xbf16, #tpu.memory_space<vmem>>, vector<2x10x8x128xbf16>,
    %80 = vector.extract_strided_slice %77 {offsets = [0, 0, 1, 0], sizes = [2, 10, 8, 128], strides = [1, 1, 1, 1]} : vector<2x10x10x128xbf16> to vector<2x10x8x128xbf16>
    %c0_66 = arith.constant 0 : index
    %c0_67 = arith.constant 0 : index
    %c0_68 = arith.constant 0 : index
    %c128 = arith.constant 128 : index
    %81 = vector.load %arg13[%c0_66, %c0_67, %c0_68, %c128] : memref<2x10x8x384xbf16, #tpu.memory_space<vmem>>, vector<2x10x8x128xbf16>
    tpu.vector_store %arg13[%c0_66, %c0_67, %c0_68, %c128], %80 {strides = array<i32>} : memref<2x10x8x384xbf16, #tpu.memory_space<vmem>>, vector<2x10x8x128xbf16>,
    %82 = vector.extract_strided_slice %77 {offsets = [0, 0, 2, 0], sizes = [2, 10, 8, 128], strides = [1, 1, 1, 1]} : vector<2x10x10x128xbf16> to vector<2x10x8x128xbf16>
    %c0_69 = arith.constant 0 : index
    %c0_70 = arith.constant 0 : index
    %c0_71 = arith.constant 0 : index
    %c256 = arith.constant 256 : index
    %83 = vector.load %arg13[%c0_69, %c0_70, %c0_71, %c256] : memref<2x10x8x384xbf16, #tpu.memory_space<vmem>>, vector<2x10x8x128xbf16>
    tpu.vector_store %arg13[%c0_69, %c0_70, %c0_71, %c256], %82 {strides = array<i32>} : memref<2x10x8x384xbf16, #tpu.memory_space<vmem>>, vector<2x10x8x128xbf16>,
    %c0_72 = arith.constant 0 : index
    %c0_73 = arith.constant 0 : index
    %c0_74 = arith.constant 0 : index
    %c0_75 = arith.constant 0 : index
    %84 = vector.load %arg13[%c0_72, %c0_73, %c0_74, %c0_75] : memref<2x10x8x384xbf16, #tpu.memory_space<vmem>>, vector<2x8x8x384xbf16>
    %85 = vector.shape_cast %84 : vector<2x8x8x384xbf16> to vector<128x384xbf16>
    %c0_76 = arith.constant 0 : index
    %c0_77 = arith.constant 0 : index
    %c0_78 = arith.constant 0 : index
    %86 = vector.load %arg4[%c0_76, %c0_77, %c0_78] : memref<3x384x128xbf16, #tpu.memory_space<vmem>>, vector<1x384x128xbf16>
    %87 = vector.shape_cast %86 : vector<1x384x128xbf16> to vector<384x128xbf16>
    %cst_79 = arith.constant dense<0.000000e+00> : vector<128x128xf32>
    %88 = tpu.matmul %85, %87, %cst_79 {dimension_numbers = #tpu.dot_dimension_numbers<[1], [0], [0], [1], [0, 0, 1, 1], [], []>} : vector<128x384xbf16>, vector<384x128xbf16>, vector<128x128xf32> -> vector<128x128xf32>
    %c0_80 = arith.constant 0 : index
    %c0_81 = arith.constant 0 : index
    %89 = vector.load %arg14[%c0_80, %c0_81] : memref<512x128xf32, #tpu.memory_space<vmem>>, vector<128x128xf32>
    tpu.vector_store %arg14[%c0_80, %c0_81], %88 {strides = array<i32>} : memref<512x128xf32, #tpu.memory_space<vmem>>, vector<128x128xf32>,
    %c0_82 = arith.constant 0 : index
    %c1_83 = arith.constant 1 : index
    %c0_84 = arith.constant 0 : index
    %c0_85 = arith.constant 0 : index
    %90 = vector.load %arg13[%c0_82, %c1_83, %c0_84, %c0_85] : memref<2x10x8x384xbf16, #tpu.memory_space<vmem>>, vector<2x8x8x384xbf16>
    %91 = vector.shape_cast %90 : vector<2x8x8x384xbf16> to vector<128x384xbf16>
    %c1_86 = arith.constant 1 : index
    %c0_87 = arith.constant 0 : index
    %c0_88 = arith.constant 0 : index
    %92 = vector.load %arg4[%c1_86, %c0_87, %c0_88] : memref<3x384x128xbf16, #tpu.memory_space<vmem>>, vector<1x384x128xbf16>
    %93 = vector.shape_cast %92 : vector<1x384x128xbf16> to vector<384x128xbf16>
    %cst_89 = arith.constant dense<0.000000e+00> : vector<128x128xf32>
    %94 = tpu.matmul %91, %93, %cst_89 {dimension_numbers = #tpu.dot_dimension_numbers<[1], [0], [0], [1], [0, 0, 1, 1], [], []>} : vector<128x384xbf16>, vector<384x128xbf16>, vector<128x128xf32> -> vector<128x128xf32>
    %c0_90 = arith.constant 0 : index
    %c0_91 = arith.constant 0 : index
    %95 = vector.load %arg14[%c0_90, %c0_91] : memref<512x128xf32, #tpu.memory_space<vmem>>, vector<128x128xf32>
    %96 = arith.addf %95, %94 : vector<128x128xf32>
    %c0_92 = arith.constant 0 : index
    %c0_93 = arith.constant 0 : index
    %97 = vector.load %arg14[%c0_92, %c0_93] : memref<512x128xf32, #tpu.memory_space<vmem>>, vector<128x128xf32>
    tpu.vector_store %arg14[%c0_92, %c0_93], %96 {strides = array<i32>} : memref<512x128xf32, #tpu.memory_space<vmem>>, vector<128x128xf32>,
    %c0_94 = arith.constant 0 : index
    %c2_95 = arith.constant 2 : index
    %c0_96 = arith.constant 0 : index
    %c0_97 = arith.constant 0 : index
    %98 = vector.load %arg13[%c0_94, %c2_95, %c0_96, %c0_97] : memref<2x10x8x384xbf16, #tpu.memory_space<vmem>>, vector<2x8x8x384xbf16>
    %99 = vector.shape_cast %98 : vector<2x8x8x384xbf16> to vector<128x384xbf16>
    %c2_98 = arith.constant 2 : index
    %c0_99 = arith.constant 0 : index
    %c0_100 = arith.constant 0 : index
    %100 = vector.load %arg4[%c2_98, %c0_99, %c0_100] : memref<3x384x128xbf16, #tpu.memory_space<vmem>>, vector<1x384x128xbf16>
    %101 = vector.shape_cast %100 : vector<1x384x128xbf16> to vector<384x128xbf16>
    %cst_101 = arith.constant dense<0.000000e+00> : vector<128x128xf32>
    %102 = tpu.matmul %99, %101, %cst_101 {dimension_numbers = #tpu.dot_dimension_numbers<[1], [0], [0], [1], [0, 0, 1, 1], [], []>} : vector<128x384xbf16>, vector<384x128xbf16>, vector<128x128xf32> -> vector<128x128xf32>
    %c0_102 = arith.constant 0 : index
    %c0_103 = arith.constant 0 : index
    %103 = vector.load %arg14[%c0_102, %c0_103] : memref<512x128xf32, #tpu.memory_space<vmem>>, vector<128x128xf32>
    %104 = arith.addf %103, %102 : vector<128x128xf32>
    %c0_104 = arith.constant 0 : index
    %c0_105 = arith.constant 0 : index
    %105 = vector.load %arg14[%c0_104, %c0_105] : memref<512x128xf32, #tpu.memory_space<vmem>>, vector<128x128xf32>
    tpu.vector_store %arg14[%c0_104, %c0_105], %104 {strides = array<i32>} : memref<512x128xf32, #tpu.memory_space<vmem>>, vector<128x128xf32>,
    %c0_106 = arith.constant 0 : index
    %c0_107 = arith.constant 0 : index
    %106 = vector.load %arg14[%c0_106, %c0_107] : memref<512x128xf32, #tpu.memory_space<vmem>>, vector<128x128xf32>
    %cst_108 = arith.constant dense<0.000000e+00> : vector<128xf32>
    %107 = vector.multi_reduction <add>, %106, %cst_108 [0] : vector<128x128xf32> to vector<128xf32>
    %108 = vector.shape_cast %107 : vector<128xf32> to vector<1x128xf32>
    %cst_109 = arith.constant 1.280000e+02 : f32
    %109 = vector.broadcast %cst_109 : f32 to vector<1x128xf32>
    %110 = arith.divf %108, %109 : vector<1x128xf32>
    %111 = vector.broadcast %110 : vector<1x128xf32> to vector<128x128xf32>
    %112 = arith.subf %106, %111 : vector<128x128xf32>
    %113 = arith.mulf %112, %112 : vector<128x128xf32>
    %cst_110 = arith.constant dense<0.000000e+00> : vector<128xf32>
    %114 = vector.multi_reduction <add>, %113, %cst_110 [0] : vector<128x128xf32> to vector<128xf32>
    %115 = vector.shape_cast %114 : vector<128xf32> to vector<1x128xf32>
    %cst_111 = arith.constant 1.280000e+02 : f32
    %116 = vector.broadcast %cst_111 : f32 to vector<1x128xf32>
    %117 = arith.divf %115, %116 : vector<1x128xf32>
    %c0_112 = arith.constant 0 : index
    %c0_113 = arith.constant 0 : index
    %118 = vector.load %arg5[%c0_112, %c0_113] : memref<1x128xf32, #tpu.memory_space<vmem>>, vector<1x128xf32>
    %cst_114 = arith.constant 9.99999974E-6 : f32
    %119 = vector.broadcast %cst_114 : f32 to vector<1x128xf32>
    %120 = arith.addf %117, %119 : vector<1x128xf32>
    %121 = math.rsqrt %120 : vector<1x128xf32>
    %122 = arith.mulf %118, %121 : vector<1x128xf32>
    %c0_115 = arith.constant 0 : index
    %c0_116 = arith.constant 0 : index
    %123 = vector.load %arg6[%c0_115, %c0_116] : memref<1x128xf32, #tpu.memory_space<vmem>>, vector<1x128xf32>
    %124 = arith.mulf %110, %122 : vector<1x128xf32>
    %125 = arith.subf %123, %124 : vector<1x128xf32>
    %c0_117 = arith.constant 0 : index
    %c0_118 = arith.constant 0 : index
    %126 = vector.load %arg14[%c0_117, %c0_118] : memref<512x128xf32, #tpu.memory_space<vmem>>, vector<128x128xf32>
    %127 = vector.broadcast %122 : vector<1x128xf32> to vector<128x128xf32>
    %128 = arith.mulf %126, %127 : vector<128x128xf32>
    %129 = vector.broadcast %125 : vector<1x128xf32> to vector<128x128xf32>
    %130 = arith.addf %128, %129 : vector<128x128xf32>
    %cst_119 = arith.constant 0.000000e+00 : f32
    %131 = vector.broadcast %cst_119 : f32 to vector<128x128xf32>
    %132 = arith.maximumf %130, %131 : vector<128x128xf32>
    %133 = vector.shape_cast %132 : vector<128x128xf32> to vector<16x4x2x128xf32>
    %134 = vector.extract_strided_slice %133 {offsets = [0, 0, 0, 0], sizes = [16, 4, 1, 128], strides = [1, 1, 1, 1]} : vector<16x4x2x128xf32> to vector<16x4x1x128xf32>
    %135 = vector.shape_cast %134 : vector<16x4x1x128xf32> to vector<16x4x128xf32>
    %136 = vector.extract_strided_slice %133 {offsets = [0, 0, 1, 0], sizes = [16, 4, 1, 128], strides = [1, 1, 1, 1]} : vector<16x4x2x128xf32> to vector<16x4x1x128xf32>
    %137 = vector.shape_cast %136 : vector<16x4x1x128xf32> to vector<16x4x128xf32>
    %138 = arith.maximumf %135, %137 : vector<16x4x128xf32>
    %139 = vector.shape_cast %138 : vector<16x4x128xf32> to vector<8x2x4x128xf32>
    %140 = vector.extract_strided_slice %139 {offsets = [0, 0, 0, 0], sizes = [8, 1, 4, 128], strides = [1, 1, 1, 1]} : vector<8x2x4x128xf32> to vector<8x1x4x128xf32>
    %141 = vector.shape_cast %140 : vector<8x1x4x128xf32> to vector<8x4x128xf32>
    %142 = vector.extract_strided_slice %139 {offsets = [0, 1, 0, 0], sizes = [8, 1, 4, 128], strides = [1, 1, 1, 1]} : vector<8x2x4x128xf32> to vector<8x1x4x128xf32>
    %143 = vector.shape_cast %142 : vector<8x1x4x128xf32> to vector<8x4x128xf32>
    %144 = arith.maximumf %141, %143 : vector<8x4x128xf32>
    %145 = vector.shape_cast %144 : vector<8x4x128xf32> to vector<2x4x4x128xf32>
    %146 = arith.truncf %145 : vector<2x4x4x128xf32> to vector<2x4x4x128xbf16>
    %147 = vector.shape_cast %146 : vector<2x4x4x128xbf16> to vector<2x2048xbf16>
    %c0_120 = arith.constant 0 : index
    %c0_121 = arith.constant 0 : index
    %148 = vector.load %arg7[%c0_120, %c0_121] : memref<2048x128xbf16, #tpu.memory_space<vmem>>, vector<2048x128xbf16>
    %cst_122 = arith.constant dense<0.000000e+00> : vector<2x128xf32>
    %149 = tpu.matmul %147, %148, %cst_122 {dimension_numbers = #tpu.dot_dimension_numbers<[1], [0], [0], [1], [0, 0, 1, 1], [], []>} : vector<2x2048xbf16>, vector<2048x128xbf16>, vector<2x128xf32> -> vector<2x128xf32>
    %c0_123 = arith.constant 0 : index
    %c0_124 = arith.constant 0 : index
    %150 = vector.load %arg8[%c0_123, %c0_124] : memref<1x128xf32, #tpu.memory_space<vmem>>, vector<1x128xf32>
    %151 = vector.broadcast %150 : vector<1x128xf32> to vector<2x128xf32>
    %152 = arith.addf %149, %151 : vector<2x128xf32>
    %cst_125 = arith.constant 0.000000e+00 : f32
    %153 = vector.broadcast %cst_125 : f32 to vector<2x128xf32>
    %154 = arith.maximumf %152, %153 : vector<2x128xf32>
    %155 = arith.truncf %154 : vector<2x128xf32> to vector<2x128xbf16>
    %c0_126 = arith.constant 0 : index
    %c0_127 = arith.constant 0 : index
    %156 = vector.load %arg9[%c0_126, %c0_127] : memref<128x128xbf16, #tpu.memory_space<vmem>>, vector<128x128xbf16>
    %cst_128 = arith.constant dense<0.000000e+00> : vector<2x128xf32>
    %157 = tpu.matmul %155, %156, %cst_128 {dimension_numbers = #tpu.dot_dimension_numbers<[1], [0], [0], [1], [0, 0, 1, 1], [], []>} : vector<2x128xbf16>, vector<128x128xbf16>, vector<2x128xf32> -> vector<2x128xf32>
    %c0_129 = arith.constant 0 : index
    %c0_130 = arith.constant 0 : index
    %158 = vector.load %arg10[%c0_129, %c0_130] : memref<1x128xf32, #tpu.memory_space<vmem>>, vector<1x128xf32>
    %159 = vector.broadcast %158 : vector<1x128xf32> to vector<2x128xf32>
    %160 = arith.addf %157, %159 : vector<2x128xf32>
    %c0_131 = arith.constant 0 : index
    %c0_132 = arith.constant 0 : index
    %161 = vector.load %arg11[%c0_131, %c0_132] : memref<2x128xf32, #tpu.memory_space<vmem>>, vector<2x128xf32>
    tpu.vector_store %arg11[%c0_131, %c0_132], %160 {strides = array<i32>} : memref<2x128xf32, #tpu.memory_space<vmem>>, vector<2x128xf32>,
    return
  }
}

</mosaic_0001>

<llo_original>
// kernel: _lambda_.1
$region0: #{_lambda_.1}
  #allocation0 [shape = 'u32[]', space=smem, size = 0x4, offset = 0x4, fixed_abs, tag = 'smem constant byte address 0x4 - core index']
  #allocation1 [shape = 'u32[144,128]{1,0:T(1,128)}', space=vmem, size = 0x12000, scoped, tag = 'internal scratch']
  #allocation2 [shape = 'bf16[2,18,16,9]{3,2,1,0:T(16,128)(2,1)}', space=vmem, size = 0x24000, scoped, tag = 'scratch operand']
  #allocation3 [shape = 'bf16[2,10,8,384]{3,2,1,0:T(8,128)(2,1)}', space=vmem, size = 0x1e000, scoped, tag = 'scratch operand']
  #allocation4 [shape = 'f32[512,128]{1,0:T(8,128)}', space=vmem, size = 0x40000, scoped, tag = 'scratch operand']
  %s0 = inlined_call_operand.vmem [shape: bf16[2,16,16,3], index: 0, kind: input, shape index: {}]
  %s1 = inlined_call_operand.vmem [shape: bf16[3,9,128], index: 1, kind: input, shape index: {}]
  %s2 = inlined_call_operand.vmem [shape: f32[1,128], index: 2, kind: input, shape index: {}]
  %s3 = inlined_call_operand.vmem [shape: f32[1,128], index: 3, kind: input, shape index: {}, may-alias: {3,6,8,10}]
  %s4 = inlined_call_operand.hbm [shape: bf16[3,384,128], index: 4, kind: input, shape index: {}]
  %s5 = inlined_call_operand.vmem [shape: f32[1,128], index: 5, kind: input, shape index: {}]
  %s6 = inlined_call_operand.vmem [shape: f32[1,128], index: 6, kind: input, shape index: {}, may-alias: {3,6,8,10}]
  %s7 = inlined_call_operand.hbm [shape: bf16[2048,128], index: 7, kind: input, shape index: {}]
  %s8 = inlined_call_operand.vmem [shape: f32[1,128], index: 8, kind: input, shape index: {}, may-alias: {3,6,8,10}]
  %s9 = inlined_call_operand.vmem [shape: bf16[128,128], index: 9, kind: input, shape index: {}]
  %s10 = inlined_call_operand.vmem [shape: f32[1,128], index: 10, kind: input, shape index: {}, may-alias: {3,6,8,10}]
  %s11 = inlined_call_operand.hbm [shape: f32[2,128], index: 11, kind: output, shape index: {}]
  %s12 = sld [smem:[#allocation0]]
  $region62: #{_lambda_.1} parent=0
    _
  %s14 = ssub.s32 1, %s12
  %s15 = scalar_select 0, %s14, %s12
  $region1: #{_lambda_.1} parent=0
    #allocation5 [shape = 'u8[294912]{0}', space=vmem, size = 0x48000, scoped, tag = 'input window, operand 4, single buffered']
    #allocation6 [shape = 's32[1]{0}', space=sflag, size = 0x4, scoped, tag = 'scoped memory for _lambda_.1']
    #allocation7 [shape = 's32[1]{0}', space=sflag, size = 0x4, scoped, tag = 'scoped memory for _lambda_.1']
    #allocation8 [shape = 'u8[524288]{0}', space=vmem, size = 0x80000, scoped, tag = 'input window, operand 7, single buffered']
    #allocation9 [shape = 's32[1]{0}', space=sflag, size = 0x4, scoped, tag = 'scoped memory for _lambda_.1']
    #allocation10 [shape = 'u8[1024]{0}', space=vmem, size = 0x400, scoped, tag = 'output window, operand 0, single buffered']
    %16 = vsyncpa [#allocation6], 0
    %17 = vsyncpa [#allocation9], 0
    %18 = vsyncpa [#allocation7], 0
    // Predicated region
    $region2: #{_lambda_.1} parent=1 // pred_check
      _
    $region3: #{_lambda_.1} parent=1 // pred_check_branch
      %20 = sbr.rel (0) target = $region5
    $region4: #{_lambda_.1} parent=1 // pred_region
      _
    $region5: #{_lambda_.1} parent=1 // pred_fallthru
      _
    // Predicated region
    $region6: #{_lambda_.1} parent=1 // pred_check
      _
    $region7: #{_lambda_.1} parent=1 // pred_check_branch
      %22 = sbr.rel (0) target = $region9
    $region8: #{_lambda_.1} parent=1 // pred_region
      _
    $region9: #{_lambda_.1} parent=1 // pred_fallthru
      _
    // Predicated region
    $region10: #{_lambda_.1} parent=1 // pred_check
      _
    $region11: #{_lambda_.1} parent=1 // pred_check_branch
      %24 = sbr.rel (0) target = $region13
    $region12: #{_lambda_.1} parent=1 // pred_region
      _
    $region13: #{_lambda_.1} parent=1 // pred_fallthru
      _
    // Predicated region
    $region14: #{_lambda_.1} parent=1 // pred_check
      _
    $region15: #{_lambda_.1} parent=1 // pred_check_branch
      %26 = sbr.rel (0) target = $region17
    $region16: #{_lambda_.1} parent=1 // pred_region
      _
    $region17: #{_lambda_.1} parent=1 // pred_fallthru
      _
    // Predicated region
    $region18: #{_lambda_.1} parent=1 // pred_check
      _
    $region19: #{_lambda_.1} parent=1 // pred_check_branch
      %28 = sbr.rel (0) target = $region21
    $region20: #{_lambda_.1} parent=1 // pred_region
      %s30 = ssub.s32 9216, 9216
      %31 = vsyncadd [#allocation6], %s30
      %s32 = sshll.u32 [#allocation5], 4
      %s33 = int_to_ptr.vmem [resolvable:$true] %s32
      %38 = dma.hbm_to_vmem [thread:$0]  %s4, 9216, %s33, [#allocation6], 64, 64, 4
    $region21: #{_lambda_.1} parent=1 // pred_fallthru
      _
    // Predicated region
    $region22: #{_lambda_.1} parent=1 // pred_check
      _
    $region23: #{_lambda_.1} parent=1 // pred_check_branch
      %40 = sbr.rel (0) target = $region25
    $region24: #{_lambda_.1} parent=1 // pred_region
      _
    $region25: #{_lambda_.1} parent=1 // pred_fallthru
      _
    // Predicated region
    $region26: #{_lambda_.1} parent=1 // pred_check
      _
    $region27: #{_lambda_.1} parent=1 // pred_check_branch
      %42 = sbr.rel (0) target = $region29
    $region28: #{_lambda_.1} parent=1 // pred_region
      _
    $region29: #{_lambda_.1} parent=1 // pred_fallthru
      _
    // Predicated region
    $region30: #{_lambda_.1} parent=1 // pred_check
      _
    $region31: #{_lambda_.1} parent=1 // pred_check_branch
      %44 = sbr.rel (0) target = $region33
    $region32: #{_lambda_.1} parent=1 // pred_region
      %s46 = ssub.s32 16384, 16384
      %47 = vsyncadd [#allocation9], %s46
      %s48 = sshll.u32 [#allocation8], 4
      %s49 = int_to_ptr.vmem [resolvable:$true] %s48
      %54 = dma.hbm_to_vmem [thread:$0]  %s7, 16384, %s49, [#allocation9], 64, 64, 4
    $region33: #{_lambda_.1} parent=1 // pred_fallthru
      _
    // Predicated region
    $region34: #{_lambda_.1} parent=1 // pred_check
      _
    $region35: #{_lambda_.1} parent=1 // pred_check_branch
      %56 = sbr.rel (0) target = $region37
    $region36: #{_lambda_.1} parent=1 // pred_region
      _
    $region37: #{_lambda_.1} parent=1 // pred_fallthru
      _
    // Predicated region
    $region38: #{_lambda_.1} parent=1 // pred_check
      _
    $region39: #{_lambda_.1} parent=1 // pred_check_branch
      %58 = sbr.rel (0) target = $region41
    $region40: #{_lambda_.1} parent=1 // pred_region
      _
    $region41: #{_lambda_.1} parent=1 // pred_fallthru
      _
    // Predicated region
    $region42: #{_lambda_.1} parent=1 // pred_check
      _
    $region43: #{_lambda_.1} parent=1 // pred_check_branch
      %60 = sbr.rel (0) target = $region45
    $region44: #{_lambda_.1} parent=1 // pred_region
      _
    $region45: #{_lambda_.1} parent=1 // pred_fallthru
      _
    // Predicated region
    $region46: #{_lambda_.1} parent=1 // pred_check
      _
    $region47: #{_lambda_.1} parent=1 // pred_check_branch
      %62 = sbr.rel (0) target = $region49
    $region48: #{_lambda_.1} parent=1 // pred_region
      %63 = dma.done [#allocation6], 9216
    $region49: #{_lambda_.1} parent=1 // pred_fallthru
      _
    // Predicated region
    $region50: #{_lambda_.1} parent=1 // pred_check
      _
    $region51: #{_lambda_.1} parent=1 // pred_check_branch
      %65 = sbr.rel (0) target = $region53
    $region52: #{_lambda_.1} parent=1 // pred_region
      %66 = dma.done [#allocation9], 16384
    $region53: #{_lambda_.1} parent=1 // pred_fallthru
      _
    %v68 = vld [vmem:[%s0] sm:$0xf]
    %v69 = vld [vmem:[%s0 + $0x4] sm:$0xf]
    %v70 = vld [vmem:[%s0 + $0x8] sm:$0xf]
    %v71 = vld [vmem:[%s0 + $0xc] sm:$0xf]
    %v72 = vld [vmem:[%s0 + $0x10] sm:$0xf]
    %v73 = vld [vmem:[%s0 + $0x14] sm:$0xf]
    %v74 = vld [vmem:[%s0 + $0x18] sm:$0xf]
    %v75 = vld [vmem:[%s0 + $0x1c] sm:$0xf]
    %v76 = vld [vmem:[%s0 + $0x20] sm:$0xf]
    %v77 = vld [vmem:[%s0 + $0x24] sm:$0xf]
    %v78 = vld [vmem:[%s0 + $0x28] sm:$0xf]
    %v79 = vld [vmem:[%s0 + $0x2c] sm:$0xf]
    %v80 = vld [vmem:[%s0 + $0x30] sm:$0xf]
    %v81 = vld [vmem:[%s0 + $0x34] sm:$0xf]
    %v82 = vld [vmem:[%s0 + $0x38] sm:$0xf]
    %v83 = vld [vmem:[%s0 + $0x3c] sm:$0xf]
    %v84 = vld [vmem:[%s0 + $0x40] sm:$0xf]
    %v85 = vld [vmem:[%s0 + $0x44] sm:$0xf]
    %v86 = vld [vmem:[%s0 + $0x48] sm:$0xf]
    %v87 = vld [vmem:[%s0 + $0x4c] sm:$0xf]
    %v88 = vld [vmem:[%s0 + $0x50] sm:$0xf]
    %v89 = vld [vmem:[%s0 + $0x54] sm:$0xf]
    %v90 = vld [vmem:[%s0 + $0x58] sm:$0xf]
    %v91 = vld [vmem:[%s0 + $0x5c] sm:$0xf]
    %v92 = vld [vmem:[%s0 + $0x60] sm:$0xf]
    %v93 = vld [vmem:[%s0 + $0x64] sm:$0xf]
    %v94 = vld [vmem:[%s0 + $0x68] sm:$0xf]
    %v95 = vld [vmem:[%s0 + $0x6c] sm:$0xf]
    %v96 = vld [vmem:[%s0 + $0x70] sm:$0xf]
    %v97 = vld [vmem:[%s0 + $0x74] sm:$0xf]
    %v98 = vld [vmem:[%s0 + $0x78] sm:$0xf]
    %v99 = vld [vmem:[%s0 + $0x7c] sm:$0xf]
    %v100 = vld [vmem:[%s0 + $0x80] sm:$0xf]
    %v101 = vld [vmem:[%s0 + $0x84] sm:$0xf]
    %v102 = vld [vmem:[%s0 + $0x88] sm:$0xf]
    %v103 = vld [vmem:[%s0 + $0x8c] sm:$0xf]
    %v104 = vld [vmem:[%s0 + $0x90] sm:$0xf]
    %v105 = vld [vmem:[%s0 + $0x94] sm:$0xf]
    %v106 = vld [vmem:[%s0 + $0x98] sm:$0xf]
    %v107 = vld [vmem:[%s0 + $0x9c] sm:$0xf]
    %v108 = vld [vmem:[%s0 + $0xa0] sm:$0xf]
    %v109 = vld [vmem:[%s0 + $0xa4] sm:$0xf]
    %v110 = vld [vmem:[%s0 + $0xa8] sm:$0xf]
    %v111 = vld [vmem:[%s0 + $0xac] sm:$0xf]
    %v112 = vld [vmem:[%s0 + $0xb0] sm:$0xf]
    %v113 = vld [vmem:[%s0 + $0xb4] sm:$0xf]
    %v114 = vld [vmem:[%s0 + $0xb8] sm:$0xf]
    %v115 = vld [vmem:[%s0 + $0xbc] sm:$0xf]
    %v116 = vld [vmem:[%s0 + $0xc0] sm:$0xf]
    %v117 = vld [vmem:[%s0 + $0xc4] sm:$0xf]
    %v118 = vld [vmem:[%s0 + $0xc8] sm:$0xf]
    %v119 = vld [vmem:[%s0 + $0xcc] sm:$0xf]
    %v120 = vld [vmem:[%s0 + $0xd0] sm:$0xf]
    %v121 = vld [vmem:[%s0 + $0xd4] sm:$0xf]
    %v122 = vld [vmem:[%s0 + $0xd8] sm:$0xf]
    %v123 = vld [vmem:[%s0 + $0xdc] sm:$0xf]
    %v124 = vld [vmem:[%s0 + $0xe0] sm:$0xf]
    %v125 = vld [vmem:[%s0 + $0xe4] sm:$0xf]
    %v126 = vld [vmem:[%s0 + $0xe8] sm:$0xf]
    %v127 = vld [vmem:[%s0 + $0xec] sm:$0xf]
    %v128 = vld [vmem:[%s0 + $0xf0] sm:$0xf]
    %v129 = vld [vmem:[%s0 + $0xf4] sm:$0xf]
    %v130 = vld [vmem:[%s0 + $0xf8] sm:$0xf]
    %v131 = vld [vmem:[%s0 + $0xfc] sm:$0xf]
    %v196 = vunpack.c.l.b16 %v68
    %v197 = vunpack.c.l.b16 %v69
    %v198 = vunpack.c.l.b16 %v70
    %v199 = vunpack.c.l.b16 %v71
    %v200 = vunpack.c.l.b16 %v72
    %v201 = vunpack.c.l.b16 %v73
    %v202 = vunpack.c.l.b16 %v74
    %v203 = vunpack.c.l.b16 %v75
    %v204 = vunpack.c.l.b16 %v76
    %v205 = vunpack.c.l.b16 %v77
    %v206 = vunpack.c.l.b16 %v78
    %v207 = vunpack.c.l.b16 %v79
    %v208 = vunpack.c.l.b16 %v80
    %v209 = vunpack.c.l.b16 %v81
    %v210 = vunpack.c.l.b16 %v82
    %v211 = vunpack.c.l.b16 %v83
    %v212 = vunpack.c.l.b16 %v84
    %v213 = vunpack.c.l.b16 %v85
    %v214 = vunpack.c.l.b16 %v86
    %v215 = vunpack.c.l.b16 %v87
    %v216 = vunpack.c.l.b16 %v88
    %v217 = vunpack.c.l.b16 %v89
    %v218 = vunpack.c.l.b16 %v90
    %v219 = vunpack.c.l.b16 %v91
    %v220 = vunpack.c.l.b16 %v92
    %v221 = vunpack.c.l.b16 %v93
    %v222 = vunpack.c.l.b16 %v94
    %v223 = vunpack.c.l.b16 %v95
    %v224 = vunpack.c.l.b16 %v96
    %v225 = vunpack.c.l.b16 %v97
    %v226 = vunpack.c.l.b16 %v98
    %v227 = vunpack.c.l.b16 %v99
    %v228 = vunpack.c.l.b16 %v100
    %v229 = vunpack.c.l.b16 %v101
    %v230 = vunpack.c.l.b16 %v102
    %v231 = vunpack.c.l.b16 %v103
    %v232 = vunpack.c.l.b16 %v104
    %v233 = vunpack.c.l.b16 %v105
    %v234 = vunpack.c.l.b16 %v106
    %v235 = vunpack.c.l.b16 %v107
    %v236 = vunpack.c.l.b16 %v108
    %v237 = vunpack.c.l.b16 %v109
    %v238 = vunpack.c.l.b16 %v110
    %v239 = vunpack.c.l.b16 %v111
    %v240 = vunpack.c.l.b16 %v112
    %v241 = vunpack.c.l.b16 %v113
    %v242 = vunpack.c.l.b16 %v114
    %v243 = vunpack.c.l.b16 %v115
    %v244 = vunpack.c.l.b16 %v116
    %v245 = vunpack.c.l.b16 %v117
    %v246 = vunpack.c.l.b16 %v118
    %v247 = vunpack.c.l.b16 %v119
    %v248 = vunpack.c.l.b16 %v120
    %v249 = vunpack.c.l.b16 %v121
    %v250 = vunpack.c.l.b16 %v122
    %v251 = vunpack.c.l.b16 %v123
    %v252 = vunpack.c.l.b16 %v124
    %v253 = vunpack.c.l.b16 %v125
    %v254 = vunpack.c.l.b16 %v126
    %v255 = vunpack.c.l.b16 %v127
    %v256 = vunpack.c.l.b16 %v128
    %v257 = vunpack.c.l.b16 %v129
    %v258 = vunpack.c.l.b16 %v130
    %v259 = vunpack.c.l.b16 %v131
    %v260 = vpack.c.b16 %v197, %v196
    %v261 = vpack.c.b16 %v199, %v198
    %v262 = vpack.c.b16 %v201, %v200
    %v263 = vpack.c.b16 %v203, %v202
    %v264 = vpack.c.b16 %v205, %v204
    %v265 = vpack.c.b16 %v207, %v206
    %v266 = vpack.c.b16 %v209, %v208
    %v267 = vpack.c.b16 %v211, %v210
    %v268 = vpack.c.b16 %v213, %v212
    %v269 = vpack.c.b16 %v215, %v214
    %v270 = vpack.c.b16 %v217, %v216
    %v271 = vpack.c.b16 %v219, %v218
    %v272 = vpack.c.b16 %v221, %v220
    %v273 = vpack.c.b16 %v223, %v222
    %v274 = vpack.c.b16 %v225, %v224
    %v275 = vpack.c.b16 %v227, %v226
    %v276 = vpack.c.b16 %v229, %v228
    %v277 = vpack.c.b16 %v231, %v230
    %v278 = vpack.c.b16 %v233, %v232
    %v279 = vpack.c.b16 %v235, %v234
    %v280 = vpack.c.b16 %v237, %v236
    %v281 = vpack.c.b16 %v239, %v238
    %v282 = vpack.c.b16 %v241, %v240
    %v283 = vpack.c.b16 %v243, %v242
    %v284 = vpack.c.b16 %v245, %v244
    %v285 = vpack.c.b16 %v247, %v246
    %v286 = vpack.c.b16 %v249, %v248
    %v287 = vpack.c.b16 %v251, %v250
    %v288 = vpack.c.b16 %v253, %v252
    %v289 = vpack.c.b16 %v255, %v254
    %v290 = vpack.c.b16 %v257, %v256
    %v291 = vpack.c.b16 %v259, %v258
    %v293 = vshrl.u32 %v260, 16
    %v295 = vrot.slane %v293, 7
    %v296 = vshll.u32 %v260, 16
    %v298 = vor.u32 %v295, %v296
    %v300 = vshrl.u32 %v261, 16
    %v302 = vrot.slane %v300, 7
    %v303 = vshll.u32 %v261, 16
    %v305 = vor.u32 %v302, %v303
    %v307 = vshrl.u32 %v262, 16
    %v309 = vrot.slane %v307, 7
    %v310 = vshll.u32 %v262, 16
    %v312 = vor.u32 %v309, %v310
    %v314 = vshrl.u32 %v263, 16
    %v316 = vrot.slane %v314, 7
    %v317 = vshll.u32 %v263, 16
    %v319 = vor.u32 %v316, %v317
    %v321 = vshrl.u32 %v264, 16
    %v323 = vrot.slane %v321, 7
    %v324 = vshll.u32 %v264, 16
    %v326 = vor.u32 %v323, %v324
    %v328 = vshrl.u32 %v265, 16
    %v330 = vrot.slane %v328, 7
    %v331 = vshll.u32 %v265, 16
    %v333 = vor.u32 %v330, %v331
    %v335 = vshrl.u32 %v266, 16
    %v337 = vrot.slane %v335, 7
    %v338 = vshll.u32 %v266, 16
    %v340 = vor.u32 %v337, %v338
    %v342 = vshrl.u32 %v267, 16
    %v344 = vrot.slane %v342, 7
    %v345 = vshll.u32 %v267, 16
    %v347 = vor.u32 %v344, %v345
    %v349 = vshrl.u32 %v268, 16
    %v351 = vrot.slane %v349, 7
    %v352 = vshll.u32 %v268, 16
    %v354 = vor.u32 %v351, %v352
    %v356 = vshrl.u32 %v269, 16
    %v358 = vrot.slane %v356, 7
    %v359 = vshll.u32 %v269, 16
    %v361 = vor.u32 %v358, %v359
    %v363 = vshrl.u32 %v270, 16
    %v365 = vrot.slane %v363, 7
    %v366 = vshll.u32 %v270, 16
    %v368 = vor.u32 %v365, %v366
    %v370 = vshrl.u32 %v271, 16
    %v372 = vrot.slane %v370, 7
    %v373 = vshll.u32 %v271, 16
    %v375 = vor.u32 %v372, %v373
    %v377 = vshrl.u32 %v272, 16
    %v379 = vrot.slane %v377, 7
    %v380 = vshll.u32 %v272, 16
    %v382 = vor.u32 %v379, %v380
    %v384 = vshrl.u32 %v273, 16
    %v386 = vrot.slane %v384, 7
    %v387 = vshll.u32 %v273, 16
    %v389 = vor.u32 %v386, %v387
    %v391 = vshrl.u32 %v274, 16
    %v393 = vrot.slane %v391, 7
    %v394 = vshll.u32 %v274, 16
    %v396 = vor.u32 %v393, %v394
    %v398 = vshrl.u32 %v275, 16
    %v400 = vrot.slane %v398, 7
    %v401 = vshll.u32 %v275, 16
    %v403 = vor.u32 %v400, %v401
    %v405 = vshrl.u32 %v276, 16
    %v407 = vrot.slane %v405, 7
    %v408 = vshll.u32 %v276, 16
    %v410 = vor.u32 %v407, %v408
    %v412 = vshrl.u32 %v277, 16
    %v414 = vrot.slane %v412, 7
    %v415 = vshll.u32 %v277, 16
    %v417 = vor.u32 %v414, %v415
    %v419 = vshrl.u32 %v278, 16
    %v421 = vrot.slane %v419, 7
    %v422 = vshll.u32 %v278, 16
    %v424 = vor.u32 %v421, %v422
    %v426 = vshrl.u32 %v279, 16
    %v428 = vrot.slane %v426, 7
    %v429 = vshll.u32 %v279, 16
    %v431 = vor.u32 %v428, %v429
    %v433 = vshrl.u32 %v280, 16
    %v435 = vrot.slane %v433, 7
    %v436 = vshll.u32 %v280, 16
    %v438 = vor.u32 %v435, %v436
    %v440 = vshrl.u32 %v281, 16
    %v442 = vrot.slane %v440, 7
    %v443 = vshll.u32 %v281, 16
    %v445 = vor.u32 %v442, %v443
    %v447 = vshrl.u32 %v282, 16
    %v449 = vrot.slane %v447, 7
    %v450 = vshll.u32 %v282, 16
    %v452 = vor.u32 %v449, %v450
    %v454 = vshrl.u32 %v283, 16
    %v456 = vrot.slane %v454, 7
    %v457 = vshll.u32 %v283, 16
    %v459 = vor.u32 %v456, %v457
    %v461 = vshrl.u32 %v284, 16
    %v463 = vrot.slane %v461, 7
    %v464 = vshll.u32 %v284, 16
    %v466 = vor.u32 %v463, %v464
    %v468 = vshrl.u32 %v285, 16
    %v470 = vrot.slane %v468, 7
    %v471 = vshll.u32 %v285, 16
    %v473 = vor.u32 %v470, %v471
    %v475 = vshrl.u32 %v286, 16
    %v477 = vrot.slane %v475, 7
    %v478 = vshll.u32 %v286, 16
    %v480 = vor.u32 %v477, %v478
    %v482 = vshrl.u32 %v287, 16
    %v484 = vrot.slane %v482, 7
    %v485 = vshll.u32 %v287, 16
    %v487 = vor.u32 %v484, %v485
    %v489 = vshrl.u32 %v288, 16
    %v491 = vrot.slane %v489, 7
    %v492 = vshll.u32 %v288, 16
    %v494 = vor.u32 %v491, %v492
    %v496 = vshrl.u32 %v289, 16
    %v498 = vrot.slane %v496, 7
    %v499 = vshll.u32 %v289, 16
    %v501 = vor.u32 %v498, %v499
    %v503 = vshrl.u32 %v290, 16
    %v505 = vrot.slane %v503, 7
    %v506 = vshll.u32 %v290, 16
    %v508 = vor.u32 %v505, %v506
    %v510 = vshrl.u32 %v291, 16
    %v512 = vrot.slane %v510, 7
    %v513 = vshll.u32 %v291, 16
    %v515 = vor.u32 %v512, %v513
    %vm580 = vcmask 1040384
    %vm581 = vsmask.f32 256
    %vm582 = vmand %vm580, %vm581
    %v583 = vsel %vm582, 0, %v298
    %v584 = vsel %vm582, 0, %v305
    %v585 = vsel %vm582, 0, %v312
    %v586 = vsel %vm582, 0, %v319
    %v587 = vsel %vm582, 0, %v326
    %v588 = vsel %vm582, 0, %v333
    %v589 = vsel %vm582, 0, %v340
    %v590 = vsel %vm582, 0, %v347
    %v591 = vsel %vm582, 0, %v354
    %v592 = vsel %vm582, 0, %v361
    %v593 = vsel %vm582, 0, %v368
    %v594 = vsel %vm582, 0, %v375
    %v595 = vsel %vm582, 0, %v382
    %v596 = vsel %vm582, 0, %v389
    %v597 = vsel %vm582, 0, %v396
    %v598 = vsel %vm582, 0, %v403
    %v599 = vsel %vm582, 0, %v410
    %v600 = vsel %vm582, 0, %v417
    %v601 = vsel %vm582, 0, %v424
    %v602 = vsel %vm582, 0, %v431
    %v603 = vsel %vm582, 0, %v438
    %v604 = vsel %vm582, 0, %v445
    %v605 = vsel %vm582, 0, %v452
    %v606 = vsel %vm582, 0, %v459
    %v607 = vsel %vm582, 0, %v466
    %v608 = vsel %vm582, 0, %v473
    %v609 = vsel %vm582, 0, %v480
    %v610 = vsel %vm582, 0, %v487
    %v611 = vsel %vm582, 0, %v494
    %v612 = vsel %vm582, 0, %v501
    %v613 = vsel %vm582, 0, %v508
    %v614 = vsel %vm582, 0, %v515
    %v615 = vsel %vm582, %v295, 0
    %v616 = vsel %vm582, %v302, 0
    %v617 = vsel %vm582, %v309, 0
    %v618 = vsel %vm582, %v316, 0
    %v619 = vsel %vm582, %v323, 0
    %v620 = vsel %vm582, %v330, 0
    %v621 = vsel %vm582, %v337, 0
    %v622 = vsel %vm582, %v344, 0
    %v623 = vsel %vm582, %v351, 0
    %v624 = vsel %vm582, %v358, 0
    %v625 = vsel %vm582, %v365, 0
    %v626 = vsel %vm582, %v372, 0
    %v627 = vsel %vm582, %v379, 0
    %v628 = vsel %vm582, %v386, 0
    %v629 = vsel %vm582, %v393, 0
    %v630 = vsel %vm582, %v400, 0
    %v631 = vsel %vm582, %v407, 0
    %v632 = vsel %vm582, %v414, 0
    %v633 = vsel %vm582, %v421, 0
    %v634 = vsel %vm582, %v428, 0
    %v635 = vsel %vm582, %v435, 0
    %v636 = vsel %vm582, %v442, 0
    %v637 = vsel %vm582, %v449, 0
    %v638 = vsel %vm582, %v456, 0
    %v639 = vsel %vm582, %v463, 0
    %v640 = vsel %vm582, %v470, 0
    %v641 = vsel %vm582, %v477, 0
    %v642 = vsel %vm582, %v484, 0
    %v643 = vsel %vm582, %v491, 0
    %v644 = vsel %vm582, %v498, 0
    %v645 = vsel %vm582, %v505, 0
    %v646 = vsel %vm582, %v512, 0
    %vm647 = vcmask 23552
    %648 = vst.msk [vmem:[#allocation2] sm:$0xff] %vm647, 0
    %649 = vst.msk [vmem:[#allocation2 + $0x8] sm:$0xff] %vm647, %v583
    %650 = vst.msk [vmem:[#allocation2 + $0x10] sm:$0xff] %vm647, %v584
    %651 = vst.msk [vmem:[#allocation2 + $0x18] sm:$0xff] %vm647, %v585
    %652 = vst.msk [vmem:[#allocation2 + $0x20] sm:$0xff] %vm647, %v586
    %653 = vst.msk [vmem:[#allocation2 + $0x28] sm:$0xff] %vm647, %v587
    %654 = vst.msk [vmem:[#allocation2 + $0x30] sm:$0xff] %vm647, %v588
    %655 = vst.msk [vmem:[#allocation2 + $0x38] sm:$0xff] %vm647, %v589
    %656 = vst.msk [vmem:[#allocation2 + $0x40] sm:$0xff] %vm647, %v590
    %657 = vst.msk [vmem:[#allocation2 + $0x48] sm:$0xff] %vm647, %v591
    %658 = vst.msk [vmem:[#allocation2 + $0x50] sm:$0xff] %vm647, %v592
    %659 = vst.msk [vmem:[#allocation2 + $0x58] sm:$0xff] %vm647, %v593
    %660 = vst.msk [vmem:[#allocation2 + $0x60] sm:$0xff] %vm647, %v594
    %661 = vst.msk [vmem:[#allocation2 + $0x68] sm:$0xff] %vm647, %v595
    %662 = vst.msk [vmem:[#allocation2 + $0x70] sm:$0xff] %vm647, %v596
    %663 = vst.msk [vmem:[#allocation2 + $0x78] sm:$0xff] %vm647, %v597
    %664 = vst.msk [vmem:[#allocation2 + $0x80] sm:$0xff] %vm647, %v598
    %665 = vst.msk [vmem:[#allocation2 + $0x88] sm:$0xff] %vm647, 0
    %666 = vst.msk [vmem:[#allocation2 + $0x90] sm:$0xff] %vm647, 0
    %667 = vst.msk [vmem:[#allocation2 + $0x98] sm:$0xff] %vm647, %v599
    %668 = vst.msk [vmem:[#allocation2 + $0xa0] sm:$0xff] %vm647, %v600
    %669 = vst.msk [vmem:[#allocation2 + $0xa8] sm:$0xff] %vm647, %v601
    %670 = vst.msk [vmem:[#allocation2 + $0xb0] sm:$0xff] %vm647, %v602
    %671 = vst.msk [vmem:[#allocation2 + $0xb8] sm:$0xff] %vm647, %v603
    %672 = vst.msk [vmem:[#allocation2 + $0xc0] sm:$0xff] %vm647, %v604
    %673 = vst.msk [vmem:[#allocation2 + $0xc8] sm:$0xff] %vm647, %v605
    %674 = vst.msk [vmem:[#allocation2 + $0xd0] sm:$0xff] %vm647, %v606
    %675 = vst.msk [vmem:[#allocation2 + $0xd8] sm:$0xff] %vm647, %v607
    %676 = vst.msk [vmem:[#allocation2 + $0xe0] sm:$0xff] %vm647, %v608
    %677 = vst.msk [vmem:[#allocation2 + $0xe8] sm:$0xff] %vm647, %v609
    %678 = vst.msk [vmem:[#allocation2 + $0xf0] sm:$0xff] %vm647, %v610
    %679 = vst.msk [vmem:[#allocation2 + $0xf8] sm:$0xff] %vm647, %v611
    %680 = vst.msk [vmem:[#allocation2 + $0x100] sm:$0xff] %vm647, %v612
    %681 = vst.msk [vmem:[#allocation2 + $0x108] sm:$0xff] %vm647, %v613
    %682 = vst.msk [vmem:[#allocation2 + $0x110] sm:$0xff] %vm647, %v614
    %683 = vst.msk [vmem:[#allocation2 + $0x118] sm:$0xff] %vm647, 0
    %vm684 = vsmask.f32 7424
    %v686 = vshrl.u32 0, 16
    %v688 = vshll.u32 0, 16
    %v690 = vrot.slane %v688, 1
    %v691 = vor.u32 %v686, %v690
    %v692 = vsel %vm684, %v691, %v690
    %v694 = vshrl.u32 %v583, 16
    %v696 = vshll.u32 %v583, 16
    %v698 = vrot.slane %v696, 1
    %v699 = vor.u32 %v694, %v698
    %v701 = vshll.u32 %v615, 16
    %v703 = vrot.slane %v701, 1
    %v704 = vsel %vm684, %v699, %v703
    %v706 = vshrl.u32 %v584, 16
    %v708 = vshll.u32 %v584, 16
    %v710 = vrot.slane %v708, 1
    %v711 = vor.u32 %v706, %v710
    %v713 = vshll.u32 %v616, 16
    %v715 = vrot.slane %v713, 1
    %v716 = vsel %vm684, %v711, %v715
    %v718 = vshrl.u32 %v585, 16
    %v720 = vshll.u32 %v585, 16
    %v722 = vrot.slane %v720, 1
    %v723 = vor.u32 %v718, %v722
    %v725 = vshll.u32 %v617, 16
    %v727 = vrot.slane %v725, 1
    %v728 = vsel %vm684, %v723, %v727
    %v730 = vshrl.u32 %v586, 16
    %v732 = vshll.u32 %v586, 16
    %v734 = vrot.slane %v732, 1
    %v735 = vor.u32 %v730, %v734
    %v737 = vshll.u32 %v618, 16
    %v739 = vrot.slane %v737, 1
    %v740 = vsel %vm684, %v735, %v739
    %v742 = vshrl.u32 %v587, 16
    %v744 = vshll.u32 %v587, 16
    %v746 = vrot.slane %v744, 1
    %v747 = vor.u32 %v742, %v746
    %v749 = vshll.u32 %v619, 16
    %v751 = vrot.slane %v749, 1
    %v752 = vsel %vm684, %v747, %v751
    %v754 = vshrl.u32 %v588, 16
    %v756 = vshll.u32 %v588, 16
    %v758 = vrot.slane %v756, 1
    %v759 = vor.u32 %v754, %v758
    %v761 = vshll.u32 %v620, 16
    %v763 = vrot.slane %v761, 1
    %v764 = vsel %vm684, %v759, %v763
    %v766 = vshrl.u32 %v589, 16
    %v768 = vshll.u32 %v589, 16
    %v770 = vrot.slane %v768, 1
    %v771 = vor.u32 %v766, %v770
    %v773 = vshll.u32 %v621, 16
    %v775 = vrot.slane %v773, 1
    %v776 = vsel %vm684, %v771, %v775
    %v778 = vshrl.u32 %v590, 16
    %v780 = vshll.u32 %v590, 16
    %v782 = vrot.slane %v780, 1
    %v783 = vor.u32 %v778, %v782
    %v785 = vshll.u32 %v622, 16
    %v787 = vrot.slane %v785, 1
    %v788 = vsel %vm684, %v783, %v787
    %v790 = vshrl.u32 %v591, 16
    %v792 = vshll.u32 %v591, 16
    %v794 = vrot.slane %v792, 1
    %v795 = vor.u32 %v790, %v794
    %v797 = vshll.u32 %v623, 16
    %v799 = vrot.slane %v797, 1
    %v800 = vsel %vm684, %v795, %v799
    %v802 = vshrl.u32 %v592, 16
    %v804 = vshll.u32 %v592, 16
    %v806 = vrot.slane %v804, 1
    %v807 = vor.u32 %v802, %v806
    %v809 = vshll.u32 %v624, 16
    %v811 = vrot.slane %v809, 1
    %v812 = vsel %vm684, %v807, %v811
    %v814 = vshrl.u32 %v593, 16
    %v816 = vshll.u32 %v593, 16
    %v818 = vrot.slane %v816, 1
    %v819 = vor.u32 %v814, %v818
    %v821 = vshll.u32 %v625, 16
    %v823 = vrot.slane %v821, 1
    %v824 = vsel %vm684, %v819, %v823
    %v826 = vshrl.u32 %v594, 16
    %v828 = vshll.u32 %v594, 16
    %v830 = vrot.slane %v828, 1
    %v831 = vor.u32 %v826, %v830
    %v833 = vshll.u32 %v626, 16
    %v835 = vrot.slane %v833, 1
    %v836 = vsel %vm684, %v831, %v835
    %v838 = vshrl.u32 %v595, 16
    %v840 = vshll.u32 %v595, 16
    %v842 = vrot.slane %v840, 1
    %v843 = vor.u32 %v838, %v842
    %v845 = vshll.u32 %v627, 16
    %v847 = vrot.slane %v845, 1
    %v848 = vsel %vm684, %v843, %v847
    %v850 = vshrl.u32 %v596, 16
    %v852 = vshll.u32 %v596, 16
    %v854 = vrot.slane %v852, 1
    %v855 = vor.u32 %v850, %v854
    %v857 = vshll.u32 %v628, 16
    %v859 = vrot.slane %v857, 1
    %v860 = vsel %vm684, %v855, %v859
    %v862 = vshrl.u32 %v597, 16
    %v864 = vshll.u32 %v597, 16
    %v866 = vrot.slane %v864, 1
    %v867 = vor.u32 %v862, %v866
    %v869 = vshll.u32 %v629, 16
    %v871 = vrot.slane %v869, 1
    %v872 = vsel %vm684, %v867, %v871
    %v874 = vshrl.u32 %v598, 16
    %v876 = vshll.u32 %v598, 16
    %v878 = vrot.slane %v876, 1
    %v879 = vor.u32 %v874, %v878
    %v881 = vshll.u32 %v630, 16
    %v883 = vrot.slane %v881, 1
    %v884 = vsel %vm684, %v879, %v883
    %v886 = vshrl.u32 %v599, 16
    %v888 = vshll.u32 %v599, 16
    %v890 = vrot.slane %v888, 1
    %v891 = vor.u32 %v886, %v890
    %v893 = vshll.u32 %v631, 16
    %v895 = vrot.slane %v893, 1
    %v896 = vsel %vm684, %v891, %v895
    %v898 = vshrl.u32 %v600, 16
    %v900 = vshll.u32 %v600, 16
    %v902 = vrot.slane %v900, 1
    %v903 = vor.u32 %v898, %v902
    %v905 = vshll.u32 %v632, 16
    %v907 = vrot.slane %v905, 1
    %v908 = vsel %vm684, %v903, %v907
    %v910 = vshrl.u32 %v601, 16
    %v912 = vshll.u32 %v601, 16
    %v914 = vrot.slane %v912, 1
    %v915 = vor.u32 %v910, %v914
    %v917 = vshll.u32 %v633, 16
    %v919 = vrot.slane %v917, 1
    %v920 = vsel %vm684, %v915, %v919
    %v922 = vshrl.u32 %v602, 16
    %v924 = vshll.u32 %v602, 16
    %v926 = vrot.slane %v924, 1
    %v927 = vor.u32 %v922, %v926
    %v929 = vshll.u32 %v634, 16
    %v931 = vrot.slane %v929, 1
    %v932 = vsel %vm684, %v927, %v931
    %v934 = vshrl.u32 %v603, 16
    %v936 = vshll.u32 %v603, 16
    %v938 = vrot.slane %v936, 1
    %v939 = vor.u32 %v934, %v938
    %v941 = vshll.u32 %v635, 16
    %v943 = vrot.slane %v941, 1
    %v944 = vsel %vm684, %v939, %v943
    %v946 = vshrl.u32 %v604, 16
    %v948 = vshll.u32 %v604, 16
    %v950 = vrot.slane %v948, 1
    %v951 = vor.u32 %v946, %v950
    %v953 = vshll.u32 %v636, 16
    %v955 = vrot.slane %v953, 1
    %v956 = vsel %vm684, %v951, %v955
    %v958 = vshrl.u32 %v605, 16
    %v960 = vshll.u32 %v605, 16
    %v962 = vrot.slane %v960, 1
    %v963 = vor.u32 %v958, %v962
    %v965 = vshll.u32 %v637, 16
    %v967 = vrot.slane %v965, 1
    %v968 = vsel %vm684, %v963, %v967
    %v970 = vshrl.u32 %v606, 16
    %v972 = vshll.u32 %v606, 16
    %v974 = vrot.slane %v972, 1
    %v975 = vor.u32 %v970, %v974
    %v977 = vshll.u32 %v638, 16
    %v979 = vrot.slane %v977, 1
    %v980 = vsel %vm684, %v975, %v979
    %v982 = vshrl.u32 %v607, 16
    %v984 = vshll.u32 %v607, 16
    %v986 = vrot.slane %v984, 1
    %v987 = vor.u32 %v982, %v986
    %v989 = vshll.u32 %v639, 16
    %v991 = vrot.slane %v989, 1
    %v992 = vsel %vm684, %v987, %v991
    %v994 = vshrl.u32 %v608, 16
    %v996 = vshll.u32 %v608, 16
    %v998 = vrot.slane %v996, 1
    %v999 = vor.u32 %v994, %v998
    %v1001 = vshll.u32 %v640, 16
    %v1003 = vrot.slane %v1001, 1
    %v1004 = vsel %vm684, %v999, %v1003
    %v1006 = vshrl.u32 %v609, 16
    %v1008 = vshll.u32 %v609, 16
    %v1010 = vrot.slane %v1008, 1
    %v1011 = vor.u32 %v1006, %v1010
    %v1013 = vshll.u32 %v641, 16
    %v1015 = vrot.slane %v1013, 1
    %v1016 = vsel %vm684, %v1011, %v1015
    %v1018 = vshrl.u32 %v610, 16
    %v1020 = vshll.u32 %v610, 16
    %v1022 = vrot.slane %v1020, 1
    %v1023 = vor.u32 %v1018, %v1022
    %v1025 = vshll.u32 %v642, 16
    %v1027 = vrot.slane %v1025, 1
    %v1028 = vsel %vm684, %v1023, %v1027
    %v1030 = vshrl.u32 %v611, 16
    %v1032 = vshll.u32 %v611, 16
    %v1034 = vrot.slane %v1032, 1
    %v1035 = vor.u32 %v1030, %v1034
    %v1037 = vshll.u32 %v643, 16
    %v1039 = vrot.slane %v1037, 1
    %v1040 = vsel %vm684, %v1035, %v1039
    %v1042 = vshrl.u32 %v612, 16
    %v1044 = vshll.u32 %v612, 16
    %v1046 = vrot.slane %v1044, 1
    %v1047 = vor.u32 %v1042, %v1046
    %v1049 = vshll.u32 %v644, 16
    %v1051 = vrot.slane %v1049, 1
    %v1052 = vsel %vm684, %v1047, %v1051
    %v1054 = vshrl.u32 %v613, 16
    %v1056 = vshll.u32 %v613, 16
    %v1058 = vrot.slane %v1056, 1
    %v1059 = vor.u32 %v1054, %v1058
    %v1061 = vshll.u32 %v645, 16
    %v1063 = vrot.slane %v1061, 1
    %v1064 = vsel %vm684, %v1059, %v1063
    %v1066 = vshrl.u32 %v614, 16
    %v1068 = vshll.u32 %v614, 16
    %v1070 = vrot.slane %v1068, 1
    %v1071 = vor.u32 %v1066, %v1070
    %v1073 = vshll.u32 %v646, 16
    %v1075 = vrot.slane %v1073, 1
    %v1076 = vsel %vm684, %v1071, %v1075
    %1077 = vrot.lane.b32.xlu0 %v692, 3
    %v1078 = vpop.permute.xlu0 %1077
    %1079 = vrot.lane.b32.xlu0 %v704, 3
    %v1080 = vpop.permute.xlu0 %1079
    %1081 = vrot.lane.b32.xlu0 %v716, 3
    %v1082 = vpop.permute.xlu0 %1081
    %1083 = vrot.lane.b32.xlu0 %v728, 3
    %v1084 = vpop.permute.xlu0 %1083
    %1085 = vrot.lane.b32.xlu0 %v740, 3
    %v1086 = vpop.permute.xlu0 %1085
    %1087 = vrot.lane.b32.xlu0 %v752, 3
    %v1088 = vpop.permute.xlu0 %1087
    %1089 = vrot.lane.b32.xlu0 %v764, 3
    %v1090 = vpop.permute.xlu0 %1089
    %1091 = vrot.lane.b32.xlu0 %v776, 3
    %v1092 = vpop.permute.xlu0 %1091
    %1093 = vrot.lane.b32.xlu0 %v788, 3
    %v1094 = vpop.permute.xlu0 %1093
    %1095 = vrot.lane.b32.xlu0 %v800, 3
    %v1096 = vpop.permute.xlu0 %1095
    %1097 = vrot.lane.b32.xlu0 %v812, 3
    %v1098 = vpop.permute.xlu0 %1097
    %1099 = vrot.lane.b32.xlu0 %v824, 3
    %v1100 = vpop.permute.xlu0 %1099
    %1101 = vrot.lane.b32.xlu0 %v836, 3
    %v1102 = vpop.permute.xlu0 %1101
    %1103 = vrot.lane.b32.xlu0 %v848, 3
    %v1104 = vpop.permute.xlu0 %1103
    %1105 = vrot.lane.b32.xlu0 %v860, 3
    %v1106 = vpop.permute.xlu0 %1105
    %1107 = vrot.lane.b32.xlu0 %v872, 3
    %v1108 = vpop.permute.xlu0 %1107
    %1109 = vrot.lane.b32.xlu0 %v884, 3
    %v1110 = vpop.permute.xlu0 %1109
    %1111 = vrot.lane.b32.xlu0 %v896, 3
    %v1112 = vpop.permute.xlu0 %1111
    %1113 = vrot.lane.b32.xlu0 %v908, 3
    %v1114 = vpop.permute.xlu0 %1113
    %1115 = vrot.lane.b32.xlu0 %v920, 3
    %v1116 = vpop.permute.xlu0 %1115
    %1117 = vrot.lane.b32.xlu0 %v932, 3
    %v1118 = vpop.permute.xlu0 %1117
    %1119 = vrot.lane.b32.xlu0 %v944, 3
    %v1120 = vpop.permute.xlu0 %1119
    %1121 = vrot.lane.b32.xlu0 %v956, 3
    %v1122 = vpop.permute.xlu0 %1121
    %1123 = vrot.lane.b32.xlu0 %v968, 3
    %v1124 = vpop.permute.xlu0 %1123
    %1125 = vrot.lane.b32.xlu0 %v980, 3
    %v1126 = vpop.permute.xlu0 %1125
    %1127 = vrot.lane.b32.xlu0 %v992, 3
    %v1128 = vpop.permute.xlu0 %1127
    %1129 = vrot.lane.b32.xlu0 %v1004, 3
    %v1130 = vpop.permute.xlu0 %1129
    %1131 = vrot.lane.b32.xlu0 %v1016, 3
    %v1132 = vpop.permute.xlu0 %1131
    %1133 = vrot.lane.b32.xlu0 %v1028, 3
    %v1134 = vpop.permute.xlu0 %1133
    %1135 = vrot.lane.b32.xlu0 %v1040, 3
    %v1136 = vpop.permute.xlu0 %1135
    %1137 = vrot.lane.b32.xlu0 %v1052, 3
    %v1138 = vpop.permute.xlu0 %1137
    %1139 = vrot.lane.b32.xlu0 %v1064, 3
    %v1140 = vpop.permute.xlu0 %1139
    %1141 = vrot.lane.b32.xlu0 %v1076, 3
    %v1142 = vpop.permute.xlu0 %1141
    %vm1176 = vcmask 48152
    %1177 = vst.msk [vmem:[#allocation2] sm:$0xff] %vm1176, %v1078
    %1178 = vst.msk [vmem:[#allocation2 + $0x8] sm:$0xff] %vm1176, %v1080
    %1179 = vst.msk [vmem:[#allocation2 + $0x10] sm:$0xff] %vm1176, %v1082
    %1180 = vst.msk [vmem:[#allocation2 + $0x18] sm:$0xff] %vm1176, %v1084
    %1181 = vst.msk [vmem:[#allocation2 + $0x20] sm:$0xff] %vm1176, %v1086
    %1182 = vst.msk [vmem:[#allocation2 + $0x28] sm:$0xff] %vm1176, %v1088
    %1183 = vst.msk [vmem:[#allocation2 + $0x30] sm:$0xff] %vm1176, %v1090
    %1184 = vst.msk [vmem:[#allocation2 + $0x38] sm:$0xff] %vm1176, %v1092
    %1185 = vst.msk [vmem:[#allocation2 + $0x40] sm:$0xff] %vm1176, %v1094
    %1186 = vst.msk [vmem:[#allocation2 + $0x48] sm:$0xff] %vm1176, %v1096
    %1187 = vst.msk [vmem:[#allocation2 + $0x50] sm:$0xff] %vm1176, %v1098
    %1188 = vst.msk [vmem:[#allocation2 + $0x58] sm:$0xff] %vm1176, %v1100
    %1189 = vst.msk [vmem:[#allocation2 + $0x60] sm:$0xff] %vm1176, %v1102
    %1190 = vst.msk [vmem:[#allocation2 + $0x68] sm:$0xff] %vm1176, %v1104
    %1191 = vst.msk [vmem:[#allocation2 + $0x70] sm:$0xff] %vm1176, %v1106
    %1192 = vst.msk [vmem:[#allocation2 + $0x78] sm:$0xff] %vm1176, %v1108
    %1193 = vst.msk [vmem:[#allocation2 + $0x80] sm:$0xff] %vm1176, %v1110
    %1194 = vst.msk [vmem:[#allocation2 + $0x88] sm:$0xff] %vm1176, %v1078
    %1195 = vst.msk [vmem:[#allocation2 + $0x90] sm:$0xff] %vm1176, %v1078
    %1196 = vst.msk [vmem:[#allocation2 + $0x98] sm:$0xff] %vm1176, %v1112
    %1197 = vst.msk [vmem:[#allocation2 + $0xa0] sm:$0xff] %vm1176, %v1114
    %1198 = vst.msk [vmem:[#allocation2 + $0xa8] sm:$0xff] %vm1176, %v1116
    %1199 = vst.msk [vmem:[#allocation2 + $0xb0] sm:$0xff] %vm1176, %v1118
    %1200 = vst.msk [vmem:[#allocation2 + $0xb8] sm:$0xff] %vm1176, %v1120
    %1201 = vst.msk [vmem:[#allocation2 + $0xc0] sm:$0xff] %vm1176, %v1122
    %1202 = vst.msk [vmem:[#allocation2 + $0xc8] sm:$0xff] %vm1176, %v1124
    %1203 = vst.msk [vmem:[#allocation2 + $0xd0] sm:$0xff] %vm1176, %v1126
    %1204 = vst.msk [vmem:[#allocation2 + $0xd8] sm:$0xff] %vm1176, %v1128
    %1205 = vst.msk [vmem:[#allocation2 + $0xe0] sm:$0xff] %vm1176, %v1130
    %1206 = vst.msk [vmem:[#allocation2 + $0xe8] sm:$0xff] %vm1176, %v1132
    %1207 = vst.msk [vmem:[#allocation2 + $0xf0] sm:$0xff] %vm1176, %v1134
    %1208 = vst.msk [vmem:[#allocation2 + $0xf8] sm:$0xff] %vm1176, %v1136
    %1209 = vst.msk [vmem:[#allocation2 + $0x100] sm:$0xff] %vm1176, %v1138
    %1210 = vst.msk [vmem:[#allocation2 + $0x108] sm:$0xff] %vm1176, %v1140
    %1211 = vst.msk [vmem:[#allocation2 + $0x110] sm:$0xff] %vm1176, %v1142
    %1212 = vst.msk [vmem:[#allocation2 + $0x118] sm:$0xff] %vm1176, %v1078
    %vm1278 = vcmask 1046528
    %v1279 = vrot.slane 0, 1
    %v1280 = vsel %vm1278, %v1279, %v1279
    %v1281 = vrot.slane %v583, 1
    %v1282 = vrot.slane %v615, 1
    %v1283 = vsel %vm1278, %v1281, %v1282
    %v1284 = vrot.slane %v584, 1
    %v1285 = vrot.slane %v616, 1
    %v1286 = vsel %vm1278, %v1284, %v1285
    %v1287 = vrot.slane %v585, 1
    %v1288 = vrot.slane %v617, 1
    %v1289 = vsel %vm1278, %v1287, %v1288
    %v1290 = vrot.slane %v586, 1
    %v1291 = vrot.slane %v618, 1
    %v1292 = vsel %vm1278, %v1290, %v1291
    %v1293 = vrot.slane %v587, 1
    %v1294 = vrot.slane %v619, 1
    %v1295 = vsel %vm1278, %v1293, %v1294
    %v1296 = vrot.slane %v588, 1
    %v1297 = vrot.slane %v620, 1
    %v1298 = vsel %vm1278, %v1296, %v1297
    %v1299 = vrot.slane %v589, 1
    %v1300 = vrot.slane %v621, 1
    %v1301 = vsel %vm1278, %v1299, %v1300
    %v1302 = vrot.slane %v590, 1
    %v1303 = vrot.slane %v622, 1
    %v1304 = vsel %vm1278, %v1302, %v1303
    %v1305 = vrot.slane %v591, 1
    %v1306 = vrot.slane %v623, 1
    %v1307 = vsel %vm1278, %v1305, %v1306
    %v1308 = vrot.slane %v592, 1
    %v1309 = vrot.slane %v624, 1
    %v1310 = vsel %vm1278, %v1308, %v1309
    %v1311 = vrot.slane %v593, 1
    %v1312 = vrot.slane %v625, 1
    %v1313 = vsel %vm1278, %v1311, %v1312
    %v1314 = vrot.slane %v594, 1
    %v1315 = vrot.slane %v626, 1
    %v1316 = vsel %vm1278, %v1314, %v1315
    %v1317 = vrot.slane %v595, 1
    %v1318 = vrot.slane %v627, 1
    %v1319 = vsel %vm1278, %v1317, %v1318
    %v1320 = vrot.slane %v596, 1
    %v1321 = vrot.slane %v628, 1
    %v1322 = vsel %vm1278, %v1320, %v1321
    %v1323 = vrot.slane %v597, 1
    %v1324 = vrot.slane %v629, 1
    %v1325 = vsel %vm1278, %v1323, %v1324
    %v1326 = vrot.slane %v598, 1
    %v1327 = vrot.slane %v630, 1
    %v1328 = vsel %vm1278, %v1326, %v1327
    %v1329 = vrot.slane %v599, 1
    %v1330 = vrot.slane %v631, 1
    %v1331 = vsel %vm1278, %v1329, %v1330
    %v1332 = vrot.slane %v600, 1
    %v1333 = vrot.slane %v632, 1
    %v1334 = vsel %vm1278, %v1332, %v1333
    %v1335 = vrot.slane %v601, 1
    %v1336 = vrot.slane %v633, 1
    %v1337 = vsel %vm1278, %v1335, %v1336
    %v1338 = vrot.slane %v602, 1
    %v1339 = vrot.slane %v634, 1
    %v1340 = vsel %vm1278, %v1338, %v1339
    %v1341 = vrot.slane %v603, 1
    %v1342 = vrot.slane %v635, 1
    %v1343 = vsel %vm1278, %v1341, %v1342
    %v1344 = vrot.slane %v604, 1
    %v1345 = vrot.slane %v636, 1
    %v1346 = vsel %vm1278, %v1344, %v1345
    %v1347 = vrot.slane %v605, 1
    %v1348 = vrot.slane %v637, 1
    %v1349 = vsel %vm1278, %v1347, %v1348
    %v1350 = vrot.slane %v606, 1
    %v1351 = vrot.slane %v638, 1
    %v1352 = vsel %vm1278, %v1350, %v1351
    %v1353 = vrot.slane %v607, 1
    %v1354 = vrot.slane %v639, 1
    %v1355 = vsel %vm1278, %v1353, %v1354
    %v1356 = vrot.slane %v608, 1
    %v1357 = vrot.slane %v640, 1
    %v1358 = vsel %vm1278, %v1356, %v1357
    %v1359 = vrot.slane %v609, 1
    %v1360 = vrot.slane %v641, 1
    %v1361 = vsel %vm1278, %v1359, %v1360
    %v1362 = vrot.slane %v610, 1
    %v1363 = vrot.slane %v642, 1
    %v1364 = vsel %vm1278, %v1362, %v1363
    %v1365 = vrot.slane %v611, 1
    %v1366 = vrot.slane %v643, 1
    %v1367 = vsel %vm1278, %v1365, %v1366
    %v1368 = vrot.slane %v612, 1
    %v1369 = vrot.slane %v644, 1
    %v1370 = vsel %vm1278, %v1368, %v1369
    %v1371 = vrot.slane %v613, 1
    %v1372 = vrot.slane %v645, 1
    %v1373 = vsel %vm1278, %v1371, %v1372
    %v1374 = vrot.slane %v614, 1
    %v1375 = vrot.slane %v646, 1
    %v1376 = vsel %vm1278, %v1374, %v1375
    %1377 = vrot.lane.b32.xlu0 %v1280, 6
    %v1378 = vpop.permute.xlu0 %1377
    %1379 = vrot.lane.b32.xlu0 %v1283, 6
    %v1380 = vpop.permute.xlu0 %1379
    %1381 = vrot.lane.b32.xlu0 %v1286, 6
    %v1382 = vpop.permute.xlu0 %1381
    %1383 = vrot.lane.b32.xlu0 %v1289, 6
    %v1384 = vpop.permute.xlu0 %1383
    %1385 = vrot.lane.b32.xlu0 %v1292, 6
    %v1386 = vpop.permute.xlu0 %1385
    %1387 = vrot.lane.b32.xlu0 %v1295, 6
    %v1388 = vpop.permute.xlu0 %1387
    %1389 = vrot.lane.b32.xlu0 %v1298, 6
    %v1390 = vpop.permute.xlu0 %1389
    %1391 = vrot.lane.b32.xlu0 %v1301, 6
    %v1392 = vpop.permute.xlu0 %1391
    %1393 = vrot.lane.b32.xlu0 %v1304, 6
    %v1394 = vpop.permute.xlu0 %1393
    %1395 = vrot.lane.b32.xlu0 %v1307, 6
    %v1396 = vpop.permute.xlu0 %1395
    %1397 = vrot.lane.b32.xlu0 %v1310, 6
    %v1398 = vpop.permute.xlu0 %1397
    %1399 = vrot.lane.b32.xlu0 %v1313, 6
    %v1400 = vpop.permute.xlu0 %1399
    %1401 = vrot.lane.b32.xlu0 %v1316, 6
    %v1402 = vpop.permute.xlu0 %1401
    %1403 = vrot.lane.b32.xlu0 %v1319, 6
    %v1404 = vpop.permute.xlu0 %1403
    %1405 = vrot.lane.b32.xlu0 %v1322, 6
    %v1406 = vpop.permute.xlu0 %1405
    %1407 = vrot.lane.b32.xlu0 %v1325, 6
    %v1408 = vpop.permute.xlu0 %1407
    %1409 = vrot.lane.b32.xlu0 %v1328, 6
    %v1410 = vpop.permute.xlu0 %1409
    %1411 = vrot.lane.b32.xlu0 %v1331, 6
    %v1412 = vpop.permute.xlu0 %1411
    %1413 = vrot.lane.b32.xlu0 %v1334, 6
    %v1414 = vpop.permute.xlu0 %1413
    %1415 = vrot.lane.b32.xlu0 %v1337, 6
    %v1416 = vpop.permute.xlu0 %1415
    %1417 = vrot.lane.b32.xlu0 %v1340, 6
    %v1418 = vpop.permute.xlu0 %1417
    %1419 = vrot.lane.b32.xlu0 %v1343, 6
    %v1420 = vpop.permute.xlu0 %1419
    %1421 = vrot.lane.b32.xlu0 %v1346, 6
    %v1422 = vpop.permute.xlu0 %1421
    %1423 = vrot.lane.b32.xlu0 %v1349, 6
    %v1424 = vpop.permute.xlu0 %1423
    %1425 = vrot.lane.b32.xlu0 %v1352, 6
    %v1426 = vpop.permute.xlu0 %1425
    %1427 = vrot.lane.b32.xlu0 %v1355, 6
    %v1428 = vpop.permute.xlu0 %1427
    %1429 = vrot.lane.b32.xlu0 %v1358, 6
    %v1430 = vpop.permute.xlu0 %1429
    %1431 = vrot.lane.b32.xlu0 %v1361, 6
    %v1432 = vpop.permute.xlu0 %1431
    %1433 = vrot.lane.b32.xlu0 %v1364, 6
    %v1434 = vpop.permute.xlu0 %1433
    %1435 = vrot.lane.b32.xlu0 %v1367, 6
    %v1436 = vpop.permute.xlu0 %1435
    %1437 = vrot.lane.b32.xlu0 %v1370, 6
    %v1438 = vpop.permute.xlu0 %1437
    %1439 = vrot.lane.b32.xlu0 %v1373, 6
    %v1440 = vpop.permute.xlu0 %1439
    %1441 = vrot.lane.b32.xlu0 %v1376, 6
    %v1442 = vpop.permute.xlu0 %1441
    %vm1476 = vcmask 72752
    %1477 = vst.msk [vmem:[#allocation2] sm:$0xff] %vm1476, %v1378
    %1478 = vst.msk [vmem:[#allocation2 + $0x8] sm:$0xff] %vm1476, %v1380
    %1479 = vst.msk [vmem:[#allocation2 + $0x10] sm:$0xff] %vm1476, %v1382
    %1480 = vst.msk [vmem:[#allocation2 + $0x18] sm:$0xff] %vm1476, %v1384
    %1481 = vst.msk [vmem:[#allocation2 + $0x20] sm:$0xff] %vm1476, %v1386
    %1482 = vst.msk [vmem:[#allocation2 + $0x28] sm:$0xff] %vm1476, %v1388
    %1483 = vst.msk [vmem:[#allocation2 + $0x30] sm:$0xff] %vm1476, %v1390
    %1484 = vst.msk [vmem:[#allocation2 + $0x38] sm:$0xff] %vm1476, %v1392
    %1485 = vst.msk [vmem:[#allocation2 + $0x40] sm:$0xff] %vm1476, %v1394
    %1486 = vst.msk [vmem:[#allocation2 + $0x48] sm:$0xff] %vm1476, %v1396
    %1487 = vst.msk [vmem:[#allocation2 + $0x50] sm:$0xff] %vm1476, %v1398
    %1488 = vst.msk [vmem:[#allocation2 + $0x58] sm:$0xff] %vm1476, %v1400
    %1489 = vst.msk [vmem:[#allocation2 + $0x60] sm:$0xff] %vm1476, %v1402
    %1490 = vst.msk [vmem:[#allocation2 + $0x68] sm:$0xff] %vm1476, %v1404
    %1491 = vst.msk [vmem:[#allocation2 + $0x70] sm:$0xff] %vm1476, %v1406
    %1492 = vst.msk [vmem:[#allocation2 + $0x78] sm:$0xff] %vm1476, %v1408
    %1493 = vst.msk [vmem:[#allocation2 + $0x80] sm:$0xff] %vm1476, %v1410
    %1494 = vst.msk [vmem:[#allocation2 + $0x88] sm:$0xff] %vm1476, %v1378
    %1495 = vst.msk [vmem:[#allocation2 + $0x90] sm:$0xff] %vm1476, %v1378
    %1496 = vst.msk [vmem:[#allocation2 + $0x98] sm:$0xff] %vm1476, %v1412
    %1497 = vst.msk [vmem:[#allocation2 + $0xa0] sm:$0xff] %vm1476, %v1414
    %1498 = vst.msk [vmem:[#allocation2 + $0xa8] sm:$0xff] %vm1476, %v1416
    %1499 = vst.msk [vmem:[#allocation2 + $0xb0] sm:$0xff] %vm1476, %v1418
    %1500 = vst.msk [vmem:[#allocation2 + $0xb8] sm:$0xff] %vm1476, %v1420
    %1501 = vst.msk [vmem:[#allocation2 + $0xc0] sm:$0xff] %vm1476, %v1422
    %1502 = vst.msk [vmem:[#allocation2 + $0xc8] sm:$0xff] %vm1476, %v1424
    %1503 = vst.msk [vmem:[#allocation2 + $0xd0] sm:$0xff] %vm1476, %v1426
    %1504 = vst.msk [vmem:[#allocation2 + $0xd8] sm:$0xff] %vm1476, %v1428
    %1505 = vst.msk [vmem:[#allocation2 + $0xe0] sm:$0xff] %vm1476, %v1430
    %1506 = vst.msk [vmem:[#allocation2 + $0xe8] sm:$0xff] %vm1476, %v1432
    %1507 = vst.msk [vmem:[#allocation2 + $0xf0] sm:$0xff] %vm1476, %v1434
    %1508 = vst.msk [vmem:[#allocation2 + $0xf8] sm:$0xff] %vm1476, %v1436
    %1509 = vst.msk [vmem:[#allocation2 + $0x100] sm:$0xff] %vm1476, %v1438
    %1510 = vst.msk [vmem:[#allocation2 + $0x108] sm:$0xff] %vm1476, %v1440
    %1511 = vst.msk [vmem:[#allocation2 + $0x110] sm:$0xff] %vm1476, %v1442
    %1512 = vst.msk [vmem:[#allocation2 + $0x118] sm:$0xff] %vm1476, %v1378
    %v1513 = vld [vmem:[#allocation2] sm:$0xff]
    %v1514 = vld [vmem:[#allocation2 + $0x8] sm:$0xff]
    %v1515 = vld [vmem:[#allocation2 + $0x10] sm:$0xff]
    %v1516 = vld [vmem:[#allocation2 + $0x18] sm:$0xff]
    %v1517 = vld [vmem:[#allocation2 + $0x20] sm:$0xff]
    %v1518 = vld [vmem:[#allocation2 + $0x28] sm:$0xff]
    %v1519 = vld [vmem:[#allocation2 + $0x30] sm:$0xff]
    %v1520 = vld [vmem:[#allocation2 + $0x38] sm:$0xff]
    %v1521 = vld [vmem:[#allocation2 + $0x40] sm:$0xff]
    %v1522 = vld [vmem:[#allocation2 + $0x48] sm:$0xff]
    %v1523 = vld [vmem:[#allocation2 + $0x50] sm:$0xff]
    %v1524 = vld [vmem:[#allocation2 + $0x58] sm:$0xff]
    %v1525 = vld [vmem:[#allocation2 + $0x60] sm:$0xff]
    %v1526 = vld [vmem:[#allocation2 + $0x68] sm:$0xff]
    %v1527 = vld [vmem:[#allocation2 + $0x70] sm:$0xff]
    %v1528 = vld [vmem:[#allocation2 + $0x78] sm:$0xff]
    %v1529 = vld [vmem:[#allocation2 + $0x90] sm:$0xff]
    %v1530 = vld [vmem:[#allocation2 + $0x98] sm:$0xff]
    %v1531 = vld [vmem:[#allocation2 + $0xa0] sm:$0xff]
    %v1532 = vld [vmem:[#allocation2 + $0xa8] sm:$0xff]
    %v1533 = vld [vmem:[#allocation2 + $0xb0] sm:$0xff]
    %v1534 = vld [vmem:[#allocation2 + $0xb8] sm:$0xff]
    %v1535 = vld [vmem:[#allocation2 + $0xc0] sm:$0xff]
    %v1536 = vld [vmem:[#allocation2 + $0xc8] sm:$0xff]
    %v1537 = vld [vmem:[#allocation2 + $0xd0] sm:$0xff]
    %v1538 = vld [vmem:[#allocation2 + $0xd8] sm:$0xff]
    %v1539 = vld [vmem:[#allocation2 + $0xe0] sm:$0xff]
    %v1540 = vld [vmem:[#allocation2 + $0xe8] sm:$0xff]
    %v1541 = vld [vmem:[#allocation2 + $0xf0] sm:$0xff]
    %v1542 = vld [vmem:[#allocation2 + $0xf8] sm:$0xff]
    %v1543 = vld [vmem:[#allocation2 + $0x100] sm:$0xff]
    %v1544 = vld [vmem:[#allocation2 + $0x108] sm:$0xff]
    %v1545 = vld [vmem:[%s1] sm:$0xf]
    %v1546 = vld [vmem:[%s1 + $0x4] sm:$0x1]
    %v1549 = vunpack.c.l.b16 %v1545
    %v1550 = vunpack.c.l.b16 %v1546
    %v1551 = vpack.c.b16 %v1550, %v1549
    %vm1552 = vcmask 72704
    %v1554 = vsel %vm1552, %v1513, 0
    %v1557 = vsel %vm1552, %v1514, 0
    %v1560 = vsel %vm1552, %v1515, 0
    %v1563 = vsel %vm1552, %v1516, 0
    %v1566 = vsel %vm1552, %v1517, 0
    %v1569 = vsel %vm1552, %v1518, 0
    %v1572 = vsel %vm1552, %v1519, 0
    %v1575 = vsel %vm1552, %v1520, 0
    %v1578 = vsel %vm1552, %v1521, 0
    %v1581 = vsel %vm1552, %v1522, 0
    %v1584 = vsel %vm1552, %v1523, 0
    %v1587 = vsel %vm1552, %v1524, 0
    %v1590 = vsel %vm1552, %v1525, 0
    %v1593 = vsel %vm1552, %v1526, 0
    %v1596 = vsel %vm1552, %v1527, 0
    %v1599 = vsel %vm1552, %v1528, 0
    %v1602 = vsel %vm1552, %v1529, 0
    %v1605 = vsel %vm1552, %v1530, 0
    %v1608 = vsel %vm1552, %v1531, 0
    %v1611 = vsel %vm1552, %v1532, 0
    %v1614 = vsel %vm1552, %v1533, 0
    %v1617 = vsel %vm1552, %v1534, 0
    %v1620 = vsel %vm1552, %v1535, 0
    %v1623 = vsel %vm1552, %v1536, 0
    %v1626 = vsel %vm1552, %v1537, 0
    %v1629 = vsel %vm1552, %v1538, 0
    %v1632 = vsel %vm1552, %v1539, 0
    %v1635 = vsel %vm1552, %v1540, 0
    %v1638 = vsel %vm1552, %v1541, 0
    %v1641 = vsel %vm1552, %v1542, 0
    %v1644 = vsel %vm1552, %v1543, 0
    %v1647 = vsel %vm1552, %v1544, 0
    %vm1649 = vcmask 1043456
    %vm1650 = vcmask 1044480
    %v1651 = vsel %vm1649, 4294967295, 65535
    %v1652 = vsel %vm1650, %v1651, 0
    %v1654 = vand.u32 %v1551, %v1652
    %1656 = vmatprep.subr.bf16.mxu0 0
    %1657 = vmatpush1.bf16.msra.mxu0 %v1654
    %1658 = vmatprep.subr.bf16.mxu0 0
    %1659 = vmatpush1.bf16.msra.mxu0 0
    %1660 = vmatprep.subr.bf16.mxu0 0
    %1661 = vmatpush1.bf16.msra.mxu0 0
    %1662 = vmatprep.subr.bf16.mxu0 0
    %1663 = vmatpush1.bf16.msra.mxu0 0
    %1664 = vmatprep.subr.bf16.mxu0 0
    %1665 = vmatpush1.bf16.msra.mxu0 0
    %1666 = vmatprep.subr.bf16.mxu0 0
    %1667 = vmatpush1.bf16.msra.mxu0 0
    %1668 = vmatprep.subr.bf16.mxu0 0
    %1669 = vmatpush1.bf16.msra.mxu0 0
    %1670 = vmatprep.subr.bf16.mxu0 0
    %1671 = vmatpush1.bf16.msra.mxu0 0
    %1672 = vmatprep.subr.bf16.mxu0 0
    %1673 = vmatpush1.bf16.msra.mxu0 0
    %1674 = vmatprep.subr.bf16.mxu0 0
    %1675 = vmatpush1.bf16.msra.mxu0 0
    %1676 = vmatprep.subr.bf16.mxu0 0
    %1677 = vmatpush1.bf16.msra.mxu0 0
    %1678 = vmatprep.subr.bf16.mxu0 0
    %1679 = vmatpush1.bf16.msra.mxu0 0
    %1680 = vmatprep.subr.bf16.mxu0 0
    %1681 = vmatpush1.bf16.msra.mxu0 0
    %1682 = vmatprep.subr.bf16.mxu0 0
    %1683 = vmatpush1.bf16.msra.mxu0 0
    %1684 = vmatprep.subr.bf16.mxu0 0
    %1685 = vmatpush1.bf16.msra.mxu0 0
    %1686 = vmatprep.subr.bf16.mxu0 0
    %1687 = vmatpush1.bf16.msra.mxu0 0
    %1688 = vmatprep.mubr.bf16.mxu0 0
    %1689 = vmatmul.mubr.bf16.gmra.mrb[0].mxu0 %v1554
    %v1690 = vpop.f32.mrb[0].mxu0
    %v1691 = vadd.f32 0.0, %v1690
    %v1692 = vpop.f32.mrb[0].mxu0
    %v1693 = vpop.f32.mrb[0].mxu0
    %v1694 = vadd.f32 0.0, %v1693
    %v1695 = vpop.f32.mrb[0].mxu0
    %1696 = vmatprep.mubr.bf16.mxu0 0
    %1697 = vmatmul.mubr.bf16.gmra.mrb[0].mxu0 %v1557
    %v1698 = vpop.f32.mrb[0].mxu0
    %v1699 = vadd.f32 0.0, %v1698
    %v1700 = vpop.f32.mrb[0].mxu0
    %v1701 = vpop.f32.mrb[0].mxu0
    %v1702 = vadd.f32 0.0, %v1701
    %v1703 = vpop.f32.mrb[0].mxu0
    %1704 = vmatprep.mubr.bf16.mxu0 0
    %1705 = vmatmul.mubr.bf16.gmra.mrb[0].mxu0 %v1560
    %v1706 = vpop.f32.mrb[0].mxu0
    %v1707 = vadd.f32 0.0, %v1706
    %v1708 = vpop.f32.mrb[0].mxu0
    %v1709 = vpop.f32.mrb[0].mxu0
    %v1710 = vadd.f32 0.0, %v1709
    %v1711 = vpop.f32.mrb[0].mxu0
    %1712 = vmatprep.mubr.bf16.mxu0 0
    %1713 = vmatmul.mubr.bf16.gmra.mrb[0].mxu0 %v1563
    %v1714 = vpop.f32.mrb[0].mxu0
    %v1715 = vadd.f32 0.0, %v1714
    %v1716 = vpop.f32.mrb[0].mxu0
    %v1717 = vpop.f32.mrb[0].mxu0
    %v1718 = vadd.f32 0.0, %v1717
    %v1719 = vpop.f32.mrb[0].mxu0
    %1720 = vmatprep.mubr.bf16.mxu0 0
    %1721 = vmatmul.mubr.bf16.gmra.mrb[0].mxu0 %v1566
    %v1722 = vpop.f32.mrb[0].mxu0
    %v1723 = vadd.f32 0.0, %v1722
    %v1724 = vpop.f32.mrb[0].mxu0
    %v1725 = vpop.f32.mrb[0].mxu0
    %v1726 = vadd.f32 0.0, %v1725
    %v1727 = vpop.f32.mrb[0].mxu0
    %1728 = vmatprep.mubr.bf16.mxu0 0
    %1729 = vmatmul.mubr.bf16.gmra.mrb[0].mxu0 %v1569
    %v1730 = vpop.f32.mrb[0].mxu0
    %v1731 = vadd.f32 0.0, %v1730
    %v1732 = vpop.f32.mrb[0].mxu0
    %v1733 = vpop.f32.mrb[0].mxu0
    %v1734 = vadd.f32 0.0, %v1733
    %v1735 = vpop.f32.mrb[0].mxu0
    %1736 = vmatprep.mubr.bf16.mxu0 0
    %1737 = vmatmul.mubr.bf16.gmra.mrb[0].mxu0 %v1572
    %v1738 = vpop.f32.mrb[0].mxu0
    %v1739 = vadd.f32 0.0, %v1738
    %v1740 = vpop.f32.mrb[0].mxu0
    %v1741 = vpop.f32.mrb[0].mxu0
    %v1742 = vadd.f32 0.0, %v1741
    %v1743 = vpop.f32.mrb[0].mxu0
    %1744 = vmatprep.mubr.bf16.mxu0 0
    %1745 = vmatmul.mubr.bf16.gmra.mrb[0].mxu0 %v1575
    %v1746 = vpop.f32.mrb[0].mxu0
    %v1747 = vadd.f32 0.0, %v1746
    %v1748 = vpop.f32.mrb[0].mxu0
    %v1749 = vpop.f32.mrb[0].mxu0
    %v1750 = vadd.f32 0.0, %v1749
    %v1751 = vpop.f32.mrb[0].mxu0
    %1752 = vmatprep.mubr.bf16.mxu0 0
    %1753 = vmatmul.mubr.bf16.gmra.mrb[0].mxu0 %v1578
    %v1754 = vpop.f32.mrb[0].mxu0
    %v1755 = vadd.f32 0.0, %v1754
    %v1756 = vpop.f32.mrb[0].mxu0
    %v1757 = vpop.f32.mrb[0].mxu0
    %v1758 = vadd.f32 0.0, %v1757
    %v1759 = vpop.f32.mrb[0].mxu0
    %1760 = vmatprep.mubr.bf16.mxu0 0
    %1761 = vmatmul.mubr.bf16.gmra.mrb[0].mxu0 %v1581
    %v1762 = vpop.f32.mrb[0].mxu0
    %v1763 = vadd.f32 0.0, %v1762
    %v1764 = vpop.f32.mrb[0].mxu0
    %v1765 = vpop.f32.mrb[0].mxu0
    %v1766 = vadd.f32 0.0, %v1765
    %v1767 = vpop.f32.mrb[0].mxu0
    %1768 = vmatprep.mubr.bf16.mxu0 0
    %1769 = vmatmul.mubr.bf16.gmra.mrb[0].mxu0 %v1584
    %v1770 = vpop.f32.mrb[0].mxu0
    %v1771 = vadd.f32 0.0, %v1770
    %v1772 = vpop.f32.mrb[0].mxu0
    %v1773 = vpop.f32.mrb[0].mxu0
    %v1774 = vadd.f32 0.0, %v1773
    %v1775 = vpop.f32.mrb[0].mxu0
    %1776 = vmatprep.mubr.bf16.mxu0 0
    %1777 = vmatmul.mubr.bf16.gmra.mrb[0].mxu0 %v1587
    %v1778 = vpop.f32.mrb[0].mxu0
    %v1779 = vadd.f32 0.0, %v1778
    %v1780 = vpop.f32.mrb[0].mxu0
    %v1781 = vpop.f32.mrb[0].mxu0
    %v1782 = vadd.f32 0.0, %v1781
    %v1783 = vpop.f32.mrb[0].mxu0
    %1784 = vmatprep.mubr.bf16.mxu0 0
    %1785 = vmatmul.mubr.bf16.gmra.mrb[0].mxu0 %v1590
    %v1786 = vpop.f32.mrb[0].mxu0
    %v1787 = vadd.f32 0.0, %v1786
    %v1788 = vpop.f32.mrb[0].mxu0
    %v1789 = vpop.f32.mrb[0].mxu0
    %v1790 = vadd.f32 0.0, %v1789
    %v1791 = vpop.f32.mrb[0].mxu0
    %1792 = vmatprep.mubr.bf16.mxu0 0
    %1793 = vmatmul.mubr.bf16.gmra.mrb[0].mxu0 %v1593
    %v1794 = vpop.f32.mrb[0].mxu0
    %v1795 = vadd.f32 0.0, %v1794
    %v1796 = vpop.f32.mrb[0].mxu0
    %v1797 = vpop.f32.mrb[0].mxu0
    %v1798 = vadd.f32 0.0, %v1797
    %v1799 = vpop.f32.mrb[0].mxu0
    %1800 = vmatprep.mubr.bf16.mxu0 0
    %1801 = vmatmul.mubr.bf16.gmra.mrb[0].mxu0 %v1596
    %v1802 = vpop.f32.mrb[0].mxu0
    %v1803 = vadd.f32 0.0, %v1802
    %v1804 = vpop.f32.mrb[0].mxu0
    %v1805 = vpop.f32.mrb[0].mxu0
    %v1806 = vadd.f32 0.0, %v1805
    %v1807 = vpop.f32.mrb[0].mxu0
    %1808 = vmatprep.mubr.bf16.mxu0 0
    %1809 = vmatmul.mubr.bf16.gmra.mrb[0].mxu0 %v1599
    %v1810 = vpop.f32.mrb[0].mxu0
    %v1811 = vadd.f32 0.0, %v1810
    %v1812 = vpop.f32.mrb[0].mxu0
    %v1813 = vpop.f32.mrb[0].mxu0
    %v1814 = vadd.f32 0.0, %v1813
    %v1815 = vpop.f32.mrb[0].mxu0
    %1816 = vmatprep.mubr.bf16.mxu0 0
    %1817 = vmatmul.mubr.bf16.gmra.mrb[0].mxu0 %v1602
    %v1818 = vpop.f32.mrb[0].mxu0
    %v1819 = vadd.f32 0.0, %v1818
    %v1820 = vpop.f32.mrb[0].mxu0
    %v1821 = vpop.f32.mrb[0].mxu0
    %v1822 = vadd.f32 0.0, %v1821
    %v1823 = vpop.f32.mrb[0].mxu0
    %1824 = vmatprep.mubr.bf16.mxu0 0
    %1825 = vmatmul.mubr.bf16.gmra.mrb[0].mxu0 %v1605
    %v1826 = vpop.f32.mrb[0].mxu0
    %v1827 = vadd.f32 0.0, %v1826
    %v1828 = vpop.f32.mrb[0].mxu0
    %v1829 = vpop.f32.mrb[0].mxu0
    %v1830 = vadd.f32 0.0, %v1829
    %v1831 = vpop.f32.mrb[0].mxu0
    %1832 = vmatprep.mubr.bf16.mxu0 0
    %1833 = vmatmul.mubr.bf16.gmra.mrb[0].mxu0 %v1608
    %v1834 = vpop.f32.mrb[0].mxu0
    %v1835 = vadd.f32 0.0, %v1834
    %v1836 = vpop.f32.mrb[0].mxu0
    %v1837 = vpop.f32.mrb[0].mxu0
    %v1838 = vadd.f32 0.0, %v1837
    %v1839 = vpop.f32.mrb[0].mxu0
    %1840 = vmatprep.mubr.bf16.mxu0 0
    %1841 = vmatmul.mubr.bf16.gmra.mrb[0].mxu0 %v1611
    %v1842 = vpop.f32.mrb[0].mxu0
    %v1843 = vadd.f32 0.0, %v1842
    %v1844 = vpop.f32.mrb[0].mxu0
    %v1845 = vpop.f32.mrb[0].mxu0
    %v1846 = vadd.f32 0.0, %v1845
    %v1847 = vpop.f32.mrb[0].mxu0
    %1848 = vmatprep.mubr.bf16.mxu0 0
    %1849 = vmatmul.mubr.bf16.gmra.mrb[0].mxu0 %v1614
    %v1850 = vpop.f32.mrb[0].mxu0
    %v1851 = vadd.f32 0.0, %v1850
    %v1852 = vpop.f32.mrb[0].mxu0
    %v1853 = vpop.f32.mrb[0].mxu0
    %v1854 = vadd.f32 0.0, %v1853
    %v1855 = vpop.f32.mrb[0].mxu0
    %1856 = vmatprep.mubr.bf16.mxu0 0
    %1857 = vmatmul.mubr.bf16.gmra.mrb[0].mxu0 %v1617
    %v1858 = vpop.f32.mrb[0].mxu0
    %v1859 = vadd.f32 0.0, %v1858
    %v1860 = vpop.f32.mrb[0].mxu0
    %v1861 = vpop.f32.mrb[0].mxu0
    %v1862 = vadd.f32 0.0, %v1861
    %v1863 = vpop.f32.mrb[0].mxu0
    %1864 = vmatprep.mubr.bf16.mxu0 0
    %1865 = vmatmul.mubr.bf16.gmra.mrb[0].mxu0 %v1620
    %v1866 = vpop.f32.mrb[0].mxu0
    %v1867 = vadd.f32 0.0, %v1866
    %v1868 = vpop.f32.mrb[0].mxu0
    %v1869 = vpop.f32.mrb[0].mxu0
    %v1870 = vadd.f32 0.0, %v1869
    %v1871 = vpop.f32.mrb[0].mxu0
    %1872 = vmatprep.mubr.bf16.mxu0 0
    %1873 = vmatmul.mubr.bf16.gmra.mrb[0].mxu0 %v1623
    %v1874 = vpop.f32.mrb[0].mxu0
    %v1875 = vadd.f32 0.0, %v1874
    %v1876 = vpop.f32.mrb[0].mxu0
    %v1877 = vpop.f32.mrb[0].mxu0
    %v1878 = vadd.f32 0.0, %v1877
    %v1879 = vpop.f32.mrb[0].mxu0
    %1880 = vmatprep.mubr.bf16.mxu0 0
    %1881 = vmatmul.mubr.bf16.gmra.mrb[0].mxu0 %v1626
    %v1882 = vpop.f32.mrb[0].mxu0
    %v1883 = vadd.f32 0.0, %v1882
    %v1884 = vpop.f32.mrb[0].mxu0
    %v1885 = vpop.f32.mrb[0].mxu0
    %v1886 = vadd.f32 0.0, %v1885
    %v1887 = vpop.f32.mrb[0].mxu0
    %1888 = vmatprep.mubr.bf16.mxu0 0
    %1889 = vmatmul.mubr.bf16.gmra.mrb[0].mxu0 %v1629
    %v1890 = vpop.f32.mrb[0].mxu0
    %v1891 = vadd.f32 0.0, %v1890
    %v1892 = vpop.f32.mrb[0].mxu0
    %v1893 = vpop.f32.mrb[0].mxu0
    %v1894 = vadd.f32 0.0, %v1893
    %v1895 = vpop.f32.mrb[0].mxu0
    %1896 = vmatprep.mubr.bf16.mxu0 0
    %1897 = vmatmul.mubr.bf16.gmra.mrb[0].mxu0 %v1632
    %v1898 = vpop.f32.mrb[0].mxu0
    %v1899 = vadd.f32 0.0, %v1898
    %v1900 = vpop.f32.mrb[0].mxu0
    %v1901 = vpop.f32.mrb[0].mxu0
    %v1902 = vadd.f32 0.0, %v1901
    %v1903 = vpop.f32.mrb[0].mxu0
    %1904 = vmatprep.mubr.bf16.mxu0 0
    %1905 = vmatmul.mubr.bf16.gmra.mrb[0].mxu0 %v1635
    %v1906 = vpop.f32.mrb[0].mxu0
    %v1907 = vadd.f32 0.0, %v1906
    %v1908 = vpop.f32.mrb[0].mxu0
    %v1909 = vpop.f32.mrb[0].mxu0
    %v1910 = vadd.f32 0.0, %v1909
    %v1911 = vpop.f32.mrb[0].mxu0
    %1912 = vmatprep.mubr.bf16.mxu0 0
    %1913 = vmatmul.mubr.bf16.gmra.mrb[0].mxu0 %v1638
    %v1914 = vpop.f32.mrb[0].mxu0
    %v1915 = vadd.f32 0.0, %v1914
    %v1916 = vpop.f32.mrb[0].mxu0
    %v1917 = vpop.f32.mrb[0].mxu0
    %v1918 = vadd.f32 0.0, %v1917
    %v1919 = vpop.f32.mrb[0].mxu0
    %1920 = vmatprep.mubr.bf16.mxu0 0
    %1921 = vmatmul.mubr.bf16.gmra.mrb[0].mxu0 %v1641
    %v1922 = vpop.f32.mrb[0].mxu0
    %v1923 = vadd.f32 0.0, %v1922
    %v1924 = vpop.f32.mrb[0].mxu0
    %v1925 = vpop.f32.mrb[0].mxu0
    %v1926 = vadd.f32 0.0, %v1925
    %v1927 = vpop.f32.mrb[0].mxu0
    %1928 = vmatprep.mubr.bf16.mxu0 0
    %1929 = vmatmul.mubr.bf16.gmra.mrb[0].mxu0 %v1644
    %v1930 = vpop.f32.mrb[0].mxu0
    %v1931 = vadd.f32 0.0, %v1930
    %v1932 = vpop.f32.mrb[0].mxu0
    %v1933 = vpop.f32.mrb[0].mxu0
    %v1934 = vadd.f32 0.0, %v1933
    %v1935 = vpop.f32.mrb[0].mxu0
    %1936 = vmatprep.mubr.bf16.mxu0 0
    %1937 = vmatmul.mubr.bf16.gmra.mrb[0].mxu0 %v1647
    %v1938 = vpop.f32.mrb[0].mxu0
    %v1939 = vadd.f32 0.0, %v1938
    %v1940 = vpop.f32.mrb[0].mxu0
    %v1941 = vpop.f32.mrb[0].mxu0
    %v1942 = vadd.f32 0.0, %v1941
    %v1943 = vpop.f32.mrb[0].mxu0
    %1944 = vdwg.mxu0
    %1945 = vst [vmem:[#allocation4] sm:$0xff] %v1691
    %1946 = vst [vmem:[#allocation4 + $0x8] sm:$0xff] %v1694
    %1947 = vst [vmem:[#allocation4 + $0x10] sm:$0xff] %v1699
    %1948 = vst [vmem:[#allocation4 + $0x18] sm:$0xff] %v1702
    %1949 = vst [vmem:[#allocation4 + $0x20] sm:$0xff] %v1707
    %1950 = vst [vmem:[#allocation4 + $0x28] sm:$0xff] %v1710
    %1951 = vst [vmem:[#allocation4 + $0x30] sm:$0xff] %v1715
    %1952 = vst [vmem:[#allocation4 + $0x38] sm:$0xff] %v1718
    %1953 = vst [vmem:[#allocation4 + $0x40] sm:$0xff] %v1723
    %1954 = vst [vmem:[#allocation4 + $0x48] sm:$0xff] %v1726
    %1955 = vst [vmem:[#allocation4 + $0x50] sm:$0xff] %v1731
    %1956 = vst [vmem:[#allocation4 + $0x58] sm:$0xff] %v1734
    %1957 = vst [vmem:[#allocation4 + $0x60] sm:$0xff] %v1739
    %1958 = vst [vmem:[#allocation4 + $0x68] sm:$0xff] %v1742
    %1959 = vst [vmem:[#allocation4 + $0x70] sm:$0xff] %v1747
    %1960 = vst [vmem:[#allocation4 + $0x78] sm:$0xff] %v1750
    %1961 = vst [vmem:[#allocation4 + $0x80] sm:$0xff] %v1755
    %1962 = vst [vmem:[#allocation4 + $0x88] sm:$0xff] %v1758
    %1963 = vst [vmem:[#allocation4 + $0x90] sm:$0xff] %v1763
    %1964 = vst [vmem:[#allocation4 + $0x98] sm:$0xff] %v1766
    %1965 = vst [vmem:[#allocation4 + $0xa0] sm:$0xff] %v1771
    %1966 = vst [vmem:[#allocation4 + $0xa8] sm:$0xff] %v1774
    %1967 = vst [vmem:[#allocation4 + $0xb0] sm:$0xff] %v1779
    %1968 = vst [vmem:[#allocation4 + $0xb8] sm:$0xff] %v1782
    %1969 = vst [vmem:[#allocation4 + $0xc0] sm:$0xff] %v1787
    %1970 = vst [vmem:[#allocation4 + $0xc8] sm:$0xff] %v1790
    %1971 = vst [vmem:[#allocation4 + $0xd0] sm:$0xff] %v1795
    %1972 = vst [vmem:[#allocation4 + $0xd8] sm:$0xff] %v1798
    %1973 = vst [vmem:[#allocation4 + $0xe0] sm:$0xff] %v1803
    %1974 = vst [vmem:[#allocation4 + $0xe8] sm:$0xff] %v1806
    %1975 = vst [vmem:[#allocation4 + $0xf0] sm:$0xff] %v1811
    %1976 = vst [vmem:[#allocation4 + $0xf8] sm:$0xff] %v1814
    %1977 = vst [vmem:[#allocation4 + $0x100] sm:$0xff] %v1819
    %1978 = vst [vmem:[#allocation4 + $0x108] sm:$0xff] %v1822
    %1979 = vst [vmem:[#allocation4 + $0x110] sm:$0xff] %v1827
    %1980 = vst [vmem:[#allocation4 + $0x118] sm:$0xff] %v1830
    %1981 = vst [vmem:[#allocation4 + $0x120] sm:$0xff] %v1835
    %1982 = vst [vmem:[#allocation4 + $0x128] sm:$0xff] %v1838
    %1983 = vst [vmem:[#allocation4 + $0x130] sm:$0xff] %v1843
    %1984 = vst [vmem:[#allocation4 + $0x138] sm:$0xff] %v1846
    %1985 = vst [vmem:[#allocation4 + $0x140] sm:$0xff] %v1851
    %1986 = vst [vmem:[#allocation4 + $0x148] sm:$0xff] %v1854
    %1987 = vst [vmem:[#allocation4 + $0x150] sm:$0xff] %v1859
    %1988 = vst [vmem:[#allocation4 + $0x158] sm:$0xff] %v1862
    %1989 = vst [vmem:[#allocation4 + $0x160] sm:$0xff] %v1867
    %1990 = vst [vmem:[#allocation4 + $0x168] sm:$0xff] %v1870
    %1991 = vst [vmem:[#allocation4 + $0x170] sm:$0xff] %v1875
    %1992 = vst [vmem:[#allocation4 + $0x178] sm:$0xff] %v1878
    %1993 = vst [vmem:[#allocation4 + $0x180] sm:$0xff] %v1883
    %1994 = vst [vmem:[#allocation4 + $0x188] sm:$0xff] %v1886
    %1995 = vst [vmem:[#allocation4 + $0x190] sm:$0xff] %v1891
    %1996 = vst [vmem:[#allocation4 + $0x198] sm:$0xff] %v1894
    %1997 = vst [vmem:[#allocation4 + $0x1a0] sm:$0xff] %v1899
    %1998 = vst [vmem:[#allocation4 + $0x1a8] sm:$0xff] %v1902
    %1999 = vst [vmem:[#allocation4 + $0x1b0] sm:$0xff] %v1907
    %2000 = vst [vmem:[#allocation4 + $0x1b8] sm:$0xff] %v1910
    %2001 = vst [vmem:[#allocation4 + $0x1c0] sm:$0xff] %v1915
    %2002 = vst [vmem:[#allocation4 + $0x1c8] sm:$0xff] %v1918
    %2003 = vst [vmem:[#allocation4 + $0x1d0] sm:$0xff] %v1923
    %2004 = vst [vmem:[#allocation4 + $0x1d8] sm:$0xff] %v1926
    %2005 = vst [vmem:[#allocation4 + $0x1e0] sm:$0xff] %v1931
    %2006 = vst [vmem:[#allocation4 + $0x1e8] sm:$0xff] %v1934
    %2007 = vst [vmem:[#allocation4 + $0x1f0] sm:$0xff] %v1939
    %2008 = vst [vmem:[#allocation4 + $0x1f8] sm:$0xff] %v1942
    %s2009 = scalar_lea.vmem [#allocation2], 8
    %v2010 = vld [vmem:[%s2009] sm:$0xff]
    %v2011 = vld [vmem:[%s2009 + $0x8] sm:$0xff]
    %v2012 = vld [vmem:[%s2009 + $0x10] sm:$0xff]
    %v2013 = vld [vmem:[%s2009 + $0x18] sm:$0xff]
    %v2014 = vld [vmem:[%s2009 + $0x20] sm:$0xff]
    %v2015 = vld [vmem:[%s2009 + $0x28] sm:$0xff]
    %v2016 = vld [vmem:[%s2009 + $0x30] sm:$0xff]
    %v2017 = vld [vmem:[%s2009 + $0x38] sm:$0xff]
    %v2018 = vld [vmem:[%s2009 + $0x40] sm:$0xff]
    %v2019 = vld [vmem:[%s2009 + $0x48] sm:$0xff]
    %v2020 = vld [vmem:[%s2009 + $0x50] sm:$0xff]
    %v2021 = vld [vmem:[%s2009 + $0x58] sm:$0xff]
    %v2022 = vld [vmem:[%s2009 + $0x60] sm:$0xff]
    %v2023 = vld [vmem:[%s2009 + $0x68] sm:$0xff]
    %v2024 = vld [vmem:[%s2009 + $0x70] sm:$0xff]
    %v2025 = vld [vmem:[%s2009 + $0x78] sm:$0xff]
    %v2026 = vld [vmem:[%s2009 + $0x90] sm:$0xff]
    %v2027 = vld [vmem:[%s2009 + $0x98] sm:$0xff]
    %v2028 = vld [vmem:[%s2009 + $0xa0] sm:$0xff]
    %v2029 = vld [vmem:[%s2009 + $0xa8] sm:$0xff]
    %v2030 = vld [vmem:[%s2009 + $0xb0] sm:$0xff]
    %v2031 = vld [vmem:[%s2009 + $0xb8] sm:$0xff]
    %v2032 = vld [vmem:[%s2009 + $0xc0] sm:$0xff]
    %v2033 = vld [vmem:[%s2009 + $0xc8] sm:$0xff]
    %v2034 = vld [vmem:[%s2009 + $0xd0] sm:$0xff]
    %v2035 = vld [vmem:[%s2009 + $0xd8] sm:$0xff]
    %v2036 = vld [vmem:[%s2009 + $0xe0] sm:$0xff]
    %v2037 = vld [vmem:[%s2009 + $0xe8] sm:$0xff]
    %v2038 = vld [vmem:[%s2009 + $0xf0] sm:$0xff]
    %v2039 = vld [vmem:[%s2009 + $0xf8] sm:$0xff]
    %v2040 = vld [vmem:[%s2009 + $0x100] sm:$0xff]
    %v2041 = vld [vmem:[%s2009 + $0x108] sm:$0xff]
    %s2042 = scalar_lea.vmem %s1, 8
    %v2043 = vld [vmem:[%s2042] sm:$0xf]
    %v2044 = vld [vmem:[%s2042 + $0x4] sm:$0x1]
    %v2047 = vunpack.c.l.b16 %v2043
    %v2048 = vunpack.c.l.b16 %v2044
    %v2049 = vpack.c.b16 %v2048, %v2047
    %v2051 = vsel %vm1552, %v2010, 0
    %v2054 = vsel %vm1552, %v2011, 0
    %v2057 = vsel %vm1552, %v2012, 0
    %v2060 = vsel %vm1552, %v2013, 0
    %v2063 = vsel %vm1552, %v2014, 0
    %v2066 = vsel %vm1552, %v2015, 0
    %v2069 = vsel %vm1552, %v2016, 0
    %v2072 = vsel %vm1552, %v2017, 0
    %v2075 = vsel %vm1552, %v2018, 0
    %v2078 = vsel %vm1552, %v2019, 0
    %v2081 = vsel %vm1552, %v2020, 0
    %v2084 = vsel %vm1552, %v2021, 0
    %v2087 = vsel %vm1552, %v2022, 0
    %v2090 = vsel %vm1552, %v2023, 0
    %v2093 = vsel %vm1552, %v2024, 0
    %v2096 = vsel %vm1552, %v2025, 0
    %v2099 = vsel %vm1552, %v2026, 0
    %v2102 = vsel %vm1552, %v2027, 0
    %v2105 = vsel %vm1552, %v2028, 0
    %v2108 = vsel %vm1552, %v2029, 0
    %v2111 = vsel %vm1552, %v2030, 0
    %v2114 = vsel %vm1552, %v2031, 0
    %v2117 = vsel %vm1552, %v2032, 0
    %v2120 = vsel %vm1552, %v2033, 0
    %v2123 = vsel %vm1552, %v2034, 0
    %v2126 = vsel %vm1552, %v2035, 0
    %v2129 = vsel %vm1552, %v2036, 0
    %v2132 = vsel %vm1552, %v2037, 0
    %v2135 = vsel %vm1552, %v2038, 0
    %v2138 = vsel %vm1552, %v2039, 0
    %v2141 = vsel %vm1552, %v2040, 0
    %v2144 = vsel %vm1552, %v2041, 0
    %v2147 = vand.u32 %v2049, %v1652
    %2149 = vmatprep.subr.bf16.mxu0 0
    %2150 = vmatpush1.bf16.msra.mxu0 %v2147
    %2151 = vmatprep.subr.bf16.mxu0 0
    %2152 = vmatpush1.bf16.msra.mxu0 0
    %2153 = vmatprep.subr.bf16.mxu0 0
    %2154 = vmatpush1.bf16.msra.mxu0 0
    %2155 = vmatprep.subr.bf16.mxu0 0
    %2156 = vmatpush1.bf16.msra.mxu0 0
    %2157 = vmatprep.subr.bf16.mxu0 0
    %2158 = vmatpush1.bf16.msra.mxu0 0
    %2159 = vmatprep.subr.bf16.mxu0 0
    %2160 = vmatpush1.bf16.msra.mxu0 0
    %2161 = vmatprep.subr.bf16.mxu0 0
    %2162 = vmatpush1.bf16.msra.mxu0 0
    %2163 = vmatprep.subr.bf16.mxu0 0
    %2164 = vmatpush1.bf16.msra.mxu0 0
    %2165 = vmatprep.subr.bf16.mxu0 0
    %2166 = vmatpush1.bf16.msra.mxu0 0
    %2167 = vmatprep.subr.bf16.mxu0 0
    %2168 = vmatpush1.bf16.msra.mxu0 0
    %2169 = vmatprep.subr.bf16.mxu0 0
    %2170 = vmatpush1.bf16.msra.mxu0 0
    %2171 = vmatprep.subr.bf16.mxu0 0
    %2172 = vmatpush1.bf16.msra.mxu0 0
    %2173 = vmatprep.subr.bf16.mxu0 0
    %2174 = vmatpush1.bf16.msra.mxu0 0
    %2175 = vmatprep.subr.bf16.mxu0 0
    %2176 = vmatpush1.bf16.msra.mxu0 0
    %2177 = vmatprep.subr.bf16.mxu0 0
    %2178 = vmatpush1.bf16.msra.mxu0 0
    %2179 = vmatprep.subr.bf16.mxu0 0
    %2180 = vmatpush1.bf16.msra.mxu0 0
    %2181 = vmatprep.mubr.bf16.mxu0 0
    %2182 = vmatmul.mubr.bf16.gmra.mrb[0].mxu0 %v2051
    %v2183 = vpop.f32.mrb[0].mxu0
    %v2184 = vadd.f32 0.0, %v2183
    %v2185 = vpop.f32.mrb[0].mxu0
    %v2186 = vpop.f32.mrb[0].mxu0
    %v2187 = vadd.f32 0.0, %v2186
    %v2188 = vpop.f32.mrb[0].mxu0
    %2189 = vmatprep.mubr.bf16.mxu0 0
    %2190 = vmatmul.mubr.bf16.gmra.mrb[0].mxu0 %v2054
    %v2191 = vpop.f32.mrb[0].mxu0
    %v2192 = vadd.f32 0.0, %v2191
    %v2193 = vpop.f32.mrb[0].mxu0
    %v2194 = vpop.f32.mrb[0].mxu0
    %v2195 = vadd.f32 0.0, %v2194
    %v2196 = vpop.f32.mrb[0].mxu0
    %2197 = vmatprep.mubr.bf16.mxu0 0
    %2198 = vmatmul.mubr.bf16.gmra.mrb[0].mxu0 %v2057
    %v2199 = vpop.f32.mrb[0].mxu0
    %v2200 = vadd.f32 0.0, %v2199
    %v2201 = vpop.f32.mrb[0].mxu0
    %v2202 = vpop.f32.mrb[0].mxu0
    %v2203 = vadd.f32 0.0, %v2202
    %v2204 = vpop.f32.mrb[0].mxu0
    %2205 = vmatprep.mubr.bf16.mxu0 0
    %2206 = vmatmul.mubr.bf16.gmra.mrb[0].mxu0 %v2060
    %v2207 = vpop.f32.mrb[0].mxu0
    %v2208 = vadd.f32 0.0, %v2207
    %v2209 = vpop.f32.mrb[0].mxu0
    %v2210 = vpop.f32.mrb[0].mxu0
    %v2211 = vadd.f32 0.0, %v2210
    %v2212 = vpop.f32.mrb[0].mxu0
    %2213 = vmatprep.mubr.bf16.mxu0 0
    %2214 = vmatmul.mubr.bf16.gmra.mrb[0].mxu0 %v2063
    %v2215 = vpop.f32.mrb[0].mxu0
    %v2216 = vadd.f32 0.0, %v2215
    %v2217 = vpop.f32.mrb[0].mxu0
    %v2218 = vpop.f32.mrb[0].mxu0
    %v2219 = vadd.f32 0.0, %v2218
    %v2220 = vpop.f32.mrb[0].mxu0
    %2221 = vmatprep.mubr.bf16.mxu0 0
    %2222 = vmatmul.mubr.bf16.gmra.mrb[0].mxu0 %v2066
    %v2223 = vpop.f32.mrb[0].mxu0
    %v2224 = vadd.f32 0.0, %v2223
    %v2225 = vpop.f32.mrb[0].mxu0
    %v2226 = vpop.f32.mrb[0].mxu0
    %v2227 = vadd.f32 0.0, %v2226
    %v2228 = vpop.f32.mrb[0].mxu0
    %2229 = vmatprep.mubr.bf16.mxu0 0
    %2230 = vmatmul.mubr.bf16.gmra.mrb[0].mxu0 %v2069
    %v2231 = vpop.f32.mrb[0].mxu0
    %v2232 = vadd.f32 0.0, %v2231
    %v2233 = vpop.f32.mrb[0].mxu0
    %v2234 = vpop.f32.mrb[0].mxu0
    %v2235 = vadd.f32 0.0, %v2234
    %v2236 = vpop.f32.mrb[0].mxu0
    %2237 = vmatprep.mubr.bf16.mxu0 0
    %2238 = vmatmul.mubr.bf16.gmra.mrb[0].mxu0 %v2072
    %v2239 = vpop.f32.mrb[0].mxu0
    %v2240 = vadd.f32 0.0, %v2239
    %v2241 = vpop.f32.mrb[0].mxu0
    %v2242 = vpop.f32.mrb[0].mxu0
    %v2243 = vadd.f32 0.0, %v2242
    %v2244 = vpop.f32.mrb[0].mxu0
    %2245 = vmatprep.mubr.bf16.mxu0 0
    %2246 = vmatmul.mubr.bf16.gmra.mrb[0].mxu0 %v2075
    %v2247 = vpop.f32.mrb[0].mxu0
    %v2248 = vadd.f32 0.0, %v2247
    %v2249 = vpop.f32.mrb[0].mxu0
    %v2250 = vpop.f32.mrb[0].mxu0
    %v2251 = vadd.f32 0.0, %v2250
    %v2252 = vpop.f32.mrb[0].mxu0
    %2253 = vmatprep.mubr.bf16.mxu0 0
    %2254 = vmatmul.mubr.bf16.gmra.mrb[0].mxu0 %v2078
    %v2255 = vpop.f32.mrb[0].mxu0
    %v2256 = vadd.f32 0.0, %v2255
    %v2257 = vpop.f32.mrb[0].mxu0
    %v2258 = vpop.f32.mrb[0].mxu0
    %v2259 = vadd.f32 0.0, %v2258
    %v2260 = vpop.f32.mrb[0].mxu0
    %2261 = vmatprep.mubr.bf16.mxu0 0
    %2262 = vmatmul.mubr.bf16.gmra.mrb[0].mxu0 %v2081
    %v2263 = vpop.f32.mrb[0].mxu0
    %v2264 = vadd.f32 0.0, %v2263
    %v2265 = vpop.f32.mrb[0].mxu0
    %v2266 = vpop.f32.mrb[0].mxu0
    %v2267 = vadd.f32 0.0, %v2266
    %v2268 = vpop.f32.mrb[0].mxu0
    %2269 = vmatprep.mubr.bf16.mxu0 0
    %2270 = vmatmul.mubr.bf16.gmra.mrb[0].mxu0 %v2084
    %v2271 = vpop.f32.mrb[0].mxu0
    %v2272 = vadd.f32 0.0, %v2271
    %v2273 = vpop.f32.mrb[0].mxu0
    %v2274 = vpop.f32.mrb[0].mxu0
    %v2275 = vadd.f32 0.0, %v2274
    %v2276 = vpop.f32.mrb[0].mxu0
    %2277 = vmatprep.mubr.bf16.mxu0 0
    %2278 = vmatmul.mubr.bf16.gmra.mrb[0].mxu0 %v2087
    %v2279 = vpop.f32.mrb[0].mxu0
    %v2280 = vadd.f32 0.0, %v2279
    %v2281 = vpop.f32.mrb[0].mxu0
    %v2282 = vpop.f32.mrb[0].mxu0
    %v2283 = vadd.f32 0.0, %v2282
    %v2284 = vpop.f32.mrb[0].mxu0
    %2285 = vmatprep.mubr.bf16.mxu0 0
    %2286 = vmatmul.mubr.bf16.gmra.mrb[0].mxu0 %v2090
    %v2287 = vpop.f32.mrb[0].mxu0
    %v2288 = vadd.f32 0.0, %v2287
    %v2289 = vpop.f32.mrb[0].mxu0
    %v2290 = vpop.f32.mrb[0].mxu0
    %v2291 = vadd.f32 0.0, %v2290
    %v2292 = vpop.f32.mrb[0].mxu0
    %2293 = vmatprep.mubr.bf16.mxu0 0
    %2294 = vmatmul.mubr.bf16.gmra.mrb[0].mxu0 %v2093
    %v2295 = vpop.f32.mrb[0].mxu0
    %v2296 = vadd.f32 0.0, %v2295
    %v2297 = vpop.f32.mrb[0].mxu0
    %v2298 = vpop.f32.mrb[0].mxu0
    %v2299 = vadd.f32 0.0, %v2298
    %v2300 = vpop.f32.mrb[0].mxu0
    %2301 = vmatprep.mubr.bf16.mxu0 0
    %2302 = vmatmul.mubr.bf16.gmra.mrb[0].mxu0 %v2096
    %v2303 = vpop.f32.mrb[0].mxu0
    %v2304 = vadd.f32 0.0, %v2303
    %v2305 = vpop.f32.mrb[0].mxu0
    %v2306 = vpop.f32.mrb[0].mxu0
    %v2307 = vadd.f32 0.0, %v2306
    %v2308 = vpop.f32.mrb[0].mxu0
    %2309 = vmatprep.mubr.bf16.mxu0 0
    %2310 = vmatmul.mubr.bf16.gmra.mrb[0].mxu0 %v2099
    %v2311 = vpop.f32.mrb[0].mxu0
    %v2312 = vadd.f32 0.0, %v2311
    %v2313 = vpop.f32.mrb[0].mxu0
    %v2314 = vpop.f32.mrb[0].mxu0
    %v2315 = vadd.f32 0.0, %v2314
    %v2316 = vpop.f32.mrb[0].mxu0
    %2317 = vmatprep.mubr.bf16.mxu0 0
    %2318 = vmatmul.mubr.bf16.gmra.mrb[0].mxu0 %v2102
    %v2319 = vpop.f32.mrb[0].mxu0
    %v2320 = vadd.f32 0.0, %v2319
    %v2321 = vpop.f32.mrb[0].mxu0
    %v2322 = vpop.f32.mrb[0].mxu0
    %v2323 = vadd.f32 0.0, %v2322
    %v2324 = vpop.f32.mrb[0].mxu0
    %2325 = vmatprep.mubr.bf16.mxu0 0
    %2326 = vmatmul.mubr.bf16.gmra.mrb[0].mxu0 %v2105
    %v2327 = vpop.f32.mrb[0].mxu0
    %v2328 = vadd.f32 0.0, %v2327
    %v2329 = vpop.f32.mrb[0].mxu0
    %v2330 = vpop.f32.mrb[0].mxu0
    %v2331 = vadd.f32 0.0, %v2330
    %v2332 = vpop.f32.mrb[0].mxu0
    %2333 = vmatprep.mubr.bf16.mxu0 0
    %2334 = vmatmul.mubr.bf16.gmra.mrb[0].mxu0 %v2108
    %v2335 = vpop.f32.mrb[0].mxu0
    %v2336 = vadd.f32 0.0, %v2335
    %v2337 = vpop.f32.mrb[0].mxu0
    %v2338 = vpop.f32.mrb[0].mxu0
    %v2339 = vadd.f32 0.0, %v2338
    %v2340 = vpop.f32.mrb[0].mxu0
    %2341 = vmatprep.mubr.bf16.mxu0 0
    %2342 = vmatmul.mubr.bf16.gmra.mrb[0].mxu0 %v2111
    %v2343 = vpop.f32.mrb[0].mxu0
    %v2344 = vadd.f32 0.0, %v2343
    %v2345 = vpop.f32.mrb[0].mxu0
    %v2346 = vpop.f32.mrb[0].mxu0
    %v2347 = vadd.f32 0.0, %v2346
    %v2348 = vpop.f32.mrb[0].mxu0
    %2349 = vmatprep.mubr.bf16.mxu0 0
    %2350 = vmatmul.mubr.bf16.gmra.mrb[0].mxu0 %v2114
    %v2351 = vpop.f32.mrb[0].mxu0
    %v2352 = vadd.f32 0.0, %v2351
    %v2353 = vpop.f32.mrb[0].mxu0
    %v2354 = vpop.f32.mrb[0].mxu0
    %v2355 = vadd.f32 0.0, %v2354
    %v2356 = vpop.f32.mrb[0].mxu0
    %2357 = vmatprep.mubr.bf16.mxu0 0
    %2358 = vmatmul.mubr.bf16.gmra.mrb[0].mxu0 %v2117
    %v2359 = vpop.f32.mrb[0].mxu0
    %v2360 = vadd.f32 0.0, %v2359
    %v2361 = vpop.f32.mrb[0].mxu0
    %v2362 = vpop.f32.mrb[0].mxu0
    %v2363 = vadd.f32 0.0, %v2362
    %v2364 = vpop.f32.mrb[0].mxu0
    %2365 = vmatprep.mubr.bf16.mxu0 0
    %2366 = vmatmul.mubr.bf16.gmra.mrb[0].mxu0 %v2120
    %v2367 = vpop.f32.mrb[0].mxu0
    %v2368 = vadd.f32 0.0, %v2367
    %v2369 = vpop.f32.mrb[0].mxu0
    %v2370 = vpop.f32.mrb[0].mxu0
    %v2371 = vadd.f32 0.0, %v2370
    %v2372 = vpop.f32.mrb[0].mxu0
    %2373 = vmatprep.mubr.bf16.mxu0 0
    %2374 = vmatmul.mubr.bf16.gmra.mrb[0].mxu0 %v2123
    %v2375 = vpop.f32.mrb[0].mxu0
    %v2376 = vadd.f32 0.0, %v2375
    %v2377 = vpop.f32.mrb[0].mxu0
    %v2378 = vpop.f32.mrb[0].mxu0
    %v2379 = vadd.f32 0.0, %v2378
    %v2380 = vpop.f32.mrb[0].mxu0
    %2381 = vmatprep.mubr.bf16.mxu0 0
    %2382 = vmatmul.mubr.bf16.gmra.mrb[0].mxu0 %v2126
    %v2383 = vpop.f32.mrb[0].mxu0
    %v2384 = vadd.f32 0.0, %v2383
    %v2385 = vpop.f32.mrb[0].mxu0
    %v2386 = vpop.f32.mrb[0].mxu0
    %v2387 = vadd.f32 0.0, %v2386
    %v2388 = vpop.f32.mrb[0].mxu0
    %2389 = vmatprep.mubr.bf16.mxu0 0
    %2390 = vmatmul.mubr.bf16.gmra.mrb[0].mxu0 %v2129
    %v2391 = vpop.f32.mrb[0].mxu0
    %v2392 = vadd.f32 0.0, %v2391
    %v2393 = vpop.f32.mrb[0].mxu0
    %v2394 = vpop.f32.mrb[0].mxu0
    %v2395 = vadd.f32 0.0, %v2394
    %v2396 = vpop.f32.mrb[0].mxu0
    %2397 = vmatprep.mubr.bf16.mxu0 0
    %2398 = vmatmul.mubr.bf16.gmra.mrb[0].mxu0 %v2132
    %v2399 = vpop.f32.mrb[0].mxu0
    %v2400 = vadd.f32 0.0, %v2399
    %v2401 = vpop.f32.mrb[0].mxu0
    %v2402 = vpop.f32.mrb[0].mxu0
    %v2403 = vadd.f32 0.0, %v2402
    %v2404 = vpop.f32.mrb[0].mxu0
    %2405 = vmatprep.mubr.bf16.mxu0 0
    %2406 = vmatmul.mubr.bf16.gmra.mrb[0].mxu0 %v2135
    %v2407 = vpop.f32.mrb[0].mxu0
    %v2408 = vadd.f32 0.0, %v2407
    %v2409 = vpop.f32.mrb[0].mxu0
    %v2410 = vpop.f32.mrb[0].mxu0
    %v2411 = vadd.f32 0.0, %v2410
    %v2412 = vpop.f32.mrb[0].mxu0
    %2413 = vmatprep.mubr.bf16.mxu0 0
    %2414 = vmatmul.mubr.bf16.gmra.mrb[0].mxu0 %v2138
    %v2415 = vpop.f32.mrb[0].mxu0
    %v2416 = vadd.f32 0.0, %v2415
    %v2417 = vpop.f32.mrb[0].mxu0
    %v2418 = vpop.f32.mrb[0].mxu0
    %v2419 = vadd.f32 0.0, %v2418
    %v2420 = vpop.f32.mrb[0].mxu0
    %2421 = vmatprep.mubr.bf16.mxu0 0
    %2422 = vmatmul.mubr.bf16.gmra.mrb[0].mxu0 %v2141
    %v2423 = vpop.f32.mrb[0].mxu0
    %v2424 = vadd.f32 0.0, %v2423
    %v2425 = vpop.f32.mrb[0].mxu0
    %v2426 = vpop.f32.mrb[0].mxu0
    %v2427 = vadd.f32 0.0, %v2426
    %v2428 = vpop.f32.mrb[0].mxu0
    %2429 = vmatprep.mubr.bf16.mxu0 0
    %2430 = vmatmul.mubr.bf16.gmra.mrb[0].mxu0 %v2144
    %v2431 = vpop.f32.mrb[0].mxu0
    %v2432 = vadd.f32 0.0, %v2431
    %v2433 = vpop.f32.mrb[0].mxu0
    %v2434 = vpop.f32.mrb[0].mxu0
    %v2435 = vadd.f32 0.0, %v2434
    %v2436 = vpop.f32.mrb[0].mxu0
    %2437 = vdwg.mxu0
    %v2438 = vld [vmem:[#allocation4] sm:$0xff]
    %v2439 = vld [vmem:[#allocation4 + $0x8] sm:$0xff]
    %v2440 = vld [vmem:[#allocation4 + $0x10] sm:$0xff]
    %v2441 = vld [vmem:[#allocation4 + $0x18] sm:$0xff]
    %v2442 = vld [vmem:[#allocation4 + $0x20] sm:$0xff]
    %v2443 = vld [vmem:[#allocation4 + $0x28] sm:$0xff]
    %v2444 = vld [vmem:[#allocation4 + $0x30] sm:$0xff]
    %v2445 = vld [vmem:[#allocation4 + $0x38] sm:$0xff]
    %v2446 = vld [vmem:[#allocation4 + $0x40] sm:$0xff]
    %v2447 = vld [vmem:[#allocation4 + $0x48] sm:$0xff]
    %v2448 = vld [vmem:[#allocation4 + $0x50] sm:$0xff]
    %v2449 = vld [vmem:[#allocation4 + $0x58] sm:$0xff]
    %v2450 = vld [vmem:[#allocation4 + $0x60] sm:$0xff]
    %v2451 = vld [vmem:[#allocation4 + $0x68] sm:$0xff]
    %v2452 = vld [vmem:[#allocation4 + $0x70] sm:$0xff]
    %v2453 = vld [vmem:[#allocation4 + $0x78] sm:$0xff]
    %v2454 = vld [vmem:[#allocation4 + $0x80] sm:$0xff]
    %v2455 = vld [vmem:[#allocation4 + $0x88] sm:$0xff]
    %v2456 = vld [vmem:[#allocation4 + $0x90] sm:$0xff]
    %v2457 = vld [vmem:[#allocation4 + $0x98] sm:$0xff]
    %v2458 = vld [vmem:[#allocation4 + $0xa0] sm:$0xff]
    %v2459 = vld [vmem:[#allocation4 + $0xa8] sm:$0xff]
    %v2460 = vld [vmem:[#allocation4 + $0xb0] sm:$0xff]
    %v2461 = vld [vmem:[#allocation4 + $0xb8] sm:$0xff]
    %v2462 = vld [vmem:[#allocation4 + $0xc0] sm:$0xff]
    %v2463 = vld [vmem:[#allocation4 + $0xc8] sm:$0xff]
    %v2464 = vld [vmem:[#allocation4 + $0xd0] sm:$0xff]
    %v2465 = vld [vmem:[#allocation4 + $0xd8] sm:$0xff]
    %v2466 = vld [vmem:[#allocation4 + $0xe0] sm:$0xff]
    %v2467 = vld [vmem:[#allocation4 + $0xe8] sm:$0xff]
    %v2468 = vld [vmem:[#allocation4 + $0xf0] sm:$0xff]
    %v2469 = vld [vmem:[#allocation4 + $0xf8] sm:$0xff]
    %v2470 = vld [vmem:[#allocation4 + $0x100] sm:$0xff]
    %v2471 = vld [vmem:[#allocation4 + $0x108] sm:$0xff]
    %v2472 = vld [vmem:[#allocation4 + $0x110] sm:$0xff]
    %v2473 = vld [vmem:[#allocation4 + $0x118] sm:$0xff]
    %v2474 = vld [vmem:[#allocation4 + $0x120] sm:$0xff]
    %v2475 = vld [vmem:[#allocation4 + $0x128] sm:$0xff]
    %v2476 = vld [vmem:[#allocation4 + $0x130] sm:$0xff]
    %v2477 = vld [vmem:[#allocation4 + $0x138] sm:$0xff]
    %v2478 = vld [vmem:[#allocation4 + $0x140] sm:$0xff]
    %v2479 = vld [vmem:[#allocation4 + $0x148] sm:$0xff]
    %v2480 = vld [vmem:[#allocation4 + $0x150] sm:$0xff]
    %v2481 = vld [vmem:[#allocation4 + $0x158] sm:$0xff]
    %v2482 = vld [vmem:[#allocation4 + $0x160] sm:$0xff]
    %v2483 = vld [vmem:[#allocation4 + $0x168] sm:$0xff]
    %v2484 = vld [vmem:[#allocation4 + $0x170] sm:$0xff]
    %v2485 = vld [vmem:[#allocation4 + $0x178] sm:$0xff]
    %v2486 = vld [vmem:[#allocation4 + $0x180] sm:$0xff]
    %v2487 = vld [vmem:[#allocation4 + $0x188] sm:$0xff]
    %v2488 = vld [vmem:[#allocation4 + $0x190] sm:$0xff]
    %v2489 = vld [vmem:[#allocation4 + $0x198] sm:$0xff]
    %v2490 = vld [vmem:[#allocation4 + $0x1a0] sm:$0xff]
    %v2491 = vld [vmem:[#allocation4 + $0x1a8] sm:$0xff]
    %v2492 = vld [vmem:[#allocation4 + $0x1b0] sm:$0xff]
    %v2493 = vld [vmem:[#allocation4 + $0x1b8] sm:$0xff]
    %v2494 = vld [vmem:[#allocation4 + $0x1c0] sm:$0xff]
    %v2495 = vld [vmem:[#allocation4 + $0x1c8] sm:$0xff]
    %v2496 = vld [vmem:[#allocation4 + $0x1d0] sm:$0xff]
    %v2497 = vld [vmem:[#allocation4 + $0x1d8] sm:$0xff]
    %v2498 = vld [vmem:[#allocation4 + $0x1e0] sm:$0xff]
    %v2499 = vld [vmem:[#allocation4 + $0x1e8] sm:$0xff]
    %v2500 = vld [vmem:[#allocation4 + $0x1f0] sm:$0xff]
    %v2501 = vld [vmem:[#allocation4 + $0x1f8] sm:$0xff]
    %v2502 = vadd.f32 %v2438, %v2184
    %v2503 = vadd.f32 %v2439, %v2187
    %v2504 = vadd.f32 %v2440, %v2192
    %v2505 = vadd.f32 %v2441, %v2195
    %v2506 = vadd.f32 %v2442, %v2200
    %v2507 = vadd.f32 %v2443, %v2203
    %v2508 = vadd.f32 %v2444, %v2208
    %v2509 = vadd.f32 %v2445, %v2211
    %v2510 = vadd.f32 %v2446, %v2216
    %v2511 = vadd.f32 %v2447, %v2219
    %v2512 = vadd.f32 %v2448, %v2224
    %v2513 = vadd.f32 %v2449, %v2227
    %v2514 = vadd.f32 %v2450, %v2232
    %v2515 = vadd.f32 %v2451, %v2235
    %v2516 = vadd.f32 %v2452, %v2240
    %v2517 = vadd.f32 %v2453, %v2243
    %v2518 = vadd.f32 %v2454, %v2248
    %v2519 = vadd.f32 %v2455, %v2251
    %v2520 = vadd.f32 %v2456, %v2256
    %v2521 = vadd.f32 %v2457, %v2259
    %v2522 = vadd.f32 %v2458, %v2264
    %v2523 = vadd.f32 %v2459, %v2267
    %v2524 = vadd.f32 %v2460, %v2272
    %v2525 = vadd.f32 %v2461, %v2275
    %v2526 = vadd.f32 %v2462, %v2280
    %v2527 = vadd.f32 %v2463, %v2283
    %v2528 = vadd.f32 %v2464, %v2288
    %v2529 = vadd.f32 %v2465, %v2291
    %v2530 = vadd.f32 %v2466, %v2296
    %v2531 = vadd.f32 %v2467, %v2299
    %v2532 = vadd.f32 %v2468, %v2304
    %v2533 = vadd.f32 %v2469, %v2307
    %v2534 = vadd.f32 %v2470, %v2312
    %v2535 = vadd.f32 %v2471, %v2315
    %v2536 = vadd.f32 %v2472, %v2320
    %v2537 = vadd.f32 %v2473, %v2323
    %v2538 = vadd.f32 %v2474, %v2328
    %v2539 = vadd.f32 %v2475, %v2331
    %v2540 = vadd.f32 %v2476, %v2336
    %v2541 = vadd.f32 %v2477, %v2339
    %v2542 = vadd.f32 %v2478, %v2344
    %v2543 = vadd.f32 %v2479, %v2347
    %v2544 = vadd.f32 %v2480, %v2352
    %v2545 = vadd.f32 %v2481, %v2355
    %v2546 = vadd.f32 %v2482, %v2360
    %v2547 = vadd.f32 %v2483, %v2363
    %v2548 = vadd.f32 %v2484, %v2368
    %v2549 = vadd.f32 %v2485, %v2371
    %v2550 = vadd.f32 %v2486, %v2376
    %v2551 = vadd.f32 %v2487, %v2379
    %v2552 = vadd.f32 %v2488, %v2384
    %v2553 = vadd.f32 %v2489, %v2387
    %v2554 = vadd.f32 %v2490, %v2392
    %v2555 = vadd.f32 %v2491, %v2395
    %v2556 = vadd.f32 %v2492, %v2400
    %v2557 = vadd.f32 %v2493, %v2403
    %v2558 = vadd.f32 %v2494, %v2408
    %v2559 = vadd.f32 %v2495, %v2411
    %v2560 = vadd.f32 %v2496, %v2416
    %v2561 = vadd.f32 %v2497, %v2419
    %v2562 = vadd.f32 %v2498, %v2424
    %v2563 = vadd.f32 %v2499, %v2427
    %v2564 = vadd.f32 %v2500, %v2432
    %v2565 = vadd.f32 %v2501, %v2435
    %2566 = vst [vmem:[#allocation4] sm:$0xff] %v2502
    %2567 = vst [vmem:[#allocation4 + $0x8] sm:$0xff] %v2503
    %2568 = vst [vmem:[#allocation4 + $0x10] sm:$0xff] %v2504
    %2569 = vst [vmem:[#allocation4 + $0x18] sm:$0xff] %v2505
    %2570 = vst [vmem:[#allocation4 + $0x20] sm:$0xff] %v2506
    %2571 = vst [vmem:[#allocation4 + $0x28] sm:$0xff] %v2507
    %2572 = vst [vmem:[#allocation4 + $0x30] sm:$0xff] %v2508
    %2573 = vst [vmem:[#allocation4 + $0x38] sm:$0xff] %v2509
    %2574 = vst [vmem:[#allocation4 + $0x40] sm:$0xff] %v2510
    %2575 = vst [vmem:[#allocation4 + $0x48] sm:$0xff] %v2511
    %2576 = vst [vmem:[#allocation4 + $0x50] sm:$0xff] %v2512
    %2577 = vst [vmem:[#allocation4 + $0x58] sm:$0xff] %v2513
    %2578 = vst [vmem:[#allocation4 + $0x60] sm:$0xff] %v2514
    %2579 = vst [vmem:[#allocation4 + $0x68] sm:$0xff] %v2515
    %2580 = vst [vmem:[#allocation4 + $0x70] sm:$0xff] %v2516
    %2581 = vst [vmem:[#allocation4 + $0x78] sm:$0xff] %v2517
    %2582 = vst [vmem:[#allocation4 + $0x80] sm:$0xff] %v2518
    %2583 = vst [vmem:[#allocation4 + $0x88] sm:$0xff] %v2519
    %2584 = vst [vmem:[#allocation4 + $0x90] sm:$0xff] %v2520
    %2585 = vst [vmem:[#allocation4 + $0x98] sm:$0xff] %v2521
    %2586 = vst [vmem:[#allocation4 + $0xa0] sm:$0xff] %v2522
    %2587 = vst [vmem:[#allocation4 + $0xa8] sm:$0xff] %v2523
    %2588 = vst [vmem:[#allocation4 + $0xb0] sm:$0xff] %v2524
    %2589 = vst [vmem:[#allocation4 + $0xb8] sm:$0xff] %v2525
    %2590 = vst [vmem:[#allocation4 + $0xc0] sm:$0xff] %v2526
    %2591 = vst [vmem:[#allocation4 + $0xc8] sm:$0xff] %v2527
    %2592 = vst [vmem:[#allocation4 + $0xd0] sm:$0xff] %v2528
    %2593 = vst [vmem:[#allocation4 + $0xd8] sm:$0xff] %v2529
    %2594 = vst [vmem:[#allocation4 + $0xe0] sm:$0xff] %v2530
    %2595 = vst [vmem:[#allocation4 + $0xe8] sm:$0xff] %v2531
    %2596 = vst [vmem:[#allocation4 + $0xf0] sm:$0xff] %v2532
    %2597 = vst [vmem:[#allocation4 + $0xf8] sm:$0xff] %v2533
    %2598 = vst [vmem:[#allocation4 + $0x100] sm:$0xff] %v2534
    %2599 = vst [vmem:[#allocation4 + $0x108] sm:$0xff] %v2535
    %2600 = vst [vmem:[#allocation4 + $0x110] sm:$0xff] %v2536
    %2601 = vst [vmem:[#allocation4 + $0x118] sm:$0xff] %v2537
    %2602 = vst [vmem:[#allocation4 + $0x120] sm:$0xff] %v2538
    %2603 = vst [vmem:[#allocation4 + $0x128] sm:$0xff] %v2539
    %2604 = vst [vmem:[#allocation4 + $0x130] sm:$0xff] %v2540
    %2605 = vst [vmem:[#allocation4 + $0x138] sm:$0xff] %v2541
    %2606 = vst [vmem:[#allocation4 + $0x140] sm:$0xff] %v2542
    %2607 = vst [vmem:[#allocation4 + $0x148] sm:$0xff] %v2543
    %2608 = vst [vmem:[#allocation4 + $0x150] sm:$0xff] %v2544
    %2609 = vst [vmem:[#allocation4 + $0x158] sm:$0xff] %v2545
    %2610 = vst [vmem:[#allocation4 + $0x160] sm:$0xff] %v2546
    %2611 = vst [vmem:[#allocation4 + $0x168] sm:$0xff] %v2547
    %2612 = vst [vmem:[#allocation4 + $0x170] sm:$0xff] %v2548
    %2613 = vst [vmem:[#allocation4 + $0x178] sm:$0xff] %v2549
    %2614 = vst [vmem:[#allocation4 + $0x180] sm:$0xff] %v2550
    %2615 = vst [vmem:[#allocation4 + $0x188] sm:$0xff] %v2551
    %2616 = vst [vmem:[#allocation4 + $0x190] sm:$0xff] %v2552
    %2617 = vst [vmem:[#allocation4 + $0x198] sm:$0xff] %v2553
    %2618 = vst [vmem:[#allocation4 + $0x1a0] sm:$0xff] %v2554
    %2619 = vst [vmem:[#allocation4 + $0x1a8] sm:$0xff] %v2555
    %2620 = vst [vmem:[#allocation4 + $0x1b0] sm:$0xff] %v2556
    %2621 = vst [vmem:[#allocation4 + $0x1b8] sm:$0xff] %v2557
    %2622 = vst [vmem:[#allocation4 + $0x1c0] sm:$0xff] %v2558
    %2623 = vst [vmem:[#allocation4 + $0x1c8] sm:$0xff] %v2559
    %2624 = vst [vmem:[#allocation4 + $0x1d0] sm:$0xff] %v2560
    %2625 = vst [vmem:[#allocation4 + $0x1d8] sm:$0xff] %v2561
    %2626 = vst [vmem:[#allocation4 + $0x1e0] sm:$0xff] %v2562
    %2627 = vst [vmem:[#allocation4 + $0x1e8] sm:$0xff] %v2563
    %2628 = vst [vmem:[#allocation4 + $0x1f0] sm:$0xff] %v2564
    %2629 = vst [vmem:[#allocation4 + $0x1f8] sm:$0xff] %v2565
    %s2630 = scalar_lea.vmem [#allocation2], 16
    %v2631 = vld [vmem:[%s2630] sm:$0xff]
    %v2632 = vld [vmem:[%s2630 + $0x8] sm:$0xff]
    %v2633 = vld [vmem:[%s2630 + $0x10] sm:$0xff]
    %v2634 = vld [vmem:[%s2630 + $0x18] sm:$0xff]
    %v2635 = vld [vmem:[%s2630 + $0x20] sm:$0xff]
    %v2636 = vld [vmem:[%s2630 + $0x28] sm:$0xff]
    %v2637 = vld [vmem:[%s2630 + $0x30] sm:$0xff]
    %v2638 = vld [vmem:[%s2630 + $0x38] sm:$0xff]
    %v2639 = vld [vmem:[%s2630 + $0x40] sm:$0xff]
    %v2640 = vld [vmem:[%s2630 + $0x48] sm:$0xff]
    %v2641 = vld [vmem:[%s2630 + $0x50] sm:$0xff]
    %v2642 = vld [vmem:[%s2630 + $0x58] sm:$0xff]
    %v2643 = vld [vmem:[%s2630 + $0x60] sm:$0xff]
    %v2644 = vld [vmem:[%s2630 + $0x68] sm:$0xff]
    %v2645 = vld [vmem:[%s2630 + $0x70] sm:$0xff]
    %v2646 = vld [vmem:[%s2630 + $0x78] sm:$0xff]
    %v2647 = vld [vmem:[%s2630 + $0x90] sm:$0xff]
    %v2648 = vld [vmem:[%s2630 + $0x98] sm:$0xff]
    %v2649 = vld [vmem:[%s2630 + $0xa0] sm:$0xff]
    %v2650 = vld [vmem:[%s2630 + $0xa8] sm:$0xff]
    %v2651 = vld [vmem:[%s2630 + $0xb0] sm:$0xff]
    %v2652 = vld [vmem:[%s2630 + $0xb8] sm:$0xff]
    %v2653 = vld [vmem:[%s2630 + $0xc0] sm:$0xff]
    %v2654 = vld [vmem:[%s2630 + $0xc8] sm:$0xff]
    %v2655 = vld [vmem:[%s2630 + $0xd0] sm:$0xff]
    %v2656 = vld [vmem:[%s2630 + $0xd8] sm:$0xff]
    %v2657 = vld [vmem:[%s2630 + $0xe0] sm:$0xff]
    %v2658 = vld [vmem:[%s2630 + $0xe8] sm:$0xff]
    %v2659 = vld [vmem:[%s2630 + $0xf0] sm:$0xff]
    %v2660 = vld [vmem:[%s2630 + $0xf8] sm:$0xff]
    %v2661 = vld [vmem:[%s2630 + $0x100] sm:$0xff]
    %v2662 = vld [vmem:[%s2630 + $0x108] sm:$0xff]
    %s2663 = scalar_lea.vmem %s1, 16
    %v2664 = vld [vmem:[%s2663] sm:$0xf]
    %v2665 = vld [vmem:[%s2663 + $0x4] sm:$0x1]
    %v2668 = vunpack.c.l.b16 %v2664
    %v2669 = vunpack.c.l.b16 %v2665
    %v2670 = vpack.c.b16 %v2669, %v2668
    %v2672 = vsel %vm1552, %v2631, 0
    %v2675 = vsel %vm1552, %v2632, 0
    %v2678 = vsel %vm1552, %v2633, 0
    %v2681 = vsel %vm1552, %v2634, 0
    %v2684 = vsel %vm1552, %v2635, 0
    %v2687 = vsel %vm1552, %v2636, 0
    %v2690 = vsel %vm1552, %v2637, 0
    %v2693 = vsel %vm1552, %v2638, 0
    %v2696 = vsel %vm1552, %v2639, 0
    %v2699 = vsel %vm1552, %v2640, 0
    %v2702 = vsel %vm1552, %v2641, 0
    %v2705 = vsel %vm1552, %v2642, 0
    %v2708 = vsel %vm1552, %v2643, 0
    %v2711 = vsel %vm1552, %v2644, 0
    %v2714 = vsel %vm1552, %v2645, 0
    %v2717 = vsel %vm1552, %v2646, 0
    %v2720 = vsel %vm1552, %v2647, 0
    %v2723 = vsel %vm1552, %v2648, 0
    %v2726 = vsel %vm1552, %v2649, 0
    %v2729 = vsel %vm1552, %v2650, 0
    %v2732 = vsel %vm1552, %v2651, 0
    %v2735 = vsel %vm1552, %v2652, 0
    %v2738 = vsel %vm1552, %v2653, 0
    %v2741 = vsel %vm1552, %v2654, 0
    %v2744 = vsel %vm1552, %v2655, 0
    %v2747 = vsel %vm1552, %v2656, 0
    %v2750 = vsel %vm1552, %v2657, 0
    %v2753 = vsel %vm1552, %v2658, 0
    %v2756 = vsel %vm1552, %v2659, 0
    %v2759 = vsel %vm1552, %v2660, 0
    %v2762 = vsel %vm1552, %v2661, 0
    %v2765 = vsel %vm1552, %v2662, 0
    %v2768 = vand.u32 %v2670, %v1652
    %2770 = vmatprep.subr.bf16.mxu0 0
    %2771 = vmatpush1.bf16.msra.mxu0 %v2768
    %2772 = vmatprep.subr.bf16.mxu0 0
    %2773 = vmatpush1.bf16.msra.mxu0 0
    %2774 = vmatprep.subr.bf16.mxu0 0
    %2775 = vmatpush1.bf16.msra.mxu0 0
    %2776 = vmatprep.subr.bf16.mxu0 0
    %2777 = vmatpush1.bf16.msra.mxu0 0
    %2778 = vmatprep.subr.bf16.mxu0 0
    %2779 = vmatpush1.bf16.msra.mxu0 0
    %2780 = vmatprep.subr.bf16.mxu0 0
    %2781 = vmatpush1.bf16.msra.mxu0 0
    %2782 = vmatprep.subr.bf16.mxu0 0
    %2783 = vmatpush1.bf16.msra.mxu0 0
    %2784 = vmatprep.subr.bf16.mxu0 0
    %2785 = vmatpush1.bf16.msra.mxu0 0
    %2786 = vmatprep.subr.bf16.mxu0 0
    %2787 = vmatpush1.bf16.msra.mxu0 0
    %2788 = vmatprep.subr.bf16.mxu0 0
    %2789 = vmatpush1.bf16.msra.mxu0 0
    %2790 = vmatprep.subr.bf16.mxu0 0
    %2791 = vmatpush1.bf16.msra.mxu0 0
    %2792 = vmatprep.subr.bf16.mxu0 0
    %2793 = vmatpush1.bf16.msra.mxu0 0
    %2794 = vmatprep.subr.bf16.mxu0 0
    %2795 = vmatpush1.bf16.msra.mxu0 0
    %2796 = vmatprep.subr.bf16.mxu0 0
    %2797 = vmatpush1.bf16.msra.mxu0 0
    %2798 = vmatprep.subr.bf16.mxu0 0
    %2799 = vmatpush1.bf16.msra.mxu0 0
    %2800 = vmatprep.subr.bf16.mxu0 0
    %2801 = vmatpush1.bf16.msra.mxu0 0
    %2802 = vmatprep.mubr.bf16.mxu0 0
    %2803 = vmatmul.mubr.bf16.gmra.mrb[0].mxu0 %v2672
    %v2804 = vpop.f32.mrb[0].mxu0
    %v2805 = vadd.f32 0.0, %v2804
    %v2806 = vpop.f32.mrb[0].mxu0
    %v2807 = vpop.f32.mrb[0].mxu0
    %v2808 = vadd.f32 0.0, %v2807
    %v2809 = vpop.f32.mrb[0].mxu0
    %2810 = vmatprep.mubr.bf16.mxu0 0
    %2811 = vmatmul.mubr.bf16.gmra.mrb[0].mxu0 %v2675
    %v2812 = vpop.f32.mrb[0].mxu0
    %v2813 = vadd.f32 0.0, %v2812
    %v2814 = vpop.f32.mrb[0].mxu0
    %v2815 = vpop.f32.mrb[0].mxu0
    %v2816 = vadd.f32 0.0, %v2815
    %v2817 = vpop.f32.mrb[0].mxu0
    %2818 = vmatprep.mubr.bf16.mxu0 0
    %2819 = vmatmul.mubr.bf16.gmra.mrb[0].mxu0 %v2678
    %v2820 = vpop.f32.mrb[0].mxu0
    %v2821 = vadd.f32 0.0, %v2820
    %v2822 = vpop.f32.mrb[0].mxu0
    %v2823 = vpop.f32.mrb[0].mxu0
    %v2824 = vadd.f32 0.0, %v2823
    %v2825 = vpop.f32.mrb[0].mxu0
    %2826 = vmatprep.mubr.bf16.mxu0 0
    %2827 = vmatmul.mubr.bf16.gmra.mrb[0].mxu0 %v2681
    %v2828 = vpop.f32.mrb[0].mxu0
    %v2829 = vadd.f32 0.0, %v2828
    %v2830 = vpop.f32.mrb[0].mxu0
    %v2831 = vpop.f32.mrb[0].mxu0
    %v2832 = vadd.f32 0.0, %v2831
    %v2833 = vpop.f32.mrb[0].mxu0
    %2834 = vmatprep.mubr.bf16.mxu0 0
    %2835 = vmatmul.mubr.bf16.gmra.mrb[0].mxu0 %v2684
    %v2836 = vpop.f32.mrb[0].mxu0
    %v2837 = vadd.f32 0.0, %v2836
    %v2838 = vpop.f32.mrb[0].mxu0
    %v2839 = vpop.f32.mrb[0].mxu0
    %v2840 = vadd.f32 0.0, %v2839
    %v2841 = vpop.f32.mrb[0].mxu0
    %2842 = vmatprep.mubr.bf16.mxu0 0
    %2843 = vmatmul.mubr.bf16.gmra.mrb[0].mxu0 %v2687
    %v2844 = vpop.f32.mrb[0].mxu0
    %v2845 = vadd.f32 0.0, %v2844
    %v2846 = vpop.f32.mrb[0].mxu0
    %v2847 = vpop.f32.mrb[0].mxu0
    %v2848 = vadd.f32 0.0, %v2847
    %v2849 = vpop.f32.mrb[0].mxu0
    %2850 = vmatprep.mubr.bf16.mxu0 0
    %2851 = vmatmul.mubr.bf16.gmra.mrb[0].mxu0 %v2690
    %v2852 = vpop.f32.mrb[0].mxu0
    %v2853 = vadd.f32 0.0, %v2852
    %v2854 = vpop.f32.mrb[0].mxu0
    %v2855 = vpop.f32.mrb[0].mxu0
    %v2856 = vadd.f32 0.0, %v2855
    %v2857 = vpop.f32.mrb[0].mxu0
    %2858 = vmatprep.mubr.bf16.mxu0 0
    %2859 = vmatmul.mubr.bf16.gmra.mrb[0].mxu0 %v2693
    %v2860 = vpop.f32.mrb[0].mxu0
    %v2861 = vadd.f32 0.0, %v2860
    %v2862 = vpop.f32.mrb[0].mxu0
    %v2863 = vpop.f32.mrb[0].mxu0
    %v2864 = vadd.f32 0.0, %v2863
    %v2865 = vpop.f32.mrb[0].mxu0
    %2866 = vmatprep.mubr.bf16.mxu0 0
    %2867 = vmatmul.mubr.bf16.gmra.mrb[0].mxu0 %v2696
    %v2868 = vpop.f32.mrb[0].mxu0
    %v2869 = vadd.f32 0.0, %v2868
    %v2870 = vpop.f32.mrb[0].mxu0
    %v2871 = vpop.f32.mrb[0].mxu0
    %v2872 = vadd.f32 0.0, %v2871
    %v2873 = vpop.f32.mrb[0].mxu0
    %2874 = vmatprep.mubr.bf16.mxu0 0
    %2875 = vmatmul.mubr.bf16.gmra.mrb[0].mxu0 %v2699
    %v2876 = vpop.f32.mrb[0].mxu0
    %v2877 = vadd.f32 0.0, %v2876
    %v2878 = vpop.f32.mrb[0].mxu0
    %v2879 = vpop.f32.mrb[0].mxu0
    %v2880 = vadd.f32 0.0, %v2879
    %v2881 = vpop.f32.mrb[0].mxu0
    %2882 = vmatprep.mubr.bf16.mxu0 0
    %2883 = vmatmul.mubr.bf16.gmra.mrb[0].mxu0 %v2702
    %v2884 = vpop.f32.mrb[0].mxu0
    %v2885 = vadd.f32 0.0, %v2884
    %v2886 = vpop.f32.mrb[0].mxu0
    %v2887 = vpop.f32.mrb[0].mxu0
    %v2888 = vadd.f32 0.0, %v2887
    %v2889 = vpop.f32.mrb[0].mxu0
    %2890 = vmatprep.mubr.bf16.mxu0 0
    %2891 = vmatmul.mubr.bf16.gmra.mrb[0].mxu0 %v2705
    %v2892 = vpop.f32.mrb[0].mxu0
    %v2893 = vadd.f32 0.0, %v2892
    %v2894 = vpop.f32.mrb[0].mxu0
    %v2895 = vpop.f32.mrb[0].mxu0
    %v2896 = vadd.f32 0.0, %v2895
    %v2897 = vpop.f32.mrb[0].mxu0
    %2898 = vmatprep.mubr.bf16.mxu0 0
    %2899 = vmatmul.mubr.bf16.gmra.mrb[0].mxu0 %v2708
    %v2900 = vpop.f32.mrb[0].mxu0
    %v2901 = vadd.f32 0.0, %v2900
    %v2902 = vpop.f32.mrb[0].mxu0
    %v2903 = vpop.f32.mrb[0].mxu0
    %v2904 = vadd.f32 0.0, %v2903
    %v2905 = vpop.f32.mrb[0].mxu0
    %2906 = vmatprep.mubr.bf16.mxu0 0
    %2907 = vmatmul.mubr.bf16.gmra.mrb[0].mxu0 %v2711
    %v2908 = vpop.f32.mrb[0].mxu0
    %v2909 = vadd.f32 0.0, %v2908
    %v2910 = vpop.f32.mrb[0].mxu0
    %v2911 = vpop.f32.mrb[0].mxu0
    %v2912 = vadd.f32 0.0, %v2911
    %v2913 = vpop.f32.mrb[0].mxu0
    %2914 = vmatprep.mubr.bf16.mxu0 0
    %2915 = vmatmul.mubr.bf16.gmra.mrb[0].mxu0 %v2714
    %v2916 = vpop.f32.mrb[0].mxu0
    %v2917 = vadd.f32 0.0, %v2916
    %v2918 = vpop.f32.mrb[0].mxu0
    %v2919 = vpop.f32.mrb[0].mxu0
    %v2920 = vadd.f32 0.0, %v2919
    %v2921 = vpop.f32.mrb[0].mxu0
    %2922 = vmatprep.mubr.bf16.mxu0 0
    %2923 = vmatmul.mubr.bf16.gmra.mrb[0].mxu0 %v2717
    %v2924 = vpop.f32.mrb[0].mxu0
    %v2925 = vadd.f32 0.0, %v2924
    %v2926 = vpop.f32.mrb[0].mxu0
    %v2927 = vpop.f32.mrb[0].mxu0
    %v2928 = vadd.f32 0.0, %v2927
    %v2929 = vpop.f32.mrb[0].mxu0
    %2930 = vmatprep.mubr.bf16.mxu0 0
    %2931 = vmatmul.mubr.bf16.gmra.mrb[0].mxu0 %v2720
    %v2932 = vpop.f32.mrb[0].mxu0
    %v2933 = vadd.f32 0.0, %v2932
    %v2934 = vpop.f32.mrb[0].mxu0
    %v2935 = vpop.f32.mrb[0].mxu0
    %v2936 = vadd.f32 0.0, %v2935
    %v2937 = vpop.f32.mrb[0].mxu0
    %2938 = vmatprep.mubr.bf16.mxu0 0
    %2939 = vmatmul.mubr.bf16.gmra.mrb[0].mxu0 %v2723
    %v2940 = vpop.f32.mrb[0].mxu0
    %v2941 = vadd.f32 0.0, %v2940
    %v2942 = vpop.f32.mrb[0].mxu0
    %v2943 = vpop.f32.mrb[0].mxu0
    %v2944 = vadd.f32 0.0, %v2943
    %v2945 = vpop.f32.mrb[0].mxu0
    %2946 = vmatprep.mubr.bf16.mxu0 0
    %2947 = vmatmul.mubr.bf16.gmra.mrb[0].mxu0 %v2726
    %v2948 = vpop.f32.mrb[0].mxu0
    %v2949 = vadd.f32 0.0, %v2948
    %v2950 = vpop.f32.mrb[0].mxu0
    %v2951 = vpop.f32.mrb[0].mxu0
    %v2952 = vadd.f32 0.0, %v2951
    %v2953 = vpop.f32.mrb[0].mxu0
    %2954 = vmatprep.mubr.bf16.mxu0 0
    %2955 = vmatmul.mubr.bf16.gmra.mrb[0].mxu0 %v2729
    %v2956 = vpop.f32.mrb[0].mxu0
    %v2957 = vadd.f32 0.0, %v2956
    %v2958 = vpop.f32.mrb[0].mxu0
    %v2959 = vpop.f32.mrb[0].mxu0
    %v2960 = vadd.f32 0.0, %v2959
    %v2961 = vpop.f32.mrb[0].mxu0
    %2962 = vmatprep.mubr.bf16.mxu0 0
    %2963 = vmatmul.mubr.bf16.gmra.mrb[0].mxu0 %v2732
    %v2964 = vpop.f32.mrb[0].mxu0
    %v2965 = vadd.f32 0.0, %v2964
    %v2966 = vpop.f32.mrb[0].mxu0
    %v2967 = vpop.f32.mrb[0].mxu0
    %v2968 = vadd.f32 0.0, %v2967
    %v2969 = vpop.f32.mrb[0].mxu0
    %2970 = vmatprep.mubr.bf16.mxu0 0
    %2971 = vmatmul.mubr.bf16.gmra.mrb[0].mxu0 %v2735
    %v2972 = vpop.f32.mrb[0].mxu0
    %v2973 = vadd.f32 0.0, %v2972
    %v2974 = vpop.f32.mrb[0].mxu0
    %v2975 = vpop.f32.mrb[0].mxu0
    %v2976 = vadd.f32 0.0, %v2975
    %v2977 = vpop.f32.mrb[0].mxu0
    %2978 = vmatprep.mubr.bf16.mxu0 0
    %2979 = vmatmul.mubr.bf16.gmra.mrb[0].mxu0 %v2738
    %v2980 = vpop.f32.mrb[0].mxu0
    %v2981 = vadd.f32 0.0, %v2980
    %v2982 = vpop.f32.mrb[0].mxu0
    %v2983 = vpop.f32.mrb[0].mxu0
    %v2984 = vadd.f32 0.0, %v2983
    %v2985 = vpop.f32.mrb[0].mxu0
    %2986 = vmatprep.mubr.bf16.mxu0 0
    %2987 = vmatmul.mubr.bf16.gmra.mrb[0].mxu0 %v2741
    %v2988 = vpop.f32.mrb[0].mxu0
    %v2989 = vadd.f32 0.0, %v2988
    %v2990 = vpop.f32.mrb[0].mxu0
    %v2991 = vpop.f32.mrb[0].mxu0
    %v2992 = vadd.f32 0.0, %v2991
    %v2993 = vpop.f32.mrb[0].mxu0
    %2994 = vmatprep.mubr.bf16.mxu0 0
    %2995 = vmatmul.mubr.bf16.gmra.mrb[0].mxu0 %v2744
    %v2996 = vpop.f32.mrb[0].mxu0
    %v2997 = vadd.f32 0.0, %v2996
    %v2998 = vpop.f32.mrb[0].mxu0
    %v2999 = vpop.f32.mrb[0].mxu0
    %v3000 = vadd.f32 0.0, %v2999
    %v3001 = vpop.f32.mrb[0].mxu0
    %3002 = vmatprep.mubr.bf16.mxu0 0
    %3003 = vmatmul.mubr.bf16.gmra.mrb[0].mxu0 %v2747
    %v3004 = vpop.f32.mrb[0].mxu0
    %v3005 = vadd.f32 0.0, %v3004
    %v3006 = vpop.f32.mrb[0].mxu0
    %v3007 = vpop.f32.mrb[0].mxu0
    %v3008 = vadd.f32 0.0, %v3007
    %v3009 = vpop.f32.mrb[0].mxu0
    %3010 = vmatprep.mubr.bf16.mxu0 0
    %3011 = vmatmul.mubr.bf16.gmra.mrb[0].mxu0 %v2750
    %v3012 = vpop.f32.mrb[0].mxu0
    %v3013 = vadd.f32 0.0, %v3012
    %v3014 = vpop.f32.mrb[0].mxu0
    %v3015 = vpop.f32.mrb[0].mxu0
    %v3016 = vadd.f32 0.0, %v3015
    %v3017 = vpop.f32.mrb[0].mxu0
    %3018 = vmatprep.mubr.bf16.mxu0 0
    %3019 = vmatmul.mubr.bf16.gmra.mrb[0].mxu0 %v2753
    %v3020 = vpop.f32.mrb[0].mxu0
    %v3021 = vadd.f32 0.0, %v3020
    %v3022 = vpop.f32.mrb[0].mxu0
    %v3023 = vpop.f32.mrb[0].mxu0
    %v3024 = vadd.f32 0.0, %v3023
    %v3025 = vpop.f32.mrb[0].mxu0
    %3026 = vmatprep.mubr.bf16.mxu0 0
    %3027 = vmatmul.mubr.bf16.gmra.mrb[0].mxu0 %v2756
    %v3028 = vpop.f32.mrb[0].mxu0
    %v3029 = vadd.f32 0.0, %v3028
    %v3030 = vpop.f32.mrb[0].mxu0
    %v3031 = vpop.f32.mrb[0].mxu0
    %v3032 = vadd.f32 0.0, %v3031
    %v3033 = vpop.f32.mrb[0].mxu0
    %3034 = vmatprep.mubr.bf16.mxu0 0
    %3035 = vmatmul.mubr.bf16.gmra.mrb[0].mxu0 %v2759
    %v3036 = vpop.f32.mrb[0].mxu0
    %v3037 = vadd.f32 0.0, %v3036
    %v3038 = vpop.f32.mrb[0].mxu0
    %v3039 = vpop.f32.mrb[0].mxu0
    %v3040 = vadd.f32 0.0, %v3039
    %v3041 = vpop.f32.mrb[0].mxu0
    %3042 = vmatprep.mubr.bf16.mxu0 0
    %3043 = vmatmul.mubr.bf16.gmra.mrb[0].mxu0 %v2762
    %v3044 = vpop.f32.mrb[0].mxu0
    %v3045 = vadd.f32 0.0, %v3044
    %v3046 = vpop.f32.mrb[0].mxu0
    %v3047 = vpop.f32.mrb[0].mxu0
    %v3048 = vadd.f32 0.0, %v3047
    %v3049 = vpop.f32.mrb[0].mxu0
    %3050 = vmatprep.mubr.bf16.mxu0 0
    %3051 = vmatmul.mubr.bf16.gmra.mrb[0].mxu0 %v2765
    %v3052 = vpop.f32.mrb[0].mxu0
    %v3053 = vadd.f32 0.0, %v3052
    %v3054 = vpop.f32.mrb[0].mxu0
    %v3055 = vpop.f32.mrb[0].mxu0
    %v3056 = vadd.f32 0.0, %v3055
    %v3057 = vpop.f32.mrb[0].mxu0
    %3058 = vdwg.mxu0
    %v3059 = vld [vmem:[#allocation4] sm:$0xff]
    %v3060 = vld [vmem:[#allocation4 + $0x8] sm:$0xff]
    %v3061 = vld [vmem:[#allocation4 + $0x10] sm:$0xff]
    %v3062 = vld [vmem:[#allocation4 + $0x18] sm:$0xff]
    %v3063 = vld [vmem:[#allocation4 + $0x20] sm:$0xff]
    %v3064 = vld [vmem:[#allocation4 + $0x28] sm:$0xff]
    %v3065 = vld [vmem:[#allocation4 + $0x30] sm:$0xff]
    %v3066 = vld [vmem:[#allocation4 + $0x38] sm:$0xff]
    %v3067 = vld [vmem:[#allocation4 + $0x40] sm:$0xff]
    %v3068 = vld [vmem:[#allocation4 + $0x48] sm:$0xff]
    %v3069 = vld [vmem:[#allocation4 + $0x50] sm:$0xff]
    %v3070 = vld [vmem:[#allocation4 + $0x58] sm:$0xff]
    %v3071 = vld [vmem:[#allocation4 + $0x60] sm:$0xff]
    %v3072 = vld [vmem:[#allocation4 + $0x68] sm:$0xff]
    %v3073 = vld [vmem:[#allocation4 + $0x70] sm:$0xff]
    %v3074 = vld [vmem:[#allocation4 + $0x78] sm:$0xff]
    %v3075 = vld [vmem:[#allocation4 + $0x80] sm:$0xff]
    %v3076 = vld [vmem:[#allocation4 + $0x88] sm:$0xff]
    %v3077 = vld [vmem:[#allocation4 + $0x90] sm:$0xff]
    %v3078 = vld [vmem:[#allocation4 + $0x98] sm:$0xff]
    %v3079 = vld [vmem:[#allocation4 + $0xa0] sm:$0xff]
    %v3080 = vld [vmem:[#allocation4 + $0xa8] sm:$0xff]
    %v3081 = vld [vmem:[#allocation4 + $0xb0] sm:$0xff]
    %v3082 = vld [vmem:[#allocation4 + $0xb8] sm:$0xff]
    %v3083 = vld [vmem:[#allocation4 + $0xc0] sm:$0xff]
    %v3084 = vld [vmem:[#allocation4 + $0xc8] sm:$0xff]
    %v3085 = vld [vmem:[#allocation4 + $0xd0] sm:$0xff]
    %v3086 = vld [vmem:[#allocation4 + $0xd8] sm:$0xff]
    %v3087 = vld [vmem:[#allocation4 + $0xe0] sm:$0xff]
    %v3088 = vld [vmem:[#allocation4 + $0xe8] sm:$0xff]
    %v3089 = vld [vmem:[#allocation4 + $0xf0] sm:$0xff]
    %v3090 = vld [vmem:[#allocation4 + $0xf8] sm:$0xff]
    %v3091 = vld [vmem:[#allocation4 + $0x100] sm:$0xff]
    %v3092 = vld [vmem:[#allocation4 + $0x108] sm:$0xff]
    %v3093 = vld [vmem:[#allocation4 + $0x110] sm:$0xff]
    %v3094 = vld [vmem:[#allocation4 + $0x118] sm:$0xff]
    %v3095 = vld [vmem:[#allocation4 + $0x120] sm:$0xff]
    %v3096 = vld [vmem:[#allocation4 + $0x128] sm:$0xff]
    %v3097 = vld [vmem:[#allocation4 + $0x130] sm:$0xff]
    %v3098 = vld [vmem:[#allocation4 + $0x138] sm:$0xff]
    %v3099 = vld [vmem:[#allocation4 + $0x140] sm:$0xff]
    %v3100 = vld [vmem:[#allocation4 + $0x148] sm:$0xff]
    %v3101 = vld [vmem:[#allocation4 + $0x150] sm:$0xff]
    %v3102 = vld [vmem:[#allocation4 + $0x158] sm:$0xff]
    %v3103 = vld [vmem:[#allocation4 + $0x160] sm:$0xff]
    %v3104 = vld [vmem:[#allocation4 + $0x168] sm:$0xff]
    %v3105 = vld [vmem:[#allocation4 + $0x170] sm:$0xff]
    %v3106 = vld [vmem:[#allocation4 + $0x178] sm:$0xff]
    %v3107 = vld [vmem:[#allocation4 + $0x180] sm:$0xff]
    %v3108 = vld [vmem:[#allocation4 + $0x188] sm:$0xff]
    %v3109 = vld [vmem:[#allocation4 + $0x190] sm:$0xff]
    %v3110 = vld [vmem:[#allocation4 + $0x198] sm:$0xff]
    %v3111 = vld [vmem:[#allocation4 + $0x1a0] sm:$0xff]
    %v3112 = vld [vmem:[#allocation4 + $0x1a8] sm:$0xff]
    %v3113 = vld [vmem:[#allocation4 + $0x1b0] sm:$0xff]
    %v3114 = vld [vmem:[#allocation4 + $0x1b8] sm:$0xff]
    %v3115 = vld [vmem:[#allocation4 + $0x1c0] sm:$0xff]
    %v3116 = vld [vmem:[#allocation4 + $0x1c8] sm:$0xff]
    %v3117 = vld [vmem:[#allocation4 + $0x1d0] sm:$0xff]
    %v3118 = vld [vmem:[#allocation4 + $0x1d8] sm:$0xff]
    %v3119 = vld [vmem:[#allocation4 + $0x1e0] sm:$0xff]
    %v3120 = vld [vmem:[#allocation4 + $0x1e8] sm:$0xff]
    %v3121 = vld [vmem:[#allocation4 + $0x1f0] sm:$0xff]
    %v3122 = vld [vmem:[#allocation4 + $0x1f8] sm:$0xff]
    %v3123 = vadd.f32 %v3059, %v2805
    %v3124 = vadd.f32 %v3060, %v2808
    %v3125 = vadd.f32 %v3061, %v2813
    %v3126 = vadd.f32 %v3062, %v2816
    %v3127 = vadd.f32 %v3063, %v2821
    %v3128 = vadd.f32 %v3064, %v2824
    %v3129 = vadd.f32 %v3065, %v2829
    %v3130 = vadd.f32 %v3066, %v2832
    %v3131 = vadd.f32 %v3067, %v2837
    %v3132 = vadd.f32 %v3068, %v2840
    %v3133 = vadd.f32 %v3069, %v2845
    %v3134 = vadd.f32 %v3070, %v2848
    %v3135 = vadd.f32 %v3071, %v2853
    %v3136 = vadd.f32 %v3072, %v2856
    %v3137 = vadd.f32 %v3073, %v2861
    %v3138 = vadd.f32 %v3074, %v2864
    %v3139 = vadd.f32 %v3075, %v2869
    %v3140 = vadd.f32 %v3076, %v2872
    %v3141 = vadd.f32 %v3077, %v2877
    %v3142 = vadd.f32 %v3078, %v2880
    %v3143 = vadd.f32 %v3079, %v2885
    %v3144 = vadd.f32 %v3080, %v2888
    %v3145 = vadd.f32 %v3081, %v2893
    %v3146 = vadd.f32 %v3082, %v2896
    %v3147 = vadd.f32 %v3083, %v2901
    %v3148 = vadd.f32 %v3084, %v2904
    %v3149 = vadd.f32 %v3085, %v2909
    %v3150 = vadd.f32 %v3086, %v2912
    %v3151 = vadd.f32 %v3087, %v2917
    %v3152 = vadd.f32 %v3088, %v2920
    %v3153 = vadd.f32 %v3089, %v2925
    %v3154 = vadd.f32 %v3090, %v2928
    %v3155 = vadd.f32 %v3091, %v2933
    %v3156 = vadd.f32 %v3092, %v2936
    %v3157 = vadd.f32 %v3093, %v2941
    %v3158 = vadd.f32 %v3094, %v2944
    %v3159 = vadd.f32 %v3095, %v2949
    %v3160 = vadd.f32 %v3096, %v2952
    %v3161 = vadd.f32 %v3097, %v2957
    %v3162 = vadd.f32 %v3098, %v2960
    %v3163 = vadd.f32 %v3099, %v2965
    %v3164 = vadd.f32 %v3100, %v2968
    %v3165 = vadd.f32 %v3101, %v2973
    %v3166 = vadd.f32 %v3102, %v2976
    %v3167 = vadd.f32 %v3103, %v2981
    %v3168 = vadd.f32 %v3104, %v2984
    %v3169 = vadd.f32 %v3105, %v2989
    %v3170 = vadd.f32 %v3106, %v2992
    %v3171 = vadd.f32 %v3107, %v2997
    %v3172 = vadd.f32 %v3108, %v3000
    %v3173 = vadd.f32 %v3109, %v3005
    %v3174 = vadd.f32 %v3110, %v3008
    %v3175 = vadd.f32 %v3111, %v3013
    %v3176 = vadd.f32 %v3112, %v3016
    %v3177 = vadd.f32 %v3113, %v3021
    %v3178 = vadd.f32 %v3114, %v3024
    %v3179 = vadd.f32 %v3115, %v3029
    %v3180 = vadd.f32 %v3116, %v3032
    %v3181 = vadd.f32 %v3117, %v3037
    %v3182 = vadd.f32 %v3118, %v3040
    %v3183 = vadd.f32 %v3119, %v3045
    %v3184 = vadd.f32 %v3120, %v3048
    %v3185 = vadd.f32 %v3121, %v3053
    %v3186 = vadd.f32 %v3122, %v3056
    %3187 = vst [vmem:[#allocation4] sm:$0xff] %v3123
    %3188 = vst [vmem:[#allocation4 + $0x8] sm:$0xff] %v3124
    %3189 = vst [vmem:[#allocation4 + $0x10] sm:$0xff] %v3125
    %3190 = vst [vmem:[#allocation4 + $0x18] sm:$0xff] %v3126
    %3191 = vst [vmem:[#allocation4 + $0x20] sm:$0xff] %v3127
    %3192 = vst [vmem:[#allocation4 + $0x28] sm:$0xff] %v3128
    %3193 = vst [vmem:[#allocation4 + $0x30] sm:$0xff] %v3129
    %3194 = vst [vmem:[#allocation4 + $0x38] sm:$0xff] %v3130
    %3195 = vst [vmem:[#allocation4 + $0x40] sm:$0xff] %v3131
    %3196 = vst [vmem:[#allocation4 + $0x48] sm:$0xff] %v3132
    %3197 = vst [vmem:[#allocation4 + $0x50] sm:$0xff] %v3133
    %3198 = vst [vmem:[#allocation4 + $0x58] sm:$0xff] %v3134
    %3199 = vst [vmem:[#allocation4 + $0x60] sm:$0xff] %v3135
    %3200 = vst [vmem:[#allocation4 + $0x68] sm:$0xff] %v3136
    %3201 = vst [vmem:[#allocation4 + $0x70] sm:$0xff] %v3137
    %3202 = vst [vmem:[#allocation4 + $0x78] sm:$0xff] %v3138
    %3203 = vst [vmem:[#allocation4 + $0x80] sm:$0xff] %v3139
    %3204 = vst [vmem:[#allocation4 + $0x88] sm:$0xff] %v3140
    %3205 = vst [vmem:[#allocation4 + $0x90] sm:$0xff] %v3141
    %3206 = vst [vmem:[#allocation4 + $0x98] sm:$0xff] %v3142
    %3207 = vst [vmem:[#allocation4 + $0xa0] sm:$0xff] %v3143
    %3208 = vst [vmem:[#allocation4 + $0xa8] sm:$0xff] %v3144
    %3209 = vst [vmem:[#allocation4 + $0xb0] sm:$0xff] %v3145
    %3210 = vst [vmem:[#allocation4 + $0xb8] sm:$0xff] %v3146
    %3211 = vst [vmem:[#allocation4 + $0xc0] sm:$0xff] %v3147
    %3212 = vst [vmem:[#allocation4 + $0xc8] sm:$0xff] %v3148
    %3213 = vst [vmem:[#allocation4 + $0xd0] sm:$0xff] %v3149
    %3214 = vst [vmem:[#allocation4 + $0xd8] sm:$0xff] %v3150
    %3215 = vst [vmem:[#allocation4 + $0xe0] sm:$0xff] %v3151
    %3216 = vst [vmem:[#allocation4 + $0xe8] sm:$0xff] %v3152
    %3217 = vst [vmem:[#allocation4 + $0xf0] sm:$0xff] %v3153
    %3218 = vst [vmem:[#allocation4 + $0xf8] sm:$0xff] %v3154
    %3219 = vst [vmem:[#allocation4 + $0x100] sm:$0xff] %v3155
    %3220 = vst [vmem:[#allocation4 + $0x108] sm:$0xff] %v3156
    %3221 = vst [vmem:[#allocation4 + $0x110] sm:$0xff] %v3157
    %3222 = vst [vmem:[#allocation4 + $0x118] sm:$0xff] %v3158
    %3223 = vst [vmem:[#allocation4 + $0x120] sm:$0xff] %v3159
    %3224 = vst [vmem:[#allocation4 + $0x128] sm:$0xff] %v3160
    %3225 = vst [vmem:[#allocation4 + $0x130] sm:$0xff] %v3161
    %3226 = vst [vmem:[#allocation4 + $0x138] sm:$0xff] %v3162
    %3227 = vst [vmem:[#allocation4 + $0x140] sm:$0xff] %v3163
    %3228 = vst [vmem:[#allocation4 + $0x148] sm:$0xff] %v3164
    %3229 = vst [vmem:[#allocation4 + $0x150] sm:$0xff] %v3165
    %3230 = vst [vmem:[#allocation4 + $0x158] sm:$0xff] %v3166
    %3231 = vst [vmem:[#allocation4 + $0x160] sm:$0xff] %v3167
    %3232 = vst [vmem:[#allocation4 + $0x168] sm:$0xff] %v3168
    %3233 = vst [vmem:[#allocation4 + $0x170] sm:$0xff] %v3169
    %3234 = vst [vmem:[#allocation4 + $0x178] sm:$0xff] %v3170
    %3235 = vst [vmem:[#allocation4 + $0x180] sm:$0xff] %v3171
    %3236 = vst [vmem:[#allocation4 + $0x188] sm:$0xff] %v3172
    %3237 = vst [vmem:[#allocation4 + $0x190] sm:$0xff] %v3173
    %3238 = vst [vmem:[#allocation4 + $0x198] sm:$0xff] %v3174
    %3239 = vst [vmem:[#allocation4 + $0x1a0] sm:$0xff] %v3175
    %3240 = vst [vmem:[#allocation4 + $0x1a8] sm:$0xff] %v3176
    %3241 = vst [vmem:[#allocation4 + $0x1b0] sm:$0xff] %v3177
    %3242 = vst [vmem:[#allocation4 + $0x1b8] sm:$0xff] %v3178
    %3243 = vst [vmem:[#allocation4 + $0x1c0] sm:$0xff] %v3179
    %3244 = vst [vmem:[#allocation4 + $0x1c8] sm:$0xff] %v3180
    %3245 = vst [vmem:[#allocation4 + $0x1d0] sm:$0xff] %v3181
    %3246 = vst [vmem:[#allocation4 + $0x1d8] sm:$0xff] %v3182
    %3247 = vst [vmem:[#allocation4 + $0x1e0] sm:$0xff] %v3183
    %3248 = vst [vmem:[#allocation4 + $0x1e8] sm:$0xff] %v3184
    %3249 = vst [vmem:[#allocation4 + $0x1f0] sm:$0xff] %v3185
    %3250 = vst [vmem:[#allocation4 + $0x1f8] sm:$0xff] %v3186
    %v3251 = vld [vmem:[#allocation4] sm:$0xff]
    %v3252 = vld [vmem:[#allocation4 + $0x8] sm:$0xff]
    %v3253 = vld [vmem:[#allocation4 + $0x10] sm:$0xff]
    %v3254 = vld [vmem:[#allocation4 + $0x18] sm:$0xff]
    %v3255 = vld [vmem:[#allocation4 + $0x20] sm:$0xff]
    %v3256 = vld [vmem:[#allocation4 + $0x28] sm:$0xff]
    %v3257 = vld [vmem:[#allocation4 + $0x30] sm:$0xff]
    %v3258 = vld [vmem:[#allocation4 + $0x38] sm:$0xff]
    %v3259 = vld [vmem:[#allocation4 + $0x40] sm:$0xff]
    %v3260 = vld [vmem:[#allocation4 + $0x48] sm:$0xff]
    %v3261 = vld [vmem:[#allocation4 + $0x50] sm:$0xff]
    %v3262 = vld [vmem:[#allocation4 + $0x58] sm:$0xff]
    %v3263 = vld [vmem:[#allocation4 + $0x60] sm:$0xff]
    %v3264 = vld [vmem:[#allocation4 + $0x68] sm:$0xff]
    %v3265 = vld [vmem:[#allocation4 + $0x70] sm:$0xff]
    %v3266 = vld [vmem:[#allocation4 + $0x78] sm:$0xff]
    %v3267 = vld [vmem:[#allocation4 + $0x80] sm:$0xff]
    %v3268 = vld [vmem:[#allocation4 + $0x88] sm:$0xff]
    %v3269 = vld [vmem:[#allocation4 + $0x90] sm:$0xff]
    %v3270 = vld [vmem:[#allocation4 + $0x98] sm:$0xff]
    %v3271 = vld [vmem:[#allocation4 + $0xa0] sm:$0xff]
    %v3272 = vld [vmem:[#allocation4 + $0xa8] sm:$0xff]
    %v3273 = vld [vmem:[#allocation4 + $0xb0] sm:$0xff]
    %v3274 = vld [vmem:[#allocation4 + $0xb8] sm:$0xff]
    %v3275 = vld [vmem:[#allocation4 + $0xc0] sm:$0xff]
    %v3276 = vld [vmem:[#allocation4 + $0xc8] sm:$0xff]
    %v3277 = vld [vmem:[#allocation4 + $0xd0] sm:$0xff]
    %v3278 = vld [vmem:[#allocation4 + $0xd8] sm:$0xff]
    %v3279 = vld [vmem:[#allocation4 + $0xe0] sm:$0xff]
    %v3280 = vld [vmem:[#allocation4 + $0xe8] sm:$0xff]
    %v3281 = vld [vmem:[#allocation4 + $0xf0] sm:$0xff]
    %v3282 = vld [vmem:[#allocation4 + $0xf8] sm:$0xff]
    %v3283 = vld [vmem:[#allocation4 + $0x100] sm:$0xff]
    %v3284 = vld [vmem:[#allocation4 + $0x108] sm:$0xff]
    %v3285 = vld [vmem:[#allocation4 + $0x110] sm:$0xff]
    %v3286 = vld [vmem:[#allocation4 + $0x118] sm:$0xff]
    %v3287 = vld [vmem:[#allocation4 + $0x120] sm:$0xff]
    %v3288 = vld [vmem:[#allocation4 + $0x128] sm:$0xff]
    %v3289 = vld [vmem:[#allocation4 + $0x130] sm:$0xff]
    %v3290 = vld [vmem:[#allocation4 + $0x138] sm:$0xff]
    %v3291 = vld [vmem:[#allocation4 + $0x140] sm:$0xff]
    %v3292 = vld [vmem:[#allocation4 + $0x148] sm:$0xff]
    %v3293 = vld [vmem:[#allocation4 + $0x150] sm:$0xff]
    %v3294 = vld [vmem:[#allocation4 + $0x158] sm:$0xff]
    %v3295 = vld [vmem:[#allocation4 + $0x160] sm:$0xff]
    %v3296 = vld [vmem:[#allocation4 + $0x168] sm:$0xff]
    %v3297 = vld [vmem:[#allocation4 + $0x170] sm:$0xff]
    %v3298 = vld [vmem:[#allocation4 + $0x178] sm:$0xff]
    %v3299 = vld [vmem:[#allocation4 + $0x180] sm:$0xff]
    %v3300 = vld [vmem:[#allocation4 + $0x188] sm:$0xff]
    %v3301 = vld [vmem:[#allocation4 + $0x190] sm:$0xff]
    %v3302 = vld [vmem:[#allocation4 + $0x198] sm:$0xff]
    %v3303 = vld [vmem:[#allocation4 + $0x1a0] sm:$0xff]
    %v3304 = vld [vmem:[#allocation4 + $0x1a8] sm:$0xff]
    %v3305 = vld [vmem:[#allocation4 + $0x1b0] sm:$0xff]
    %v3306 = vld [vmem:[#allocation4 + $0x1b8] sm:$0xff]
    %v3307 = vld [vmem:[#allocation4 + $0x1c0] sm:$0xff]
    %v3308 = vld [vmem:[#allocation4 + $0x1c8] sm:$0xff]
    %v3309 = vld [vmem:[#allocation4 + $0x1d0] sm:$0xff]
    %v3310 = vld [vmem:[#allocation4 + $0x1d8] sm:$0xff]
    %v3311 = vld [vmem:[#allocation4 + $0x1e0] sm:$0xff]
    %v3312 = vld [vmem:[#allocation4 + $0x1e8] sm:$0xff]
    %v3313 = vld [vmem:[#allocation4 + $0x1f0] sm:$0xff]
    %v3314 = vld [vmem:[#allocation4 + $0x1f8] sm:$0xff]
    %v3315 = vadd.f32 %v3251, %v3252
    %v3316 = vadd.f32 %v3315, %v3253
    %v3317 = vadd.f32 %v3316, %v3254
    %v3318 = vadd.f32 %v3317, %v3255
    %v3319 = vadd.f32 %v3318, %v3256
    %v3320 = vadd.f32 %v3319, %v3257
    %v3321 = vadd.f32 %v3320, %v3258
    %v3322 = vadd.f32 %v3321, %v3259
    %v3323 = vadd.f32 %v3322, %v3260
    %v3324 = vadd.f32 %v3323, %v3261
    %v3325 = vadd.f32 %v3324, %v3262
    %v3326 = vadd.f32 %v3325, %v3263
    %v3327 = vadd.f32 %v3326, %v3264
    %v3328 = vadd.f32 %v3327, %v3265
    %v3329 = vadd.f32 %v3328, %v3266
    %v3330 = vadd.f32 %v3329, %v3267
    %v3331 = vadd.f32 %v3330, %v3268
    %v3332 = vadd.f32 %v3331, %v3269
    %v3333 = vadd.f32 %v3332, %v3270
    %v3334 = vadd.f32 %v3333, %v3271
    %v3335 = vadd.f32 %v3334, %v3272
    %v3336 = vadd.f32 %v3335, %v3273
    %v3337 = vadd.f32 %v3336, %v3274
    %v3338 = vadd.f32 %v3337, %v3275
    %v3339 = vadd.f32 %v3338, %v3276
    %v3340 = vadd.f32 %v3339, %v3277
    %v3341 = vadd.f32 %v3340, %v3278
    %v3342 = vadd.f32 %v3341, %v3279
    %v3343 = vadd.f32 %v3342, %v3280
    %v3344 = vadd.f32 %v3343, %v3281
    %v3345 = vadd.f32 %v3344, %v3282
    %v3346 = vadd.f32 %v3345, %v3283
    %v3347 = vadd.f32 %v3346, %v3284
    %v3348 = vadd.f32 %v3347, %v3285
    %v3349 = vadd.f32 %v3348, %v3286
    %v3350 = vadd.f32 %v3349, %v3287
    %v3351 = vadd.f32 %v3350, %v3288
    %v3352 = vadd.f32 %v3351, %v3289
    %v3353 = vadd.f32 %v3352, %v3290
    %v3354 = vadd.f32 %v3353, %v3291
    %v3355 = vadd.f32 %v3354, %v3292
    %v3356 = vadd.f32 %v3355, %v3293
    %v3357 = vadd.f32 %v3356, %v3294
    %v3358 = vadd.f32 %v3357, %v3295
    %v3359 = vadd.f32 %v3358, %v3296
    %v3360 = vadd.f32 %v3359, %v3297
    %v3361 = vadd.f32 %v3360, %v3298
    %v3362 = vadd.f32 %v3361, %v3299
    %v3363 = vadd.f32 %v3362, %v3300
    %v3364 = vadd.f32 %v3363, %v3301
    %v3365 = vadd.f32 %v3364, %v3302
    %v3366 = vadd.f32 %v3365, %v3303
    %v3367 = vadd.f32 %v3366, %v3304
    %v3368 = vadd.f32 %v3367, %v3305
    %v3369 = vadd.f32 %v3368, %v3306
    %v3370 = vadd.f32 %v3369, %v3307
    %v3371 = vadd.f32 %v3370, %v3308
    %v3372 = vadd.f32 %v3371, %v3309
    %v3373 = vadd.f32 %v3372, %v3310
    %v3374 = vadd.f32 %v3373, %v3311
    %v3375 = vadd.f32 %v3374, %v3312
    %v3376 = vadd.f32 %v3375, %v3313
    %v3377 = vadd.f32 %v3376, %v3314
    %v3378 = vrot.slane %v3377, 4
    %v3379 = vadd.f32 %v3377, %v3378
    %v3380 = vrot.slane %v3379, 2
    %v3381 = vadd.f32 %v3379, %v3380
    %v3382 = vrot.slane %v3381, 1
    %v3383 = vadd.f32 %v3381, %v3382
    %v3384 = vrcp.pop 512.0
    %v3385 = vmul.f32 %v3383, %v3384
    %v3386 = vsub.f32 %v3251, %v3385
    %v3387 = vsub.f32 %v3252, %v3385
    %v3388 = vsub.f32 %v3253, %v3385
    %v3389 = vsub.f32 %v3254, %v3385
    %v3390 = vsub.f32 %v3255, %v3385
    %v3391 = vsub.f32 %v3256, %v3385
    %v3392 = vsub.f32 %v3257, %v3385
    %v3393 = vsub.f32 %v3258, %v3385
    %v3394 = vsub.f32 %v3259, %v3385
    %v3395 = vsub.f32 %v3260, %v3385
    %v3396 = vsub.f32 %v3261, %v3385
    %v3397 = vsub.f32 %v3262, %v3385
    %v3398 = vsub.f32 %v3263, %v3385
    %v3399 = vsub.f32 %v3264, %v3385
    %v3400 = vsub.f32 %v3265, %v3385
    %v3401 = vsub.f32 %v3266, %v3385
    %v3402 = vsub.f32 %v3267, %v3385
    %v3403 = vsub.f32 %v3268, %v3385
    %v3404 = vsub.f32 %v3269, %v3385
    %v3405 = vsub.f32 %v3270, %v3385
    %v3406 = vsub.f32 %v3271, %v3385
    %v3407 = vsub.f32 %v3272, %v3385
    %v3408 = vsub.f32 %v3273, %v3385
    %v3409 = vsub.f32 %v3274, %v3385
    %v3410 = vsub.f32 %v3275, %v3385
    %v3411 = vsub.f32 %v3276, %v3385
    %v3412 = vsub.f32 %v3277, %v3385
    %v3413 = vsub.f32 %v3278, %v3385
    %v3414 = vsub.f32 %v3279, %v3385
    %v3415 = vsub.f32 %v3280, %v3385
    %v3416 = vsub.f32 %v3281, %v3385
    %v3417 = vsub.f32 %v3282, %v3385
    %v3418 = vsub.f32 %v3283, %v3385
    %v3419 = vsub.f32 %v3284, %v3385
    %v3420 = vsub.f32 %v3285, %v3385
    %v3421 = vsub.f32 %v3286, %v3385
    %v3422 = vsub.f32 %v3287, %v3385
    %v3423 = vsub.f32 %v3288, %v3385
    %v3424 = vsub.f32 %v3289, %v3385
    %v3425 = vsub.f32 %v3290, %v3385
    %v3426 = vsub.f32 %v3291, %v3385
    %v3427 = vsub.f32 %v3292, %v3385
    %v3428 = vsub.f32 %v3293, %v3385
    %v3429 = vsub.f32 %v3294, %v3385
    %v3430 = vsub.f32 %v3295, %v3385
    %v3431 = vsub.f32 %v3296, %v3385
    %v3432 = vsub.f32 %v3297, %v3385
    %v3433 = vsub.f32 %v3298, %v3385
    %v3434 = vsub.f32 %v3299, %v3385
    %v3435 = vsub.f32 %v3300, %v3385
    %v3436 = vsub.f32 %v3301, %v3385
    %v3437 = vsub.f32 %v3302, %v3385
    %v3438 = vsub.f32 %v3303, %v3385
    %v3439 = vsub.f32 %v3304, %v3385
    %v3440 = vsub.f32 %v3305, %v3385
    %v3441 = vsub.f32 %v3306, %v3385
    %v3442 = vsub.f32 %v3307, %v3385
    %v3443 = vsub.f32 %v3308, %v3385
    %v3444 = vsub.f32 %v3309, %v3385
    %v3445 = vsub.f32 %v3310, %v3385
    %v3446 = vsub.f32 %v3311, %v3385
    %v3447 = vsub.f32 %v3312, %v3385
    %v3448 = vsub.f32 %v3313, %v3385
    %v3449 = vsub.f32 %v3314, %v3385
    %v3450 = vmul.f32 %v3386, %v3386
    %v3451 = vmul.f32 %v3387, %v3387
    %v3452 = vmul.f32 %v3388, %v3388
    %v3453 = vmul.f32 %v3389, %v3389
    %v3454 = vmul.f32 %v3390, %v3390
    %v3455 = vmul.f32 %v3391, %v3391
    %v3456 = vmul.f32 %v3392, %v3392
    %v3457 = vmul.f32 %v3393, %v3393
    %v3458 = vmul.f32 %v3394, %v3394
    %v3459 = vmul.f32 %v3395, %v3395
    %v3460 = vmul.f32 %v3396, %v3396
    %v3461 = vmul.f32 %v3397, %v3397
    %v3462 = vmul.f32 %v3398, %v3398
    %v3463 = vmul.f32 %v3399, %v3399
    %v3464 = vmul.f32 %v3400, %v3400
    %v3465 = vmul.f32 %v3401, %v3401
    %v3466 = vmul.f32 %v3402, %v3402
    %v3467 = vmul.f32 %v3403, %v3403
    %v3468 = vmul.f32 %v3404, %v3404
    %v3469 = vmul.f32 %v3405, %v3405
    %v3470 = vmul.f32 %v3406, %v3406
    %v3471 = vmul.f32 %v3407, %v3407
    %v3472 = vmul.f32 %v3408, %v3408
    %v3473 = vmul.f32 %v3409, %v3409
    %v3474 = vmul.f32 %v3410, %v3410
    %v3475 = vmul.f32 %v3411, %v3411
    %v3476 = vmul.f32 %v3412, %v3412
    %v3477 = vmul.f32 %v3413, %v3413
    %v3478 = vmul.f32 %v3414, %v3414
    %v3479 = vmul.f32 %v3415, %v3415
    %v3480 = vmul.f32 %v3416, %v3416
    %v3481 = vmul.f32 %v3417, %v3417
    %v3482 = vmul.f32 %v3418, %v3418
    %v3483 = vmul.f32 %v3419, %v3419
    %v3484 = vmul.f32 %v3420, %v3420
    %v3485 = vmul.f32 %v3421, %v3421
    %v3486 = vmul.f32 %v3422, %v3422
    %v3487 = vmul.f32 %v3423, %v3423
    %v3488 = vmul.f32 %v3424, %v3424
    %v3489 = vmul.f32 %v3425, %v3425
    %v3490 = vmul.f32 %v3426, %v3426
    %v3491 = vmul.f32 %v3427, %v3427
    %v3492 = vmul.f32 %v3428, %v3428
    %v3493 = vmul.f32 %v3429, %v3429
    %v3494 = vmul.f32 %v3430, %v3430
    %v3495 = vmul.f32 %v3431, %v3431
    %v3496 = vmul.f32 %v3432, %v3432
    %v3497 = vmul.f32 %v3433, %v3433
    %v3498 = vmul.f32 %v3434, %v3434
    %v3499 = vmul.f32 %v3435, %v3435
    %v3500 = vmul.f32 %v3436, %v3436
    %v3501 = vmul.f32 %v3437, %v3437
    %v3502 = vmul.f32 %v3438, %v3438
    %v3503 = vmul.f32 %v3439, %v3439
    %v3504 = vmul.f32 %v3440, %v3440
    %v3505 = vmul.f32 %v3441, %v3441
    %v3506 = vmul.f32 %v3442, %v3442
    %v3507 = vmul.f32 %v3443, %v3443
    %v3508 = vmul.f32 %v3444, %v3444
    %v3509 = vmul.f32 %v3445, %v3445
    %v3510 = vmul.f32 %v3446, %v3446
    %v3511 = vmul.f32 %v3447, %v3447
    %v3512 = vmul.f32 %v3448, %v3448
    %v3513 = vmul.f32 %v3449, %v3449
    %v3514 = vadd.f32 %v3450, %v3451
    %v3515 = vadd.f32 %v3514, %v3452
    %v3516 = vadd.f32 %v3515, %v3453
    %v3517 = vadd.f32 %v3516, %v3454
    %v3518 = vadd.f32 %v3517, %v3455
    %v3519 = vadd.f32 %v3518, %v3456
    %v3520 = vadd.f32 %v3519, %v3457
    %v3521 = vadd.f32 %v3520, %v3458
    %v3522 = vadd.f32 %v3521, %v3459
    %v3523 = vadd.f32 %v3522, %v3460
    %v3524 = vadd.f32 %v3523, %v3461
    %v3525 = vadd.f32 %v3524, %v3462
    %v3526 = vadd.f32 %v3525, %v3463
    %v3527 = vadd.f32 %v3526, %v3464
    %v3528 = vadd.f32 %v3527, %v3465
    %v3529 = vadd.f32 %v3528, %v3466
    %v3530 = vadd.f32 %v3529, %v3467
    %v3531 = vadd.f32 %v3530, %v3468
    %v3532 = vadd.f32 %v3531, %v3469
    %v3533 = vadd.f32 %v3532, %v3470
    %v3534 = vadd.f32 %v3533, %v3471
    %v3535 = vadd.f32 %v3534, %v3472
    %v3536 = vadd.f32 %v3535, %v3473
    %v3537 = vadd.f32 %v3536, %v3474
    %v3538 = vadd.f32 %v3537, %v3475
    %v3539 = vadd.f32 %v3538, %v3476
    %v3540 = vadd.f32 %v3539, %v3477
    %v3541 = vadd.f32 %v3540, %v3478
    %v3542 = vadd.f32 %v3541, %v3479
    %v3543 = vadd.f32 %v3542, %v3480
    %v3544 = vadd.f32 %v3543, %v3481
    %v3545 = vadd.f32 %v3544, %v3482
    %v3546 = vadd.f32 %v3545, %v3483
    %v3547 = vadd.f32 %v3546, %v3484
    %v3548 = vadd.f32 %v3547, %v3485
    %v3549 = vadd.f32 %v3548, %v3486
    %v3550 = vadd.f32 %v3549, %v3487
    %v3551 = vadd.f32 %v3550, %v3488
    %v3552 = vadd.f32 %v3551, %v3489
    %v3553 = vadd.f32 %v3552, %v3490
    %v3554 = vadd.f32 %v3553, %v3491
    %v3555 = vadd.f32 %v3554, %v3492
    %v3556 = vadd.f32 %v3555, %v3493
    %v3557 = vadd.f32 %v3556, %v3494
    %v3558 = vadd.f32 %v3557, %v3495
    %v3559 = vadd.f32 %v3558, %v3496
    %v3560 = vadd.f32 %v3559, %v3497
    %v3561 = vadd.f32 %v3560, %v3498
    %v3562 = vadd.f32 %v3561, %v3499
    %v3563 = vadd.f32 %v3562, %v3500
    %v3564 = vadd.f32 %v3563, %v3501
    %v3565 = vadd.f32 %v3564, %v3502
    %v3566 = vadd.f32 %v3565, %v3503
    %v3567 = vadd.f32 %v3566, %v3504
    %v3568 = vadd.f32 %v3567, %v3505
    %v3569 = vadd.f32 %v3568, %v3506
    %v3570 = vadd.f32 %v3569, %v3507
    %v3571 = vadd.f32 %v3570, %v3508
    %v3572 = vadd.f32 %v3571, %v3509
    %v3573 = vadd.f32 %v3572, %v3510
    %v3574 = vadd.f32 %v3573, %v3511
    %v3575 = vadd.f32 %v3574, %v3512
    %v3576 = vadd.f32 %v3575, %v3513
    %v3577 = vrot.slane %v3576, 4
    %v3578 = vadd.f32 %v3576, %v3577
    %v3579 = vrot.slane %v3578, 2
    %v3580 = vadd.f32 %v3578, %v3579
    %v3581 = vrot.slane %v3580, 1
    %v3582 = vadd.f32 %v3580, %v3581
    %v3583 = vmul.f32 %v3582, %v3384
    %v3584 = vld [vmem:[%s2] sm:$0x1]
    %v3585 = vadd.f32 %v3583, 1e-05
    %v3586 = vrsqrt.pop %v3585
    %v3587 = vmul.f32 %v3584, %v3586
    %v3588 = vld [vmem:[%s3] sm:$0x1]
    %v3589 = vmul.f32 %v3385, %v3587
    %v3590 = vsub.f32 %v3588, %v3589
    %v3592 = vlaneseq
    %v3593 = vshrl.u32 %v3592, 7
    %v3594 = vsub.s32 0, %v3593
    %v3595 = vrot.slane %v3587, %v3594
    %v3597 = vmul.f32 %v3251, %v3595
    %v3598 = vmul.f32 %v3252, %v3595
    %v3599 = vmul.f32 %v3253, %v3595
    %v3600 = vmul.f32 %v3254, %v3595
    %v3601 = vmul.f32 %v3255, %v3595
    %v3602 = vmul.f32 %v3256, %v3595
    %v3603 = vmul.f32 %v3257, %v3595
    %v3604 = vmul.f32 %v3258, %v3595
    %v3605 = vmul.f32 %v3259, %v3595
    %v3606 = vmul.f32 %v3260, %v3595
    %v3607 = vmul.f32 %v3261, %v3595
    %v3608 = vmul.f32 %v3262, %v3595
    %v3609 = vmul.f32 %v3263, %v3595
    %v3610 = vmul.f32 %v3264, %v3595
    %v3611 = vmul.f32 %v3265, %v3595
    %v3612 = vmul.f32 %v3266, %v3595
    %v3613 = vmul.f32 %v3267, %v3595
    %v3614 = vmul.f32 %v3268, %v3595
    %v3615 = vmul.f32 %v3269, %v3595
    %v3616 = vmul.f32 %v3270, %v3595
    %v3617 = vmul.f32 %v3271, %v3595
    %v3618 = vmul.f32 %v3272, %v3595
    %v3619 = vmul.f32 %v3273, %v3595
    %v3620 = vmul.f32 %v3274, %v3595
    %v3621 = vmul.f32 %v3275, %v3595
    %v3622 = vmul.f32 %v3276, %v3595
    %v3623 = vmul.f32 %v3277, %v3595
    %v3624 = vmul.f32 %v3278, %v3595
    %v3625 = vmul.f32 %v3279, %v3595
    %v3626 = vmul.f32 %v3280, %v3595
    %v3627 = vmul.f32 %v3281, %v3595
    %v3628 = vmul.f32 %v3282, %v3595
    %v3629 = vmul.f32 %v3283, %v3595
    %v3630 = vmul.f32 %v3284, %v3595
    %v3631 = vmul.f32 %v3285, %v3595
    %v3632 = vmul.f32 %v3286, %v3595
    %v3633 = vmul.f32 %v3287, %v3595
    %v3634 = vmul.f32 %v3288, %v3595
    %v3635 = vmul.f32 %v3289, %v3595
    %v3636 = vmul.f32 %v3290, %v3595
    %v3637 = vmul.f32 %v3291, %v3595
    %v3638 = vmul.f32 %v3292, %v3595
    %v3639 = vmul.f32 %v3293, %v3595
    %v3640 = vmul.f32 %v3294, %v3595
    %v3641 = vmul.f32 %v3295, %v3595
    %v3642 = vmul.f32 %v3296, %v3595
    %v3643 = vmul.f32 %v3297, %v3595
    %v3644 = vmul.f32 %v3298, %v3595
    %v3645 = vmul.f32 %v3299, %v3595
    %v3646 = vmul.f32 %v3300, %v3595
    %v3647 = vmul.f32 %v3301, %v3595
    %v3648 = vmul.f32 %v3302, %v3595
    %v3649 = vmul.f32 %v3303, %v3595
    %v3650 = vmul.f32 %v3304, %v3595
    %v3651 = vmul.f32 %v3305, %v3595
    %v3652 = vmul.f32 %v3306, %v3595
    %v3653 = vmul.f32 %v3307, %v3595
    %v3654 = vmul.f32 %v3308, %v3595
    %v3655 = vmul.f32 %v3309, %v3595
    %v3656 = vmul.f32 %v3310, %v3595
    %v3657 = vmul.f32 %v3311, %v3595
    %v3658 = vmul.f32 %v3312, %v3595
    %v3659 = vmul.f32 %v3313, %v3595
    %v3660 = vmul.f32 %v3314, %v3595
    %v3662 = vlaneseq
    %v3663 = vshrl.u32 %v3662, 7
    %v3664 = vsub.s32 0, %v3663
    %v3665 = vrot.slane %v3590, %v3664
    %v3667 = vadd.f32 %v3597, %v3665
    %v3668 = vadd.f32 %v3598, %v3665
    %v3669 = vadd.f32 %v3599, %v3665
    %v3670 = vadd.f32 %v3600, %v3665
    %v3671 = vadd.f32 %v3601, %v3665
    %v3672 = vadd.f32 %v3602, %v3665
    %v3673 = vadd.f32 %v3603, %v3665
    %v3674 = vadd.f32 %v3604, %v3665
    %v3675 = vadd.f32 %v3605, %v3665
    %v3676 = vadd.f32 %v3606, %v3665
    %v3677 = vadd.f32 %v3607, %v3665
    %v3678 = vadd.f32 %v3608, %v3665
    %v3679 = vadd.f32 %v3609, %v3665
    %v3680 = vadd.f32 %v3610, %v3665
    %v3681 = vadd.f32 %v3611, %v3665
    %v3682 = vadd.f32 %v3612, %v3665
    %v3683 = vadd.f32 %v3613, %v3665
    %v3684 = vadd.f32 %v3614, %v3665
    %v3685 = vadd.f32 %v3615, %v3665
    %v3686 = vadd.f32 %v3616, %v3665
    %v3687 = vadd.f32 %v3617, %v3665
    %v3688 = vadd.f32 %v3618, %v3665
    %v3689 = vadd.f32 %v3619, %v3665
    %v3690 = vadd.f32 %v3620, %v3665
    %v3691 = vadd.f32 %v3621, %v3665
    %v3692 = vadd.f32 %v3622, %v3665
    %v3693 = vadd.f32 %v3623, %v3665
    %v3694 = vadd.f32 %v3624, %v3665
    %v3695 = vadd.f32 %v3625, %v3665
    %v3696 = vadd.f32 %v3626, %v3665
    %v3697 = vadd.f32 %v3627, %v3665
    %v3698 = vadd.f32 %v3628, %v3665
    %v3699 = vadd.f32 %v3629, %v3665
    %v3700 = vadd.f32 %v3630, %v3665
    %v3701 = vadd.f32 %v3631, %v3665
    %v3702 = vadd.f32 %v3632, %v3665
    %v3703 = vadd.f32 %v3633, %v3665
    %v3704 = vadd.f32 %v3634, %v3665
    %v3705 = vadd.f32 %v3635, %v3665
    %v3706 = vadd.f32 %v3636, %v3665
    %v3707 = vadd.f32 %v3637, %v3665
    %v3708 = vadd.f32 %v3638, %v3665
    %v3709 = vadd.f32 %v3639, %v3665
    %v3710 = vadd.f32 %v3640, %v3665
    %v3711 = vadd.f32 %v3641, %v3665
    %v3712 = vadd.f32 %v3642, %v3665
    %v3713 = vadd.f32 %v3643, %v3665
    %v3714 = vadd.f32 %v3644, %v3665
    %v3715 = vadd.f32 %v3645, %v3665
    %v3716 = vadd.f32 %v3646, %v3665
    %v3717 = vadd.f32 %v3647, %v3665
    %v3718 = vadd.f32 %v3648, %v3665
    %v3719 = vadd.f32 %v3649, %v3665
    %v3720 = vadd.f32 %v3650, %v3665
    %v3721 = vadd.f32 %v3651, %v3665
    %v3722 = vadd.f32 %v3652, %v3665
    %v3723 = vadd.f32 %v3653, %v3665
    %v3724 = vadd.f32 %v3654, %v3665
    %v3725 = vadd.f32 %v3655, %v3665
    %v3726 = vadd.f32 %v3656, %v3665
    %v3727 = vadd.f32 %v3657, %v3665
    %v3728 = vadd.f32 %v3658, %v3665
    %v3729 = vadd.f32 %v3659, %v3665
    %v3730 = vadd.f32 %v3660, %v3665
    %v3731 = vmax.f32 %v3667, 0.0
    %v3732 = vmax.f32 %v3668, 0.0
    %v3733 = vmax.f32 %v3669, 0.0
    %v3734 = vmax.f32 %v3670, 0.0
    %v3735 = vmax.f32 %v3671, 0.0
    %v3736 = vmax.f32 %v3672, 0.0
    %v3737 = vmax.f32 %v3673, 0.0
    %v3738 = vmax.f32 %v3674, 0.0
    %v3739 = vmax.f32 %v3675, 0.0
    %v3740 = vmax.f32 %v3676, 0.0
    %v3741 = vmax.f32 %v3677, 0.0
    %v3742 = vmax.f32 %v3678, 0.0
    %v3743 = vmax.f32 %v3679, 0.0
    %v3744 = vmax.f32 %v3680, 0.0
    %v3745 = vmax.f32 %v3681, 0.0
    %v3746 = vmax.f32 %v3682, 0.0
    %v3747 = vmax.f32 %v3683, 0.0
    %v3748 = vmax.f32 %v3684, 0.0
    %v3749 = vmax.f32 %v3685, 0.0
    %v3750 = vmax.f32 %v3686, 0.0
    %v3751 = vmax.f32 %v3687, 0.0
    %v3752 = vmax.f32 %v3688, 0.0
    %v3753 = vmax.f32 %v3689, 0.0
    %v3754 = vmax.f32 %v3690, 0.0
    %v3755 = vmax.f32 %v3691, 0.0
    %v3756 = vmax.f32 %v3692, 0.0
    %v3757 = vmax.f32 %v3693, 0.0
    %v3758 = vmax.f32 %v3694, 0.0
    %v3759 = vmax.f32 %v3695, 0.0
    %v3760 = vmax.f32 %v3696, 0.0
    %v3761 = vmax.f32 %v3697, 0.0
    %v3762 = vmax.f32 %v3698, 0.0
    %v3763 = vmax.f32 %v3699, 0.0
    %v3764 = vmax.f32 %v3700, 0.0
    %v3765 = vmax.f32 %v3701, 0.0
    %v3766 = vmax.f32 %v3702, 0.0
    %v3767 = vmax.f32 %v3703, 0.0
    %v3768 = vmax.f32 %v3704, 0.0
    %v3769 = vmax.f32 %v3705, 0.0
    %v3770 = vmax.f32 %v3706, 0.0
    %v3771 = vmax.f32 %v3707, 0.0
    %v3772 = vmax.f32 %v3708, 0.0
    %v3773 = vmax.f32 %v3709, 0.0
    %v3774 = vmax.f32 %v3710, 0.0
    %v3775 = vmax.f32 %v3711, 0.0
    %v3776 = vmax.f32 %v3712, 0.0
    %v3777 = vmax.f32 %v3713, 0.0
    %v3778 = vmax.f32 %v3714, 0.0
    %v3779 = vmax.f32 %v3715, 0.0
    %v3780 = vmax.f32 %v3716, 0.0
    %v3781 = vmax.f32 %v3717, 0.0
    %v3782 = vmax.f32 %v3718, 0.0
    %v3783 = vmax.f32 %v3719, 0.0
    %v3784 = vmax.f32 %v3720, 0.0
    %v3785 = vmax.f32 %v3721, 0.0
    %v3786 = vmax.f32 %v3722, 0.0
    %v3787 = vmax.f32 %v3723, 0.0
    %v3788 = vmax.f32 %v3724, 0.0
    %v3789 = vmax.f32 %v3725, 0.0
    %v3790 = vmax.f32 %v3726, 0.0
    %v3791 = vmax.f32 %v3727, 0.0
    %v3792 = vmax.f32 %v3728, 0.0
    %v3793 = vmax.f32 %v3729, 0.0
    %v3794 = vmax.f32 %v3730, 0.0
    %v3859 = vcombine.high %v3731, %v3731
    %v3861 = vunpack.c.l.s4 1983009808
    %v3862 = vunpack.c.0.s8 %v3861
    %v3863 = vlaneseq
    %v3864 = vshrl.u32 %v3863, 7
    %v3865 = vsub.s32 %v3862, %v3864
    %v3866 = vrot.slane %v3731, %v3865
    %v3868 = vunpack.c.l.s4 1983009808
    %v3869 = vunpack.c.0.s8 %v3868
    %v3870 = vlaneseq
    %v3871 = vshrl.u32 %v3870, 7
    %v3872 = vsub.s32 %v3869, %v3871
    %v3873 = vrot.slane %v3859, %v3872
    %v3874 = vcombine.high %v3866, %v3866
    %v3875 = vcombine.high %v3873, %v3873
    %v3876 = vcombine.high %v3732, %v3732
    %v3878 = vunpack.c.l.s4 1983009808
    %v3879 = vunpack.c.0.s8 %v3878
    %v3880 = vlaneseq
    %v3881 = vshrl.u32 %v3880, 7
    %v3882 = vsub.s32 %v3879, %v3881
    %v3883 = vrot.slane %v3732, %v3882
    %v3885 = vunpack.c.l.s4 1983009808
    %v3886 = vunpack.c.0.s8 %v3885
    %v3887 = vlaneseq
    %v3888 = vshrl.u32 %v3887, 7
    %v3889 = vsub.s32 %v3886, %v3888
    %v3890 = vrot.slane %v3876, %v3889
    %v3891 = vcombine.high %v3883, %v3883
    %v3892 = vcombine.high %v3890, %v3890
    %v3893 = vcombine.high %v3733, %v3733
    %v3895 = vunpack.c.l.s4 1983009808
    %v3896 = vunpack.c.0.s8 %v3895
    %v3897 = vlaneseq
    %v3898 = vshrl.u32 %v3897, 7
    %v3899 = vsub.s32 %v3896, %v3898
    %v3900 = vrot.slane %v3733, %v3899
    %v3902 = vunpack.c.l.s4 1983009808
    %v3903 = vunpack.c.0.s8 %v3902
    %v3904 = vlaneseq
    %v3905 = vshrl.u32 %v3904, 7
    %v3906 = vsub.s32 %v3903, %v3905
    %v3907 = vrot.slane %v3893, %v3906
    %v3908 = vcombine.high %v3900, %v3900
    %v3909 = vcombine.high %v3907, %v3907
    %v3910 = vcombine.high %v3734, %v3734
    %v3912 = vunpack.c.l.s4 1983009808
    %v3913 = vunpack.c.0.s8 %v3912
    %v3914 = vlaneseq
    %v3915 = vshrl.u32 %v3914, 7
    %v3916 = vsub.s32 %v3913, %v3915
    %v3917 = vrot.slane %v3734, %v3916
    %v3919 = vunpack.c.l.s4 1983009808
    %v3920 = vunpack.c.0.s8 %v3919
    %v3921 = vlaneseq
    %v3922 = vshrl.u32 %v3921, 7
    %v3923 = vsub.s32 %v3920, %v3922
    %v3924 = vrot.slane %v3910, %v3923
    %v3925 = vcombine.high %v3917, %v3917
    %v3926 = vcombine.high %v3924, %v3924
    %v3927 = vcombine.high %v3735, %v3735
    %v3929 = vunpack.c.l.s4 1983009808
    %v3930 = vunpack.c.0.s8 %v3929
    %v3931 = vlaneseq
    %v3932 = vshrl.u32 %v3931, 7
    %v3933 = vsub.s32 %v3930, %v3932
    %v3934 = vrot.slane %v3735, %v3933
    %v3936 = vunpack.c.l.s4 1983009808
    %v3937 = vunpack.c.0.s8 %v3936
    %v3938 = vlaneseq
    %v3939 = vshrl.u32 %v3938, 7
    %v3940 = vsub.s32 %v3937, %v3939
    %v3941 = vrot.slane %v3927, %v3940
    %v3942 = vcombine.high %v3934, %v3934
    %v3943 = vcombine.high %v3941, %v3941
    %v3944 = vcombine.high %v3736, %v3736
    %v3946 = vunpack.c.l.s4 1983009808
    %v3947 = vunpack.c.0.s8 %v3946
    %v3948 = vlaneseq
    %v3949 = vshrl.u32 %v3948, 7
    %v3950 = vsub.s32 %v3947, %v3949
    %v3951 = vrot.slane %v3736, %v3950
    %v3953 = vunpack.c.l.s4 1983009808
    %v3954 = vunpack.c.0.s8 %v3953
    %v3955 = vlaneseq
    %v3956 = vshrl.u32 %v3955, 7
    %v3957 = vsub.s32 %v3954, %v3956
    %v3958 = vrot.slane %v3944, %v3957
    %v3959 = vcombine.high %v3951, %v3951
    %v3960 = vcombine.high %v3958, %v3958
    %v3961 = vcombine.high %v3737, %v3737
    %v3963 = vunpack.c.l.s4 1983009808
    %v3964 = vunpack.c.0.s8 %v3963
    %v3965 = vlaneseq
    %v3966 = vshrl.u32 %v3965, 7
    %v3967 = vsub.s32 %v3964, %v3966
    %v3968 = vrot.slane %v3737, %v3967
    %v3970 = vunpack.c.l.s4 1983009808
    %v3971 = vunpack.c.0.s8 %v3970
    %v3972 = vlaneseq
    %v3973 = vshrl.u32 %v3972, 7
    %v3974 = vsub.s32 %v3971, %v3973
    %v3975 = vrot.slane %v3961, %v3974
    %v3976 = vcombine.high %v3968, %v3968
    %v3977 = vcombine.high %v3975, %v3975
    %v3978 = vcombine.high %v3738, %v3738
    %v3980 = vunpack.c.l.s4 1983009808
    %v3981 = vunpack.c.0.s8 %v3980
    %v3982 = vlaneseq
    %v3983 = vshrl.u32 %v3982, 7
    %v3984 = vsub.s32 %v3981, %v3983
    %v3985 = vrot.slane %v3738, %v3984
    %v3987 = vunpack.c.l.s4 1983009808
    %v3988 = vunpack.c.0.s8 %v3987
    %v3989 = vlaneseq
    %v3990 = vshrl.u32 %v3989, 7
    %v3991 = vsub.s32 %v3988, %v3990
    %v3992 = vrot.slane %v3978, %v3991
    %v3993 = vcombine.high %v3985, %v3985
    %v3994 = vcombine.high %v3992, %v3992
    %v3995 = vcombine.high %v3739, %v3739
    %v3997 = vunpack.c.l.s4 1983009808
    %v3998 = vunpack.c.0.s8 %v3997
    %v3999 = vlaneseq
    %v4000 = vshrl.u32 %v3999, 7
    %v4001 = vsub.s32 %v3998, %v4000
    %v4002 = vrot.slane %v3739, %v4001
    %v4004 = vunpack.c.l.s4 1983009808
    %v4005 = vunpack.c.0.s8 %v4004
    %v4006 = vlaneseq
    %v4007 = vshrl.u32 %v4006, 7
    %v4008 = vsub.s32 %v4005, %v4007
    %v4009 = vrot.slane %v3995, %v4008
    %v4010 = vcombine.high %v4002, %v4002
    %v4011 = vcombine.high %v4009, %v4009
    %v4012 = vcombine.high %v3740, %v3740
    %v4014 = vunpack.c.l.s4 1983009808
    %v4015 = vunpack.c.0.s8 %v4014
    %v4016 = vlaneseq
    %v4017 = vshrl.u32 %v4016, 7
    %v4018 = vsub.s32 %v4015, %v4017
    %v4019 = vrot.slane %v3740, %v4018
    %v4021 = vunpack.c.l.s4 1983009808
    %v4022 = vunpack.c.0.s8 %v4021
    %v4023 = vlaneseq
    %v4024 = vshrl.u32 %v4023, 7
    %v4025 = vsub.s32 %v4022, %v4024
    %v4026 = vrot.slane %v4012, %v4025
    %v4027 = vcombine.high %v4019, %v4019
    %v4028 = vcombine.high %v4026, %v4026
    %v4029 = vcombine.high %v3741, %v3741
    %v4031 = vunpack.c.l.s4 1983009808
    %v4032 = vunpack.c.0.s8 %v4031
    %v4033 = vlaneseq
    %v4034 = vshrl.u32 %v4033, 7
    %v4035 = vsub.s32 %v4032, %v4034
    %v4036 = vrot.slane %v3741, %v4035
    %v4038 = vunpack.c.l.s4 1983009808
    %v4039 = vunpack.c.0.s8 %v4038
    %v4040 = vlaneseq
    %v4041 = vshrl.u32 %v4040, 7
    %v4042 = vsub.s32 %v4039, %v4041
    %v4043 = vrot.slane %v4029, %v4042
    %v4044 = vcombine.high %v4036, %v4036
    %v4045 = vcombine.high %v4043, %v4043
    %v4046 = vcombine.high %v3742, %v3742
    %v4048 = vunpack.c.l.s4 1983009808
    %v4049 = vunpack.c.0.s8 %v4048
    %v4050 = vlaneseq
    %v4051 = vshrl.u32 %v4050, 7
    %v4052 = vsub.s32 %v4049, %v4051
    %v4053 = vrot.slane %v3742, %v4052
    %v4055 = vunpack.c.l.s4 1983009808
    %v4056 = vunpack.c.0.s8 %v4055
    %v4057 = vlaneseq
    %v4058 = vshrl.u32 %v4057, 7
    %v4059 = vsub.s32 %v4056, %v4058
    %v4060 = vrot.slane %v4046, %v4059
    %v4061 = vcombine.high %v4053, %v4053
    %v4062 = vcombine.high %v4060, %v4060
    %v4063 = vcombine.high %v3743, %v3743
    %v4065 = vunpack.c.l.s4 1983009808
    %v4066 = vunpack.c.0.s8 %v4065
    %v4067 = vlaneseq
    %v4068 = vshrl.u32 %v4067, 7
    %v4069 = vsub.s32 %v4066, %v4068
    %v4070 = vrot.slane %v3743, %v4069
    %v4072 = vunpack.c.l.s4 1983009808
    %v4073 = vunpack.c.0.s8 %v4072
    %v4074 = vlaneseq
    %v4075 = vshrl.u32 %v4074, 7
    %v4076 = vsub.s32 %v4073, %v4075
    %v4077 = vrot.slane %v4063, %v4076
    %v4078 = vcombine.high %v4070, %v4070
    %v4079 = vcombine.high %v4077, %v4077
    %v4080 = vcombine.high %v3744, %v3744
    %v4082 = vunpack.c.l.s4 1983009808
    %v4083 = vunpack.c.0.s8 %v4082
    %v4084 = vlaneseq
    %v4085 = vshrl.u32 %v4084, 7
    %v4086 = vsub.s32 %v4083, %v4085
    %v4087 = vrot.slane %v3744, %v4086
    %v4089 = vunpack.c.l.s4 1983009808
    %v4090 = vunpack.c.0.s8 %v4089
    %v4091 = vlaneseq
    %v4092 = vshrl.u32 %v4091, 7
    %v4093 = vsub.s32 %v4090, %v4092
    %v4094 = vrot.slane %v4080, %v4093
    %v4095 = vcombine.high %v4087, %v4087
    %v4096 = vcombine.high %v4094, %v4094
    %v4097 = vcombine.high %v3745, %v3745
    %v4099 = vunpack.c.l.s4 1983009808
    %v4100 = vunpack.c.0.s8 %v4099
    %v4101 = vlaneseq
    %v4102 = vshrl.u32 %v4101, 7
    %v4103 = vsub.s32 %v4100, %v4102
    %v4104 = vrot.slane %v3745, %v4103
    %v4106 = vunpack.c.l.s4 1983009808
    %v4107 = vunpack.c.0.s8 %v4106
    %v4108 = vlaneseq
    %v4109 = vshrl.u32 %v4108, 7
    %v4110 = vsub.s32 %v4107, %v4109
    %v4111 = vrot.slane %v4097, %v4110
    %v4112 = vcombine.high %v4104, %v4104
    %v4113 = vcombine.high %v4111, %v4111
    %v4114 = vcombine.high %v3746, %v3746
    %v4116 = vunpack.c.l.s4 1983009808
    %v4117 = vunpack.c.0.s8 %v4116
    %v4118 = vlaneseq
    %v4119 = vshrl.u32 %v4118, 7
    %v4120 = vsub.s32 %v4117, %v4119
    %v4121 = vrot.slane %v3746, %v4120
    %v4123 = vunpack.c.l.s4 1983009808
    %v4124 = vunpack.c.0.s8 %v4123
    %v4125 = vlaneseq
    %v4126 = vshrl.u32 %v4125, 7
    %v4127 = vsub.s32 %v4124, %v4126
    %v4128 = vrot.slane %v4114, %v4127
    %v4129 = vcombine.high %v4121, %v4121
    %v4130 = vcombine.high %v4128, %v4128
    %v4131 = vcombine.high %v3747, %v3747
    %v4133 = vunpack.c.l.s4 1983009808
    %v4134 = vunpack.c.0.s8 %v4133
    %v4135 = vlaneseq
    %v4136 = vshrl.u32 %v4135, 7
    %v4137 = vsub.s32 %v4134, %v4136
    %v4138 = vrot.slane %v3747, %v4137
    %v4140 = vunpack.c.l.s4 1983009808
    %v4141 = vunpack.c.0.s8 %v4140
    %v4142 = vlaneseq
    %v4143 = vshrl.u32 %v4142, 7
    %v4144 = vsub.s32 %v4141, %v4143
    %v4145 = vrot.slane %v4131, %v4144
    %v4146 = vcombine.high %v4138, %v4138
    %v4147 = vcombine.high %v4145, %v4145
    %v4148 = vcombine.high %v3748, %v3748
    %v4150 = vunpack.c.l.s4 1983009808
    %v4151 = vunpack.c.0.s8 %v4150
    %v4152 = vlaneseq
    %v4153 = vshrl.u32 %v4152, 7
    %v4154 = vsub.s32 %v4151, %v4153
    %v4155 = vrot.slane %v3748, %v4154
    %v4157 = vunpack.c.l.s4 1983009808
    %v4158 = vunpack.c.0.s8 %v4157
    %v4159 = vlaneseq
    %v4160 = vshrl.u32 %v4159, 7
    %v4161 = vsub.s32 %v4158, %v4160
    %v4162 = vrot.slane %v4148, %v4161
    %v4163 = vcombine.high %v4155, %v4155
    %v4164 = vcombine.high %v4162, %v4162
    %v4165 = vcombine.high %v3749, %v3749
    %v4167 = vunpack.c.l.s4 1983009808
    %v4168 = vunpack.c.0.s8 %v4167
    %v4169 = vlaneseq
    %v4170 = vshrl.u32 %v4169, 7
    %v4171 = vsub.s32 %v4168, %v4170
    %v4172 = vrot.slane %v3749, %v4171
    %v4174 = vunpack.c.l.s4 1983009808
    %v4175 = vunpack.c.0.s8 %v4174
    %v4176 = vlaneseq
    %v4177 = vshrl.u32 %v4176, 7
    %v4178 = vsub.s32 %v4175, %v4177
    %v4179 = vrot.slane %v4165, %v4178
    %v4180 = vcombine.high %v4172, %v4172
    %v4181 = vcombine.high %v4179, %v4179
    %v4182 = vcombine.high %v3750, %v3750
    %v4184 = vunpack.c.l.s4 1983009808
    %v4185 = vunpack.c.0.s8 %v4184
    %v4186 = vlaneseq
    %v4187 = vshrl.u32 %v4186, 7
    %v4188 = vsub.s32 %v4185, %v4187
    %v4189 = vrot.slane %v3750, %v4188
    %v4191 = vunpack.c.l.s4 1983009808
    %v4192 = vunpack.c.0.s8 %v4191
    %v4193 = vlaneseq
    %v4194 = vshrl.u32 %v4193, 7
    %v4195 = vsub.s32 %v4192, %v4194
    %v4196 = vrot.slane %v4182, %v4195
    %v4197 = vcombine.high %v4189, %v4189
    %v4198 = vcombine.high %v4196, %v4196
    %v4199 = vcombine.high %v3751, %v3751
    %v4201 = vunpack.c.l.s4 1983009808
    %v4202 = vunpack.c.0.s8 %v4201
    %v4203 = vlaneseq
    %v4204 = vshrl.u32 %v4203, 7
    %v4205 = vsub.s32 %v4202, %v4204
    %v4206 = vrot.slane %v3751, %v4205
    %v4208 = vunpack.c.l.s4 1983009808
    %v4209 = vunpack.c.0.s8 %v4208
    %v4210 = vlaneseq
    %v4211 = vshrl.u32 %v4210, 7
    %v4212 = vsub.s32 %v4209, %v4211
    %v4213 = vrot.slane %v4199, %v4212
    %v4214 = vcombine.high %v4206, %v4206
    %v4215 = vcombine.high %v4213, %v4213
    %v4216 = vcombine.high %v3752, %v3752
    %v4218 = vunpack.c.l.s4 1983009808
    %v4219 = vunpack.c.0.s8 %v4218
    %v4220 = vlaneseq
    %v4221 = vshrl.u32 %v4220, 7
    %v4222 = vsub.s32 %v4219, %v4221
    %v4223 = vrot.slane %v3752, %v4222
    %v4225 = vunpack.c.l.s4 1983009808
    %v4226 = vunpack.c.0.s8 %v4225
    %v4227 = vlaneseq
    %v4228 = vshrl.u32 %v4227, 7
    %v4229 = vsub.s32 %v4226, %v4228
    %v4230 = vrot.slane %v4216, %v4229
    %v4231 = vcombine.high %v4223, %v4223
    %v4232 = vcombine.high %v4230, %v4230
    %v4233 = vcombine.high %v3753, %v3753
    %v4235 = vunpack.c.l.s4 1983009808
    %v4236 = vunpack.c.0.s8 %v4235
    %v4237 = vlaneseq
    %v4238 = vshrl.u32 %v4237, 7
    %v4239 = vsub.s32 %v4236, %v4238
    %v4240 = vrot.slane %v3753, %v4239
    %v4242 = vunpack.c.l.s4 1983009808
    %v4243 = vunpack.c.0.s8 %v4242
    %v4244 = vlaneseq
    %v4245 = vshrl.u32 %v4244, 7
    %v4246 = vsub.s32 %v4243, %v4245
    %v4247 = vrot.slane %v4233, %v4246
    %v4248 = vcombine.high %v4240, %v4240
    %v4249 = vcombine.high %v4247, %v4247
    %v4250 = vcombine.high %v3754, %v3754
    %v4252 = vunpack.c.l.s4 1983009808
    %v4253 = vunpack.c.0.s8 %v4252
    %v4254 = vlaneseq
    %v4255 = vshrl.u32 %v4254, 7
    %v4256 = vsub.s32 %v4253, %v4255
    %v4257 = vrot.slane %v3754, %v4256
    %v4259 = vunpack.c.l.s4 1983009808
    %v4260 = vunpack.c.0.s8 %v4259
    %v4261 = vlaneseq
    %v4262 = vshrl.u32 %v4261, 7
    %v4263 = vsub.s32 %v4260, %v4262
    %v4264 = vrot.slane %v4250, %v4263
    %v4265 = vcombine.high %v4257, %v4257
    %v4266 = vcombine.high %v4264, %v4264
    %v4267 = vcombine.high %v3755, %v3755
    %v4269 = vunpack.c.l.s4 1983009808
    %v4270 = vunpack.c.0.s8 %v4269
    %v4271 = vlaneseq
    %v4272 = vshrl.u32 %v4271, 7
    %v4273 = vsub.s32 %v4270, %v4272
    %v4274 = vrot.slane %v3755, %v4273
    %v4276 = vunpack.c.l.s4 1983009808
    %v4277 = vunpack.c.0.s8 %v4276
    %v4278 = vlaneseq
    %v4279 = vshrl.u32 %v4278, 7
    %v4280 = vsub.s32 %v4277, %v4279
    %v4281 = vrot.slane %v4267, %v4280
    %v4282 = vcombine.high %v4274, %v4274
    %v4283 = vcombine.high %v4281, %v4281
    %v4284 = vcombine.high %v3756, %v3756
    %v4286 = vunpack.c.l.s4 1983009808
    %v4287 = vunpack.c.0.s8 %v4286
    %v4288 = vlaneseq
    %v4289 = vshrl.u32 %v4288, 7
    %v4290 = vsub.s32 %v4287, %v4289
    %v4291 = vrot.slane %v3756, %v4290
    %v4293 = vunpack.c.l.s4 1983009808
    %v4294 = vunpack.c.0.s8 %v4293
    %v4295 = vlaneseq
    %v4296 = vshrl.u32 %v4295, 7
    %v4297 = vsub.s32 %v4294, %v4296
    %v4298 = vrot.slane %v4284, %v4297
    %v4299 = vcombine.high %v4291, %v4291
    %v4300 = vcombine.high %v4298, %v4298
    %v4301 = vcombine.high %v3757, %v3757
    %v4303 = vunpack.c.l.s4 1983009808
    %v4304 = vunpack.c.0.s8 %v4303
    %v4305 = vlaneseq
    %v4306 = vshrl.u32 %v4305, 7
    %v4307 = vsub.s32 %v4304, %v4306
    %v4308 = vrot.slane %v3757, %v4307
    %v4310 = vunpack.c.l.s4 1983009808
    %v4311 = vunpack.c.0.s8 %v4310
    %v4312 = vlaneseq
    %v4313 = vshrl.u32 %v4312, 7
    %v4314 = vsub.s32 %v4311, %v4313
    %v4315 = vrot.slane %v4301, %v4314
    %v4316 = vcombine.high %v4308, %v4308
    %v4317 = vcombine.high %v4315, %v4315
    %v4318 = vcombine.high %v3758, %v3758
    %v4320 = vunpack.c.l.s4 1983009808
    %v4321 = vunpack.c.0.s8 %v4320
    %v4322 = vlaneseq
    %v4323 = vshrl.u32 %v4322, 7
    %v4324 = vsub.s32 %v4321, %v4323
    %v4325 = vrot.slane %v3758, %v4324
    %v4327 = vunpack.c.l.s4 1983009808
    %v4328 = vunpack.c.0.s8 %v4327
    %v4329 = vlaneseq
    %v4330 = vshrl.u32 %v4329, 7
    %v4331 = vsub.s32 %v4328, %v4330
    %v4332 = vrot.slane %v4318, %v4331
    %v4333 = vcombine.high %v4325, %v4325
    %v4334 = vcombine.high %v4332, %v4332
    %v4335 = vcombine.high %v3759, %v3759
    %v4337 = vunpack.c.l.s4 1983009808
    %v4338 = vunpack.c.0.s8 %v4337
    %v4339 = vlaneseq
    %v4340 = vshrl.u32 %v4339, 7
    %v4341 = vsub.s32 %v4338, %v4340
    %v4342 = vrot.slane %v3759, %v4341
    %v4344 = vunpack.c.l.s4 1983009808
    %v4345 = vunpack.c.0.s8 %v4344
    %v4346 = vlaneseq
    %v4347 = vshrl.u32 %v4346, 7
    %v4348 = vsub.s32 %v4345, %v4347
    %v4349 = vrot.slane %v4335, %v4348
    %v4350 = vcombine.high %v4342, %v4342
    %v4351 = vcombine.high %v4349, %v4349
    %v4352 = vcombine.high %v3760, %v3760
    %v4354 = vunpack.c.l.s4 1983009808
    %v4355 = vunpack.c.0.s8 %v4354
    %v4356 = vlaneseq
    %v4357 = vshrl.u32 %v4356, 7
    %v4358 = vsub.s32 %v4355, %v4357
    %v4359 = vrot.slane %v3760, %v4358
    %v4361 = vunpack.c.l.s4 1983009808
    %v4362 = vunpack.c.0.s8 %v4361
    %v4363 = vlaneseq
    %v4364 = vshrl.u32 %v4363, 7
    %v4365 = vsub.s32 %v4362, %v4364
    %v4366 = vrot.slane %v4352, %v4365
    %v4367 = vcombine.high %v4359, %v4359
    %v4368 = vcombine.high %v4366, %v4366
    %v4369 = vcombine.high %v3761, %v3761
    %v4371 = vunpack.c.l.s4 1983009808
    %v4372 = vunpack.c.0.s8 %v4371
    %v4373 = vlaneseq
    %v4374 = vshrl.u32 %v4373, 7
    %v4375 = vsub.s32 %v4372, %v4374
    %v4376 = vrot.slane %v3761, %v4375
    %v4378 = vunpack.c.l.s4 1983009808
    %v4379 = vunpack.c.0.s8 %v4378
    %v4380 = vlaneseq
    %v4381 = vshrl.u32 %v4380, 7
    %v4382 = vsub.s32 %v4379, %v4381
    %v4383 = vrot.slane %v4369, %v4382
    %v4384 = vcombine.high %v4376, %v4376
    %v4385 = vcombine.high %v4383, %v4383
    %v4386 = vcombine.high %v3762, %v3762
    %v4388 = vunpack.c.l.s4 1983009808
    %v4389 = vunpack.c.0.s8 %v4388
    %v4390 = vlaneseq
    %v4391 = vshrl.u32 %v4390, 7
    %v4392 = vsub.s32 %v4389, %v4391
    %v4393 = vrot.slane %v3762, %v4392
    %v4395 = vunpack.c.l.s4 1983009808
    %v4396 = vunpack.c.0.s8 %v4395
    %v4397 = vlaneseq
    %v4398 = vshrl.u32 %v4397, 7
    %v4399 = vsub.s32 %v4396, %v4398
    %v4400 = vrot.slane %v4386, %v4399
    %v4401 = vcombine.high %v4393, %v4393
    %v4402 = vcombine.high %v4400, %v4400
    %v4403 = vcombine.high %v3763, %v3763
    %v4405 = vunpack.c.l.s4 1983009808
    %v4406 = vunpack.c.0.s8 %v4405
    %v4407 = vlaneseq
    %v4408 = vshrl.u32 %v4407, 7
    %v4409 = vsub.s32 %v4406, %v4408
    %v4410 = vrot.slane %v3763, %v4409
    %v4412 = vunpack.c.l.s4 1983009808
    %v4413 = vunpack.c.0.s8 %v4412
    %v4414 = vlaneseq
    %v4415 = vshrl.u32 %v4414, 7
    %v4416 = vsub.s32 %v4413, %v4415
    %v4417 = vrot.slane %v4403, %v4416
    %v4418 = vcombine.high %v4410, %v4410
    %v4419 = vcombine.high %v4417, %v4417
    %v4420 = vcombine.high %v3764, %v3764
    %v4422 = vunpack.c.l.s4 1983009808
    %v4423 = vunpack.c.0.s8 %v4422
    %v4424 = vlaneseq
    %v4425 = vshrl.u32 %v4424, 7
    %v4426 = vsub.s32 %v4423, %v4425
    %v4427 = vrot.slane %v3764, %v4426
    %v4429 = vunpack.c.l.s4 1983009808
    %v4430 = vunpack.c.0.s8 %v4429
    %v4431 = vlaneseq
    %v4432 = vshrl.u32 %v4431, 7
    %v4433 = vsub.s32 %v4430, %v4432
    %v4434 = vrot.slane %v4420, %v4433
    %v4435 = vcombine.high %v4427, %v4427
    %v4436 = vcombine.high %v4434, %v4434
    %v4437 = vcombine.high %v3765, %v3765
    %v4439 = vunpack.c.l.s4 1983009808
    %v4440 = vunpack.c.0.s8 %v4439
    %v4441 = vlaneseq
    %v4442 = vshrl.u32 %v4441, 7
    %v4443 = vsub.s32 %v4440, %v4442
    %v4444 = vrot.slane %v3765, %v4443
    %v4446 = vunpack.c.l.s4 1983009808
    %v4447 = vunpack.c.0.s8 %v4446
    %v4448 = vlaneseq
    %v4449 = vshrl.u32 %v4448, 7
    %v4450 = vsub.s32 %v4447, %v4449
    %v4451 = vrot.slane %v4437, %v4450
    %v4452 = vcombine.high %v4444, %v4444
    %v4453 = vcombine.high %v4451, %v4451
    %v4454 = vcombine.high %v3766, %v3766
    %v4456 = vunpack.c.l.s4 1983009808
    %v4457 = vunpack.c.0.s8 %v4456
    %v4458 = vlaneseq
    %v4459 = vshrl.u32 %v4458, 7
    %v4460 = vsub.s32 %v4457, %v4459
    %v4461 = vrot.slane %v3766, %v4460
    %v4463 = vunpack.c.l.s4 1983009808
    %v4464 = vunpack.c.0.s8 %v4463
    %v4465 = vlaneseq
    %v4466 = vshrl.u32 %v4465, 7
    %v4467 = vsub.s32 %v4464, %v4466
    %v4468 = vrot.slane %v4454, %v4467
    %v4469 = vcombine.high %v4461, %v4461
    %v4470 = vcombine.high %v4468, %v4468
    %v4471 = vcombine.high %v3767, %v3767
    %v4473 = vunpack.c.l.s4 1983009808
    %v4474 = vunpack.c.0.s8 %v4473
    %v4475 = vlaneseq
    %v4476 = vshrl.u32 %v4475, 7
    %v4477 = vsub.s32 %v4474, %v4476
    %v4478 = vrot.slane %v3767, %v4477
    %v4480 = vunpack.c.l.s4 1983009808
    %v4481 = vunpack.c.0.s8 %v4480
    %v4482 = vlaneseq
    %v4483 = vshrl.u32 %v4482, 7
    %v4484 = vsub.s32 %v4481, %v4483
    %v4485 = vrot.slane %v4471, %v4484
    %v4486 = vcombine.high %v4478, %v4478
    %v4487 = vcombine.high %v4485, %v4485
    %v4488 = vcombine.high %v3768, %v3768
    %v4490 = vunpack.c.l.s4 1983009808
    %v4491 = vunpack.c.0.s8 %v4490
    %v4492 = vlaneseq
    %v4493 = vshrl.u32 %v4492, 7
    %v4494 = vsub.s32 %v4491, %v4493
    %v4495 = vrot.slane %v3768, %v4494
    %v4497 = vunpack.c.l.s4 1983009808
    %v4498 = vunpack.c.0.s8 %v4497
    %v4499 = vlaneseq
    %v4500 = vshrl.u32 %v4499, 7
    %v4501 = vsub.s32 %v4498, %v4500
    %v4502 = vrot.slane %v4488, %v4501
    %v4503 = vcombine.high %v4495, %v4495
    %v4504 = vcombine.high %v4502, %v4502
    %v4505 = vcombine.high %v3769, %v3769
    %v4507 = vunpack.c.l.s4 1983009808
    %v4508 = vunpack.c.0.s8 %v4507
    %v4509 = vlaneseq
    %v4510 = vshrl.u32 %v4509, 7
    %v4511 = vsub.s32 %v4508, %v4510
    %v4512 = vrot.slane %v3769, %v4511
    %v4514 = vunpack.c.l.s4 1983009808
    %v4515 = vunpack.c.0.s8 %v4514
    %v4516 = vlaneseq
    %v4517 = vshrl.u32 %v4516, 7
    %v4518 = vsub.s32 %v4515, %v4517
    %v4519 = vrot.slane %v4505, %v4518
    %v4520 = vcombine.high %v4512, %v4512
    %v4521 = vcombine.high %v4519, %v4519
    %v4522 = vcombine.high %v3770, %v3770
    %v4524 = vunpack.c.l.s4 1983009808
    %v4525 = vunpack.c.0.s8 %v4524
    %v4526 = vlaneseq
    %v4527 = vshrl.u32 %v4526, 7
    %v4528 = vsub.s32 %v4525, %v4527
    %v4529 = vrot.slane %v3770, %v4528
    %v4531 = vunpack.c.l.s4 1983009808
    %v4532 = vunpack.c.0.s8 %v4531
    %v4533 = vlaneseq
    %v4534 = vshrl.u32 %v4533, 7
    %v4535 = vsub.s32 %v4532, %v4534
    %v4536 = vrot.slane %v4522, %v4535
    %v4537 = vcombine.high %v4529, %v4529
    %v4538 = vcombine.high %v4536, %v4536
    %v4539 = vcombine.high %v3771, %v3771
    %v4541 = vunpack.c.l.s4 1983009808
    %v4542 = vunpack.c.0.s8 %v4541
    %v4543 = vlaneseq
    %v4544 = vshrl.u32 %v4543, 7
    %v4545 = vsub.s32 %v4542, %v4544
    %v4546 = vrot.slane %v3771, %v4545
    %v4548 = vunpack.c.l.s4 1983009808
    %v4549 = vunpack.c.0.s8 %v4548
    %v4550 = vlaneseq
    %v4551 = vshrl.u32 %v4550, 7
    %v4552 = vsub.s32 %v4549, %v4551
    %v4553 = vrot.slane %v4539, %v4552
    %v4554 = vcombine.high %v4546, %v4546
    %v4555 = vcombine.high %v4553, %v4553
    %v4556 = vcombine.high %v3772, %v3772
    %v4558 = vunpack.c.l.s4 1983009808
    %v4559 = vunpack.c.0.s8 %v4558
    %v4560 = vlaneseq
    %v4561 = vshrl.u32 %v4560, 7
    %v4562 = vsub.s32 %v4559, %v4561
    %v4563 = vrot.slane %v3772, %v4562
    %v4565 = vunpack.c.l.s4 1983009808
    %v4566 = vunpack.c.0.s8 %v4565
    %v4567 = vlaneseq
    %v4568 = vshrl.u32 %v4567, 7
    %v4569 = vsub.s32 %v4566, %v4568
    %v4570 = vrot.slane %v4556, %v4569
    %v4571 = vcombine.high %v4563, %v4563
    %v4572 = vcombine.high %v4570, %v4570
    %v4573 = vcombine.high %v3773, %v3773
    %v4575 = vunpack.c.l.s4 1983009808
    %v4576 = vunpack.c.0.s8 %v4575
    %v4577 = vlaneseq
    %v4578 = vshrl.u32 %v4577, 7
    %v4579 = vsub.s32 %v4576, %v4578
    %v4580 = vrot.slane %v3773, %v4579
    %v4582 = vunpack.c.l.s4 1983009808
    %v4583 = vunpack.c.0.s8 %v4582
    %v4584 = vlaneseq
    %v4585 = vshrl.u32 %v4584, 7
    %v4586 = vsub.s32 %v4583, %v4585
    %v4587 = vrot.slane %v4573, %v4586
    %v4588 = vcombine.high %v4580, %v4580
    %v4589 = vcombine.high %v4587, %v4587
    %v4590 = vcombine.high %v3774, %v3774
    %v4592 = vunpack.c.l.s4 1983009808
    %v4593 = vunpack.c.0.s8 %v4592
    %v4594 = vlaneseq
    %v4595 = vshrl.u32 %v4594, 7
    %v4596 = vsub.s32 %v4593, %v4595
    %v4597 = vrot.slane %v3774, %v4596
    %v4599 = vunpack.c.l.s4 1983009808
    %v4600 = vunpack.c.0.s8 %v4599
    %v4601 = vlaneseq
    %v4602 = vshrl.u32 %v4601, 7
    %v4603 = vsub.s32 %v4600, %v4602
    %v4604 = vrot.slane %v4590, %v4603
    %v4605 = vcombine.high %v4597, %v4597
    %v4606 = vcombine.high %v4604, %v4604
    %v4607 = vcombine.high %v3775, %v3775
    %v4609 = vunpack.c.l.s4 1983009808
    %v4610 = vunpack.c.0.s8 %v4609
    %v4611 = vlaneseq
    %v4612 = vshrl.u32 %v4611, 7
    %v4613 = vsub.s32 %v4610, %v4612
    %v4614 = vrot.slane %v3775, %v4613
    %v4616 = vunpack.c.l.s4 1983009808
    %v4617 = vunpack.c.0.s8 %v4616
    %v4618 = vlaneseq
    %v4619 = vshrl.u32 %v4618, 7
    %v4620 = vsub.s32 %v4617, %v4619
    %v4621 = vrot.slane %v4607, %v4620
    %v4622 = vcombine.high %v4614, %v4614
    %v4623 = vcombine.high %v4621, %v4621
    %v4624 = vcombine.high %v3776, %v3776
    %v4626 = vunpack.c.l.s4 1983009808
    %v4627 = vunpack.c.0.s8 %v4626
    %v4628 = vlaneseq
    %v4629 = vshrl.u32 %v4628, 7
    %v4630 = vsub.s32 %v4627, %v4629
    %v4631 = vrot.slane %v3776, %v4630
    %v4633 = vunpack.c.l.s4 1983009808
    %v4634 = vunpack.c.0.s8 %v4633
    %v4635 = vlaneseq
    %v4636 = vshrl.u32 %v4635, 7
    %v4637 = vsub.s32 %v4634, %v4636
    %v4638 = vrot.slane %v4624, %v4637
    %v4639 = vcombine.high %v4631, %v4631
    %v4640 = vcombine.high %v4638, %v4638
    %v4641 = vcombine.high %v3777, %v3777
    %v4643 = vunpack.c.l.s4 1983009808
    %v4644 = vunpack.c.0.s8 %v4643
    %v4645 = vlaneseq
    %v4646 = vshrl.u32 %v4645, 7
    %v4647 = vsub.s32 %v4644, %v4646
    %v4648 = vrot.slane %v3777, %v4647
    %v4650 = vunpack.c.l.s4 1983009808
    %v4651 = vunpack.c.0.s8 %v4650
    %v4652 = vlaneseq
    %v4653 = vshrl.u32 %v4652, 7
    %v4654 = vsub.s32 %v4651, %v4653
    %v4655 = vrot.slane %v4641, %v4654
    %v4656 = vcombine.high %v4648, %v4648
    %v4657 = vcombine.high %v4655, %v4655
    %v4658 = vcombine.high %v3778, %v3778
    %v4660 = vunpack.c.l.s4 1983009808
    %v4661 = vunpack.c.0.s8 %v4660
    %v4662 = vlaneseq
    %v4663 = vshrl.u32 %v4662, 7
    %v4664 = vsub.s32 %v4661, %v4663
    %v4665 = vrot.slane %v3778, %v4664
    %v4667 = vunpack.c.l.s4 1983009808
    %v4668 = vunpack.c.0.s8 %v4667
    %v4669 = vlaneseq
    %v4670 = vshrl.u32 %v4669, 7
    %v4671 = vsub.s32 %v4668, %v4670
    %v4672 = vrot.slane %v4658, %v4671
    %v4673 = vcombine.high %v4665, %v4665
    %v4674 = vcombine.high %v4672, %v4672
    %v4675 = vcombine.high %v3779, %v3779
    %v4677 = vunpack.c.l.s4 1983009808
    %v4678 = vunpack.c.0.s8 %v4677
    %v4679 = vlaneseq
    %v4680 = vshrl.u32 %v4679, 7
    %v4681 = vsub.s32 %v4678, %v4680
    %v4682 = vrot.slane %v3779, %v4681
    %v4684 = vunpack.c.l.s4 1983009808
    %v4685 = vunpack.c.0.s8 %v4684
    %v4686 = vlaneseq
    %v4687 = vshrl.u32 %v4686, 7
    %v4688 = vsub.s32 %v4685, %v4687
    %v4689 = vrot.slane %v4675, %v4688
    %v4690 = vcombine.high %v4682, %v4682
    %v4691 = vcombine.high %v4689, %v4689
    %v4692 = vcombine.high %v3780, %v3780
    %v4694 = vunpack.c.l.s4 1983009808
    %v4695 = vunpack.c.0.s8 %v4694
    %v4696 = vlaneseq
    %v4697 = vshrl.u32 %v4696, 7
    %v4698 = vsub.s32 %v4695, %v4697
    %v4699 = vrot.slane %v3780, %v4698
    %v4701 = vunpack.c.l.s4 1983009808
    %v4702 = vunpack.c.0.s8 %v4701
    %v4703 = vlaneseq
    %v4704 = vshrl.u32 %v4703, 7
    %v4705 = vsub.s32 %v4702, %v4704
    %v4706 = vrot.slane %v4692, %v4705
    %v4707 = vcombine.high %v4699, %v4699
    %v4708 = vcombine.high %v4706, %v4706
    %v4709 = vcombine.high %v3781, %v3781
    %v4711 = vunpack.c.l.s4 1983009808
    %v4712 = vunpack.c.0.s8 %v4711
    %v4713 = vlaneseq
    %v4714 = vshrl.u32 %v4713, 7
    %v4715 = vsub.s32 %v4712, %v4714
    %v4716 = vrot.slane %v3781, %v4715
    %v4718 = vunpack.c.l.s4 1983009808
    %v4719 = vunpack.c.0.s8 %v4718
    %v4720 = vlaneseq
    %v4721 = vshrl.u32 %v4720, 7
    %v4722 = vsub.s32 %v4719, %v4721
    %v4723 = vrot.slane %v4709, %v4722
    %v4724 = vcombine.high %v4716, %v4716
    %v4725 = vcombine.high %v4723, %v4723
    %v4726 = vcombine.high %v3782, %v3782
    %v4728 = vunpack.c.l.s4 1983009808
    %v4729 = vunpack.c.0.s8 %v4728
    %v4730 = vlaneseq
    %v4731 = vshrl.u32 %v4730, 7
    %v4732 = vsub.s32 %v4729, %v4731
    %v4733 = vrot.slane %v3782, %v4732
    %v4735 = vunpack.c.l.s4 1983009808
    %v4736 = vunpack.c.0.s8 %v4735
    %v4737 = vlaneseq
    %v4738 = vshrl.u32 %v4737, 7
    %v4739 = vsub.s32 %v4736, %v4738
    %v4740 = vrot.slane %v4726, %v4739
    %v4741 = vcombine.high %v4733, %v4733
    %v4742 = vcombine.high %v4740, %v4740
    %v4743 = vcombine.high %v3783, %v3783
    %v4745 = vunpack.c.l.s4 1983009808
    %v4746 = vunpack.c.0.s8 %v4745
    %v4747 = vlaneseq
    %v4748 = vshrl.u32 %v4747, 7
    %v4749 = vsub.s32 %v4746, %v4748
    %v4750 = vrot.slane %v3783, %v4749
    %v4752 = vunpack.c.l.s4 1983009808
    %v4753 = vunpack.c.0.s8 %v4752
    %v4754 = vlaneseq
    %v4755 = vshrl.u32 %v4754, 7
    %v4756 = vsub.s32 %v4753, %v4755
    %v4757 = vrot.slane %v4743, %v4756
    %v4758 = vcombine.high %v4750, %v4750
    %v4759 = vcombine.high %v4757, %v4757
    %v4760 = vcombine.high %v3784, %v3784
    %v4762 = vunpack.c.l.s4 1983009808
    %v4763 = vunpack.c.0.s8 %v4762
    %v4764 = vlaneseq
    %v4765 = vshrl.u32 %v4764, 7
    %v4766 = vsub.s32 %v4763, %v4765
    %v4767 = vrot.slane %v3784, %v4766
    %v4769 = vunpack.c.l.s4 1983009808
    %v4770 = vunpack.c.0.s8 %v4769
    %v4771 = vlaneseq
    %v4772 = vshrl.u32 %v4771, 7
    %v4773 = vsub.s32 %v4770, %v4772
    %v4774 = vrot.slane %v4760, %v4773
    %v4775 = vcombine.high %v4767, %v4767
    %v4776 = vcombine.high %v4774, %v4774
    %v4777 = vcombine.high %v3785, %v3785
    %v4779 = vunpack.c.l.s4 1983009808
    %v4780 = vunpack.c.0.s8 %v4779
    %v4781 = vlaneseq
    %v4782 = vshrl.u32 %v4781, 7
    %v4783 = vsub.s32 %v4780, %v4782
    %v4784 = vrot.slane %v3785, %v4783
    %v4786 = vunpack.c.l.s4 1983009808
    %v4787 = vunpack.c.0.s8 %v4786
    %v4788 = vlaneseq
    %v4789 = vshrl.u32 %v4788, 7
    %v4790 = vsub.s32 %v4787, %v4789
    %v4791 = vrot.slane %v4777, %v4790
    %v4792 = vcombine.high %v4784, %v4784
    %v4793 = vcombine.high %v4791, %v4791
    %v4794 = vcombine.high %v3786, %v3786
    %v4796 = vunpack.c.l.s4 1983009808
    %v4797 = vunpack.c.0.s8 %v4796
    %v4798 = vlaneseq
    %v4799 = vshrl.u32 %v4798, 7
    %v4800 = vsub.s32 %v4797, %v4799
    %v4801 = vrot.slane %v3786, %v4800
    %v4803 = vunpack.c.l.s4 1983009808
    %v4804 = vunpack.c.0.s8 %v4803
    %v4805 = vlaneseq
    %v4806 = vshrl.u32 %v4805, 7
    %v4807 = vsub.s32 %v4804, %v4806
    %v4808 = vrot.slane %v4794, %v4807
    %v4809 = vcombine.high %v4801, %v4801
    %v4810 = vcombine.high %v4808, %v4808
    %v4811 = vcombine.high %v3787, %v3787
    %v4813 = vunpack.c.l.s4 1983009808
    %v4814 = vunpack.c.0.s8 %v4813
    %v4815 = vlaneseq
    %v4816 = vshrl.u32 %v4815, 7
    %v4817 = vsub.s32 %v4814, %v4816
    %v4818 = vrot.slane %v3787, %v4817
    %v4820 = vunpack.c.l.s4 1983009808
    %v4821 = vunpack.c.0.s8 %v4820
    %v4822 = vlaneseq
    %v4823 = vshrl.u32 %v4822, 7
    %v4824 = vsub.s32 %v4821, %v4823
    %v4825 = vrot.slane %v4811, %v4824
    %v4826 = vcombine.high %v4818, %v4818
    %v4827 = vcombine.high %v4825, %v4825
    %v4828 = vcombine.high %v3788, %v3788
    %v4830 = vunpack.c.l.s4 1983009808
    %v4831 = vunpack.c.0.s8 %v4830
    %v4832 = vlaneseq
    %v4833 = vshrl.u32 %v4832, 7
    %v4834 = vsub.s32 %v4831, %v4833
    %v4835 = vrot.slane %v3788, %v4834
    %v4837 = vunpack.c.l.s4 1983009808
    %v4838 = vunpack.c.0.s8 %v4837
    %v4839 = vlaneseq
    %v4840 = vshrl.u32 %v4839, 7
    %v4841 = vsub.s32 %v4838, %v4840
    %v4842 = vrot.slane %v4828, %v4841
    %v4843 = vcombine.high %v4835, %v4835
    %v4844 = vcombine.high %v4842, %v4842
    %v4845 = vcombine.high %v3789, %v3789
    %v4847 = vunpack.c.l.s4 1983009808
    %v4848 = vunpack.c.0.s8 %v4847
    %v4849 = vlaneseq
    %v4850 = vshrl.u32 %v4849, 7
    %v4851 = vsub.s32 %v4848, %v4850
    %v4852 = vrot.slane %v3789, %v4851
    %v4854 = vunpack.c.l.s4 1983009808
    %v4855 = vunpack.c.0.s8 %v4854
    %v4856 = vlaneseq
    %v4857 = vshrl.u32 %v4856, 7
    %v4858 = vsub.s32 %v4855, %v4857
    %v4859 = vrot.slane %v4845, %v4858
    %v4860 = vcombine.high %v4852, %v4852
    %v4861 = vcombine.high %v4859, %v4859
    %v4862 = vcombine.high %v3790, %v3790
    %v4864 = vunpack.c.l.s4 1983009808
    %v4865 = vunpack.c.0.s8 %v4864
    %v4866 = vlaneseq
    %v4867 = vshrl.u32 %v4866, 7
    %v4868 = vsub.s32 %v4865, %v4867
    %v4869 = vrot.slane %v3790, %v4868
    %v4871 = vunpack.c.l.s4 1983009808
    %v4872 = vunpack.c.0.s8 %v4871
    %v4873 = vlaneseq
    %v4874 = vshrl.u32 %v4873, 7
    %v4875 = vsub.s32 %v4872, %v4874
    %v4876 = vrot.slane %v4862, %v4875
    %v4877 = vcombine.high %v4869, %v4869
    %v4878 = vcombine.high %v4876, %v4876
    %v4879 = vcombine.high %v3791, %v3791
    %v4881 = vunpack.c.l.s4 1983009808
    %v4882 = vunpack.c.0.s8 %v4881
    %v4883 = vlaneseq
    %v4884 = vshrl.u32 %v4883, 7
    %v4885 = vsub.s32 %v4882, %v4884
    %v4886 = vrot.slane %v3791, %v4885
    %v4888 = vunpack.c.l.s4 1983009808
    %v4889 = vunpack.c.0.s8 %v4888
    %v4890 = vlaneseq
    %v4891 = vshrl.u32 %v4890, 7
    %v4892 = vsub.s32 %v4889, %v4891
    %v4893 = vrot.slane %v4879, %v4892
    %v4894 = vcombine.high %v4886, %v4886
    %v4895 = vcombine.high %v4893, %v4893
    %v4896 = vcombine.high %v3792, %v3792
    %v4898 = vunpack.c.l.s4 1983009808
    %v4899 = vunpack.c.0.s8 %v4898
    %v4900 = vlaneseq
    %v4901 = vshrl.u32 %v4900, 7
    %v4902 = vsub.s32 %v4899, %v4901
    %v4903 = vrot.slane %v3792, %v4902
    %v4905 = vunpack.c.l.s4 1983009808
    %v4906 = vunpack.c.0.s8 %v4905
    %v4907 = vlaneseq
    %v4908 = vshrl.u32 %v4907, 7
    %v4909 = vsub.s32 %v4906, %v4908
    %v4910 = vrot.slane %v4896, %v4909
    %v4911 = vcombine.high %v4903, %v4903
    %v4912 = vcombine.high %v4910, %v4910
    %v4913 = vcombine.high %v3793, %v3793
    %v4915 = vunpack.c.l.s4 1983009808
    %v4916 = vunpack.c.0.s8 %v4915
    %v4917 = vlaneseq
    %v4918 = vshrl.u32 %v4917, 7
    %v4919 = vsub.s32 %v4916, %v4918
    %v4920 = vrot.slane %v3793, %v4919
    %v4922 = vunpack.c.l.s4 1983009808
    %v4923 = vunpack.c.0.s8 %v4922
    %v4924 = vlaneseq
    %v4925 = vshrl.u32 %v4924, 7
    %v4926 = vsub.s32 %v4923, %v4925
    %v4927 = vrot.slane %v4913, %v4926
    %v4928 = vcombine.high %v4920, %v4920
    %v4929 = vcombine.high %v4927, %v4927
    %v4930 = vcombine.high %v3794, %v3794
    %v4932 = vunpack.c.l.s4 1983009808
    %v4933 = vunpack.c.0.s8 %v4932
    %v4934 = vlaneseq
    %v4935 = vshrl.u32 %v4934, 7
    %v4936 = vsub.s32 %v4933, %v4935
    %v4937 = vrot.slane %v3794, %v4936
    %v4939 = vunpack.c.l.s4 1983009808
    %v4940 = vunpack.c.0.s8 %v4939
    %v4941 = vlaneseq
    %v4942 = vshrl.u32 %v4941, 7
    %v4943 = vsub.s32 %v4940, %v4942
    %v4944 = vrot.slane %v4930, %v4943
    %v4945 = vcombine.high %v4937, %v4937
    %v4946 = vcombine.high %v4944, %v4944
    %v5203 = vrot.slane %v3866, 7
    %v5204 = vrot.slane %v5203, 2
    %v5205 = vrot.slane %v3874, 7
    %v5206 = vrot.slane %v5205, 2
    %v5207 = vrot.slane %v3873, 7
    %v5208 = vrot.slane %v5207, 2
    %v5209 = vrot.slane %v3875, 7
    %v5210 = vrot.slane %v5209, 2
    %v5211 = vrot.slane %v3883, 7
    %v5212 = vrot.slane %v5211, 2
    %v5213 = vrot.slane %v3891, 7
    %v5214 = vrot.slane %v5213, 2
    %v5215 = vrot.slane %v3890, 7
    %v5216 = vrot.slane %v5215, 2
    %v5217 = vrot.slane %v3892, 7
    %v5218 = vrot.slane %v5217, 2
    %v5219 = vrot.slane %v3900, 7
    %v5220 = vrot.slane %v5219, 2
    %v5221 = vrot.slane %v3908, 7
    %v5222 = vrot.slane %v5221, 2
    %v5223 = vrot.slane %v3907, 7
    %v5224 = vrot.slane %v5223, 2
    %v5225 = vrot.slane %v3909, 7
    %v5226 = vrot.slane %v5225, 2
    %v5227 = vrot.slane %v3917, 7
    %v5228 = vrot.slane %v5227, 2
    %v5229 = vrot.slane %v3925, 7
    %v5230 = vrot.slane %v5229, 2
    %v5231 = vrot.slane %v3924, 7
    %v5232 = vrot.slane %v5231, 2
    %v5233 = vrot.slane %v3926, 7
    %v5234 = vrot.slane %v5233, 2
    %v5235 = vrot.slane %v3934, 7
    %v5236 = vrot.slane %v5235, 2
    %v5237 = vrot.slane %v3942, 7
    %v5238 = vrot.slane %v5237, 2
    %v5239 = vrot.slane %v3941, 7
    %v5240 = vrot.slane %v5239, 2
    %v5241 = vrot.slane %v3943, 7
    %v5242 = vrot.slane %v5241, 2
    %v5243 = vrot.slane %v3951, 7
    %v5244 = vrot.slane %v5243, 2
    %v5245 = vrot.slane %v3959, 7
    %v5246 = vrot.slane %v5245, 2
    %v5247 = vrot.slane %v3958, 7
    %v5248 = vrot.slane %v5247, 2
    %v5249 = vrot.slane %v3960, 7
    %v5250 = vrot.slane %v5249, 2
    %v5251 = vrot.slane %v3968, 7
    %v5252 = vrot.slane %v5251, 2
    %v5253 = vrot.slane %v3976, 7
    %v5254 = vrot.slane %v5253, 2
    %v5255 = vrot.slane %v3975, 7
    %v5256 = vrot.slane %v5255, 2
    %v5257 = vrot.slane %v3977, 7
    %v5258 = vrot.slane %v5257, 2
    %v5259 = vrot.slane %v3985, 7
    %v5260 = vrot.slane %v5259, 2
    %v5261 = vrot.slane %v3993, 7
    %v5262 = vrot.slane %v5261, 2
    %v5263 = vrot.slane %v3992, 7
    %v5264 = vrot.slane %v5263, 2
    %v5265 = vrot.slane %v3994, 7
    %v5266 = vrot.slane %v5265, 2
    %v5267 = vrot.slane %v4002, 7
    %v5268 = vrot.slane %v5267, 2
    %v5269 = vrot.slane %v4010, 7
    %v5270 = vrot.slane %v5269, 2
    %v5271 = vrot.slane %v4009, 7
    %v5272 = vrot.slane %v5271, 2
    %v5273 = vrot.slane %v4011, 7
    %v5274 = vrot.slane %v5273, 2
    %v5275 = vrot.slane %v4019, 7
    %v5276 = vrot.slane %v5275, 2
    %v5277 = vrot.slane %v4027, 7
    %v5278 = vrot.slane %v5277, 2
    %v5279 = vrot.slane %v4026, 7
    %v5280 = vrot.slane %v5279, 2
    %v5281 = vrot.slane %v4028, 7
    %v5282 = vrot.slane %v5281, 2
    %v5283 = vrot.slane %v4036, 7
    %v5284 = vrot.slane %v5283, 2
    %v5285 = vrot.slane %v4044, 7
    %v5286 = vrot.slane %v5285, 2
    %v5287 = vrot.slane %v4043, 7
    %v5288 = vrot.slane %v5287, 2
    %v5289 = vrot.slane %v4045, 7
    %v5290 = vrot.slane %v5289, 2
    %v5291 = vrot.slane %v4053, 7
    %v5292 = vrot.slane %v5291, 2
    %v5293 = vrot.slane %v4061, 7
    %v5294 = vrot.slane %v5293, 2
    %v5295 = vrot.slane %v4060, 7
    %v5296 = vrot.slane %v5295, 2
    %v5297 = vrot.slane %v4062, 7
    %v5298 = vrot.slane %v5297, 2
    %v5299 = vrot.slane %v4070, 7
    %v5300 = vrot.slane %v5299, 2
    %v5301 = vrot.slane %v4078, 7
    %v5302 = vrot.slane %v5301, 2
    %v5303 = vrot.slane %v4077, 7
    %v5304 = vrot.slane %v5303, 2
    %v5305 = vrot.slane %v4079, 7
    %v5306 = vrot.slane %v5305, 2
    %v5307 = vrot.slane %v4087, 7
    %v5308 = vrot.slane %v5307, 2
    %v5309 = vrot.slane %v4095, 7
    %v5310 = vrot.slane %v5309, 2
    %v5311 = vrot.slane %v4094, 7
    %v5312 = vrot.slane %v5311, 2
    %v5313 = vrot.slane %v4096, 7
    %v5314 = vrot.slane %v5313, 2
    %v5315 = vrot.slane %v4104, 7
    %v5316 = vrot.slane %v5315, 2
    %v5317 = vrot.slane %v4112, 7
    %v5318 = vrot.slane %v5317, 2
    %v5319 = vrot.slane %v4111, 7
    %v5320 = vrot.slane %v5319, 2
    %v5321 = vrot.slane %v4113, 7
    %v5322 = vrot.slane %v5321, 2
    %v5323 = vrot.slane %v4121, 7
    %v5324 = vrot.slane %v5323, 2
    %v5325 = vrot.slane %v4129, 7
    %v5326 = vrot.slane %v5325, 2
    %v5327 = vrot.slane %v4128, 7
    %v5328 = vrot.slane %v5327, 2
    %v5329 = vrot.slane %v4130, 7
    %v5330 = vrot.slane %v5329, 2
    %v5331 = vrot.slane %v4138, 7
    %v5332 = vrot.slane %v5331, 2
    %v5333 = vrot.slane %v4146, 7
    %v5334 = vrot.slane %v5333, 2
    %v5335 = vrot.slane %v4145, 7
    %v5336 = vrot.slane %v5335, 2
    %v5337 = vrot.slane %v4147, 7
    %v5338 = vrot.slane %v5337, 2
    %v5339 = vrot.slane %v4155, 7
    %v5340 = vrot.slane %v5339, 2
    %v5341 = vrot.slane %v4163, 7
    %v5342 = vrot.slane %v5341, 2
    %v5343 = vrot.slane %v4162, 7
    %v5344 = vrot.slane %v5343, 2
    %v5345 = vrot.slane %v4164, 7
    %v5346 = vrot.slane %v5345, 2
    %v5347 = vrot.slane %v4172, 7
    %v5348 = vrot.slane %v5347, 2
    %v5349 = vrot.slane %v4180, 7
    %v5350 = vrot.slane %v5349, 2
    %v5351 = vrot.slane %v4179, 7
    %v5352 = vrot.slane %v5351, 2
    %v5353 = vrot.slane %v4181, 7
    %v5354 = vrot.slane %v5353, 2
    %v5355 = vrot.slane %v4189, 7
    %v5356 = vrot.slane %v5355, 2
    %v5357 = vrot.slane %v4197, 7
    %v5358 = vrot.slane %v5357, 2
    %v5359 = vrot.slane %v4196, 7
    %v5360 = vrot.slane %v5359, 2
    %v5361 = vrot.slane %v4198, 7
    %v5362 = vrot.slane %v5361, 2
    %v5363 = vrot.slane %v4206, 7
    %v5364 = vrot.slane %v5363, 2
    %v5365 = vrot.slane %v4214, 7
    %v5366 = vrot.slane %v5365, 2
    %v5367 = vrot.slane %v4213, 7
    %v5368 = vrot.slane %v5367, 2
    %v5369 = vrot.slane %v4215, 7
    %v5370 = vrot.slane %v5369, 2
    %v5371 = vrot.slane %v4223, 7
    %v5372 = vrot.slane %v5371, 2
    %v5373 = vrot.slane %v4231, 7
    %v5374 = vrot.slane %v5373, 2
    %v5375 = vrot.slane %v4230, 7
    %v5376 = vrot.slane %v5375, 2
    %v5377 = vrot.slane %v4232, 7
    %v5378 = vrot.slane %v5377, 2
    %v5379 = vrot.slane %v4240, 7
    %v5380 = vrot.slane %v5379, 2
    %v5381 = vrot.slane %v4248, 7
    %v5382 = vrot.slane %v5381, 2
    %v5383 = vrot.slane %v4247, 7
    %v5384 = vrot.slane %v5383, 2
    %v5385 = vrot.slane %v4249, 7
    %v5386 = vrot.slane %v5385, 2
    %v5387 = vrot.slane %v4257, 7
    %v5388 = vrot.slane %v5387, 2
    %v5389 = vrot.slane %v4265, 7
    %v5390 = vrot.slane %v5389, 2
    %v5391 = vrot.slane %v4264, 7
    %v5392 = vrot.slane %v5391, 2
    %v5393 = vrot.slane %v4266, 7
    %v5394 = vrot.slane %v5393, 2
    %v5395 = vrot.slane %v4274, 7
    %v5396 = vrot.slane %v5395, 2
    %v5397 = vrot.slane %v4282, 7
    %v5398 = vrot.slane %v5397, 2
    %v5399 = vrot.slane %v4281, 7
    %v5400 = vrot.slane %v5399, 2
    %v5401 = vrot.slane %v4283, 7
    %v5402 = vrot.slane %v5401, 2
    %v5403 = vrot.slane %v4291, 7
    %v5404 = vrot.slane %v5403, 2
    %v5405 = vrot.slane %v4299, 7
    %v5406 = vrot.slane %v5405, 2
    %v5407 = vrot.slane %v4298, 7
    %v5408 = vrot.slane %v5407, 2
    %v5409 = vrot.slane %v4300, 7
    %v5410 = vrot.slane %v5409, 2
    %v5411 = vrot.slane %v4308, 7
    %v5412 = vrot.slane %v5411, 2
    %v5413 = vrot.slane %v4316, 7
    %v5414 = vrot.slane %v5413, 2
    %v5415 = vrot.slane %v4315, 7
    %v5416 = vrot.slane %v5415, 2
    %v5417 = vrot.slane %v4317, 7
    %v5418 = vrot.slane %v5417, 2
    %v5419 = vrot.slane %v4325, 7
    %v5420 = vrot.slane %v5419, 2
    %v5421 = vrot.slane %v4333, 7
    %v5422 = vrot.slane %v5421, 2
    %v5423 = vrot.slane %v4332, 7
    %v5424 = vrot.slane %v5423, 2
    %v5425 = vrot.slane %v4334, 7
    %v5426 = vrot.slane %v5425, 2
    %v5427 = vrot.slane %v4342, 7
    %v5428 = vrot.slane %v5427, 2
    %v5429 = vrot.slane %v4350, 7
    %v5430 = vrot.slane %v5429, 2
    %v5431 = vrot.slane %v4349, 7
    %v5432 = vrot.slane %v5431, 2
    %v5433 = vrot.slane %v4351, 7
    %v5434 = vrot.slane %v5433, 2
    %v5435 = vrot.slane %v4359, 7
    %v5436 = vrot.slane %v5435, 2
    %v5437 = vrot.slane %v4367, 7
    %v5438 = vrot.slane %v5437, 2
    %v5439 = vrot.slane %v4366, 7
    %v5440 = vrot.slane %v5439, 2
    %v5441 = vrot.slane %v4368, 7
    %v5442 = vrot.slane %v5441, 2
    %v5443 = vrot.slane %v4376, 7
    %v5444 = vrot.slane %v5443, 2
    %v5445 = vrot.slane %v4384, 7
    %v5446 = vrot.slane %v5445, 2
    %v5447 = vrot.slane %v4383, 7
    %v5448 = vrot.slane %v5447, 2
    %v5449 = vrot.slane %v4385, 7
    %v5450 = vrot.slane %v5449, 2
    %v5451 = vrot.slane %v4393, 7
    %v5452 = vrot.slane %v5451, 2
    %v5453 = vrot.slane %v4401, 7
    %v5454 = vrot.slane %v5453, 2
    %v5455 = vrot.slane %v4400, 7
    %v5456 = vrot.slane %v5455, 2
    %v5457 = vrot.slane %v4402, 7
    %v5458 = vrot.slane %v5457, 2
    %v5459 = vrot.slane %v4410, 7
    %v5460 = vrot.slane %v5459, 2
    %v5461 = vrot.slane %v4418, 7
    %v5462 = vrot.slane %v5461, 2
    %v5463 = vrot.slane %v4417, 7
    %v5464 = vrot.slane %v5463, 2
    %v5465 = vrot.slane %v4419, 7
    %v5466 = vrot.slane %v5465, 2
    %v5467 = vrot.slane %v4427, 7
    %v5468 = vrot.slane %v5467, 2
    %v5469 = vrot.slane %v4435, 7
    %v5470 = vrot.slane %v5469, 2
    %v5471 = vrot.slane %v4434, 7
    %v5472 = vrot.slane %v5471, 2
    %v5473 = vrot.slane %v4436, 7
    %v5474 = vrot.slane %v5473, 2
    %v5475 = vrot.slane %v4444, 7
    %v5476 = vrot.slane %v5475, 2
    %v5477 = vrot.slane %v4452, 7
    %v5478 = vrot.slane %v5477, 2
    %v5479 = vrot.slane %v4451, 7
    %v5480 = vrot.slane %v5479, 2
    %v5481 = vrot.slane %v4453, 7
    %v5482 = vrot.slane %v5481, 2
    %v5483 = vrot.slane %v4461, 7
    %v5484 = vrot.slane %v5483, 2
    %v5485 = vrot.slane %v4469, 7
    %v5486 = vrot.slane %v5485, 2
    %v5487 = vrot.slane %v4468, 7
    %v5488 = vrot.slane %v5487, 2
    %v5489 = vrot.slane %v4470, 7
    %v5490 = vrot.slane %v5489, 2
    %v5491 = vrot.slane %v4478, 7
    %v5492 = vrot.slane %v5491, 2
    %v5493 = vrot.slane %v4486, 7
    %v5494 = vrot.slane %v5493, 2
    %v5495 = vrot.slane %v4485, 7
    %v5496 = vrot.slane %v5495, 2
    %v5497 = vrot.slane %v4487, 7
    %v5498 = vrot.slane %v5497, 2
    %v5499 = vrot.slane %v4495, 7
    %v5500 = vrot.slane %v5499, 2
    %v5501 = vrot.slane %v4503, 7
    %v5502 = vrot.slane %v5501, 2
    %v5503 = vrot.slane %v4502, 7
    %v5504 = vrot.slane %v5503, 2
    %v5505 = vrot.slane %v4504, 7
    %v5506 = vrot.slane %v5505, 2
    %v5507 = vrot.slane %v4512, 7
    %v5508 = vrot.slane %v5507, 2
    %v5509 = vrot.slane %v4520, 7
    %v5510 = vrot.slane %v5509, 2
    %v5511 = vrot.slane %v4519, 7
    %v5512 = vrot.slane %v5511, 2
    %v5513 = vrot.slane %v4521, 7
    %v5514 = vrot.slane %v5513, 2
    %v5515 = vrot.slane %v4529, 7
    %v5516 = vrot.slane %v5515, 2
    %v5517 = vrot.slane %v4537, 7
    %v5518 = vrot.slane %v5517, 2
    %v5519 = vrot.slane %v4536, 7
    %v5520 = vrot.slane %v5519, 2
    %v5521 = vrot.slane %v4538, 7
    %v5522 = vrot.slane %v5521, 2
    %v5523 = vrot.slane %v4546, 7
    %v5524 = vrot.slane %v5523, 2
    %v5525 = vrot.slane %v4554, 7
    %v5526 = vrot.slane %v5525, 2
    %v5527 = vrot.slane %v4553, 7
    %v5528 = vrot.slane %v5527, 2
    %v5529 = vrot.slane %v4555, 7
    %v5530 = vrot.slane %v5529, 2
    %v5531 = vrot.slane %v4563, 7
    %v5532 = vrot.slane %v5531, 2
    %v5533 = vrot.slane %v4571, 7
    %v5534 = vrot.slane %v5533, 2
    %v5535 = vrot.slane %v4570, 7
    %v5536 = vrot.slane %v5535, 2
    %v5537 = vrot.slane %v4572, 7
    %v5538 = vrot.slane %v5537, 2
    %v5539 = vrot.slane %v4580, 7
    %v5540 = vrot.slane %v5539, 2
    %v5541 = vrot.slane %v4588, 7
    %v5542 = vrot.slane %v5541, 2
    %v5543 = vrot.slane %v4587, 7
    %v5544 = vrot.slane %v5543, 2
    %v5545 = vrot.slane %v4589, 7
    %v5546 = vrot.slane %v5545, 2
    %v5547 = vrot.slane %v4597, 7
    %v5548 = vrot.slane %v5547, 2
    %v5549 = vrot.slane %v4605, 7
    %v5550 = vrot.slane %v5549, 2
    %v5551 = vrot.slane %v4604, 7
    %v5552 = vrot.slane %v5551, 2
    %v5553 = vrot.slane %v4606, 7
    %v5554 = vrot.slane %v5553, 2
    %v5555 = vrot.slane %v4614, 7
    %v5556 = vrot.slane %v5555, 2
    %v5557 = vrot.slane %v4622, 7
    %v5558 = vrot.slane %v5557, 2
    %v5559 = vrot.slane %v4621, 7
    %v5560 = vrot.slane %v5559, 2
    %v5561 = vrot.slane %v4623, 7
    %v5562 = vrot.slane %v5561, 2
    %v5563 = vrot.slane %v4631, 7
    %v5564 = vrot.slane %v5563, 2
    %v5565 = vrot.slane %v4639, 7
    %v5566 = vrot.slane %v5565, 2
    %v5567 = vrot.slane %v4638, 7
    %v5568 = vrot.slane %v5567, 2
    %v5569 = vrot.slane %v4640, 7
    %v5570 = vrot.slane %v5569, 2
    %v5571 = vrot.slane %v4648, 7
    %v5572 = vrot.slane %v5571, 2
    %v5573 = vrot.slane %v4656, 7
    %v5574 = vrot.slane %v5573, 2
    %v5575 = vrot.slane %v4655, 7
    %v5576 = vrot.slane %v5575, 2
    %v5577 = vrot.slane %v4657, 7
    %v5578 = vrot.slane %v5577, 2
    %v5579 = vrot.slane %v4665, 7
    %v5580 = vrot.slane %v5579, 2
    %v5581 = vrot.slane %v4673, 7
    %v5582 = vrot.slane %v5581, 2
    %v5583 = vrot.slane %v4672, 7
    %v5584 = vrot.slane %v5583, 2
    %v5585 = vrot.slane %v4674, 7
    %v5586 = vrot.slane %v5585, 2
    %v5587 = vrot.slane %v4682, 7
    %v5588 = vrot.slane %v5587, 2
    %v5589 = vrot.slane %v4690, 7
    %v5590 = vrot.slane %v5589, 2
    %v5591 = vrot.slane %v4689, 7
    %v5592 = vrot.slane %v5591, 2
    %v5593 = vrot.slane %v4691, 7
    %v5594 = vrot.slane %v5593, 2
    %v5595 = vrot.slane %v4699, 7
    %v5596 = vrot.slane %v5595, 2
    %v5597 = vrot.slane %v4707, 7
    %v5598 = vrot.slane %v5597, 2
    %v5599 = vrot.slane %v4706, 7
    %v5600 = vrot.slane %v5599, 2
    %v5601 = vrot.slane %v4708, 7
    %v5602 = vrot.slane %v5601, 2
    %v5603 = vrot.slane %v4716, 7
    %v5604 = vrot.slane %v5603, 2
    %v5605 = vrot.slane %v4724, 7
    %v5606 = vrot.slane %v5605, 2
    %v5607 = vrot.slane %v4723, 7
    %v5608 = vrot.slane %v5607, 2
    %v5609 = vrot.slane %v4725, 7
    %v5610 = vrot.slane %v5609, 2
    %v5611 = vrot.slane %v4733, 7
    %v5612 = vrot.slane %v5611, 2
    %v5613 = vrot.slane %v4741, 7
    %v5614 = vrot.slane %v5613, 2
    %v5615 = vrot.slane %v4740, 7
    %v5616 = vrot.slane %v5615, 2
    %v5617 = vrot.slane %v4742, 7
    %v5618 = vrot.slane %v5617, 2
    %v5619 = vrot.slane %v4750, 7
    %v5620 = vrot.slane %v5619, 2
    %v5621 = vrot.slane %v4758, 7
    %v5622 = vrot.slane %v5621, 2
    %v5623 = vrot.slane %v4757, 7
    %v5624 = vrot.slane %v5623, 2
    %v5625 = vrot.slane %v4759, 7
    %v5626 = vrot.slane %v5625, 2
    %v5627 = vrot.slane %v4767, 7
    %v5628 = vrot.slane %v5627, 2
    %v5629 = vrot.slane %v4775, 7
    %v5630 = vrot.slane %v5629, 2
    %v5631 = vrot.slane %v4774, 7
    %v5632 = vrot.slane %v5631, 2
    %v5633 = vrot.slane %v4776, 7
    %v5634 = vrot.slane %v5633, 2
    %v5635 = vrot.slane %v4784, 7
    %v5636 = vrot.slane %v5635, 2
    %v5637 = vrot.slane %v4792, 7
    %v5638 = vrot.slane %v5637, 2
    %v5639 = vrot.slane %v4791, 7
    %v5640 = vrot.slane %v5639, 2
    %v5641 = vrot.slane %v4793, 7
    %v5642 = vrot.slane %v5641, 2
    %v5643 = vrot.slane %v4801, 7
    %v5644 = vrot.slane %v5643, 2
    %v5645 = vrot.slane %v4809, 7
    %v5646 = vrot.slane %v5645, 2
    %v5647 = vrot.slane %v4808, 7
    %v5648 = vrot.slane %v5647, 2
    %v5649 = vrot.slane %v4810, 7
    %v5650 = vrot.slane %v5649, 2
    %v5651 = vrot.slane %v4818, 7
    %v5652 = vrot.slane %v5651, 2
    %v5653 = vrot.slane %v4826, 7
    %v5654 = vrot.slane %v5653, 2
    %v5655 = vrot.slane %v4825, 7
    %v5656 = vrot.slane %v5655, 2
    %v5657 = vrot.slane %v4827, 7
    %v5658 = vrot.slane %v5657, 2
    %v5659 = vrot.slane %v4835, 7
    %v5660 = vrot.slane %v5659, 2
    %v5661 = vrot.slane %v4843, 7
    %v5662 = vrot.slane %v5661, 2
    %v5663 = vrot.slane %v4842, 7
    %v5664 = vrot.slane %v5663, 2
    %v5665 = vrot.slane %v4844, 7
    %v5666 = vrot.slane %v5665, 2
    %v5667 = vrot.slane %v4852, 7
    %v5668 = vrot.slane %v5667, 2
    %v5669 = vrot.slane %v4860, 7
    %v5670 = vrot.slane %v5669, 2
    %v5671 = vrot.slane %v4859, 7
    %v5672 = vrot.slane %v5671, 2
    %v5673 = vrot.slane %v4861, 7
    %v5674 = vrot.slane %v5673, 2
    %v5675 = vrot.slane %v4869, 7
    %v5676 = vrot.slane %v5675, 2
    %v5677 = vrot.slane %v4877, 7
    %v5678 = vrot.slane %v5677, 2
    %v5679 = vrot.slane %v4876, 7
    %v5680 = vrot.slane %v5679, 2
    %v5681 = vrot.slane %v4878, 7
    %v5682 = vrot.slane %v5681, 2
    %v5683 = vrot.slane %v4886, 7
    %v5684 = vrot.slane %v5683, 2
    %v5685 = vrot.slane %v4894, 7
    %v5686 = vrot.slane %v5685, 2
    %v5687 = vrot.slane %v4893, 7
    %v5688 = vrot.slane %v5687, 2
    %v5689 = vrot.slane %v4895, 7
    %v5690 = vrot.slane %v5689, 2
    %v5691 = vrot.slane %v4903, 7
    %v5692 = vrot.slane %v5691, 2
    %v5693 = vrot.slane %v4911, 7
    %v5694 = vrot.slane %v5693, 2
    %v5695 = vrot.slane %v4910, 7
    %v5696 = vrot.slane %v5695, 2
    %v5697 = vrot.slane %v4912, 7
    %v5698 = vrot.slane %v5697, 2
    %v5699 = vrot.slane %v4920, 7
    %v5700 = vrot.slane %v5699, 2
    %v5701 = vrot.slane %v4928, 7
    %v5702 = vrot.slane %v5701, 2
    %v5703 = vrot.slane %v4927, 7
    %v5704 = vrot.slane %v5703, 2
    %v5705 = vrot.slane %v4929, 7
    %v5706 = vrot.slane %v5705, 2
    %v5707 = vrot.slane %v4937, 7
    %v5708 = vrot.slane %v5707, 2
    %v5709 = vrot.slane %v4945, 7
    %v5710 = vrot.slane %v5709, 2
    %v5711 = vrot.slane %v4944, 7
    %v5712 = vrot.slane %v5711, 2
    %v5713 = vrot.slane %v4946, 7
    %v5714 = vrot.slane %v5713, 2
    %v5971 = vmax.f32 %v3866, %v5204
    %v5972 = vmax.f32 %v3874, %v5206
    %v5973 = vmax.f32 %v3873, %v5208
    %v5974 = vmax.f32 %v3875, %v5210
    %v5975 = vmax.f32 %v3883, %v5212
    %v5976 = vmax.f32 %v3891, %v5214
    %v5977 = vmax.f32 %v3890, %v5216
    %v5978 = vmax.f32 %v3892, %v5218
    %v5979 = vmax.f32 %v3900, %v5220
    %v5980 = vmax.f32 %v3908, %v5222
    %v5981 = vmax.f32 %v3907, %v5224
    %v5982 = vmax.f32 %v3909, %v5226
    %v5983 = vmax.f32 %v3917, %v5228
    %v5984 = vmax.f32 %v3925, %v5230
    %v5985 = vmax.f32 %v3924, %v5232
    %v5986 = vmax.f32 %v3926, %v5234
    %v5987 = vmax.f32 %v3934, %v5236
    %v5988 = vmax.f32 %v3942, %v5238
    %v5989 = vmax.f32 %v3941, %v5240
    %v5990 = vmax.f32 %v3943, %v5242
    %v5991 = vmax.f32 %v3951, %v5244
    %v5992 = vmax.f32 %v3959, %v5246
    %v5993 = vmax.f32 %v3958, %v5248
    %v5994 = vmax.f32 %v3960, %v5250
    %v5995 = vmax.f32 %v3968, %v5252
    %v5996 = vmax.f32 %v3976, %v5254
    %v5997 = vmax.f32 %v3975, %v5256
    %v5998 = vmax.f32 %v3977, %v5258
    %v5999 = vmax.f32 %v3985, %v5260
    %v6000 = vmax.f32 %v3993, %v5262
    %v6001 = vmax.f32 %v3992, %v5264
    %v6002 = vmax.f32 %v3994, %v5266
    %v6003 = vmax.f32 %v4002, %v5268
    %v6004 = vmax.f32 %v4010, %v5270
    %v6005 = vmax.f32 %v4009, %v5272
    %v6006 = vmax.f32 %v4011, %v5274
    %v6007 = vmax.f32 %v4019, %v5276
    %v6008 = vmax.f32 %v4027, %v5278
    %v6009 = vmax.f32 %v4026, %v5280
    %v6010 = vmax.f32 %v4028, %v5282
    %v6011 = vmax.f32 %v4036, %v5284
    %v6012 = vmax.f32 %v4044, %v5286
    %v6013 = vmax.f32 %v4043, %v5288
    %v6014 = vmax.f32 %v4045, %v5290
    %v6015 = vmax.f32 %v4053, %v5292
    %v6016 = vmax.f32 %v4061, %v5294
    %v6017 = vmax.f32 %v4060, %v5296
    %v6018 = vmax.f32 %v4062, %v5298
    %v6019 = vmax.f32 %v4070, %v5300
    %v6020 = vmax.f32 %v4078, %v5302
    %v6021 = vmax.f32 %v4077, %v5304
    %v6022 = vmax.f32 %v4079, %v5306
    %v6023 = vmax.f32 %v4087, %v5308
    %v6024 = vmax.f32 %v4095, %v5310
    %v6025 = vmax.f32 %v4094, %v5312
    %v6026 = vmax.f32 %v4096, %v5314
    %v6027 = vmax.f32 %v4104, %v5316
    %v6028 = vmax.f32 %v4112, %v5318
    %v6029 = vmax.f32 %v4111, %v5320
    %v6030 = vmax.f32 %v4113, %v5322
    %v6031 = vmax.f32 %v4121, %v5324
    %v6032 = vmax.f32 %v4129, %v5326
    %v6033 = vmax.f32 %v4128, %v5328
    %v6034 = vmax.f32 %v4130, %v5330
    %v6035 = vmax.f32 %v4138, %v5332
    %v6036 = vmax.f32 %v4146, %v5334
    %v6037 = vmax.f32 %v4145, %v5336
    %v6038 = vmax.f32 %v4147, %v5338
    %v6039 = vmax.f32 %v4155, %v5340
    %v6040 = vmax.f32 %v4163, %v5342
    %v6041 = vmax.f32 %v4162, %v5344
    %v6042 = vmax.f32 %v4164, %v5346
    %v6043 = vmax.f32 %v4172, %v5348
    %v6044 = vmax.f32 %v4180, %v5350
    %v6045 = vmax.f32 %v4179, %v5352
    %v6046 = vmax.f32 %v4181, %v5354
    %v6047 = vmax.f32 %v4189, %v5356
    %v6048 = vmax.f32 %v4197, %v5358
    %v6049 = vmax.f32 %v4196, %v5360
    %v6050 = vmax.f32 %v4198, %v5362
    %v6051 = vmax.f32 %v4206, %v5364
    %v6052 = vmax.f32 %v4214, %v5366
    %v6053 = vmax.f32 %v4213, %v5368
    %v6054 = vmax.f32 %v4215, %v5370
    %v6055 = vmax.f32 %v4223, %v5372
    %v6056 = vmax.f32 %v4231, %v5374
    %v6057 = vmax.f32 %v4230, %v5376
    %v6058 = vmax.f32 %v4232, %v5378
    %v6059 = vmax.f32 %v4240, %v5380
    %v6060 = vmax.f32 %v4248, %v5382
    %v6061 = vmax.f32 %v4247, %v5384
    %v6062 = vmax.f32 %v4249, %v5386
    %v6063 = vmax.f32 %v4257, %v5388
    %v6064 = vmax.f32 %v4265, %v5390
    %v6065 = vmax.f32 %v4264, %v5392
    %v6066 = vmax.f32 %v4266, %v5394
    %v6067 = vmax.f32 %v4274, %v5396
    %v6068 = vmax.f32 %v4282, %v5398
    %v6069 = vmax.f32 %v4281, %v5400
    %v6070 = vmax.f32 %v4283, %v5402
    %v6071 = vmax.f32 %v4291, %v5404
    %v6072 = vmax.f32 %v4299, %v5406
    %v6073 = vmax.f32 %v4298, %v5408
    %v6074 = vmax.f32 %v4300, %v5410
    %v6075 = vmax.f32 %v4308, %v5412
    %v6076 = vmax.f32 %v4316, %v5414
    %v6077 = vmax.f32 %v4315, %v5416
    %v6078 = vmax.f32 %v4317, %v5418
    %v6079 = vmax.f32 %v4325, %v5420
    %v6080 = vmax.f32 %v4333, %v5422
    %v6081 = vmax.f32 %v4332, %v5424
    %v6082 = vmax.f32 %v4334, %v5426
    %v6083 = vmax.f32 %v4342, %v5428
    %v6084 = vmax.f32 %v4350, %v5430
    %v6085 = vmax.f32 %v4349, %v5432
    %v6086 = vmax.f32 %v4351, %v5434
    %v6087 = vmax.f32 %v4359, %v5436
    %v6088 = vmax.f32 %v4367, %v5438
    %v6089 = vmax.f32 %v4366, %v5440
    %v6090 = vmax.f32 %v4368, %v5442
    %v6091 = vmax.f32 %v4376, %v5444
    %v6092 = vmax.f32 %v4384, %v5446
    %v6093 = vmax.f32 %v4383, %v5448
    %v6094 = vmax.f32 %v4385, %v5450
    %v6095 = vmax.f32 %v4393, %v5452
    %v6096 = vmax.f32 %v4401, %v5454
    %v6097 = vmax.f32 %v4400, %v5456
    %v6098 = vmax.f32 %v4402, %v5458
    %v6099 = vmax.f32 %v4410, %v5460
    %v6100 = vmax.f32 %v4418, %v5462
    %v6101 = vmax.f32 %v4417, %v5464
    %v6102 = vmax.f32 %v4419, %v5466
    %v6103 = vmax.f32 %v4427, %v5468
    %v6104 = vmax.f32 %v4435, %v5470
    %v6105 = vmax.f32 %v4434, %v5472
    %v6106 = vmax.f32 %v4436, %v5474
    %v6107 = vmax.f32 %v4444, %v5476
    %v6108 = vmax.f32 %v4452, %v5478
    %v6109 = vmax.f32 %v4451, %v5480
    %v6110 = vmax.f32 %v4453, %v5482
    %v6111 = vmax.f32 %v4461, %v5484
    %v6112 = vmax.f32 %v4469, %v5486
    %v6113 = vmax.f32 %v4468, %v5488
    %v6114 = vmax.f32 %v4470, %v5490
    %v6115 = vmax.f32 %v4478, %v5492
    %v6116 = vmax.f32 %v4486, %v5494
    %v6117 = vmax.f32 %v4485, %v5496
    %v6118 = vmax.f32 %v4487, %v5498
    %v6119 = vmax.f32 %v4495, %v5500
    %v6120 = vmax.f32 %v4503, %v5502
    %v6121 = vmax.f32 %v4502, %v5504
    %v6122 = vmax.f32 %v4504, %v5506
    %v6123 = vmax.f32 %v4512, %v5508
    %v6124 = vmax.f32 %v4520, %v5510
    %v6125 = vmax.f32 %v4519, %v5512
    %v6126 = vmax.f32 %v4521, %v5514
    %v6127 = vmax.f32 %v4529, %v5516
    %v6128 = vmax.f32 %v4537, %v5518
    %v6129 = vmax.f32 %v4536, %v5520
    %v6130 = vmax.f32 %v4538, %v5522
    %v6131 = vmax.f32 %v4546, %v5524
    %v6132 = vmax.f32 %v4554, %v5526
    %v6133 = vmax.f32 %v4553, %v5528
    %v6134 = vmax.f32 %v4555, %v5530
    %v6135 = vmax.f32 %v4563, %v5532
    %v6136 = vmax.f32 %v4571, %v5534
    %v6137 = vmax.f32 %v4570, %v5536
    %v6138 = vmax.f32 %v4572, %v5538
    %v6139 = vmax.f32 %v4580, %v5540
    %v6140 = vmax.f32 %v4588, %v5542
    %v6141 = vmax.f32 %v4587, %v5544
    %v6142 = vmax.f32 %v4589, %v5546
    %v6143 = vmax.f32 %v4597, %v5548
    %v6144 = vmax.f32 %v4605, %v5550
    %v6145 = vmax.f32 %v4604, %v5552
    %v6146 = vmax.f32 %v4606, %v5554
    %v6147 = vmax.f32 %v4614, %v5556
    %v6148 = vmax.f32 %v4622, %v5558
    %v6149 = vmax.f32 %v4621, %v5560
    %v6150 = vmax.f32 %v4623, %v5562
    %v6151 = vmax.f32 %v4631, %v5564
    %v6152 = vmax.f32 %v4639, %v5566
    %v6153 = vmax.f32 %v4638, %v5568
    %v6154 = vmax.f32 %v4640, %v5570
    %v6155 = vmax.f32 %v4648, %v5572
    %v6156 = vmax.f32 %v4656, %v5574
    %v6157 = vmax.f32 %v4655, %v5576
    %v6158 = vmax.f32 %v4657, %v5578
    %v6159 = vmax.f32 %v4665, %v5580
    %v6160 = vmax.f32 %v4673, %v5582
    %v6161 = vmax.f32 %v4672, %v5584
    %v6162 = vmax.f32 %v4674, %v5586
    %v6163 = vmax.f32 %v4682, %v5588
    %v6164 = vmax.f32 %v4690, %v5590
    %v6165 = vmax.f32 %v4689, %v5592
    %v6166 = vmax.f32 %v4691, %v5594
    %v6167 = vmax.f32 %v4699, %v5596
    %v6168 = vmax.f32 %v4707, %v5598
    %v6169 = vmax.f32 %v4706, %v5600
    %v6170 = vmax.f32 %v4708, %v5602
    %v6171 = vmax.f32 %v4716, %v5604
    %v6172 = vmax.f32 %v4724, %v5606
    %v6173 = vmax.f32 %v4723, %v5608
    %v6174 = vmax.f32 %v4725, %v5610
    %v6175 = vmax.f32 %v4733, %v5612
    %v6176 = vmax.f32 %v4741, %v5614
    %v6177 = vmax.f32 %v4740, %v5616
    %v6178 = vmax.f32 %v4742, %v5618
    %v6179 = vmax.f32 %v4750, %v5620
    %v6180 = vmax.f32 %v4758, %v5622
    %v6181 = vmax.f32 %v4757, %v5624
    %v6182 = vmax.f32 %v4759, %v5626
    %v6183 = vmax.f32 %v4767, %v5628
    %v6184 = vmax.f32 %v4775, %v5630
    %v6185 = vmax.f32 %v4774, %v5632
    %v6186 = vmax.f32 %v4776, %v5634
    %v6187 = vmax.f32 %v4784, %v5636
    %v6188 = vmax.f32 %v4792, %v5638
    %v6189 = vmax.f32 %v4791, %v5640
    %v6190 = vmax.f32 %v4793, %v5642
    %v6191 = vmax.f32 %v4801, %v5644
    %v6192 = vmax.f32 %v4809, %v5646
    %v6193 = vmax.f32 %v4808, %v5648
    %v6194 = vmax.f32 %v4810, %v5650
    %v6195 = vmax.f32 %v4818, %v5652
    %v6196 = vmax.f32 %v4826, %v5654
    %v6197 = vmax.f32 %v4825, %v5656
    %v6198 = vmax.f32 %v4827, %v5658
    %v6199 = vmax.f32 %v4835, %v5660
    %v6200 = vmax.f32 %v4843, %v5662
    %v6201 = vmax.f32 %v4842, %v5664
    %v6202 = vmax.f32 %v4844, %v5666
    %v6203 = vmax.f32 %v4852, %v5668
    %v6204 = vmax.f32 %v4860, %v5670
    %v6205 = vmax.f32 %v4859, %v5672
    %v6206 = vmax.f32 %v4861, %v5674
    %v6207 = vmax.f32 %v4869, %v5676
    %v6208 = vmax.f32 %v4877, %v5678
    %v6209 = vmax.f32 %v4876, %v5680
    %v6210 = vmax.f32 %v4878, %v5682
    %v6211 = vmax.f32 %v4886, %v5684
    %v6212 = vmax.f32 %v4894, %v5686
    %v6213 = vmax.f32 %v4893, %v5688
    %v6214 = vmax.f32 %v4895, %v5690
    %v6215 = vmax.f32 %v4903, %v5692
    %v6216 = vmax.f32 %v4911, %v5694
    %v6217 = vmax.f32 %v4910, %v5696
    %v6218 = vmax.f32 %v4912, %v5698
    %v6219 = vmax.f32 %v4920, %v5700
    %v6220 = vmax.f32 %v4928, %v5702
    %v6221 = vmax.f32 %v4927, %v5704
    %v6222 = vmax.f32 %v4929, %v5706
    %v6223 = vmax.f32 %v4937, %v5708
    %v6224 = vmax.f32 %v4945, %v5710
    %v6225 = vmax.f32 %v4944, %v5712
    %v6226 = vmax.f32 %v4946, %v5714
    %v6227 = vmax.f32 %v5971, %v5979
    %v6228 = vmax.f32 %v5972, %v5980
    %v6229 = vmax.f32 %v5973, %v5981
    %v6230 = vmax.f32 %v5974, %v5982
    %v6231 = vmax.f32 %v5975, %v5983
    %v6232 = vmax.f32 %v5976, %v5984
    %v6233 = vmax.f32 %v5977, %v5985
    %v6234 = vmax.f32 %v5978, %v5986
    %v6235 = vmax.f32 %v5987, %v5995
    %v6236 = vmax.f32 %v5988, %v5996
    %v6237 = vmax.f32 %v5989, %v5997
    %v6238 = vmax.f32 %v5990, %v5998
    %v6239 = vmax.f32 %v5991, %v5999
    %v6240 = vmax.f32 %v5992, %v6000
    %v6241 = vmax.f32 %v5993, %v6001
    %v6242 = vmax.f32 %v5994, %v6002
    %v6243 = vmax.f32 %v6003, %v6011
    %v6244 = vmax.f32 %v6004, %v6012
    %v6245 = vmax.f32 %v6005, %v6013
    %v6246 = vmax.f32 %v6006, %v6014
    %v6247 = vmax.f32 %v6007, %v6015
    %v6248 = vmax.f32 %v6008, %v6016
    %v6249 = vmax.f32 %v6009, %v6017
    %v6250 = vmax.f32 %v6010, %v6018
    %v6251 = vmax.f32 %v6019, %v6027
    %v6252 = vmax.f32 %v6020, %v6028
    %v6253 = vmax.f32 %v6021, %v6029
    %v6254 = vmax.f32 %v6022, %v6030
    %v6255 = vmax.f32 %v6023, %v6031
    %v6256 = vmax.f32 %v6024, %v6032
    %v6257 = vmax.f32 %v6025, %v6033
    %v6258 = vmax.f32 %v6026, %v6034
    %v6259 = vmax.f32 %v6035, %v6043
    %v6260 = vmax.f32 %v6036, %v6044
    %v6261 = vmax.f32 %v6037, %v6045
    %v6262 = vmax.f32 %v6038, %v6046
    %v6263 = vmax.f32 %v6039, %v6047
    %v6264 = vmax.f32 %v6040, %v6048
    %v6265 = vmax.f32 %v6041, %v6049
    %v6266 = vmax.f32 %v6042, %v6050
    %v6267 = vmax.f32 %v6051, %v6059
    %v6268 = vmax.f32 %v6052, %v6060
    %v6269 = vmax.f32 %v6053, %v6061
    %v6270 = vmax.f32 %v6054, %v6062
    %v6271 = vmax.f32 %v6055, %v6063
    %v6272 = vmax.f32 %v6056, %v6064
    %v6273 = vmax.f32 %v6057, %v6065
    %v6274 = vmax.f32 %v6058, %v6066
    %v6275 = vmax.f32 %v6067, %v6075
    %v6276 = vmax.f32 %v6068, %v6076
    %v6277 = vmax.f32 %v6069, %v6077
    %v6278 = vmax.f32 %v6070, %v6078
    %v6279 = vmax.f32 %v6071, %v6079
    %v6280 = vmax.f32 %v6072, %v6080
    %v6281 = vmax.f32 %v6073, %v6081
    %v6282 = vmax.f32 %v6074, %v6082
    %v6283 = vmax.f32 %v6083, %v6091
    %v6284 = vmax.f32 %v6084, %v6092
    %v6285 = vmax.f32 %v6085, %v6093
    %v6286 = vmax.f32 %v6086, %v6094
    %v6287 = vmax.f32 %v6087, %v6095
    %v6288 = vmax.f32 %v6088, %v6096
    %v6289 = vmax.f32 %v6089, %v6097
    %v6290 = vmax.f32 %v6090, %v6098
    %v6291 = vmax.f32 %v6099, %v6107
    %v6292 = vmax.f32 %v6100, %v6108
    %v6293 = vmax.f32 %v6101, %v6109
    %v6294 = vmax.f32 %v6102, %v6110
    %v6295 = vmax.f32 %v6103, %v6111
    %v6296 = vmax.f32 %v6104, %v6112
    %v6297 = vmax.f32 %v6105, %v6113
    %v6298 = vmax.f32 %v6106, %v6114
    %v6299 = vmax.f32 %v6115, %v6123
    %v6300 = vmax.f32 %v6116, %v6124
    %v6301 = vmax.f32 %v6117, %v6125
    %v6302 = vmax.f32 %v6118, %v6126
    %v6303 = vmax.f32 %v6119, %v6127
    %v6304 = vmax.f32 %v6120, %v6128
    %v6305 = vmax.f32 %v6121, %v6129
    %v6306 = vmax.f32 %v6122, %v6130
    %v6307 = vmax.f32 %v6131, %v6139
    %v6308 = vmax.f32 %v6132, %v6140
    %v6309 = vmax.f32 %v6133, %v6141
    %v6310 = vmax.f32 %v6134, %v6142
    %v6311 = vmax.f32 %v6135, %v6143
    %v6312 = vmax.f32 %v6136, %v6144
    %v6313 = vmax.f32 %v6137, %v6145
    %v6314 = vmax.f32 %v6138, %v6146
    %v6315 = vmax.f32 %v6147, %v6155
    %v6316 = vmax.f32 %v6148, %v6156
    %v6317 = vmax.f32 %v6149, %v6157
    %v6318 = vmax.f32 %v6150, %v6158
    %v6319 = vmax.f32 %v6151, %v6159
    %v6320 = vmax.f32 %v6152, %v6160
    %v6321 = vmax.f32 %v6153, %v6161
    %v6322 = vmax.f32 %v6154, %v6162
    %v6323 = vmax.f32 %v6163, %v6171
    %v6324 = vmax.f32 %v6164, %v6172
    %v6325 = vmax.f32 %v6165, %v6173
    %v6326 = vmax.f32 %v6166, %v6174
    %v6327 = vmax.f32 %v6167, %v6175
    %v6328 = vmax.f32 %v6168, %v6176
    %v6329 = vmax.f32 %v6169, %v6177
    %v6330 = vmax.f32 %v6170, %v6178
    %v6331 = vmax.f32 %v6179, %v6187
    %v6332 = vmax.f32 %v6180, %v6188
    %v6333 = vmax.f32 %v6181, %v6189
    %v6334 = vmax.f32 %v6182, %v6190
    %v6335 = vmax.f32 %v6183, %v6191
    %v6336 = vmax.f32 %v6184, %v6192
    %v6337 = vmax.f32 %v6185, %v6193
    %v6338 = vmax.f32 %v6186, %v6194
    %v6339 = vmax.f32 %v6195, %v6203
    %v6340 = vmax.f32 %v6196, %v6204
    %v6341 = vmax.f32 %v6197, %v6205
    %v6342 = vmax.f32 %v6198, %v6206
    %v6343 = vmax.f32 %v6199, %v6207
    %v6344 = vmax.f32 %v6200, %v6208
    %v6345 = vmax.f32 %v6201, %v6209
    %v6346 = vmax.f32 %v6202, %v6210
    %v6347 = vmax.f32 %v6211, %v6219
    %v6348 = vmax.f32 %v6212, %v6220
    %v6349 = vmax.f32 %v6213, %v6221
    %v6350 = vmax.f32 %v6214, %v6222
    %v6351 = vmax.f32 %v6215, %v6223
    %v6352 = vmax.f32 %v6216, %v6224
    %v6353 = vmax.f32 %v6217, %v6225
    %v6354 = vmax.f32 %v6218, %v6226
    %v6355 = vpack.c.bf16 %v6227, %v6227
    %v6356 = vpack.c.bf16 %v6228, %v6228
    %v6357 = vpack.c.bf16 %v6229, %v6229
    %v6358 = vpack.c.bf16 %v6230, %v6230
    %v6359 = vpack.c.bf16 %v6231, %v6231
    %v6360 = vpack.c.bf16 %v6232, %v6232
    %v6361 = vpack.c.bf16 %v6233, %v6233
    %v6362 = vpack.c.bf16 %v6234, %v6234
    %v6363 = vpack.c.bf16 %v6235, %v6235
    %v6364 = vpack.c.bf16 %v6236, %v6236
    %v6365 = vpack.c.bf16 %v6237, %v6237
    %v6366 = vpack.c.bf16 %v6238, %v6238
    %v6367 = vpack.c.bf16 %v6239, %v6239
    %v6368 = vpack.c.bf16 %v6240, %v6240
    %v6369 = vpack.c.bf16 %v6241, %v6241
    %v6370 = vpack.c.bf16 %v6242, %v6242
    %v6371 = vpack.c.bf16 %v6243, %v6243
    %v6372 = vpack.c.bf16 %v6244, %v6244
    %v6373 = vpack.c.bf16 %v6245, %v6245
    %v6374 = vpack.c.bf16 %v6246, %v6246
    %v6375 = vpack.c.bf16 %v6247, %v6247
    %v6376 = vpack.c.bf16 %v6248, %v6248
    %v6377 = vpack.c.bf16 %v6249, %v6249
    %v6378 = vpack.c.bf16 %v6250, %v6250
    %v6379 = vpack.c.bf16 %v6251, %v6251
    %v6380 = vpack.c.bf16 %v6252, %v6252
    %v6381 = vpack.c.bf16 %v6253, %v6253
    %v6382 = vpack.c.bf16 %v6254, %v6254
    %v6383 = vpack.c.bf16 %v6255, %v6255
    %v6384 = vpack.c.bf16 %v6256, %v6256
    %v6385 = vpack.c.bf16 %v6257, %v6257
    %v6386 = vpack.c.bf16 %v6258, %v6258
    %v6387 = vpack.c.bf16 %v6259, %v6259
    %v6388 = vpack.c.bf16 %v6260, %v6260
    %v6389 = vpack.c.bf16 %v6261, %v6261
    %v6390 = vpack.c.bf16 %v6262, %v6262
    %v6391 = vpack.c.bf16 %v6263, %v6263
    %v6392 = vpack.c.bf16 %v6264, %v6264
    %v6393 = vpack.c.bf16 %v6265, %v6265
    %v6394 = vpack.c.bf16 %v6266, %v6266
    %v6395 = vpack.c.bf16 %v6267, %v6267
    %v6396 = vpack.c.bf16 %v6268, %v6268
    %v6397 = vpack.c.bf16 %v6269, %v6269
    %v6398 = vpack.c.bf16 %v6270, %v6270
    %v6399 = vpack.c.bf16 %v6271, %v6271
    %v6400 = vpack.c.bf16 %v6272, %v6272
    %v6401 = vpack.c.bf16 %v6273, %v6273
    %v6402 = vpack.c.bf16 %v6274, %v6274
    %v6403 = vpack.c.bf16 %v6275, %v6275
    %v6404 = vpack.c.bf16 %v6276, %v6276
    %v6405 = vpack.c.bf16 %v6277, %v6277
    %v6406 = vpack.c.bf16 %v6278, %v6278
    %v6407 = vpack.c.bf16 %v6279, %v6279
    %v6408 = vpack.c.bf16 %v6280, %v6280
    %v6409 = vpack.c.bf16 %v6281, %v6281
    %v6410 = vpack.c.bf16 %v6282, %v6282
    %v6411 = vpack.c.bf16 %v6283, %v6283
    %v6412 = vpack.c.bf16 %v6284, %v6284
    %v6413 = vpack.c.bf16 %v6285, %v6285
    %v6414 = vpack.c.bf16 %v6286, %v6286
    %v6415 = vpack.c.bf16 %v6287, %v6287
    %v6416 = vpack.c.bf16 %v6288, %v6288
    %v6417 = vpack.c.bf16 %v6289, %v6289
    %v6418 = vpack.c.bf16 %v6290, %v6290
    %v6419 = vpack.c.bf16 %v6291, %v6291
    %v6420 = vpack.c.bf16 %v6292, %v6292
    %v6421 = vpack.c.bf16 %v6293, %v6293
    %v6422 = vpack.c.bf16 %v6294, %v6294
    %v6423 = vpack.c.bf16 %v6295, %v6295
    %v6424 = vpack.c.bf16 %v6296, %v6296
    %v6425 = vpack.c.bf16 %v6297, %v6297
    %v6426 = vpack.c.bf16 %v6298, %v6298
    %v6427 = vpack.c.bf16 %v6299, %v6299
    %v6428 = vpack.c.bf16 %v6300, %v6300
    %v6429 = vpack.c.bf16 %v6301, %v6301
    %v6430 = vpack.c.bf16 %v6302, %v6302
    %v6431 = vpack.c.bf16 %v6303, %v6303
    %v6432 = vpack.c.bf16 %v6304, %v6304
    %v6433 = vpack.c.bf16 %v6305, %v6305
    %v6434 = vpack.c.bf16 %v6306, %v6306
    %v6435 = vpack.c.bf16 %v6307, %v6307
    %v6436 = vpack.c.bf16 %v6308, %v6308
    %v6437 = vpack.c.bf16 %v6309, %v6309
    %v6438 = vpack.c.bf16 %v6310, %v6310
    %v6439 = vpack.c.bf16 %v6311, %v6311
    %v6440 = vpack.c.bf16 %v6312, %v6312
    %v6441 = vpack.c.bf16 %v6313, %v6313
    %v6442 = vpack.c.bf16 %v6314, %v6314
    %v6443 = vpack.c.bf16 %v6315, %v6315
    %v6444 = vpack.c.bf16 %v6316, %v6316
    %v6445 = vpack.c.bf16 %v6317, %v6317
    %v6446 = vpack.c.bf16 %v6318, %v6318
    %v6447 = vpack.c.bf16 %v6319, %v6319
    %v6448 = vpack.c.bf16 %v6320, %v6320
    %v6449 = vpack.c.bf16 %v6321, %v6321
    %v6450 = vpack.c.bf16 %v6322, %v6322
    %v6451 = vpack.c.bf16 %v6323, %v6323
    %v6452 = vpack.c.bf16 %v6324, %v6324
    %v6453 = vpack.c.bf16 %v6325, %v6325
    %v6454 = vpack.c.bf16 %v6326, %v6326
    %v6455 = vpack.c.bf16 %v6327, %v6327
    %v6456 = vpack.c.bf16 %v6328, %v6328
    %v6457 = vpack.c.bf16 %v6329, %v6329
    %v6458 = vpack.c.bf16 %v6330, %v6330
    %v6459 = vpack.c.bf16 %v6331, %v6331
    %v6460 = vpack.c.bf16 %v6332, %v6332
    %v6461 = vpack.c.bf16 %v6333, %v6333
    %v6462 = vpack.c.bf16 %v6334, %v6334
    %v6463 = vpack.c.bf16 %v6335, %v6335
    %v6464 = vpack.c.bf16 %v6336, %v6336
    %v6465 = vpack.c.bf16 %v6337, %v6337
    %v6466 = vpack.c.bf16 %v6338, %v6338
    %v6467 = vpack.c.bf16 %v6339, %v6339
    %v6468 = vpack.c.bf16 %v6340, %v6340
    %v6469 = vpack.c.bf16 %v6341, %v6341
    %v6470 = vpack.c.bf16 %v6342, %v6342
    %v6471 = vpack.c.bf16 %v6343, %v6343
    %v6472 = vpack.c.bf16 %v6344, %v6344
    %v6473 = vpack.c.bf16 %v6345, %v6345
    %v6474 = vpack.c.bf16 %v6346, %v6346
    %v6475 = vpack.c.bf16 %v6347, %v6347
    %v6476 = vpack.c.bf16 %v6348, %v6348
    %v6477 = vpack.c.bf16 %v6349, %v6349
    %v6478 = vpack.c.bf16 %v6350, %v6350
    %v6479 = vpack.c.bf16 %v6351, %v6351
    %v6480 = vpack.c.bf16 %v6352, %v6352
    %v6481 = vpack.c.bf16 %v6353, %v6353
    %v6482 = vpack.c.bf16 %v6354, %v6354
    %v6611 = vunpack.c.l.b16 %v6355
    %v6612 = vunpack.c.l.b16 %v6356
    %v6613 = vunpack.c.l.b16 %v6357
    %v6614 = vunpack.c.l.b16 %v6358
    %v6615 = vunpack.c.l.b16 %v6359
    %v6616 = vunpack.c.l.b16 %v6360
    %v6617 = vunpack.c.l.b16 %v6361
    %v6618 = vunpack.c.l.b16 %v6362
    %v6619 = vunpack.c.l.b16 %v6363
    %v6620 = vunpack.c.l.b16 %v6364
    %v6621 = vunpack.c.l.b16 %v6365
    %v6622 = vunpack.c.l.b16 %v6366
    %v6623 = vunpack.c.l.b16 %v6367
    %v6624 = vunpack.c.l.b16 %v6368
    %v6625 = vunpack.c.l.b16 %v6369
    %v6626 = vunpack.c.l.b16 %v6370
    %v6627 = vunpack.c.l.b16 %v6371
    %v6628 = vunpack.c.l.b16 %v6372
    %v6629 = vunpack.c.l.b16 %v6373
    %v6630 = vunpack.c.l.b16 %v6374
    %v6631 = vunpack.c.l.b16 %v6375
    %v6632 = vunpack.c.l.b16 %v6376
    %v6633 = vunpack.c.l.b16 %v6377
    %v6634 = vunpack.c.l.b16 %v6378
    %v6635 = vunpack.c.l.b16 %v6379
    %v6636 = vunpack.c.l.b16 %v6380
    %v6637 = vunpack.c.l.b16 %v6381
    %v6638 = vunpack.c.l.b16 %v6382
    %v6639 = vunpack.c.l.b16 %v6383
    %v6640 = vunpack.c.l.b16 %v6384
    %v6641 = vunpack.c.l.b16 %v6385
    %v6642 = vunpack.c.l.b16 %v6386
    %v6643 = vunpack.c.l.b16 %v6387
    %v6644 = vunpack.c.l.b16 %v6388
    %v6645 = vunpack.c.l.b16 %v6389
    %v6646 = vunpack.c.l.b16 %v6390
    %v6647 = vunpack.c.l.b16 %v6391
    %v6648 = vunpack.c.l.b16 %v6392
    %v6649 = vunpack.c.l.b16 %v6393
    %v6650 = vunpack.c.l.b16 %v6394
    %v6651 = vunpack.c.l.b16 %v6395
    %v6652 = vunpack.c.l.b16 %v6396
    %v6653 = vunpack.c.l.b16 %v6397
    %v6654 = vunpack.c.l.b16 %v6398
    %v6655 = vunpack.c.l.b16 %v6399
    %v6656 = vunpack.c.l.b16 %v6400
    %v6657 = vunpack.c.l.b16 %v6401
    %v6658 = vunpack.c.l.b16 %v6402
    %v6659 = vunpack.c.l.b16 %v6403
    %v6660 = vunpack.c.l.b16 %v6404
    %v6661 = vunpack.c.l.b16 %v6405
    %v6662 = vunpack.c.l.b16 %v6406
    %v6663 = vunpack.c.l.b16 %v6407
    %v6664 = vunpack.c.l.b16 %v6408
    %v6665 = vunpack.c.l.b16 %v6409
    %v6666 = vunpack.c.l.b16 %v6410
    %v6667 = vunpack.c.l.b16 %v6411
    %v6668 = vunpack.c.l.b16 %v6412
    %v6669 = vunpack.c.l.b16 %v6413
    %v6670 = vunpack.c.l.b16 %v6414
    %v6671 = vunpack.c.l.b16 %v6415
    %v6672 = vunpack.c.l.b16 %v6416
    %v6673 = vunpack.c.l.b16 %v6417
    %v6674 = vunpack.c.l.b16 %v6418
    %v6675 = vunpack.c.l.b16 %v6419
    %v6676 = vunpack.c.l.b16 %v6420
    %v6677 = vunpack.c.l.b16 %v6421
    %v6678 = vunpack.c.l.b16 %v6422
    %v6679 = vunpack.c.l.b16 %v6423
    %v6680 = vunpack.c.l.b16 %v6424
    %v6681 = vunpack.c.l.b16 %v6425
    %v6682 = vunpack.c.l.b16 %v6426
    %v6683 = vunpack.c.l.b16 %v6427
    %v6684 = vunpack.c.l.b16 %v6428
    %v6685 = vunpack.c.l.b16 %v6429
    %v6686 = vunpack.c.l.b16 %v6430
    %v6687 = vunpack.c.l.b16 %v6431
    %v6688 = vunpack.c.l.b16 %v6432
    %v6689 = vunpack.c.l.b16 %v6433
    %v6690 = vunpack.c.l.b16 %v6434
    %v6691 = vunpack.c.l.b16 %v6435
    %v6692 = vunpack.c.l.b16 %v6436
    %v6693 = vunpack.c.l.b16 %v6437
    %v6694 = vunpack.c.l.b16 %v6438
    %v6695 = vunpack.c.l.b16 %v6439
    %v6696 = vunpack.c.l.b16 %v6440
    %v6697 = vunpack.c.l.b16 %v6441
    %v6698 = vunpack.c.l.b16 %v6442
    %v6699 = vunpack.c.l.b16 %v6443
    %v6700 = vunpack.c.l.b16 %v6444
    %v6701 = vunpack.c.l.b16 %v6445
    %v6702 = vunpack.c.l.b16 %v6446
    %v6703 = vunpack.c.l.b16 %v6447
    %v6704 = vunpack.c.l.b16 %v6448
    %v6705 = vunpack.c.l.b16 %v6449
    %v6706 = vunpack.c.l.b16 %v6450
    %v6707 = vunpack.c.l.b16 %v6451
    %v6708 = vunpack.c.l.b16 %v6452
    %v6709 = vunpack.c.l.b16 %v6453
    %v6710 = vunpack.c.l.b16 %v6454
    %v6711 = vunpack.c.l.b16 %v6455
    %v6712 = vunpack.c.l.b16 %v6456
    %v6713 = vunpack.c.l.b16 %v6457
    %v6714 = vunpack.c.l.b16 %v6458
    %v6715 = vunpack.c.l.b16 %v6459
    %v6716 = vunpack.c.l.b16 %v6460
    %v6717 = vunpack.c.l.b16 %v6461
    %v6718 = vunpack.c.l.b16 %v6462
    %v6719 = vunpack.c.l.b16 %v6463
    %v6720 = vunpack.c.l.b16 %v6464
    %v6721 = vunpack.c.l.b16 %v6465
    %v6722 = vunpack.c.l.b16 %v6466
    %v6723 = vunpack.c.l.b16 %v6467
    %v6724 = vunpack.c.l.b16 %v6468
    %v6725 = vunpack.c.l.b16 %v6469
    %v6726 = vunpack.c.l.b16 %v6470
    %v6727 = vunpack.c.l.b16 %v6471
    %v6728 = vunpack.c.l.b16 %v6472
    %v6729 = vunpack.c.l.b16 %v6473
    %v6730 = vunpack.c.l.b16 %v6474
    %v6731 = vunpack.c.l.b16 %v6475
    %v6732 = vunpack.c.l.b16 %v6476
    %v6733 = vunpack.c.l.b16 %v6477
    %v6734 = vunpack.c.l.b16 %v6478
    %v6735 = vunpack.c.l.b16 %v6479
    %v6736 = vunpack.c.l.b16 %v6480
    %v6737 = vunpack.c.l.b16 %v6481
    %v6738 = vunpack.c.l.b16 %v6482
    %v6739 = vrot.slane %v6611, 7
    %v6740 = vrot.slane %v6612, 6
    %vm6741 = vcmask 1042434
    %v6742 = vsel %vm6741, %v6740, %v6739
    %v6743 = vrot.slane %v6613, 5
    %vm6744 = vcmask 1043459
    %v6745 = vsel %vm6744, %v6743, %v6742
    %v6746 = vrot.slane %v6614, 4
    %vm6747 = vcmask 1044484
    %v6748 = vsel %vm6747, %v6746, %v6745
    %v6749 = vrot.slane %v6615, 3
    %vm6750 = vcmask 1045509
    %v6751 = vsel %vm6750, %v6749, %v6748
    %v6752 = vrot.slane %v6616, 2
    %vm6753 = vcmask 1046534
    %v6754 = vsel %vm6753, %v6752, %v6751
    %v6755 = vrot.slane %v6617, 1
    %vm6756 = vcmask 1047559
    %v6757 = vsel %vm6756, %v6755, %v6754
    %v6758 = vrot.slane %v6619, 7
    %v6759 = vrot.slane %v6620, 6
    %v6760 = vsel %vm6741, %v6759, %v6758
    %v6761 = vrot.slane %v6621, 5
    %v6762 = vsel %vm6744, %v6761, %v6760
    %v6763 = vrot.slane %v6622, 4
    %v6764 = vsel %vm6747, %v6763, %v6762
    %v6765 = vrot.slane %v6623, 3
    %v6766 = vsel %vm6750, %v6765, %v6764
    %v6767 = vrot.slane %v6624, 2
    %v6768 = vsel %vm6753, %v6767, %v6766
    %v6769 = vrot.slane %v6625, 1
    %v6770 = vsel %vm6756, %v6769, %v6768
    %v6771 = vrot.slane %v6627, 7
    %v6772 = vrot.slane %v6628, 6
    %v6773 = vsel %vm6741, %v6772, %v6771
    %v6774 = vrot.slane %v6629, 5
    %v6775 = vsel %vm6744, %v6774, %v6773
    %v6776 = vrot.slane %v6630, 4
    %v6777 = vsel %vm6747, %v6776, %v6775
    %v6778 = vrot.slane %v6631, 3
    %v6779 = vsel %vm6750, %v6778, %v6777
    %v6780 = vrot.slane %v6632, 2
    %v6781 = vsel %vm6753, %v6780, %v6779
    %v6782 = vrot.slane %v6633, 1
    %v6783 = vsel %vm6756, %v6782, %v6781
    %v6784 = vrot.slane %v6635, 7
    %v6785 = vrot.slane %v6636, 6
    %v6786 = vsel %vm6741, %v6785, %v6784
    %v6787 = vrot.slane %v6637, 5
    %v6788 = vsel %vm6744, %v6787, %v6786
    %v6789 = vrot.slane %v6638, 4
    %v6790 = vsel %vm6747, %v6789, %v6788
    %v6791 = vrot.slane %v6639, 3
    %v6792 = vsel %vm6750, %v6791, %v6790
    %v6793 = vrot.slane %v6640, 2
    %v6794 = vsel %vm6753, %v6793, %v6792
    %v6795 = vrot.slane %v6641, 1
    %v6796 = vsel %vm6756, %v6795, %v6794
    %v6797 = vrot.slane %v6643, 7
    %v6798 = vrot.slane %v6644, 6
    %v6799 = vsel %vm6741, %v6798, %v6797
    %v6800 = vrot.slane %v6645, 5
    %v6801 = vsel %vm6744, %v6800, %v6799
    %v6802 = vrot.slane %v6646, 4
    %v6803 = vsel %vm6747, %v6802, %v6801
    %v6804 = vrot.slane %v6647, 3
    %v6805 = vsel %vm6750, %v6804, %v6803
    %v6806 = vrot.slane %v6648, 2
    %v6807 = vsel %vm6753, %v6806, %v6805
    %v6808 = vrot.slane %v6649, 1
    %v6809 = vsel %vm6756, %v6808, %v6807
    %v6810 = vrot.slane %v6651, 7
    %v6811 = vrot.slane %v6652, 6
    %v6812 = vsel %vm6741, %v6811, %v6810
    %v6813 = vrot.slane %v6653, 5
    %v6814 = vsel %vm6744, %v6813, %v6812
    %v6815 = vrot.slane %v6654, 4
    %v6816 = vsel %vm6747, %v6815, %v6814
    %v6817 = vrot.slane %v6655, 3
    %v6818 = vsel %vm6750, %v6817, %v6816
    %v6819 = vrot.slane %v6656, 2
    %v6820 = vsel %vm6753, %v6819, %v6818
    %v6821 = vrot.slane %v6657, 1
    %v6822 = vsel %vm6756, %v6821, %v6820
    %v6823 = vrot.slane %v6659, 7
    %v6824 = vrot.slane %v6660, 6
    %v6825 = vsel %vm6741, %v6824, %v6823
    %v6826 = vrot.slane %v6661, 5
    %v6827 = vsel %vm6744, %v6826, %v6825
    %v6828 = vrot.slane %v6662, 4
    %v6829 = vsel %vm6747, %v6828, %v6827
    %v6830 = vrot.slane %v6663, 3
    %v6831 = vsel %vm6750, %v6830, %v6829
    %v6832 = vrot.slane %v6664, 2
    %v6833 = vsel %vm6753, %v6832, %v6831
    %v6834 = vrot.slane %v6665, 1
    %v6835 = vsel %vm6756, %v6834, %v6833
    %v6836 = vrot.slane %v6667, 7
    %v6837 = vrot.slane %v6668, 6
    %v6838 = vsel %vm6741, %v6837, %v6836
    %v6839 = vrot.slane %v6669, 5
    %v6840 = vsel %vm6744, %v6839, %v6838
    %v6841 = vrot.slane %v6670, 4
    %v6842 = vsel %vm6747, %v6841, %v6840
    %v6843 = vrot.slane %v6671, 3
    %v6844 = vsel %vm6750, %v6843, %v6842
    %v6845 = vrot.slane %v6672, 2
    %v6846 = vsel %vm6753, %v6845, %v6844
    %v6847 = vrot.slane %v6673, 1
    %v6848 = vsel %vm6756, %v6847, %v6846
    %v6849 = vrot.slane %v6675, 7
    %v6850 = vrot.slane %v6676, 6
    %v6851 = vsel %vm6741, %v6850, %v6849
    %v6852 = vrot.slane %v6677, 5
    %v6853 = vsel %vm6744, %v6852, %v6851
    %v6854 = vrot.slane %v6678, 4
    %v6855 = vsel %vm6747, %v6854, %v6853
    %v6856 = vrot.slane %v6679, 3
    %v6857 = vsel %vm6750, %v6856, %v6855
    %v6858 = vrot.slane %v6680, 2
    %v6859 = vsel %vm6753, %v6858, %v6857
    %v6860 = vrot.slane %v6681, 1
    %v6861 = vsel %vm6756, %v6860, %v6859
    %v6862 = vrot.slane %v6683, 7
    %v6863 = vrot.slane %v6684, 6
    %v6864 = vsel %vm6741, %v6863, %v6862
    %v6865 = vrot.slane %v6685, 5
    %v6866 = vsel %vm6744, %v6865, %v6864
    %v6867 = vrot.slane %v6686, 4
    %v6868 = vsel %vm6747, %v6867, %v6866
    %v6869 = vrot.slane %v6687, 3
    %v6870 = vsel %vm6750, %v6869, %v6868
    %v6871 = vrot.slane %v6688, 2
    %v6872 = vsel %vm6753, %v6871, %v6870
    %v6873 = vrot.slane %v6689, 1
    %v6874 = vsel %vm6756, %v6873, %v6872
    %v6875 = vrot.slane %v6691, 7
    %v6876 = vrot.slane %v6692, 6
    %v6877 = vsel %vm6741, %v6876, %v6875
    %v6878 = vrot.slane %v6693, 5
    %v6879 = vsel %vm6744, %v6878, %v6877
    %v6880 = vrot.slane %v6694, 4
    %v6881 = vsel %vm6747, %v6880, %v6879
    %v6882 = vrot.slane %v6695, 3
    %v6883 = vsel %vm6750, %v6882, %v6881
    %v6884 = vrot.slane %v6696, 2
    %v6885 = vsel %vm6753, %v6884, %v6883
    %v6886 = vrot.slane %v6697, 1
    %v6887 = vsel %vm6756, %v6886, %v6885
    %v6888 = vrot.slane %v6699, 7
    %v6889 = vrot.slane %v6700, 6
    %v6890 = vsel %vm6741, %v6889, %v6888
    %v6891 = vrot.slane %v6701, 5
    %v6892 = vsel %vm6744, %v6891, %v6890
    %v6893 = vrot.slane %v6702, 4
    %v6894 = vsel %vm6747, %v6893, %v6892
    %v6895 = vrot.slane %v6703, 3
    %v6896 = vsel %vm6750, %v6895, %v6894
    %v6897 = vrot.slane %v6704, 2
    %v6898 = vsel %vm6753, %v6897, %v6896
    %v6899 = vrot.slane %v6705, 1
    %v6900 = vsel %vm6756, %v6899, %v6898
    %v6901 = vrot.slane %v6707, 7
    %v6902 = vrot.slane %v6708, 6
    %v6903 = vsel %vm6741, %v6902, %v6901
    %v6904 = vrot.slane %v6709, 5
    %v6905 = vsel %vm6744, %v6904, %v6903
    %v6906 = vrot.slane %v6710, 4
    %v6907 = vsel %vm6747, %v6906, %v6905
    %v6908 = vrot.slane %v6711, 3
    %v6909 = vsel %vm6750, %v6908, %v6907
    %v6910 = vrot.slane %v6712, 2
    %v6911 = vsel %vm6753, %v6910, %v6909
    %v6912 = vrot.slane %v6713, 1
    %v6913 = vsel %vm6756, %v6912, %v6911
    %v6914 = vrot.slane %v6715, 7
    %v6915 = vrot.slane %v6716, 6
    %v6916 = vsel %vm6741, %v6915, %v6914
    %v6917 = vrot.slane %v6717, 5
    %v6918 = vsel %vm6744, %v6917, %v6916
    %v6919 = vrot.slane %v6718, 4
    %v6920 = vsel %vm6747, %v6919, %v6918
    %v6921 = vrot.slane %v6719, 3
    %v6922 = vsel %vm6750, %v6921, %v6920
    %v6923 = vrot.slane %v6720, 2
    %v6924 = vsel %vm6753, %v6923, %v6922
    %v6925 = vrot.slane %v6721, 1
    %v6926 = vsel %vm6756, %v6925, %v6924
    %v6927 = vrot.slane %v6723, 7
    %v6928 = vrot.slane %v6724, 6
    %v6929 = vsel %vm6741, %v6928, %v6927
    %v6930 = vrot.slane %v6725, 5
    %v6931 = vsel %vm6744, %v6930, %v6929
    %v6932 = vrot.slane %v6726, 4
    %v6933 = vsel %vm6747, %v6932, %v6931
    %v6934 = vrot.slane %v6727, 3
    %v6935 = vsel %vm6750, %v6934, %v6933
    %v6936 = vrot.slane %v6728, 2
    %v6937 = vsel %vm6753, %v6936, %v6935
    %v6938 = vrot.slane %v6729, 1
    %v6939 = vsel %vm6756, %v6938, %v6937
    %v6940 = vrot.slane %v6731, 7
    %v6941 = vrot.slane %v6732, 6
    %v6942 = vsel %vm6741, %v6941, %v6940
    %v6943 = vrot.slane %v6733, 5
    %v6944 = vsel %vm6744, %v6943, %v6942
    %v6945 = vrot.slane %v6734, 4
    %v6946 = vsel %vm6747, %v6945, %v6944
    %v6947 = vrot.slane %v6735, 3
    %v6948 = vsel %vm6750, %v6947, %v6946
    %v6949 = vrot.slane %v6736, 2
    %v6950 = vsel %vm6753, %v6949, %v6948
    %v6951 = vrot.slane %v6737, 1
    %v6952 = vsel %vm6756, %v6951, %v6950
    %v6953 = vpack.c.b16 %v6618, %v6757
    %v6954 = vpack.c.b16 %v6626, %v6770
    %v6955 = vpack.c.b16 %v6634, %v6783
    %v6956 = vpack.c.b16 %v6642, %v6796
    %v6957 = vpack.c.b16 %v6650, %v6809
    %v6958 = vpack.c.b16 %v6658, %v6822
    %v6959 = vpack.c.b16 %v6666, %v6835
    %v6960 = vpack.c.b16 %v6674, %v6848
    %v6961 = vpack.c.b16 %v6682, %v6861
    %v6962 = vpack.c.b16 %v6690, %v6874
    %v6963 = vpack.c.b16 %v6698, %v6887
    %v6964 = vpack.c.b16 %v6706, %v6900
    %v6965 = vpack.c.b16 %v6714, %v6913
    %v6966 = vpack.c.b16 %v6722, %v6926
    %v6967 = vpack.c.b16 %v6730, %v6939
    %v6968 = vpack.c.b16 %v6738, %v6952
    %v6985 = vsel %vm582, 0, %v6953
    %v6986 = vsel %vm582, 0, %v6954
    %v6987 = vsel %vm582, 0, %v6955
    %v6988 = vsel %vm582, 0, %v6956
    %v6989 = vsel %vm582, 0, %v6957
    %v6990 = vsel %vm582, 0, %v6958
    %v6991 = vsel %vm582, 0, %v6959
    %v6992 = vsel %vm582, 0, %v6960
    %v6993 = vsel %vm582, 0, %v6961
    %v6994 = vsel %vm582, 0, %v6962
    %v6995 = vsel %vm582, 0, %v6963
    %v6996 = vsel %vm582, 0, %v6964
    %v6997 = vsel %vm582, 0, %v6965
    %v6998 = vsel %vm582, 0, %v6966
    %v6999 = vsel %vm582, 0, %v6967
    %v7000 = vsel %vm582, 0, %v6968
    %vm7001 = vcmask 1044480
    %vm7002 = vsmask.f32 4352
    %vm7003 = vmand %vm7001, %vm7002
    %v7004 = vsel %vm7003, %v6985, 0
    %v7005 = vsel %vm7003, %v6986, 0
    %v7006 = vsel %vm7003, %v6987, 0
    %v7007 = vsel %vm7003, %v6988, 0
    %v7008 = vsel %vm7003, %v6989, 0
    %v7009 = vsel %vm7003, %v6990, 0
    %v7010 = vsel %vm7003, %v6991, 0
    %v7011 = vsel %vm7003, %v6992, 0
    %v7012 = vsel %vm7003, %v6993, 0
    %v7013 = vsel %vm7003, %v6994, 0
    %v7014 = vsel %vm7003, %v6995, 0
    %v7015 = vsel %vm7003, %v6996, 0
    %v7016 = vsel %vm7003, %v6997, 0
    %v7017 = vsel %vm7003, %v6998, 0
    %v7018 = vsel %vm7003, %v6999, 0
    %v7019 = vsel %vm7003, %v7000, 0
    %7020 = vst [vmem:[#allocation3] sm:$0xf] 0
    %7021 = vst [vmem:[#allocation3 + $0xc] sm:$0xf] %v7004
    %7022 = vst [vmem:[#allocation3 + $0x18] sm:$0xf] %v7005
    %7023 = vst [vmem:[#allocation3 + $0x24] sm:$0xf] %v7006
    %7024 = vst [vmem:[#allocation3 + $0x30] sm:$0xf] %v7007
    %7025 = vst [vmem:[#allocation3 + $0x3c] sm:$0xf] %v7008
    %7026 = vst [vmem:[#allocation3 + $0x48] sm:$0xf] %v7009
    %7027 = vst [vmem:[#allocation3 + $0x54] sm:$0xf] %v7010
    %7028 = vst [vmem:[#allocation3 + $0x60] sm:$0xf] %v7011
    %7029 = vst [vmem:[#allocation3 + $0x6c] sm:$0xf] 0
    %7030 = vst [vmem:[#allocation3 + $0x78] sm:$0xf] 0
    %7031 = vst [vmem:[#allocation3 + $0x84] sm:$0xf] %v7012
    %7032 = vst [vmem:[#allocation3 + $0x90] sm:$0xf] %v7013
    %7033 = vst [vmem:[#allocation3 + $0x9c] sm:$0xf] %v7014
    %7034 = vst [vmem:[#allocation3 + $0xa8] sm:$0xf] %v7015
    %7035 = vst [vmem:[#allocation3 + $0xb4] sm:$0xf] %v7016
    %7036 = vst [vmem:[#allocation3 + $0xc0] sm:$0xf] %v7017
    %7037 = vst [vmem:[#allocation3 + $0xcc] sm:$0xf] %v7018
    %7038 = vst [vmem:[#allocation3 + $0xd8] sm:$0xf] %v7019
    %7039 = vst [vmem:[#allocation3 + $0xe4] sm:$0xf] 0
    %v7056 = vunpack.c.l.b16 0
    %v7057 = vunpack.c.h.b16 0
    %v7058 = vunpack.c.l.b16 %v7004
    %v7059 = vunpack.c.h.b16 %v7004
    %v7060 = vunpack.c.l.b16 %v7005
    %v7061 = vunpack.c.h.b16 %v7005
    %v7062 = vunpack.c.l.b16 %v7006
    %v7063 = vunpack.c.h.b16 %v7006
    %v7064 = vunpack.c.l.b16 %v7007
    %v7065 = vunpack.c.h.b16 %v7007
    %v7066 = vunpack.c.l.b16 %v7008
    %v7067 = vunpack.c.h.b16 %v7008
    %v7068 = vunpack.c.l.b16 %v7009
    %v7069 = vunpack.c.h.b16 %v7009
    %v7070 = vunpack.c.l.b16 %v7010
    %v7071 = vunpack.c.h.b16 %v7010
    %v7072 = vunpack.c.l.b16 %v7011
    %v7073 = vunpack.c.h.b16 %v7011
    %v7074 = vunpack.c.l.b16 %v7012
    %v7075 = vunpack.c.h.b16 %v7012
    %v7076 = vunpack.c.l.b16 %v7013
    %v7077 = vunpack.c.h.b16 %v7013
    %v7078 = vunpack.c.l.b16 %v7014
    %v7079 = vunpack.c.h.b16 %v7014
    %v7080 = vunpack.c.l.b16 %v7015
    %v7081 = vunpack.c.h.b16 %v7015
    %v7082 = vunpack.c.l.b16 %v7016
    %v7083 = vunpack.c.h.b16 %v7016
    %v7084 = vunpack.c.l.b16 %v7017
    %v7085 = vunpack.c.h.b16 %v7017
    %v7086 = vunpack.c.l.b16 %v7018
    %v7087 = vunpack.c.h.b16 %v7018
    %v7088 = vunpack.c.l.b16 %v7019
    %v7089 = vunpack.c.h.b16 %v7019
    %v7090 = vpack.c.b16 %v7056, %v7056
    %v7091 = vpack.c.b16 %v7057, %v7057
    %v7092 = vpack.c.b16 %v7058, %v7058
    %v7093 = vpack.c.b16 %v7059, %v7059
    %v7094 = vpack.c.b16 %v7060, %v7060
    %v7095 = vpack.c.b16 %v7061, %v7061
    %v7096 = vpack.c.b16 %v7062, %v7062
    %v7097 = vpack.c.b16 %v7063, %v7063
    %v7098 = vpack.c.b16 %v7064, %v7064
    %v7099 = vpack.c.b16 %v7065, %v7065
    %v7100 = vpack.c.b16 %v7066, %v7066
    %v7101 = vpack.c.b16 %v7067, %v7067
    %v7102 = vpack.c.b16 %v7068, %v7068
    %v7103 = vpack.c.b16 %v7069, %v7069
    %v7104 = vpack.c.b16 %v7070, %v7070
    %v7105 = vpack.c.b16 %v7071, %v7071
    %v7106 = vpack.c.b16 %v7072, %v7072
    %v7107 = vpack.c.b16 %v7073, %v7073
    %v7108 = vpack.c.b16 %v7074, %v7074
    %v7109 = vpack.c.b16 %v7075, %v7075
    %v7110 = vpack.c.b16 %v7076, %v7076
    %v7111 = vpack.c.b16 %v7077, %v7077
    %v7112 = vpack.c.b16 %v7078, %v7078
    %v7113 = vpack.c.b16 %v7079, %v7079
    %v7114 = vpack.c.b16 %v7080, %v7080
    %v7115 = vpack.c.b16 %v7081, %v7081
    %v7116 = vpack.c.b16 %v7082, %v7082
    %v7117 = vpack.c.b16 %v7083, %v7083
    %v7118 = vpack.c.b16 %v7084, %v7084
    %v7119 = vpack.c.b16 %v7085, %v7085
    %v7120 = vpack.c.b16 %v7086, %v7086
    %v7121 = vpack.c.b16 %v7087, %v7087
    %v7122 = vpack.c.b16 %v7088, %v7088
    %v7123 = vpack.c.b16 %v7089, %v7089
    %vm7124 = vsmask.f32 3328
    %vm7125 = vsmask.f32 7440
    %vm7126 = vmor %vm7124, %vm7125
    %v7128 = vshrl.u32 %v7090, 16
    %v7130 = vrot.slane %v7128, 4
    %v7131 = vshll.u32 %v7090, 16
    %v7133 = vrot.slane %v7131, 5
    %v7134 = vor.u32 %v7130, %v7133
    %v7135 = vrot.slane %v7134, 4
    %v7137 = vshll.u32 %v7091, 16
    %v7139 = vrot.slane %v7137, 5
    %v7140 = vsel %vm7126, %v7135, %v7139
    %v7142 = vshrl.u32 %v7092, 16
    %v7144 = vrot.slane %v7142, 4
    %v7145 = vshll.u32 %v7092, 16
    %v7147 = vrot.slane %v7145, 5
    %v7148 = vor.u32 %v7144, %v7147
    %v7149 = vrot.slane %v7148, 4
    %v7151 = vshll.u32 %v7093, 16
    %v7153 = vrot.slane %v7151, 5
    %v7154 = vsel %vm7126, %v7149, %v7153
    %v7156 = vshrl.u32 %v7094, 16
    %v7158 = vrot.slane %v7156, 4
    %v7159 = vshll.u32 %v7094, 16
    %v7161 = vrot.slane %v7159, 5
    %v7162 = vor.u32 %v7158, %v7161
    %v7163 = vrot.slane %v7162, 4
    %v7165 = vshll.u32 %v7095, 16
    %v7167 = vrot.slane %v7165, 5
    %v7168 = vsel %vm7126, %v7163, %v7167
    %v7170 = vshrl.u32 %v7096, 16
    %v7172 = vrot.slane %v7170, 4
    %v7173 = vshll.u32 %v7096, 16
    %v7175 = vrot.slane %v7173, 5
    %v7176 = vor.u32 %v7172, %v7175
    %v7177 = vrot.slane %v7176, 4
    %v7179 = vshll.u32 %v7097, 16
    %v7181 = vrot.slane %v7179, 5
    %v7182 = vsel %vm7126, %v7177, %v7181
    %v7184 = vshrl.u32 %v7098, 16
    %v7186 = vrot.slane %v7184, 4
    %v7187 = vshll.u32 %v7098, 16
    %v7189 = vrot.slane %v7187, 5
    %v7190 = vor.u32 %v7186, %v7189
    %v7191 = vrot.slane %v7190, 4
    %v7193 = vshll.u32 %v7099, 16
    %v7195 = vrot.slane %v7193, 5
    %v7196 = vsel %vm7126, %v7191, %v7195
    %v7198 = vshrl.u32 %v7100, 16
    %v7200 = vrot.slane %v7198, 4
    %v7201 = vshll.u32 %v7100, 16
    %v7203 = vrot.slane %v7201, 5
    %v7204 = vor.u32 %v7200, %v7203
    %v7205 = vrot.slane %v7204, 4
    %v7207 = vshll.u32 %v7101, 16
    %v7209 = vrot.slane %v7207, 5
    %v7210 = vsel %vm7126, %v7205, %v7209
    %v7212 = vshrl.u32 %v7102, 16
    %v7214 = vrot.slane %v7212, 4
    %v7215 = vshll.u32 %v7102, 16
    %v7217 = vrot.slane %v7215, 5
    %v7218 = vor.u32 %v7214, %v7217
    %v7219 = vrot.slane %v7218, 4
    %v7221 = vshll.u32 %v7103, 16
    %v7223 = vrot.slane %v7221, 5
    %v7224 = vsel %vm7126, %v7219, %v7223
    %v7226 = vshrl.u32 %v7104, 16
    %v7228 = vrot.slane %v7226, 4
    %v7229 = vshll.u32 %v7104, 16
    %v7231 = vrot.slane %v7229, 5
    %v7232 = vor.u32 %v7228, %v7231
    %v7233 = vrot.slane %v7232, 4
    %v7235 = vshll.u32 %v7105, 16
    %v7237 = vrot.slane %v7235, 5
    %v7238 = vsel %vm7126, %v7233, %v7237
    %v7240 = vshrl.u32 %v7106, 16
    %v7242 = vrot.slane %v7240, 4
    %v7243 = vshll.u32 %v7106, 16
    %v7245 = vrot.slane %v7243, 5
    %v7246 = vor.u32 %v7242, %v7245
    %v7247 = vrot.slane %v7246, 4
    %v7249 = vshll.u32 %v7107, 16
    %v7251 = vrot.slane %v7249, 5
    %v7252 = vsel %vm7126, %v7247, %v7251
    %v7254 = vshrl.u32 %v7108, 16
    %v7256 = vrot.slane %v7254, 4
    %v7257 = vshll.u32 %v7108, 16
    %v7259 = vrot.slane %v7257, 5
    %v7260 = vor.u32 %v7256, %v7259
    %v7261 = vrot.slane %v7260, 4
    %v7263 = vshll.u32 %v7109, 16
    %v7265 = vrot.slane %v7263, 5
    %v7266 = vsel %vm7126, %v7261, %v7265
    %v7268 = vshrl.u32 %v7110, 16
    %v7270 = vrot.slane %v7268, 4
    %v7271 = vshll.u32 %v7110, 16
    %v7273 = vrot.slane %v7271, 5
    %v7274 = vor.u32 %v7270, %v7273
    %v7275 = vrot.slane %v7274, 4
    %v7277 = vshll.u32 %v7111, 16
    %v7279 = vrot.slane %v7277, 5
    %v7280 = vsel %vm7126, %v7275, %v7279
    %v7282 = vshrl.u32 %v7112, 16
    %v7284 = vrot.slane %v7282, 4
    %v7285 = vshll.u32 %v7112, 16
    %v7287 = vrot.slane %v7285, 5
    %v7288 = vor.u32 %v7284, %v7287
    %v7289 = vrot.slane %v7288, 4
    %v7291 = vshll.u32 %v7113, 16
    %v7293 = vrot.slane %v7291, 5
    %v7294 = vsel %vm7126, %v7289, %v7293
    %v7296 = vshrl.u32 %v7114, 16
    %v7298 = vrot.slane %v7296, 4
    %v7299 = vshll.u32 %v7114, 16
    %v7301 = vrot.slane %v7299, 5
    %v7302 = vor.u32 %v7298, %v7301
    %v7303 = vrot.slane %v7302, 4
    %v7305 = vshll.u32 %v7115, 16
    %v7307 = vrot.slane %v7305, 5
    %v7308 = vsel %vm7126, %v7303, %v7307
    %v7310 = vshrl.u32 %v7116, 16
    %v7312 = vrot.slane %v7310, 4
    %v7313 = vshll.u32 %v7116, 16
    %v7315 = vrot.slane %v7313, 5
    %v7316 = vor.u32 %v7312, %v7315
    %v7317 = vrot.slane %v7316, 4
    %v7319 = vshll.u32 %v7117, 16
    %v7321 = vrot.slane %v7319, 5
    %v7322 = vsel %vm7126, %v7317, %v7321
    %v7324 = vshrl.u32 %v7118, 16
    %v7326 = vrot.slane %v7324, 4
    %v7327 = vshll.u32 %v7118, 16
    %v7329 = vrot.slane %v7327, 5
    %v7330 = vor.u32 %v7326, %v7329
    %v7331 = vrot.slane %v7330, 4
    %v7333 = vshll.u32 %v7119, 16
    %v7335 = vrot.slane %v7333, 5
    %v7336 = vsel %vm7126, %v7331, %v7335
    %v7338 = vshrl.u32 %v7120, 16
    %v7340 = vrot.slane %v7338, 4
    %v7341 = vshll.u32 %v7120, 16
    %v7343 = vrot.slane %v7341, 5
    %v7344 = vor.u32 %v7340, %v7343
    %v7345 = vrot.slane %v7344, 4
    %v7347 = vshll.u32 %v7121, 16
    %v7349 = vrot.slane %v7347, 5
    %v7350 = vsel %vm7126, %v7345, %v7349
    %v7352 = vshrl.u32 %v7122, 16
    %v7354 = vrot.slane %v7352, 4
    %v7355 = vshll.u32 %v7122, 16
    %v7357 = vrot.slane %v7355, 5
    %v7358 = vor.u32 %v7354, %v7357
    %v7359 = vrot.slane %v7358, 4
    %v7361 = vshll.u32 %v7123, 16
    %v7363 = vrot.slane %v7361, 5
    %v7364 = vsel %vm7126, %v7359, %v7363
    %7382 = vst [vmem:[#allocation3 + $0x4] sm:$0xf] %v7140
    %7383 = vst [vmem:[#allocation3 + $0x10] sm:$0xf] %v7154
    %7384 = vst [vmem:[#allocation3 + $0x1c] sm:$0xf] %v7168
    %7385 = vst [vmem:[#allocation3 + $0x28] sm:$0xf] %v7182
    %7386 = vst [vmem:[#allocation3 + $0x34] sm:$0xf] %v7196
    %7387 = vst [vmem:[#allocation3 + $0x40] sm:$0xf] %v7210
    %7388 = vst [vmem:[#allocation3 + $0x4c] sm:$0xf] %v7224
    %7389 = vst [vmem:[#allocation3 + $0x58] sm:$0xf] %v7238
    %7390 = vst [vmem:[#allocation3 + $0x64] sm:$0xf] %v7252
    %7391 = vst [vmem:[#allocation3 + $0x70] sm:$0xf] %v7140
    %7392 = vst [vmem:[#allocation3 + $0x7c] sm:$0xf] %v7140
    %7393 = vst [vmem:[#allocation3 + $0x88] sm:$0xf] %v7266
    %7394 = vst [vmem:[#allocation3 + $0x94] sm:$0xf] %v7280
    %7395 = vst [vmem:[#allocation3 + $0xa0] sm:$0xf] %v7294
    %7396 = vst [vmem:[#allocation3 + $0xac] sm:$0xf] %v7308
    %7397 = vst [vmem:[#allocation3 + $0xb8] sm:$0xf] %v7322
    %7398 = vst [vmem:[#allocation3 + $0xc4] sm:$0xf] %v7336
    %7399 = vst [vmem:[#allocation3 + $0xd0] sm:$0xf] %v7350
    %7400 = vst [vmem:[#allocation3 + $0xdc] sm:$0xf] %v7364
    %7401 = vst [vmem:[#allocation3 + $0xe8] sm:$0xf] %v7140
    %vm7402 = vcmask 1042432
    %vm7403 = vcmask 1046532
    %vm7404 = vmor %vm7402, %vm7403
    %v7405 = vrot.slane %v7090, 5
    %v7406 = vrot.slane %v7405, 4
    %v7407 = vrot.slane %v7091, 5
    %v7408 = vsel %vm7404, %v7406, %v7407
    %v7409 = vrot.slane %v7092, 5
    %v7410 = vrot.slane %v7409, 4
    %v7411 = vrot.slane %v7093, 5
    %v7412 = vsel %vm7404, %v7410, %v7411
    %v7413 = vrot.slane %v7094, 5
    %v7414 = vrot.slane %v7413, 4
    %v7415 = vrot.slane %v7095, 5
    %v7416 = vsel %vm7404, %v7414, %v7415
    %v7417 = vrot.slane %v7096, 5
    %v7418 = vrot.slane %v7417, 4
    %v7419 = vrot.slane %v7097, 5
    %v7420 = vsel %vm7404, %v7418, %v7419
    %v7421 = vrot.slane %v7098, 5
    %v7422 = vrot.slane %v7421, 4
    %v7423 = vrot.slane %v7099, 5
    %v7424 = vsel %vm7404, %v7422, %v7423
    %v7425 = vrot.slane %v7100, 5
    %v7426 = vrot.slane %v7425, 4
    %v7427 = vrot.slane %v7101, 5
    %v7428 = vsel %vm7404, %v7426, %v7427
    %v7429 = vrot.slane %v7102, 5
    %v7430 = vrot.slane %v7429, 4
    %v7431 = vrot.slane %v7103, 5
    %v7432 = vsel %vm7404, %v7430, %v7431
    %v7433 = vrot.slane %v7104, 5
    %v7434 = vrot.slane %v7433, 4
    %v7435 = vrot.slane %v7105, 5
    %v7436 = vsel %vm7404, %v7434, %v7435
    %v7437 = vrot.slane %v7106, 5
    %v7438 = vrot.slane %v7437, 4
    %v7439 = vrot.slane %v7107, 5
    %v7440 = vsel %vm7404, %v7438, %v7439
    %v7441 = vrot.slane %v7108, 5
    %v7442 = vrot.slane %v7441, 4
    %v7443 = vrot.slane %v7109, 5
    %v7444 = vsel %vm7404, %v7442, %v7443
    %v7445 = vrot.slane %v7110, 5
    %v7446 = vrot.slane %v7445, 4
    %v7447 = vrot.slane %v7111, 5
    %v7448 = vsel %vm7404, %v7446, %v7447
    %v7449 = vrot.slane %v7112, 5
    %v7450 = vrot.slane %v7449, 4
    %v7451 = vrot.slane %v7113, 5
    %v7452 = vsel %vm7404, %v7450, %v7451
    %v7453 = vrot.slane %v7114, 5
    %v7454 = vrot.slane %v7453, 4
    %v7455 = vrot.slane %v7115, 5
    %v7456 = vsel %vm7404, %v7454, %v7455
    %v7457 = vrot.slane %v7116, 5
    %v7458 = vrot.slane %v7457, 4
    %v7459 = vrot.slane %v7117, 5
    %v7460 = vsel %vm7404, %v7458, %v7459
    %v7461 = vrot.slane %v7118, 5
    %v7462 = vrot.slane %v7461, 4
    %v7463 = vrot.slane %v7119, 5
    %v7464 = vsel %vm7404, %v7462, %v7463
    %v7465 = vrot.slane %v7120, 5
    %v7466 = vrot.slane %v7465, 4
    %v7467 = vrot.slane %v7121, 5
    %v7468 = vsel %vm7404, %v7466, %v7467
    %v7469 = vrot.slane %v7122, 5
    %v7470 = vrot.slane %v7469, 4
    %v7471 = vrot.slane %v7123, 5
    %v7472 = vsel %vm7404, %v7470, %v7471
    %7490 = vst [vmem:[#allocation3 + $0x8] sm:$0xf] %v7408
    %7491 = vst [vmem:[#allocation3 + $0x14] sm:$0xf] %v7412
    %7492 = vst [vmem:[#allocation3 + $0x20] sm:$0xf] %v7416
    %7493 = vst [vmem:[#allocation3 + $0x2c] sm:$0xf] %v7420
    %7494 = vst [vmem:[#allocation3 + $0x38] sm:$0xf] %v7424
    %7495 = vst [vmem:[#allocation3 + $0x44] sm:$0xf] %v7428
    %7496 = vst [vmem:[#allocation3 + $0x50] sm:$0xf] %v7432
    %7497 = vst [vmem:[#allocation3 + $0x5c] sm:$0xf] %v7436
    %7498 = vst [vmem:[#allocation3 + $0x68] sm:$0xf] %v7440
    %7499 = vst [vmem:[#allocation3 + $0x74] sm:$0xf] %v7408
    %7500 = vst [vmem:[#allocation3 + $0x80] sm:$0xf] %v7408
    %7501 = vst [vmem:[#allocation3 + $0x8c] sm:$0xf] %v7444
    %7502 = vst [vmem:[#allocation3 + $0x98] sm:$0xf] %v7448
    %7503 = vst [vmem:[#allocation3 + $0xa4] sm:$0xf] %v7452
    %7504 = vst [vmem:[#allocation3 + $0xb0] sm:$0xf] %v7456
    %7505 = vst [vmem:[#allocation3 + $0xbc] sm:$0xf] %v7460
    %7506 = vst [vmem:[#allocation3 + $0xc8] sm:$0xf] %v7464
    %7507 = vst [vmem:[#allocation3 + $0xd4] sm:$0xf] %v7468
    %7508 = vst [vmem:[#allocation3 + $0xe0] sm:$0xf] %v7472
    %7509 = vst [vmem:[#allocation3 + $0xec] sm:$0xf] %v7408
    %v7510 = vld [vmem:[#allocation3] sm:$0xff]
    %v7511 = vld [vmem:[#allocation3 + $0x8] sm:$0xf]
    %v7512 = vld [vmem:[#allocation3 + $0xc] sm:$0xff]
    %v7513 = vld [vmem:[#allocation3 + $0x14] sm:$0xf]
    %v7514 = vld [vmem:[#allocation3 + $0x18] sm:$0xff]
    %v7515 = vld [vmem:[#allocation3 + $0x20] sm:$0xf]
    %v7516 = vld [vmem:[#allocation3 + $0x24] sm:$0xff]
    %v7517 = vld [vmem:[#allocation3 + $0x2c] sm:$0xf]
    %v7518 = vld [vmem:[#allocation3 + $0x30] sm:$0xff]
    %v7519 = vld [vmem:[#allocation3 + $0x38] sm:$0xf]
    %v7520 = vld [vmem:[#allocation3 + $0x3c] sm:$0xff]
    %v7521 = vld [vmem:[#allocation3 + $0x44] sm:$0xf]
    %v7522 = vld [vmem:[#allocation3 + $0x48] sm:$0xff]
    %v7523 = vld [vmem:[#allocation3 + $0x50] sm:$0xf]
    %v7524 = vld [vmem:[#allocation3 + $0x54] sm:$0xff]
    %v7525 = vld [vmem:[#allocation3 + $0x5c] sm:$0xf]
    %v7526 = vld [vmem:[#allocation3 + $0x78] sm:$0xff]
    %v7527 = vld [vmem:[#allocation3 + $0x80] sm:$0xf]
    %v7528 = vld [vmem:[#allocation3 + $0x84] sm:$0xff]
    %v7529 = vld [vmem:[#allocation3 + $0x8c] sm:$0xf]
    %v7530 = vld [vmem:[#allocation3 + $0x90] sm:$0xff]
    %v7531 = vld [vmem:[#allocation3 + $0x98] sm:$0xf]
    %v7532 = vld [vmem:[#allocation3 + $0x9c] sm:$0xff]
    %v7533 = vld [vmem:[#allocation3 + $0xa4] sm:$0xf]
    %v7534 = vld [vmem:[#allocation3 + $0xa8] sm:$0xff]
    %v7535 = vld [vmem:[#allocation3 + $0xb0] sm:$0xf]
    %v7536 = vld [vmem:[#allocation3 + $0xb4] sm:$0xff]
    %v7537 = vld [vmem:[#allocation3 + $0xbc] sm:$0xf]
    %v7538 = vld [vmem:[#allocation3 + $0xc0] sm:$0xff]
    %v7539 = vld [vmem:[#allocation3 + $0xc8] sm:$0xf]
    %v7540 = vld [vmem:[#allocation3 + $0xcc] sm:$0xff]
    %v7541 = vld [vmem:[#allocation3 + $0xd4] sm:$0xf]
    %v7542 = vld [vmem:[#allocation5] sm:$0xf]
    %v7543 = vld [vmem:[#allocation5 + $0x4] sm:$0xf]
    %v7544 = vld [vmem:[#allocation5 + $0x8] sm:$0xf]
    %v7545 = vld [vmem:[#allocation5 + $0xc] sm:$0xf]
    %v7546 = vld [vmem:[#allocation5 + $0x10] sm:$0xf]
    %v7547 = vld [vmem:[#allocation5 + $0x14] sm:$0xf]
    %v7548 = vld [vmem:[#allocation5 + $0x18] sm:$0xf]
    %v7549 = vld [vmem:[#allocation5 + $0x1c] sm:$0xf]
    %v7550 = vld [vmem:[#allocation5 + $0x20] sm:$0xf]
    %v7551 = vld [vmem:[#allocation5 + $0x24] sm:$0xf]
    %v7552 = vld [vmem:[#allocation5 + $0x28] sm:$0xf]
    %v7553 = vld [vmem:[#allocation5 + $0x2c] sm:$0xf]
    %v7554 = vld [vmem:[#allocation5 + $0x30] sm:$0xf]
    %v7555 = vld [vmem:[#allocation5 + $0x34] sm:$0xf]
    %v7556 = vld [vmem:[#allocation5 + $0x38] sm:$0xf]
    %v7557 = vld [vmem:[#allocation5 + $0x3c] sm:$0xf]
    %v7558 = vld [vmem:[#allocation5 + $0x40] sm:$0xf]
    %v7559 = vld [vmem:[#allocation5 + $0x44] sm:$0xf]
    %v7560 = vld [vmem:[#allocation5 + $0x48] sm:$0xf]
    %v7561 = vld [vmem:[#allocation5 + $0x4c] sm:$0xf]
    %v7562 = vld [vmem:[#allocation5 + $0x50] sm:$0xf]
    %v7563 = vld [vmem:[#allocation5 + $0x54] sm:$0xf]
    %v7564 = vld [vmem:[#allocation5 + $0x58] sm:$0xf]
    %v7565 = vld [vmem:[#allocation5 + $0x5c] sm:$0xf]
    %v7566 = vld [vmem:[#allocation5 + $0x60] sm:$0xf]
    %v7567 = vld [vmem:[#allocation5 + $0x64] sm:$0xf]
    %v7568 = vld [vmem:[#allocation5 + $0x68] sm:$0xf]
    %v7569 = vld [vmem:[#allocation5 + $0x6c] sm:$0xf]
    %v7570 = vld [vmem:[#allocation5 + $0x70] sm:$0xf]
    %v7571 = vld [vmem:[#allocation5 + $0x74] sm:$0xf]
    %v7572 = vld [vmem:[#allocation5 + $0x78] sm:$0xf]
    %v7573 = vld [vmem:[#allocation5 + $0x7c] sm:$0xf]
    %v7574 = vld [vmem:[#allocation5 + $0x80] sm:$0xf]
    %v7575 = vld [vmem:[#allocation5 + $0x84] sm:$0xf]
    %v7576 = vld [vmem:[#allocation5 + $0x88] sm:$0xf]
    %v7577 = vld [vmem:[#allocation5 + $0x8c] sm:$0xf]
    %v7578 = vld [vmem:[#allocation5 + $0x90] sm:$0xf]
    %v7579 = vld [vmem:[#allocation5 + $0x94] sm:$0xf]
    %v7580 = vld [vmem:[#allocation5 + $0x98] sm:$0xf]
    %v7581 = vld [vmem:[#allocation5 + $0x9c] sm:$0xf]
    %v7582 = vld [vmem:[#allocation5 + $0xa0] sm:$0xf]
    %v7583 = vld [vmem:[#allocation5 + $0xa4] sm:$0xf]
    %v7584 = vld [vmem:[#allocation5 + $0xa8] sm:$0xf]
    %v7585 = vld [vmem:[#allocation5 + $0xac] sm:$0xf]
    %v7586 = vld [vmem:[#allocation5 + $0xb0] sm:$0xf]
    %v7587 = vld [vmem:[#allocation5 + $0xb4] sm:$0xf]
    %v7588 = vld [vmem:[#allocation5 + $0xb8] sm:$0xf]
    %v7589 = vld [vmem:[#allocation5 + $0xbc] sm:$0xf]
    %v7622 = vunpack.c.l.b16 %v7510
    %v7623 = vunpack.c.h.b16 %v7510
    %v7624 = vunpack.c.l.b16 %v7511
    %v7625 = vunpack.c.l.b16 %v7512
    %v7626 = vunpack.c.h.b16 %v7512
    %v7627 = vunpack.c.l.b16 %v7513
    %v7628 = vunpack.c.l.b16 %v7514
    %v7629 = vunpack.c.h.b16 %v7514
    %v7630 = vunpack.c.l.b16 %v7515
    %v7631 = vunpack.c.l.b16 %v7516
    %v7632 = vunpack.c.h.b16 %v7516
    %v7633 = vunpack.c.l.b16 %v7517
    %v7634 = vunpack.c.l.b16 %v7518
    %v7635 = vunpack.c.h.b16 %v7518
    %v7636 = vunpack.c.l.b16 %v7519
    %v7637 = vunpack.c.l.b16 %v7520
    %v7638 = vunpack.c.h.b16 %v7520
    %v7639 = vunpack.c.l.b16 %v7521
    %v7640 = vunpack.c.l.b16 %v7522
    %v7641 = vunpack.c.h.b16 %v7522
    %v7642 = vunpack.c.l.b16 %v7523
    %v7643 = vunpack.c.l.b16 %v7524
    %v7644 = vunpack.c.h.b16 %v7524
    %v7645 = vunpack.c.l.b16 %v7525
    %v7646 = vunpack.c.l.b16 %v7526
    %v7647 = vunpack.c.h.b16 %v7526
    %v7648 = vunpack.c.l.b16 %v7527
    %v7649 = vunpack.c.l.b16 %v7528
    %v7650 = vunpack.c.h.b16 %v7528
    %v7651 = vunpack.c.l.b16 %v7529
    %v7652 = vunpack.c.l.b16 %v7530
    %v7653 = vunpack.c.h.b16 %v7530
    %v7654 = vunpack.c.l.b16 %v7531
    %v7655 = vunpack.c.l.b16 %v7532
    %v7656 = vunpack.c.h.b16 %v7532
    %v7657 = vunpack.c.l.b16 %v7533
    %v7658 = vunpack.c.l.b16 %v7534
    %v7659 = vunpack.c.h.b16 %v7534
    %v7660 = vunpack.c.l.b16 %v7535
    %v7661 = vunpack.c.l.b16 %v7536
    %v7662 = vunpack.c.h.b16 %v7536
    %v7663 = vunpack.c.l.b16 %v7537
    %v7664 = vunpack.c.l.b16 %v7538
    %v7665 = vunpack.c.h.b16 %v7538
    %v7666 = vunpack.c.l.b16 %v7539
    %v7667 = vunpack.c.l.b16 %v7540
    %v7668 = vunpack.c.h.b16 %v7540
    %v7669 = vunpack.c.l.b16 %v7541
    %v7670 = vpack.c.b16 %v7625, %v7622
    %v7671 = vpack.c.b16 %v7626, %v7623
    %v7672 = vpack.c.b16 %v7627, %v7624
    %v7673 = vpack.c.b16 %v7631, %v7628
    %v7674 = vpack.c.b16 %v7632, %v7629
    %v7675 = vpack.c.b16 %v7633, %v7630
    %v7676 = vpack.c.b16 %v7637, %v7634
    %v7677 = vpack.c.b16 %v7638, %v7635
    %v7678 = vpack.c.b16 %v7639, %v7636
    %v7679 = vpack.c.b16 %v7643, %v7640
    %v7680 = vpack.c.b16 %v7644, %v7641
    %v7681 = vpack.c.b16 %v7645, %v7642
    %v7682 = vpack.c.b16 %v7649, %v7646
    %v7683 = vpack.c.b16 %v7650, %v7647
    %v7684 = vpack.c.b16 %v7651, %v7648
    %v7685 = vpack.c.b16 %v7655, %v7652
    %v7686 = vpack.c.b16 %v7656, %v7653
    %v7687 = vpack.c.b16 %v7657, %v7654
    %v7688 = vpack.c.b16 %v7661, %v7658
    %v7689 = vpack.c.b16 %v7662, %v7659
    %v7690 = vpack.c.b16 %v7663, %v7660
    %v7691 = vpack.c.b16 %v7667, %v7664
    %v7692 = vpack.c.b16 %v7668, %v7665
    %v7693 = vpack.c.b16 %v7669, %v7666
    %v7766 = vunpack.c.l.b16 %v7542
    %v7767 = vunpack.c.l.b16 %v7543
    %v7768 = vunpack.c.l.b16 %v7544
    %v7769 = vunpack.c.l.b16 %v7545
    %v7770 = vunpack.c.l.b16 %v7546
    %v7771 = vunpack.c.l.b16 %v7547
    %v7772 = vunpack.c.l.b16 %v7548
    %v7773 = vunpack.c.l.b16 %v7549
    %v7774 = vunpack.c.l.b16 %v7550
    %v7775 = vunpack.c.l.b16 %v7551
    %v7776 = vunpack.c.l.b16 %v7552
    %v7777 = vunpack.c.l.b16 %v7553
    %v7778 = vunpack.c.l.b16 %v7554
    %v7779 = vunpack.c.l.b16 %v7555
    %v7780 = vunpack.c.l.b16 %v7556
    %v7781 = vunpack.c.l.b16 %v7557
    %v7782 = vunpack.c.l.b16 %v7558
    %v7783 = vunpack.c.l.b16 %v7559
    %v7784 = vunpack.c.l.b16 %v7560
    %v7785 = vunpack.c.l.b16 %v7561
    %v7786 = vunpack.c.l.b16 %v7562
    %v7787 = vunpack.c.l.b16 %v7563
    %v7788 = vunpack.c.l.b16 %v7564
    %v7789 = vunpack.c.l.b16 %v7565
    %v7790 = vunpack.c.l.b16 %v7566
    %v7791 = vunpack.c.l.b16 %v7567
    %v7792 = vunpack.c.l.b16 %v7568
    %v7793 = vunpack.c.l.b16 %v7569
    %v7794 = vunpack.c.l.b16 %v7570
    %v7795 = vunpack.c.l.b16 %v7571
    %v7796 = vunpack.c.l.b16 %v7572
    %v7797 = vunpack.c.l.b16 %v7573
    %v7798 = vunpack.c.l.b16 %v7574
    %v7799 = vunpack.c.l.b16 %v7575
    %v7800 = vunpack.c.l.b16 %v7576
    %v7801 = vunpack.c.l.b16 %v7577
    %v7802 = vunpack.c.l.b16 %v7578
    %v7803 = vunpack.c.l.b16 %v7579
    %v7804 = vunpack.c.l.b16 %v7580
    %v7805 = vunpack.c.l.b16 %v7581
    %v7806 = vunpack.c.l.b16 %v7582
    %v7807 = vunpack.c.l.b16 %v7583
    %v7808 = vunpack.c.l.b16 %v7584
    %v7809 = vunpack.c.l.b16 %v7585
    %v7810 = vunpack.c.l.b16 %v7586
    %v7811 = vunpack.c.l.b16 %v7587
    %v7812 = vunpack.c.l.b16 %v7588
    %v7813 = vunpack.c.l.b16 %v7589
    %v7814 = vpack.c.b16 %v7767, %v7766
    %v7815 = vpack.c.b16 %v7769, %v7768
    %v7816 = vpack.c.b16 %v7771, %v7770
    %v7817 = vpack.c.b16 %v7773, %v7772
    %v7818 = vpack.c.b16 %v7775, %v7774
    %v7819 = vpack.c.b16 %v7777, %v7776
    %v7820 = vpack.c.b16 %v7779, %v7778
    %v7821 = vpack.c.b16 %v7781, %v7780
    %v7822 = vpack.c.b16 %v7783, %v7782
    %v7823 = vpack.c.b16 %v7785, %v7784
    %v7824 = vpack.c.b16 %v7787, %v7786
    %v7825 = vpack.c.b16 %v7789, %v7788
    %v7826 = vpack.c.b16 %v7791, %v7790
    %v7827 = vpack.c.b16 %v7793, %v7792
    %v7828 = vpack.c.b16 %v7795, %v7794
    %v7829 = vpack.c.b16 %v7797, %v7796
    %v7830 = vpack.c.b16 %v7799, %v7798
    %v7831 = vpack.c.b16 %v7801, %v7800
    %v7832 = vpack.c.b16 %v7803, %v7802
    %v7833 = vpack.c.b16 %v7805, %v7804
    %v7834 = vpack.c.b16 %v7807, %v7806
    %v7835 = vpack.c.b16 %v7809, %v7808
    %v7836 = vpack.c.b16 %v7811, %v7810
    %v7837 = vpack.c.b16 %v7813, %v7812
    %7862 = vmatprep.subr.bf16.mxu0 0
    %7863 = vmatpush1.bf16.msra.mxu0 %v7814
    %7864 = vmatprep.subr.bf16.mxu0 0
    %7865 = vmatpush1.bf16.msra.mxu0 %v7815
    %7866 = vmatprep.subr.bf16.mxu0 0
    %7867 = vmatpush1.bf16.msra.mxu0 %v7816
    %7868 = vmatprep.subr.bf16.mxu0 0
    %7869 = vmatpush1.bf16.msra.mxu0 %v7817
    %7870 = vmatprep.subr.bf16.mxu0 0
    %7871 = vmatpush1.bf16.msra.mxu0 %v7818
    %7872 = vmatprep.subr.bf16.mxu0 0
    %7873 = vmatpush1.bf16.msra.mxu0 %v7819
    %7874 = vmatprep.subr.bf16.mxu0 0
    %7875 = vmatpush1.bf16.msra.mxu0 %v7820
    %7876 = vmatprep.subr.bf16.mxu0 0
    %7877 = vmatpush1.bf16.msra.mxu0 %v7821
    %7878 = vmatprep.subr.bf16.mxu0 0
    %7879 = vmatpush1.bf16.msra.mxu0 %v7822
    %7880 = vmatprep.subr.bf16.mxu0 0
    %7881 = vmatpush1.bf16.msra.mxu0 %v7823
    %7882 = vmatprep.subr.bf16.mxu0 0
    %7883 = vmatpush1.bf16.msra.mxu0 %v7824
    %7884 = vmatprep.subr.bf16.mxu0 0
    %7885 = vmatpush1.bf16.msra.mxu0 %v7825
    %7886 = vmatprep.subr.bf16.mxu0 0
    %7887 = vmatpush1.bf16.msra.mxu0 %v7826
    %7888 = vmatprep.subr.bf16.mxu0 0
    %7889 = vmatpush1.bf16.msra.mxu0 %v7827
    %7890 = vmatprep.subr.bf16.mxu0 0
    %7891 = vmatpush1.bf16.msra.mxu0 %v7828
    %7892 = vmatprep.subr.bf16.mxu0 0
    %7893 = vmatpush1.bf16.msra.mxu0 %v7829
    %7894 = vmatprep.mubr.bf16.mxu0 %v7671
    %7895 = vmatmul.mubr.bf16.gmra.mrb[0].mxu0 %v7670
    %v7896 = vpop.f32.mrb[0].mxu0
    %v7897 = vadd.f32 0.0, %v7896
    %v7898 = vpop.f32.mrb[0].mxu0
    %v7899 = vpop.f32.mrb[0].mxu0
    %v7900 = vadd.f32 0.0, %v7899
    %v7901 = vpop.f32.mrb[0].mxu0
    %7902 = vmatprep.mubr.bf16.mxu0 %v7674
    %7903 = vmatmul.mubr.bf16.gmra.mrb[0].mxu0 %v7673
    %v7904 = vpop.f32.mrb[0].mxu0
    %v7905 = vadd.f32 0.0, %v7904
    %v7906 = vpop.f32.mrb[0].mxu0
    %v7907 = vpop.f32.mrb[0].mxu0
    %v7908 = vadd.f32 0.0, %v7907
    %v7909 = vpop.f32.mrb[0].mxu0
    %7910 = vmatprep.mubr.bf16.mxu0 %v7677
    %7911 = vmatmul.mubr.bf16.gmra.mrb[0].mxu0 %v7676
    %v7912 = vpop.f32.mrb[0].mxu0
    %v7913 = vadd.f32 0.0, %v7912
    %v7914 = vpop.f32.mrb[0].mxu0
    %v7915 = vpop.f32.mrb[0].mxu0
    %v7916 = vadd.f32 0.0, %v7915
    %v7917 = vpop.f32.mrb[0].mxu0
    %7918 = vmatprep.mubr.bf16.mxu0 %v7680
    %7919 = vmatmul.mubr.bf16.gmra.mrb[0].mxu0 %v7679
    %v7920 = vpop.f32.mrb[0].mxu0
    %v7921 = vadd.f32 0.0, %v7920
    %v7922 = vpop.f32.mrb[0].mxu0
    %v7923 = vpop.f32.mrb[0].mxu0
    %v7924 = vadd.f32 0.0, %v7923
    %v7925 = vpop.f32.mrb[0].mxu0
    %7926 = vmatprep.mubr.bf16.mxu0 %v7683
    %7927 = vmatmul.mubr.bf16.gmra.mrb[0].mxu0 %v7682
    %v7928 = vpop.f32.mrb[0].mxu0
    %v7929 = vadd.f32 0.0, %v7928
    %v7930 = vpop.f32.mrb[0].mxu0
    %v7931 = vpop.f32.mrb[0].mxu0
    %v7932 = vadd.f32 0.0, %v7931
    %v7933 = vpop.f32.mrb[0].mxu0
    %7934 = vmatprep.mubr.bf16.mxu0 %v7686
    %7935 = vmatmul.mubr.bf16.gmra.mrb[0].mxu0 %v7685
    %v7936 = vpop.f32.mrb[0].mxu0
    %v7937 = vadd.f32 0.0, %v7936
    %v7938 = vpop.f32.mrb[0].mxu0
    %v7939 = vpop.f32.mrb[0].mxu0
    %v7940 = vadd.f32 0.0, %v7939
    %v7941 = vpop.f32.mrb[0].mxu0
    %7942 = vmatprep.mubr.bf16.mxu0 %v7689
    %7943 = vmatmul.mubr.bf16.gmra.mrb[0].mxu0 %v7688
    %v7944 = vpop.f32.mrb[0].mxu0
    %v7945 = vadd.f32 0.0, %v7944
    %v7946 = vpop.f32.mrb[0].mxu0
    %v7947 = vpop.f32.mrb[0].mxu0
    %v7948 = vadd.f32 0.0, %v7947
    %v7949 = vpop.f32.mrb[0].mxu0
    %7950 = vmatprep.mubr.bf16.mxu0 %v7692
    %7951 = vmatmul.mubr.bf16.gmra.mrb[0].mxu0 %v7691
    %v7952 = vpop.f32.mrb[0].mxu0
    %v7953 = vadd.f32 0.0, %v7952
    %v7954 = vpop.f32.mrb[0].mxu0
    %v7955 = vpop.f32.mrb[0].mxu0
    %v7956 = vadd.f32 0.0, %v7955
    %v7957 = vpop.f32.mrb[0].mxu0
    %7958 = vdwg.mxu0
    %7959 = vmatprep.subr.bf16.mxu0 0
    %7960 = vmatpush1.bf16.msra.mxu0 %v7830
    %7961 = vmatprep.subr.bf16.mxu0 0
    %7962 = vmatpush1.bf16.msra.mxu0 %v7831
    %7963 = vmatprep.subr.bf16.mxu0 0
    %7964 = vmatpush1.bf16.msra.mxu0 %v7832
    %7965 = vmatprep.subr.bf16.mxu0 0
    %7966 = vmatpush1.bf16.msra.mxu0 %v7833
    %7967 = vmatprep.subr.bf16.mxu0 0
    %7968 = vmatpush1.bf16.msra.mxu0 %v7834
    %7969 = vmatprep.subr.bf16.mxu0 0
    %7970 = vmatpush1.bf16.msra.mxu0 %v7835
    %7971 = vmatprep.subr.bf16.mxu0 0
    %7972 = vmatpush1.bf16.msra.mxu0 %v7836
    %7973 = vmatprep.subr.bf16.mxu0 0
    %7974 = vmatpush1.bf16.msra.mxu0 %v7837
    %7975 = vmatprep.subr.bf16.mxu0 0
    %7976 = vmatpush1.bf16.msra.mxu0 0
    %7977 = vmatprep.subr.bf16.mxu0 0
    %7978 = vmatpush1.bf16.msra.mxu0 0
    %7979 = vmatprep.subr.bf16.mxu0 0
    %7980 = vmatpush1.bf16.msra.mxu0 0
    %7981 = vmatprep.subr.bf16.mxu0 0
    %7982 = vmatpush1.bf16.msra.mxu0 0
    %7983 = vmatprep.subr.bf16.mxu0 0
    %7984 = vmatpush1.bf16.msra.mxu0 0
    %7985 = vmatprep.subr.bf16.mxu0 0
    %7986 = vmatpush1.bf16.msra.mxu0 0
    %7987 = vmatprep.subr.bf16.mxu0 0
    %7988 = vmatpush1.bf16.msra.mxu0 0
    %7989 = vmatprep.subr.bf16.mxu0 0
    %7990 = vmatpush1.bf16.msra.mxu0 0
    %7991 = vmatprep.mubr.bf16.mxu0 0
    %7992 = vmatmul.mubr.bf16.gmra.mrb[0].mxu0 %v7672
    %v7993 = vpop.f32.mrb[0].mxu0
    %v7994 = vadd.f32 %v7897, %v7993
    %v7995 = vpop.f32.mrb[0].mxu0
    %v7996 = vpop.f32.mrb[0].mxu0
    %v7997 = vadd.f32 %v7900, %v7996
    %v7998 = vpop.f32.mrb[0].mxu0
    %7999 = vmatprep.mubr.bf16.mxu0 0
    %8000 = vmatmul.mubr.bf16.gmra.mrb[0].mxu0 %v7675
    %v8001 = vpop.f32.mrb[0].mxu0
    %v8002 = vadd.f32 %v7905, %v8001
    %v8003 = vpop.f32.mrb[0].mxu0
    %v8004 = vpop.f32.mrb[0].mxu0
    %v8005 = vadd.f32 %v7908, %v8004
    %v8006 = vpop.f32.mrb[0].mxu0
    %8007 = vmatprep.mubr.bf16.mxu0 0
    %8008 = vmatmul.mubr.bf16.gmra.mrb[0].mxu0 %v7678
    %v8009 = vpop.f32.mrb[0].mxu0
    %v8010 = vadd.f32 %v7913, %v8009
    %v8011 = vpop.f32.mrb[0].mxu0
    %v8012 = vpop.f32.mrb[0].mxu0
    %v8013 = vadd.f32 %v7916, %v8012
    %v8014 = vpop.f32.mrb[0].mxu0
    %8015 = vmatprep.mubr.bf16.mxu0 0
    %8016 = vmatmul.mubr.bf16.gmra.mrb[0].mxu0 %v7681
    %v8017 = vpop.f32.mrb[0].mxu0
    %v8018 = vadd.f32 %v7921, %v8017
    %v8019 = vpop.f32.mrb[0].mxu0
    %v8020 = vpop.f32.mrb[0].mxu0
    %v8021 = vadd.f32 %v7924, %v8020
    %v8022 = vpop.f32.mrb[0].mxu0
    %8023 = vmatprep.mubr.bf16.mxu0 0
    %8024 = vmatmul.mubr.bf16.gmra.mrb[0].mxu0 %v7684
    %v8025 = vpop.f32.mrb[0].mxu0
    %v8026 = vadd.f32 %v7929, %v8025
    %v8027 = vpop.f32.mrb[0].mxu0
    %v8028 = vpop.f32.mrb[0].mxu0
    %v8029 = vadd.f32 %v7932, %v8028
    %v8030 = vpop.f32.mrb[0].mxu0
    %8031 = vmatprep.mubr.bf16.mxu0 0
    %8032 = vmatmul.mubr.bf16.gmra.mrb[0].mxu0 %v7687
    %v8033 = vpop.f32.mrb[0].mxu0
    %v8034 = vadd.f32 %v7937, %v8033
    %v8035 = vpop.f32.mrb[0].mxu0
    %v8036 = vpop.f32.mrb[0].mxu0
    %v8037 = vadd.f32 %v7940, %v8036
    %v8038 = vpop.f32.mrb[0].mxu0
    %8039 = vmatprep.mubr.bf16.mxu0 0
    %8040 = vmatmul.mubr.bf16.gmra.mrb[0].mxu0 %v7690
    %v8041 = vpop.f32.mrb[0].mxu0
    %v8042 = vadd.f32 %v7945, %v8041
    %v8043 = vpop.f32.mrb[0].mxu0
    %v8044 = vpop.f32.mrb[0].mxu0
    %v8045 = vadd.f32 %v7948, %v8044
    %v8046 = vpop.f32.mrb[0].mxu0
    %8047 = vmatprep.mubr.bf16.mxu0 0
    %8048 = vmatmul.mubr.bf16.gmra.mrb[0].mxu0 %v7693
    %v8049 = vpop.f32.mrb[0].mxu0
    %v8050 = vadd.f32 %v7953, %v8049
    %v8051 = vpop.f32.mrb[0].mxu0
    %v8052 = vpop.f32.mrb[0].mxu0
    %v8053 = vadd.f32 %v7956, %v8052
    %v8054 = vpop.f32.mrb[0].mxu0
    %8055 = vdwg.mxu0
    %8056 = vst [vmem:[#allocation4] sm:$0xff] %v7994
    %8057 = vst [vmem:[#allocation4 + $0x8] sm:$0xff] %v7997
    %8058 = vst [vmem:[#allocation4 + $0x10] sm:$0xff] %v8002
    %8059 = vst [vmem:[#allocation4 + $0x18] sm:$0xff] %v8005
    %8060 = vst [vmem:[#allocation4 + $0x20] sm:$0xff] %v8010
    %8061 = vst [vmem:[#allocation4 + $0x28] sm:$0xff] %v8013
    %8062 = vst [vmem:[#allocation4 + $0x30] sm:$0xff] %v8018
    %8063 = vst [vmem:[#allocation4 + $0x38] sm:$0xff] %v8021
    %8064 = vst [vmem:[#allocation4 + $0x40] sm:$0xff] %v8026
    %8065 = vst [vmem:[#allocation4 + $0x48] sm:$0xff] %v8029
    %8066 = vst [vmem:[#allocation4 + $0x50] sm:$0xff] %v8034
    %8067 = vst [vmem:[#allocation4 + $0x58] sm:$0xff] %v8037
    %8068 = vst [vmem:[#allocation4 + $0x60] sm:$0xff] %v8042
    %8069 = vst [vmem:[#allocation4 + $0x68] sm:$0xff] %v8045
    %8070 = vst [vmem:[#allocation4 + $0x70] sm:$0xff] %v8050
    %8071 = vst [vmem:[#allocation4 + $0x78] sm:$0xff] %v8053
    %s8072 = scalar_lea.vmem [#allocation3], 12
    %v8073 = vld [vmem:[%s8072] sm:$0xff]
    %v8074 = vld [vmem:[%s8072 + $0x8] sm:$0xf]
    %v8075 = vld [vmem:[%s8072 + $0xc] sm:$0xff]
    %v8076 = vld [vmem:[%s8072 + $0x14] sm:$0xf]
    %v8077 = vld [vmem:[%s8072 + $0x18] sm:$0xff]
    %v8078 = vld [vmem:[%s8072 + $0x20] sm:$0xf]
    %v8079 = vld [vmem:[%s8072 + $0x24] sm:$0xff]
    %v8080 = vld [vmem:[%s8072 + $0x2c] sm:$0xf]
    %v8081 = vld [vmem:[%s8072 + $0x30] sm:$0xff]
    %v8082 = vld [vmem:[%s8072 + $0x38] sm:$0xf]
    %v8083 = vld [vmem:[%s8072 + $0x3c] sm:$0xff]
    %v8084 = vld [vmem:[%s8072 + $0x44] sm:$0xf]
    %v8085 = vld [vmem:[%s8072 + $0x48] sm:$0xff]
    %v8086 = vld [vmem:[%s8072 + $0x50] sm:$0xf]
    %v8087 = vld [vmem:[%s8072 + $0x54] sm:$0xff]
    %v8088 = vld [vmem:[%s8072 + $0x5c] sm:$0xf]
    %v8089 = vld [vmem:[%s8072 + $0x78] sm:$0xff]
    %v8090 = vld [vmem:[%s8072 + $0x80] sm:$0xf]
    %v8091 = vld [vmem:[%s8072 + $0x84] sm:$0xff]
    %v8092 = vld [vmem:[%s8072 + $0x8c] sm:$0xf]
    %v8093 = vld [vmem:[%s8072 + $0x90] sm:$0xff]
    %v8094 = vld [vmem:[%s8072 + $0x98] sm:$0xf]
    %v8095 = vld [vmem:[%s8072 + $0x9c] sm:$0xff]
    %v8096 = vld [vmem:[%s8072 + $0xa4] sm:$0xf]
    %v8097 = vld [vmem:[%s8072 + $0xa8] sm:$0xff]
    %v8098 = vld [vmem:[%s8072 + $0xb0] sm:$0xf]
    %v8099 = vld [vmem:[%s8072 + $0xb4] sm:$0xff]
    %v8100 = vld [vmem:[%s8072 + $0xbc] sm:$0xf]
    %v8101 = vld [vmem:[%s8072 + $0xc0] sm:$0xff]
    %v8102 = vld [vmem:[%s8072 + $0xc8] sm:$0xf]
    %v8103 = vld [vmem:[%s8072 + $0xcc] sm:$0xff]
    %v8104 = vld [vmem:[%s8072 + $0xd4] sm:$0xf]
    %s8105 = scalar_lea.vmem [#allocation5], 192
    %v8106 = vld [vmem:[%s8105] sm:$0xf]
    %v8107 = vld [vmem:[%s8105 + $0x4] sm:$0xf]
    %v8108 = vld [vmem:[%s8105 + $0x8] sm:$0xf]
    %v8109 = vld [vmem:[%s8105 + $0xc] sm:$0xf]
    %v8110 = vld [vmem:[%s8105 + $0x10] sm:$0xf]
    %v8111 = vld [vmem:[%s8105 + $0x14] sm:$0xf]
    %v8112 = vld [vmem:[%s8105 + $0x18] sm:$0xf]
    %v8113 = vld [vmem:[%s8105 + $0x1c] sm:$0xf]
    %v8114 = vld [vmem:[%s8105 + $0x20] sm:$0xf]
    %v8115 = vld [vmem:[%s8105 + $0x24] sm:$0xf]
    %v8116 = vld [vmem:[%s8105 + $0x28] sm:$0xf]
    %v8117 = vld [vmem:[%s8105 + $0x2c] sm:$0xf]
    %v8118 = vld [vmem:[%s8105 + $0x30] sm:$0xf]
    %v8119 = vld [vmem:[%s8105 + $0x34] sm:$0xf]
    %v8120 = vld [vmem:[%s8105 + $0x38] sm:$0xf]
    %v8121 = vld [vmem:[%s8105 + $0x3c] sm:$0xf]
    %v8122 = vld [vmem:[%s8105 + $0x40] sm:$0xf]
    %v8123 = vld [vmem:[%s8105 + $0x44] sm:$0xf]
    %v8124 = vld [vmem:[%s8105 + $0x48] sm:$0xf]
    %v8125 = vld [vmem:[%s8105 + $0x4c] sm:$0xf]
    %v8126 = vld [vmem:[%s8105 + $0x50] sm:$0xf]
    %v8127 = vld [vmem:[%s8105 + $0x54] sm:$0xf]
    %v8128 = vld [vmem:[%s8105 + $0x58] sm:$0xf]
    %v8129 = vld [vmem:[%s8105 + $0x5c] sm:$0xf]
    %v8130 = vld [vmem:[%s8105 + $0x60] sm:$0xf]
    %v8131 = vld [vmem:[%s8105 + $0x64] sm:$0xf]
    %v8132 = vld [vmem:[%s8105 + $0x68] sm:$0xf]
    %v8133 = vld [vmem:[%s8105 + $0x6c] sm:$0xf]
    %v8134 = vld [vmem:[%s8105 + $0x70] sm:$0xf]
    %v8135 = vld [vmem:[%s8105 + $0x74] sm:$0xf]
    %v8136 = vld [vmem:[%s8105 + $0x78] sm:$0xf]
    %v8137 = vld [vmem:[%s8105 + $0x7c] sm:$0xf]
    %v8138 = vld [vmem:[%s8105 + $0x80] sm:$0xf]
    %v8139 = vld [vmem:[%s8105 + $0x84] sm:$0xf]
    %v8140 = vld [vmem:[%s8105 + $0x88] sm:$0xf]
    %v8141 = vld [vmem:[%s8105 + $0x8c] sm:$0xf]
    %v8142 = vld [vmem:[%s8105 + $0x90] sm:$0xf]
    %v8143 = vld [vmem:[%s8105 + $0x94] sm:$0xf]
    %v8144 = vld [vmem:[%s8105 + $0x98] sm:$0xf]
    %v8145 = vld [vmem:[%s8105 + $0x9c] sm:$0xf]
    %v8146 = vld [vmem:[%s8105 + $0xa0] sm:$0xf]
    %v8147 = vld [vmem:[%s8105 + $0xa4] sm:$0xf]
    %v8148 = vld [vmem:[%s8105 + $0xa8] sm:$0xf]
    %v8149 = vld [vmem:[%s8105 + $0xac] sm:$0xf]
    %v8150 = vld [vmem:[%s8105 + $0xb0] sm:$0xf]
    %v8151 = vld [vmem:[%s8105 + $0xb4] sm:$0xf]
    %v8152 = vld [vmem:[%s8105 + $0xb8] sm:$0xf]
    %v8153 = vld [vmem:[%s8105 + $0xbc] sm:$0xf]
    %v8186 = vunpack.c.l.b16 %v8073
    %v8187 = vunpack.c.h.b16 %v8073
    %v8188 = vunpack.c.l.b16 %v8074
    %v8189 = vunpack.c.l.b16 %v8075
    %v8190 = vunpack.c.h.b16 %v8075
    %v8191 = vunpack.c.l.b16 %v8076
    %v8192 = vunpack.c.l.b16 %v8077
    %v8193 = vunpack.c.h.b16 %v8077
    %v8194 = vunpack.c.l.b16 %v8078
    %v8195 = vunpack.c.l.b16 %v8079
    %v8196 = vunpack.c.h.b16 %v8079
    %v8197 = vunpack.c.l.b16 %v8080
    %v8198 = vunpack.c.l.b16 %v8081
    %v8199 = vunpack.c.h.b16 %v8081
    %v8200 = vunpack.c.l.b16 %v8082
    %v8201 = vunpack.c.l.b16 %v8083
    %v8202 = vunpack.c.h.b16 %v8083
    %v8203 = vunpack.c.l.b16 %v8084
    %v8204 = vunpack.c.l.b16 %v8085
    %v8205 = vunpack.c.h.b16 %v8085
    %v8206 = vunpack.c.l.b16 %v8086
    %v8207 = vunpack.c.l.b16 %v8087
    %v8208 = vunpack.c.h.b16 %v8087
    %v8209 = vunpack.c.l.b16 %v8088
    %v8210 = vunpack.c.l.b16 %v8089
    %v8211 = vunpack.c.h.b16 %v8089
    %v8212 = vunpack.c.l.b16 %v8090
    %v8213 = vunpack.c.l.b16 %v8091
    %v8214 = vunpack.c.h.b16 %v8091
    %v8215 = vunpack.c.l.b16 %v8092
    %v8216 = vunpack.c.l.b16 %v8093
    %v8217 = vunpack.c.h.b16 %v8093
    %v8218 = vunpack.c.l.b16 %v8094
    %v8219 = vunpack.c.l.b16 %v8095
    %v8220 = vunpack.c.h.b16 %v8095
    %v8221 = vunpack.c.l.b16 %v8096
    %v8222 = vunpack.c.l.b16 %v8097
    %v8223 = vunpack.c.h.b16 %v8097
    %v8224 = vunpack.c.l.b16 %v8098
    %v8225 = vunpack.c.l.b16 %v8099
    %v8226 = vunpack.c.h.b16 %v8099
    %v8227 = vunpack.c.l.b16 %v8100
    %v8228 = vunpack.c.l.b16 %v8101
    %v8229 = vunpack.c.h.b16 %v8101
    %v8230 = vunpack.c.l.b16 %v8102
    %v8231 = vunpack.c.l.b16 %v8103
    %v8232 = vunpack.c.h.b16 %v8103
    %v8233 = vunpack.c.l.b16 %v8104
    %v8234 = vpack.c.b16 %v8189, %v8186
    %v8235 = vpack.c.b16 %v8190, %v8187
    %v8236 = vpack.c.b16 %v8191, %v8188
    %v8237 = vpack.c.b16 %v8195, %v8192
    %v8238 = vpack.c.b16 %v8196, %v8193
    %v8239 = vpack.c.b16 %v8197, %v8194
    %v8240 = vpack.c.b16 %v8201, %v8198
    %v8241 = vpack.c.b16 %v8202, %v8199
    %v8242 = vpack.c.b16 %v8203, %v8200
    %v8243 = vpack.c.b16 %v8207, %v8204
    %v8244 = vpack.c.b16 %v8208, %v8205
    %v8245 = vpack.c.b16 %v8209, %v8206
    %v8246 = vpack.c.b16 %v8213, %v8210
    %v8247 = vpack.c.b16 %v8214, %v8211
    %v8248 = vpack.c.b16 %v8215, %v8212
    %v8249 = vpack.c.b16 %v8219, %v8216
    %v8250 = vpack.c.b16 %v8220, %v8217
    %v8251 = vpack.c.b16 %v8221, %v8218
    %v8252 = vpack.c.b16 %v8225, %v8222
    %v8253 = vpack.c.b16 %v8226, %v8223
    %v8254 = vpack.c.b16 %v8227, %v8224
    %v8255 = vpack.c.b16 %v8231, %v8228
    %v8256 = vpack.c.b16 %v8232, %v8229
    %v8257 = vpack.c.b16 %v8233, %v8230
    %v8330 = vunpack.c.l.b16 %v8106
    %v8331 = vunpack.c.l.b16 %v8107
    %v8332 = vunpack.c.l.b16 %v8108
    %v8333 = vunpack.c.l.b16 %v8109
    %v8334 = vunpack.c.l.b16 %v8110
    %v8335 = vunpack.c.l.b16 %v8111
    %v8336 = vunpack.c.l.b16 %v8112
    %v8337 = vunpack.c.l.b16 %v8113
    %v8338 = vunpack.c.l.b16 %v8114
    %v8339 = vunpack.c.l.b16 %v8115
    %v8340 = vunpack.c.l.b16 %v8116
    %v8341 = vunpack.c.l.b16 %v8117
    %v8342 = vunpack.c.l.b16 %v8118
    %v8343 = vunpack.c.l.b16 %v8119
    %v8344 = vunpack.c.l.b16 %v8120
    %v8345 = vunpack.c.l.b16 %v8121
    %v8346 = vunpack.c.l.b16 %v8122
    %v8347 = vunpack.c.l.b16 %v8123
    %v8348 = vunpack.c.l.b16 %v8124
    %v8349 = vunpack.c.l.b16 %v8125
    %v8350 = vunpack.c.l.b16 %v8126
    %v8351 = vunpack.c.l.b16 %v8127
    %v8352 = vunpack.c.l.b16 %v8128
    %v8353 = vunpack.c.l.b16 %v8129
    %v8354 = vunpack.c.l.b16 %v8130
    %v8355 = vunpack.c.l.b16 %v8131
    %v8356 = vunpack.c.l.b16 %v8132
    %v8357 = vunpack.c.l.b16 %v8133
    %v8358 = vunpack.c.l.b16 %v8134
    %v8359 = vunpack.c.l.b16 %v8135
    %v8360 = vunpack.c.l.b16 %v8136
    %v8361 = vunpack.c.l.b16 %v8137
    %v8362 = vunpack.c.l.b16 %v8138
    %v8363 = vunpack.c.l.b16 %v8139
    %v8364 = vunpack.c.l.b16 %v8140
    %v8365 = vunpack.c.l.b16 %v8141
    %v8366 = vunpack.c.l.b16 %v8142
    %v8367 = vunpack.c.l.b16 %v8143
    %v8368 = vunpack.c.l.b16 %v8144
    %v8369 = vunpack.c.l.b16 %v8145
    %v8370 = vunpack.c.l.b16 %v8146
    %v8371 = vunpack.c.l.b16 %v8147
    %v8372 = vunpack.c.l.b16 %v8148
    %v8373 = vunpack.c.l.b16 %v8149
    %v8374 = vunpack.c.l.b16 %v8150
    %v8375 = vunpack.c.l.b16 %v8151
    %v8376 = vunpack.c.l.b16 %v8152
    %v8377 = vunpack.c.l.b16 %v8153
    %v8378 = vpack.c.b16 %v8331, %v8330
    %v8379 = vpack.c.b16 %v8333, %v8332
    %v8380 = vpack.c.b16 %v8335, %v8334
    %v8381 = vpack.c.b16 %v8337, %v8336
    %v8382 = vpack.c.b16 %v8339, %v8338
    %v8383 = vpack.c.b16 %v8341, %v8340
    %v8384 = vpack.c.b16 %v8343, %v8342
    %v8385 = vpack.c.b16 %v8345, %v8344
    %v8386 = vpack.c.b16 %v8347, %v8346
    %v8387 = vpack.c.b16 %v8349, %v8348
    %v8388 = vpack.c.b16 %v8351, %v8350
    %v8389 = vpack.c.b16 %v8353, %v8352
    %v8390 = vpack.c.b16 %v8355, %v8354
    %v8391 = vpack.c.b16 %v8357, %v8356
    %v8392 = vpack.c.b16 %v8359, %v8358
    %v8393 = vpack.c.b16 %v8361, %v8360
    %v8394 = vpack.c.b16 %v8363, %v8362
    %v8395 = vpack.c.b16 %v8365, %v8364
    %v8396 = vpack.c.b16 %v8367, %v8366
    %v8397 = vpack.c.b16 %v8369, %v8368
    %v8398 = vpack.c.b16 %v8371, %v8370
    %v8399 = vpack.c.b16 %v8373, %v8372
    %v8400 = vpack.c.b16 %v8375, %v8374
    %v8401 = vpack.c.b16 %v8377, %v8376
    %8426 = vmatprep.subr.bf16.mxu0 0
    %8427 = vmatpush1.bf16.msra.mxu0 %v8378
    %8428 = vmatprep.subr.bf16.mxu0 0
    %8429 = vmatpush1.bf16.msra.mxu0 %v8379
    %8430 = vmatprep.subr.bf16.mxu0 0
    %8431 = vmatpush1.bf16.msra.mxu0 %v8380
    %8432 = vmatprep.subr.bf16.mxu0 0
    %8433 = vmatpush1.bf16.msra.mxu0 %v8381
    %8434 = vmatprep.subr.bf16.mxu0 0
    %8435 = vmatpush1.bf16.msra.mxu0 %v8382
    %8436 = vmatprep.subr.bf16.mxu0 0
    %8437 = vmatpush1.bf16.msra.mxu0 %v8383
    %8438 = vmatprep.subr.bf16.mxu0 0
    %8439 = vmatpush1.bf16.msra.mxu0 %v8384
    %8440 = vmatprep.subr.bf16.mxu0 0
    %8441 = vmatpush1.bf16.msra.mxu0 %v8385
    %8442 = vmatprep.subr.bf16.mxu0 0
    %8443 = vmatpush1.bf16.msra.mxu0 %v8386
    %8444 = vmatprep.subr.bf16.mxu0 0
    %8445 = vmatpush1.bf16.msra.mxu0 %v8387
    %8446 = vmatprep.subr.bf16.mxu0 0
    %8447 = vmatpush1.bf16.msra.mxu0 %v8388
    %8448 = vmatprep.subr.bf16.mxu0 0
    %8449 = vmatpush1.bf16.msra.mxu0 %v8389
    %8450 = vmatprep.subr.bf16.mxu0 0
    %8451 = vmatpush1.bf16.msra.mxu0 %v8390
    %8452 = vmatprep.subr.bf16.mxu0 0
    %8453 = vmatpush1.bf16.msra.mxu0 %v8391
    %8454 = vmatprep.subr.bf16.mxu0 0
    %8455 = vmatpush1.bf16.msra.mxu0 %v8392
    %8456 = vmatprep.subr.bf16.mxu0 0
    %8457 = vmatpush1.bf16.msra.mxu0 %v8393
    %8458 = vmatprep.mubr.bf16.mxu0 %v8235
    %8459 = vmatmul.mubr.bf16.gmra.mrb[0].mxu0 %v8234
    %v8460 = vpop.f32.mrb[0].mxu0
    %v8461 = vadd.f32 0.0, %v8460
    %v8462 = vpop.f32.mrb[0].mxu0
    %v8463 = vpop.f32.mrb[0].mxu0
    %v8464 = vadd.f32 0.0, %v8463
    %v8465 = vpop.f32.mrb[0].mxu0
    %8466 = vmatprep.mubr.bf16.mxu0 %v8238
    %8467 = vmatmul.mubr.bf16.gmra.mrb[0].mxu0 %v8237
    %v8468 = vpop.f32.mrb[0].mxu0
    %v8469 = vadd.f32 0.0, %v8468
    %v8470 = vpop.f32.mrb[0].mxu0
    %v8471 = vpop.f32.mrb[0].mxu0
    %v8472 = vadd.f32 0.0, %v8471
    %v8473 = vpop.f32.mrb[0].mxu0
    %8474 = vmatprep.mubr.bf16.mxu0 %v8241
    %8475 = vmatmul.mubr.bf16.gmra.mrb[0].mxu0 %v8240
    %v8476 = vpop.f32.mrb[0].mxu0
    %v8477 = vadd.f32 0.0, %v8476
    %v8478 = vpop.f32.mrb[0].mxu0
    %v8479 = vpop.f32.mrb[0].mxu0
    %v8480 = vadd.f32 0.0, %v8479
    %v8481 = vpop.f32.mrb[0].mxu0
    %8482 = vmatprep.mubr.bf16.mxu0 %v8244
    %8483 = vmatmul.mubr.bf16.gmra.mrb[0].mxu0 %v8243
    %v8484 = vpop.f32.mrb[0].mxu0
    %v8485 = vadd.f32 0.0, %v8484
    %v8486 = vpop.f32.mrb[0].mxu0
    %v8487 = vpop.f32.mrb[0].mxu0
    %v8488 = vadd.f32 0.0, %v8487
    %v8489 = vpop.f32.mrb[0].mxu0
    %8490 = vmatprep.mubr.bf16.mxu0 %v8247
    %8491 = vmatmul.mubr.bf16.gmra.mrb[0].mxu0 %v8246
    %v8492 = vpop.f32.mrb[0].mxu0
    %v8493 = vadd.f32 0.0, %v8492
    %v8494 = vpop.f32.mrb[0].mxu0
    %v8495 = vpop.f32.mrb[0].mxu0
    %v8496 = vadd.f32 0.0, %v8495
    %v8497 = vpop.f32.mrb[0].mxu0
    %8498 = vmatprep.mubr.bf16.mxu0 %v8250
    %8499 = vmatmul.mubr.bf16.gmra.mrb[0].mxu0 %v8249
    %v8500 = vpop.f32.mrb[0].mxu0
    %v8501 = vadd.f32 0.0, %v8500
    %v8502 = vpop.f32.mrb[0].mxu0
    %v8503 = vpop.f32.mrb[0].mxu0
    %v8504 = vadd.f32 0.0, %v8503
    %v8505 = vpop.f32.mrb[0].mxu0
    %8506 = vmatprep.mubr.bf16.mxu0 %v8253
    %8507 = vmatmul.mubr.bf16.gmra.mrb[0].mxu0 %v8252
    %v8508 = vpop.f32.mrb[0].mxu0
    %v8509 = vadd.f32 0.0, %v8508
    %v8510 = vpop.f32.mrb[0].mxu0
    %v8511 = vpop.f32.mrb[0].mxu0
    %v8512 = vadd.f32 0.0, %v8511
    %v8513 = vpop.f32.mrb[0].mxu0
    %8514 = vmatprep.mubr.bf16.mxu0 %v8256
    %8515 = vmatmul.mubr.bf16.gmra.mrb[0].mxu0 %v8255
    %v8516 = vpop.f32.mrb[0].mxu0
    %v8517 = vadd.f32 0.0, %v8516
    %v8518 = vpop.f32.mrb[0].mxu0
    %v8519 = vpop.f32.mrb[0].mxu0
    %v8520 = vadd.f32 0.0, %v8519
    %v8521 = vpop.f32.mrb[0].mxu0
    %8522 = vdwg.mxu0
    %8523 = vmatprep.subr.bf16.mxu0 0
    %8524 = vmatpush1.bf16.msra.mxu0 %v8394
    %8525 = vmatprep.subr.bf16.mxu0 0
    %8526 = vmatpush1.bf16.msra.mxu0 %v8395
    %8527 = vmatprep.subr.bf16.mxu0 0
    %8528 = vmatpush1.bf16.msra.mxu0 %v8396
    %8529 = vmatprep.subr.bf16.mxu0 0
    %8530 = vmatpush1.bf16.msra.mxu0 %v8397
    %8531 = vmatprep.subr.bf16.mxu0 0
    %8532 = vmatpush1.bf16.msra.mxu0 %v8398
    %8533 = vmatprep.subr.bf16.mxu0 0
    %8534 = vmatpush1.bf16.msra.mxu0 %v8399
    %8535 = vmatprep.subr.bf16.mxu0 0
    %8536 = vmatpush1.bf16.msra.mxu0 %v8400
    %8537 = vmatprep.subr.bf16.mxu0 0
    %8538 = vmatpush1.bf16.msra.mxu0 %v8401
    %8539 = vmatprep.subr.bf16.mxu0 0
    %8540 = vmatpush1.bf16.msra.mxu0 0
    %8541 = vmatprep.subr.bf16.mxu0 0
    %8542 = vmatpush1.bf16.msra.mxu0 0
    %8543 = vmatprep.subr.bf16.mxu0 0
    %8544 = vmatpush1.bf16.msra.mxu0 0
    %8545 = vmatprep.subr.bf16.mxu0 0
    %8546 = vmatpush1.bf16.msra.mxu0 0
    %8547 = vmatprep.subr.bf16.mxu0 0
    %8548 = vmatpush1.bf16.msra.mxu0 0
    %8549 = vmatprep.subr.bf16.mxu0 0
    %8550 = vmatpush1.bf16.msra.mxu0 0
    %8551 = vmatprep.subr.bf16.mxu0 0
    %8552 = vmatpush1.bf16.msra.mxu0 0
    %8553 = vmatprep.subr.bf16.mxu0 0
    %8554 = vmatpush1.bf16.msra.mxu0 0
    %8555 = vmatprep.mubr.bf16.mxu0 0
    %8556 = vmatmul.mubr.bf16.gmra.mrb[0].mxu0 %v8236
    %v8557 = vpop.f32.mrb[0].mxu0
    %v8558 = vadd.f32 %v8461, %v8557
    %v8559 = vpop.f32.mrb[0].mxu0
    %v8560 = vpop.f32.mrb[0].mxu0
    %v8561 = vadd.f32 %v8464, %v8560
    %v8562 = vpop.f32.mrb[0].mxu0
    %8563 = vmatprep.mubr.bf16.mxu0 0
    %8564 = vmatmul.mubr.bf16.gmra.mrb[0].mxu0 %v8239
    %v8565 = vpop.f32.mrb[0].mxu0
    %v8566 = vadd.f32 %v8469, %v8565
    %v8567 = vpop.f32.mrb[0].mxu0
    %v8568 = vpop.f32.mrb[0].mxu0
    %v8569 = vadd.f32 %v8472, %v8568
    %v8570 = vpop.f32.mrb[0].mxu0
    %8571 = vmatprep.mubr.bf16.mxu0 0
    %8572 = vmatmul.mubr.bf16.gmra.mrb[0].mxu0 %v8242
    %v8573 = vpop.f32.mrb[0].mxu0
    %v8574 = vadd.f32 %v8477, %v8573
    %v8575 = vpop.f32.mrb[0].mxu0
    %v8576 = vpop.f32.mrb[0].mxu0
    %v8577 = vadd.f32 %v8480, %v8576
    %v8578 = vpop.f32.mrb[0].mxu0
    %8579 = vmatprep.mubr.bf16.mxu0 0
    %8580 = vmatmul.mubr.bf16.gmra.mrb[0].mxu0 %v8245
    %v8581 = vpop.f32.mrb[0].mxu0
    %v8582 = vadd.f32 %v8485, %v8581
    %v8583 = vpop.f32.mrb[0].mxu0
    %v8584 = vpop.f32.mrb[0].mxu0
    %v8585 = vadd.f32 %v8488, %v8584
    %v8586 = vpop.f32.mrb[0].mxu0
    %8587 = vmatprep.mubr.bf16.mxu0 0
    %8588 = vmatmul.mubr.bf16.gmra.mrb[0].mxu0 %v8248
    %v8589 = vpop.f32.mrb[0].mxu0
    %v8590 = vadd.f32 %v8493, %v8589
    %v8591 = vpop.f32.mrb[0].mxu0
    %v8592 = vpop.f32.mrb[0].mxu0
    %v8593 = vadd.f32 %v8496, %v8592
    %v8594 = vpop.f32.mrb[0].mxu0
    %8595 = vmatprep.mubr.bf16.mxu0 0
    %8596 = vmatmul.mubr.bf16.gmra.mrb[0].mxu0 %v8251
    %v8597 = vpop.f32.mrb[0].mxu0
    %v8598 = vadd.f32 %v8501, %v8597
    %v8599 = vpop.f32.mrb[0].mxu0
    %v8600 = vpop.f32.mrb[0].mxu0
    %v8601 = vadd.f32 %v8504, %v8600
    %v8602 = vpop.f32.mrb[0].mxu0
    %8603 = vmatprep.mubr.bf16.mxu0 0
    %8604 = vmatmul.mubr.bf16.gmra.mrb[0].mxu0 %v8254
    %v8605 = vpop.f32.mrb[0].mxu0
    %v8606 = vadd.f32 %v8509, %v8605
    %v8607 = vpop.f32.mrb[0].mxu0
    %v8608 = vpop.f32.mrb[0].mxu0
    %v8609 = vadd.f32 %v8512, %v8608
    %v8610 = vpop.f32.mrb[0].mxu0
    %8611 = vmatprep.mubr.bf16.mxu0 0
    %8612 = vmatmul.mubr.bf16.gmra.mrb[0].mxu0 %v8257
    %v8613 = vpop.f32.mrb[0].mxu0
    %v8614 = vadd.f32 %v8517, %v8613
    %v8615 = vpop.f32.mrb[0].mxu0
    %v8616 = vpop.f32.mrb[0].mxu0
    %v8617 = vadd.f32 %v8520, %v8616
    %v8618 = vpop.f32.mrb[0].mxu0
    %8619 = vdwg.mxu0
    %v8620 = vld [vmem:[#allocation4] sm:$0xff]
    %v8621 = vld [vmem:[#allocation4 + $0x8] sm:$0xff]
    %v8622 = vld [vmem:[#allocation4 + $0x10] sm:$0xff]
    %v8623 = vld [vmem:[#allocation4 + $0x18] sm:$0xff]
    %v8624 = vld [vmem:[#allocation4 + $0x20] sm:$0xff]
    %v8625 = vld [vmem:[#allocation4 + $0x28] sm:$0xff]
    %v8626 = vld [vmem:[#allocation4 + $0x30] sm:$0xff]
    %v8627 = vld [vmem:[#allocation4 + $0x38] sm:$0xff]
    %v8628 = vld [vmem:[#allocation4 + $0x40] sm:$0xff]
    %v8629 = vld [vmem:[#allocation4 + $0x48] sm:$0xff]
    %v8630 = vld [vmem:[#allocation4 + $0x50] sm:$0xff]
    %v8631 = vld [vmem:[#allocation4 + $0x58] sm:$0xff]
    %v8632 = vld [vmem:[#allocation4 + $0x60] sm:$0xff]
    %v8633 = vld [vmem:[#allocation4 + $0x68] sm:$0xff]
    %v8634 = vld [vmem:[#allocation4 + $0x70] sm:$0xff]
    %v8635 = vld [vmem:[#allocation4 + $0x78] sm:$0xff]
    %v8636 = vadd.f32 %v8620, %v8558
    %v8637 = vadd.f32 %v8621, %v8561
    %v8638 = vadd.f32 %v8622, %v8566
    %v8639 = vadd.f32 %v8623, %v8569
    %v8640 = vadd.f32 %v8624, %v8574
    %v8641 = vadd.f32 %v8625, %v8577
    %v8642 = vadd.f32 %v8626, %v8582
    %v8643 = vadd.f32 %v8627, %v8585
    %v8644 = vadd.f32 %v8628, %v8590
    %v8645 = vadd.f32 %v8629, %v8593
    %v8646 = vadd.f32 %v8630, %v8598
    %v8647 = vadd.f32 %v8631, %v8601
    %v8648 = vadd.f32 %v8632, %v8606
    %v8649 = vadd.f32 %v8633, %v8609
    %v8650 = vadd.f32 %v8634, %v8614
    %v8651 = vadd.f32 %v8635, %v8617
    %8652 = vst [vmem:[#allocation4] sm:$0xff] %v8636
    %8653 = vst [vmem:[#allocation4 + $0x8] sm:$0xff] %v8637
    %8654 = vst [vmem:[#allocation4 + $0x10] sm:$0xff] %v8638
    %8655 = vst [vmem:[#allocation4 + $0x18] sm:$0xff] %v8639
    %8656 = vst [vmem:[#allocation4 + $0x20] sm:$0xff] %v8640
    %8657 = vst [vmem:[#allocation4 + $0x28] sm:$0xff] %v8641
    %8658 = vst [vmem:[#allocation4 + $0x30] sm:$0xff] %v8642
    %8659 = vst [vmem:[#allocation4 + $0x38] sm:$0xff] %v8643
    %8660 = vst [vmem:[#allocation4 + $0x40] sm:$0xff] %v8644
    %8661 = vst [vmem:[#allocation4 + $0x48] sm:$0xff] %v8645
    %8662 = vst [vmem:[#allocation4 + $0x50] sm:$0xff] %v8646
    %8663 = vst [vmem:[#allocation4 + $0x58] sm:$0xff] %v8647
    %8664 = vst [vmem:[#allocation4 + $0x60] sm:$0xff] %v8648
    %8665 = vst [vmem:[#allocation4 + $0x68] sm:$0xff] %v8649
    %8666 = vst [vmem:[#allocation4 + $0x70] sm:$0xff] %v8650
    %8667 = vst [vmem:[#allocation4 + $0x78] sm:$0xff] %v8651
    %s8668 = scalar_lea.vmem [#allocation3], 24
    %v8669 = vld [vmem:[%s8668] sm:$0xff]
    %v8670 = vld [vmem:[%s8668 + $0x8] sm:$0xf]
    %v8671 = vld [vmem:[%s8668 + $0xc] sm:$0xff]
    %v8672 = vld [vmem:[%s8668 + $0x14] sm:$0xf]
    %v8673 = vld [vmem:[%s8668 + $0x18] sm:$0xff]
    %v8674 = vld [vmem:[%s8668 + $0x20] sm:$0xf]
    %v8675 = vld [vmem:[%s8668 + $0x24] sm:$0xff]
    %v8676 = vld [vmem:[%s8668 + $0x2c] sm:$0xf]
    %v8677 = vld [vmem:[%s8668 + $0x30] sm:$0xff]
    %v8678 = vld [vmem:[%s8668 + $0x38] sm:$0xf]
    %v8679 = vld [vmem:[%s8668 + $0x3c] sm:$0xff]
    %v8680 = vld [vmem:[%s8668 + $0x44] sm:$0xf]
    %v8681 = vld [vmem:[%s8668 + $0x48] sm:$0xff]
    %v8682 = vld [vmem:[%s8668 + $0x50] sm:$0xf]
    %v8683 = vld [vmem:[%s8668 + $0x54] sm:$0xff]
    %v8684 = vld [vmem:[%s8668 + $0x5c] sm:$0xf]
    %v8685 = vld [vmem:[%s8668 + $0x78] sm:$0xff]
    %v8686 = vld [vmem:[%s8668 + $0x80] sm:$0xf]
    %v8687 = vld [vmem:[%s8668 + $0x84] sm:$0xff]
    %v8688 = vld [vmem:[%s8668 + $0x8c] sm:$0xf]
    %v8689 = vld [vmem:[%s8668 + $0x90] sm:$0xff]
    %v8690 = vld [vmem:[%s8668 + $0x98] sm:$0xf]
    %v8691 = vld [vmem:[%s8668 + $0x9c] sm:$0xff]
    %v8692 = vld [vmem:[%s8668 + $0xa4] sm:$0xf]
    %v8693 = vld [vmem:[%s8668 + $0xa8] sm:$0xff]
    %v8694 = vld [vmem:[%s8668 + $0xb0] sm:$0xf]
    %v8695 = vld [vmem:[%s8668 + $0xb4] sm:$0xff]
    %v8696 = vld [vmem:[%s8668 + $0xbc] sm:$0xf]
    %v8697 = vld [vmem:[%s8668 + $0xc0] sm:$0xff]
    %v8698 = vld [vmem:[%s8668 + $0xc8] sm:$0xf]
    %v8699 = vld [vmem:[%s8668 + $0xcc] sm:$0xff]
    %v8700 = vld [vmem:[%s8668 + $0xd4] sm:$0xf]
    %s8701 = scalar_lea.vmem [#allocation5], 384
    %v8702 = vld [vmem:[%s8701] sm:$0xf]
    %v8703 = vld [vmem:[%s8701 + $0x4] sm:$0xf]
    %v8704 = vld [vmem:[%s8701 + $0x8] sm:$0xf]
    %v8705 = vld [vmem:[%s8701 + $0xc] sm:$0xf]
    %v8706 = vld [vmem:[%s8701 + $0x10] sm:$0xf]
    %v8707 = vld [vmem:[%s8701 + $0x14] sm:$0xf]
    %v8708 = vld [vmem:[%s8701 + $0x18] sm:$0xf]
    %v8709 = vld [vmem:[%s8701 + $0x1c] sm:$0xf]
    %v8710 = vld [vmem:[%s8701 + $0x20] sm:$0xf]
    %v8711 = vld [vmem:[%s8701 + $0x24] sm:$0xf]
    %v8712 = vld [vmem:[%s8701 + $0x28] sm:$0xf]
    %v8713 = vld [vmem:[%s8701 + $0x2c] sm:$0xf]
    %v8714 = vld [vmem:[%s8701 + $0x30] sm:$0xf]
    %v8715 = vld [vmem:[%s8701 + $0x34] sm:$0xf]
    %v8716 = vld [vmem:[%s8701 + $0x38] sm:$0xf]
    %v8717 = vld [vmem:[%s8701 + $0x3c] sm:$0xf]
    %v8718 = vld [vmem:[%s8701 + $0x40] sm:$0xf]
    %v8719 = vld [vmem:[%s8701 + $0x44] sm:$0xf]
    %v8720 = vld [vmem:[%s8701 + $0x48] sm:$0xf]
    %v8721 = vld [vmem:[%s8701 + $0x4c] sm:$0xf]
    %v8722 = vld [vmem:[%s8701 + $0x50] sm:$0xf]
    %v8723 = vld [vmem:[%s8701 + $0x54] sm:$0xf]
    %v8724 = vld [vmem:[%s8701 + $0x58] sm:$0xf]
    %v8725 = vld [vmem:[%s8701 + $0x5c] sm:$0xf]
    %v8726 = vld [vmem:[%s8701 + $0x60] sm:$0xf]
    %v8727 = vld [vmem:[%s8701 + $0x64] sm:$0xf]
    %v8728 = vld [vmem:[%s8701 + $0x68] sm:$0xf]
    %v8729 = vld [vmem:[%s8701 + $0x6c] sm:$0xf]
    %v8730 = vld [vmem:[%s8701 + $0x70] sm:$0xf]
    %v8731 = vld [vmem:[%s8701 + $0x74] sm:$0xf]
    %v8732 = vld [vmem:[%s8701 + $0x78] sm:$0xf]
    %v8733 = vld [vmem:[%s8701 + $0x7c] sm:$0xf]
    %v8734 = vld [vmem:[%s8701 + $0x80] sm:$0xf]
    %v8735 = vld [vmem:[%s8701 + $0x84] sm:$0xf]
    %v8736 = vld [vmem:[%s8701 + $0x88] sm:$0xf]
    %v8737 = vld [vmem:[%s8701 + $0x8c] sm:$0xf]
    %v8738 = vld [vmem:[%s8701 + $0x90] sm:$0xf]
    %v8739 = vld [vmem:[%s8701 + $0x94] sm:$0xf]
    %v8740 = vld [vmem:[%s8701 + $0x98] sm:$0xf]
    %v8741 = vld [vmem:[%s8701 + $0x9c] sm:$0xf]
    %v8742 = vld [vmem:[%s8701 + $0xa0] sm:$0xf]
    %v8743 = vld [vmem:[%s8701 + $0xa4] sm:$0xf]
    %v8744 = vld [vmem:[%s8701 + $0xa8] sm:$0xf]
    %v8745 = vld [vmem:[%s8701 + $0xac] sm:$0xf]
    %v8746 = vld [vmem:[%s8701 + $0xb0] sm:$0xf]
    %v8747 = vld [vmem:[%s8701 + $0xb4] sm:$0xf]
    %v8748 = vld [vmem:[%s8701 + $0xb8] sm:$0xf]
    %v8749 = vld [vmem:[%s8701 + $0xbc] sm:$0xf]
    %v8782 = vunpack.c.l.b16 %v8669
    %v8783 = vunpack.c.h.b16 %v8669
    %v8784 = vunpack.c.l.b16 %v8670
    %v8785 = vunpack.c.l.b16 %v8671
    %v8786 = vunpack.c.h.b16 %v8671
    %v8787 = vunpack.c.l.b16 %v8672
    %v8788 = vunpack.c.l.b16 %v8673
    %v8789 = vunpack.c.h.b16 %v8673
    %v8790 = vunpack.c.l.b16 %v8674
    %v8791 = vunpack.c.l.b16 %v8675
    %v8792 = vunpack.c.h.b16 %v8675
    %v8793 = vunpack.c.l.b16 %v8676
    %v8794 = vunpack.c.l.b16 %v8677
    %v8795 = vunpack.c.h.b16 %v8677
    %v8796 = vunpack.c.l.b16 %v8678
    %v8797 = vunpack.c.l.b16 %v8679
    %v8798 = vunpack.c.h.b16 %v8679
    %v8799 = vunpack.c.l.b16 %v8680
    %v8800 = vunpack.c.l.b16 %v8681
    %v8801 = vunpack.c.h.b16 %v8681
    %v8802 = vunpack.c.l.b16 %v8682
    %v8803 = vunpack.c.l.b16 %v8683
    %v8804 = vunpack.c.h.b16 %v8683
    %v8805 = vunpack.c.l.b16 %v8684
    %v8806 = vunpack.c.l.b16 %v8685
    %v8807 = vunpack.c.h.b16 %v8685
    %v8808 = vunpack.c.l.b16 %v8686
    %v8809 = vunpack.c.l.b16 %v8687
    %v8810 = vunpack.c.h.b16 %v8687
    %v8811 = vunpack.c.l.b16 %v8688
    %v8812 = vunpack.c.l.b16 %v8689
    %v8813 = vunpack.c.h.b16 %v8689
    %v8814 = vunpack.c.l.b16 %v8690
    %v8815 = vunpack.c.l.b16 %v8691
    %v8816 = vunpack.c.h.b16 %v8691
    %v8817 = vunpack.c.l.b16 %v8692
    %v8818 = vunpack.c.l.b16 %v8693
    %v8819 = vunpack.c.h.b16 %v8693
    %v8820 = vunpack.c.l.b16 %v8694
    %v8821 = vunpack.c.l.b16 %v8695
    %v8822 = vunpack.c.h.b16 %v8695
    %v8823 = vunpack.c.l.b16 %v8696
    %v8824 = vunpack.c.l.b16 %v8697
    %v8825 = vunpack.c.h.b16 %v8697
    %v8826 = vunpack.c.l.b16 %v8698
    %v8827 = vunpack.c.l.b16 %v8699
    %v8828 = vunpack.c.h.b16 %v8699
    %v8829 = vunpack.c.l.b16 %v8700
    %v8830 = vpack.c.b16 %v8785, %v8782
    %v8831 = vpack.c.b16 %v8786, %v8783
    %v8832 = vpack.c.b16 %v8787, %v8784
    %v8833 = vpack.c.b16 %v8791, %v8788
    %v8834 = vpack.c.b16 %v8792, %v8789
    %v8835 = vpack.c.b16 %v8793, %v8790
    %v8836 = vpack.c.b16 %v8797, %v8794
    %v8837 = vpack.c.b16 %v8798, %v8795
    %v8838 = vpack.c.b16 %v8799, %v8796
    %v8839 = vpack.c.b16 %v8803, %v8800
    %v8840 = vpack.c.b16 %v8804, %v8801
    %v8841 = vpack.c.b16 %v8805, %v8802
    %v8842 = vpack.c.b16 %v8809, %v8806
    %v8843 = vpack.c.b16 %v8810, %v8807
    %v8844 = vpack.c.b16 %v8811, %v8808
    %v8845 = vpack.c.b16 %v8815, %v8812
    %v8846 = vpack.c.b16 %v8816, %v8813
    %v8847 = vpack.c.b16 %v8817, %v8814
    %v8848 = vpack.c.b16 %v8821, %v8818
    %v8849 = vpack.c.b16 %v8822, %v8819
    %v8850 = vpack.c.b16 %v8823, %v8820
    %v8851 = vpack.c.b16 %v8827, %v8824
    %v8852 = vpack.c.b16 %v8828, %v8825
    %v8853 = vpack.c.b16 %v8829, %v8826
    %v8926 = vunpack.c.l.b16 %v8702
    %v8927 = vunpack.c.l.b16 %v8703
    %v8928 = vunpack.c.l.b16 %v8704
    %v8929 = vunpack.c.l.b16 %v8705
    %v8930 = vunpack.c.l.b16 %v8706
    %v8931 = vunpack.c.l.b16 %v8707
    %v8932 = vunpack.c.l.b16 %v8708
    %v8933 = vunpack.c.l.b16 %v8709
    %v8934 = vunpack.c.l.b16 %v8710
    %v8935 = vunpack.c.l.b16 %v8711
    %v8936 = vunpack.c.l.b16 %v8712
    %v8937 = vunpack.c.l.b16 %v8713
    %v8938 = vunpack.c.l.b16 %v8714
    %v8939 = vunpack.c.l.b16 %v8715
    %v8940 = vunpack.c.l.b16 %v8716
    %v8941 = vunpack.c.l.b16 %v8717
    %v8942 = vunpack.c.l.b16 %v8718
    %v8943 = vunpack.c.l.b16 %v8719
    %v8944 = vunpack.c.l.b16 %v8720
    %v8945 = vunpack.c.l.b16 %v8721
    %v8946 = vunpack.c.l.b16 %v8722
    %v8947 = vunpack.c.l.b16 %v8723
    %v8948 = vunpack.c.l.b16 %v8724
    %v8949 = vunpack.c.l.b16 %v8725
    %v8950 = vunpack.c.l.b16 %v8726
    %v8951 = vunpack.c.l.b16 %v8727
    %v8952 = vunpack.c.l.b16 %v8728
    %v8953 = vunpack.c.l.b16 %v8729
    %v8954 = vunpack.c.l.b16 %v8730
    %v8955 = vunpack.c.l.b16 %v8731
    %v8956 = vunpack.c.l.b16 %v8732
    %v8957 = vunpack.c.l.b16 %v8733
    %v8958 = vunpack.c.l.b16 %v8734
    %v8959 = vunpack.c.l.b16 %v8735
    %v8960 = vunpack.c.l.b16 %v8736
    %v8961 = vunpack.c.l.b16 %v8737
    %v8962 = vunpack.c.l.b16 %v8738
    %v8963 = vunpack.c.l.b16 %v8739
    %v8964 = vunpack.c.l.b16 %v8740
    %v8965 = vunpack.c.l.b16 %v8741
    %v8966 = vunpack.c.l.b16 %v8742
    %v8967 = vunpack.c.l.b16 %v8743
    %v8968 = vunpack.c.l.b16 %v8744
    %v8969 = vunpack.c.l.b16 %v8745
    %v8970 = vunpack.c.l.b16 %v8746
    %v8971 = vunpack.c.l.b16 %v8747
    %v8972 = vunpack.c.l.b16 %v8748
    %v8973 = vunpack.c.l.b16 %v8749
    %v8974 = vpack.c.b16 %v8927, %v8926
    %v8975 = vpack.c.b16 %v8929, %v8928
    %v8976 = vpack.c.b16 %v8931, %v8930
    %v8977 = vpack.c.b16 %v8933, %v8932
    %v8978 = vpack.c.b16 %v8935, %v8934
    %v8979 = vpack.c.b16 %v8937, %v8936
    %v8980 = vpack.c.b16 %v8939, %v8938
    %v8981 = vpack.c.b16 %v8941, %v8940
    %v8982 = vpack.c.b16 %v8943, %v8942
    %v8983 = vpack.c.b16 %v8945, %v8944
    %v8984 = vpack.c.b16 %v8947, %v8946
    %v8985 = vpack.c.b16 %v8949, %v8948
    %v8986 = vpack.c.b16 %v8951, %v8950
    %v8987 = vpack.c.b16 %v8953, %v8952
    %v8988 = vpack.c.b16 %v8955, %v8954
    %v8989 = vpack.c.b16 %v8957, %v8956
    %v8990 = vpack.c.b16 %v8959, %v8958
    %v8991 = vpack.c.b16 %v8961, %v8960
    %v8992 = vpack.c.b16 %v8963, %v8962
    %v8993 = vpack.c.b16 %v8965, %v8964
    %v8994 = vpack.c.b16 %v8967, %v8966
    %v8995 = vpack.c.b16 %v8969, %v8968
    %v8996 = vpack.c.b16 %v8971, %v8970
    %v8997 = vpack.c.b16 %v8973, %v8972
    %9022 = vmatprep.subr.bf16.mxu0 0
    %9023 = vmatpush1.bf16.msra.mxu0 %v8974
    %9024 = vmatprep.subr.bf16.mxu0 0
    %9025 = vmatpush1.bf16.msra.mxu0 %v8975
    %9026 = vmatprep.subr.bf16.mxu0 0
    %9027 = vmatpush1.bf16.msra.mxu0 %v8976
    %9028 = vmatprep.subr.bf16.mxu0 0
    %9029 = vmatpush1.bf16.msra.mxu0 %v8977
    %9030 = vmatprep.subr.bf16.mxu0 0
    %9031 = vmatpush1.bf16.msra.mxu0 %v8978
    %9032 = vmatprep.subr.bf16.mxu0 0
    %9033 = vmatpush1.bf16.msra.mxu0 %v8979
    %9034 = vmatprep.subr.bf16.mxu0 0
    %9035 = vmatpush1.bf16.msra.mxu0 %v8980
    %9036 = vmatprep.subr.bf16.mxu0 0
    %9037 = vmatpush1.bf16.msra.mxu0 %v8981
    %9038 = vmatprep.subr.bf16.mxu0 0
    %9039 = vmatpush1.bf16.msra.mxu0 %v8982
    %9040 = vmatprep.subr.bf16.mxu0 0
    %9041 = vmatpush1.bf16.msra.mxu0 %v8983
    %9042 = vmatprep.subr.bf16.mxu0 0
    %9043 = vmatpush1.bf16.msra.mxu0 %v8984
    %9044 = vmatprep.subr.bf16.mxu0 0
    %9045 = vmatpush1.bf16.msra.mxu0 %v8985
    %9046 = vmatprep.subr.bf16.mxu0 0
    %9047 = vmatpush1.bf16.msra.mxu0 %v8986
    %9048 = vmatprep.subr.bf16.mxu0 0
    %9049 = vmatpush1.bf16.msra.mxu0 %v8987
    %9050 = vmatprep.subr.bf16.mxu0 0
    %9051 = vmatpush1.bf16.msra.mxu0 %v8988
    %9052 = vmatprep.subr.bf16.mxu0 0
    %9053 = vmatpush1.bf16.msra.mxu0 %v8989
    %9054 = vmatprep.mubr.bf16.mxu0 %v8831
    %9055 = vmatmul.mubr.bf16.gmra.mrb[0].mxu0 %v8830
    %v9056 = vpop.f32.mrb[0].mxu0
    %v9057 = vadd.f32 0.0, %v9056
    %v9058 = vpop.f32.mrb[0].mxu0
    %v9059 = vpop.f32.mrb[0].mxu0
    %v9060 = vadd.f32 0.0, %v9059
    %v9061 = vpop.f32.mrb[0].mxu0
    %9062 = vmatprep.mubr.bf16.mxu0 %v8834
    %9063 = vmatmul.mubr.bf16.gmra.mrb[0].mxu0 %v8833
    %v9064 = vpop.f32.mrb[0].mxu0
    %v9065 = vadd.f32 0.0, %v9064
    %v9066 = vpop.f32.mrb[0].mxu0
    %v9067 = vpop.f32.mrb[0].mxu0
    %v9068 = vadd.f32 0.0, %v9067
    %v9069 = vpop.f32.mrb[0].mxu0
    %9070 = vmatprep.mubr.bf16.mxu0 %v8837
    %9071 = vmatmul.mubr.bf16.gmra.mrb[0].mxu0 %v8836
    %v9072 = vpop.f32.mrb[0].mxu0
    %v9073 = vadd.f32 0.0, %v9072
    %v9074 = vpop.f32.mrb[0].mxu0
    %v9075 = vpop.f32.mrb[0].mxu0
    %v9076 = vadd.f32 0.0, %v9075
    %v9077 = vpop.f32.mrb[0].mxu0
    %9078 = vmatprep.mubr.bf16.mxu0 %v8840
    %9079 = vmatmul.mubr.bf16.gmra.mrb[0].mxu0 %v8839
    %v9080 = vpop.f32.mrb[0].mxu0
    %v9081 = vadd.f32 0.0, %v9080
    %v9082 = vpop.f32.mrb[0].mxu0
    %v9083 = vpop.f32.mrb[0].mxu0
    %v9084 = vadd.f32 0.0, %v9083
    %v9085 = vpop.f32.mrb[0].mxu0
    %9086 = vmatprep.mubr.bf16.mxu0 %v8843
    %9087 = vmatmul.mubr.bf16.gmra.mrb[0].mxu0 %v8842
    %v9088 = vpop.f32.mrb[0].mxu0
    %v9089 = vadd.f32 0.0, %v9088
    %v9090 = vpop.f32.mrb[0].mxu0
    %v9091 = vpop.f32.mrb[0].mxu0
    %v9092 = vadd.f32 0.0, %v9091
    %v9093 = vpop.f32.mrb[0].mxu0
    %9094 = vmatprep.mubr.bf16.mxu0 %v8846
    %9095 = vmatmul.mubr.bf16.gmra.mrb[0].mxu0 %v8845
    %v9096 = vpop.f32.mrb[0].mxu0
    %v9097 = vadd.f32 0.0, %v9096
    %v9098 = vpop.f32.mrb[0].mxu0
    %v9099 = vpop.f32.mrb[0].mxu0
    %v9100 = vadd.f32 0.0, %v9099
    %v9101 = vpop.f32.mrb[0].mxu0
    %9102 = vmatprep.mubr.bf16.mxu0 %v8849
    %9103 = vmatmul.mubr.bf16.gmra.mrb[0].mxu0 %v8848
    %v9104 = vpop.f32.mrb[0].mxu0
    %v9105 = vadd.f32 0.0, %v9104
    %v9106 = vpop.f32.mrb[0].mxu0
    %v9107 = vpop.f32.mrb[0].mxu0
    %v9108 = vadd.f32 0.0, %v9107
    %v9109 = vpop.f32.mrb[0].mxu0
    %9110 = vmatprep.mubr.bf16.mxu0 %v8852
    %9111 = vmatmul.mubr.bf16.gmra.mrb[0].mxu0 %v8851
    %v9112 = vpop.f32.mrb[0].mxu0
    %v9113 = vadd.f32 0.0, %v9112
    %v9114 = vpop.f32.mrb[0].mxu0
    %v9115 = vpop.f32.mrb[0].mxu0
    %v9116 = vadd.f32 0.0, %v9115
    %v9117 = vpop.f32.mrb[0].mxu0
    %9118 = vdwg.mxu0
    %9119 = vmatprep.subr.bf16.mxu0 0
    %9120 = vmatpush1.bf16.msra.mxu0 %v8990
    %9121 = vmatprep.subr.bf16.mxu0 0
    %9122 = vmatpush1.bf16.msra.mxu0 %v8991
    %9123 = vmatprep.subr.bf16.mxu0 0
    %9124 = vmatpush1.bf16.msra.mxu0 %v8992
    %9125 = vmatprep.subr.bf16.mxu0 0
    %9126 = vmatpush1.bf16.msra.mxu0 %v8993
    %9127 = vmatprep.subr.bf16.mxu0 0
    %9128 = vmatpush1.bf16.msra.mxu0 %v8994
    %9129 = vmatprep.subr.bf16.mxu0 0
    %9130 = vmatpush1.bf16.msra.mxu0 %v8995
    %9131 = vmatprep.subr.bf16.mxu0 0
    %9132 = vmatpush1.bf16.msra.mxu0 %v8996
    %9133 = vmatprep.subr.bf16.mxu0 0
    %9134 = vmatpush1.bf16.msra.mxu0 %v8997
    %9135 = vmatprep.subr.bf16.mxu0 0
    %9136 = vmatpush1.bf16.msra.mxu0 0
    %9137 = vmatprep.subr.bf16.mxu0 0
    %9138 = vmatpush1.bf16.msra.mxu0 0
    %9139 = vmatprep.subr.bf16.mxu0 0
    %9140 = vmatpush1.bf16.msra.mxu0 0
    %9141 = vmatprep.subr.bf16.mxu0 0
    %9142 = vmatpush1.bf16.msra.mxu0 0
    %9143 = vmatprep.subr.bf16.mxu0 0
    %9144 = vmatpush1.bf16.msra.mxu0 0
    %9145 = vmatprep.subr.bf16.mxu0 0
    %9146 = vmatpush1.bf16.msra.mxu0 0
    %9147 = vmatprep.subr.bf16.mxu0 0
    %9148 = vmatpush1.bf16.msra.mxu0 0
    %9149 = vmatprep.subr.bf16.mxu0 0
    %9150 = vmatpush1.bf16.msra.mxu0 0
    %9151 = vmatprep.mubr.bf16.mxu0 0
    %9152 = vmatmul.mubr.bf16.gmra.mrb[0].mxu0 %v8832
    %v9153 = vpop.f32.mrb[0].mxu0
    %v9154 = vadd.f32 %v9057, %v9153
    %v9155 = vpop.f32.mrb[0].mxu0
    %v9156 = vpop.f32.mrb[0].mxu0
    %v9157 = vadd.f32 %v9060, %v9156
    %v9158 = vpop.f32.mrb[0].mxu0
    %9159 = vmatprep.mubr.bf16.mxu0 0
    %9160 = vmatmul.mubr.bf16.gmra.mrb[0].mxu0 %v8835
    %v9161 = vpop.f32.mrb[0].mxu0
    %v9162 = vadd.f32 %v9065, %v9161
    %v9163 = vpop.f32.mrb[0].mxu0
    %v9164 = vpop.f32.mrb[0].mxu0
    %v9165 = vadd.f32 %v9068, %v9164
    %v9166 = vpop.f32.mrb[0].mxu0
    %9167 = vmatprep.mubr.bf16.mxu0 0
    %9168 = vmatmul.mubr.bf16.gmra.mrb[0].mxu0 %v8838
    %v9169 = vpop.f32.mrb[0].mxu0
    %v9170 = vadd.f32 %v9073, %v9169
    %v9171 = vpop.f32.mrb[0].mxu0
    %v9172 = vpop.f32.mrb[0].mxu0
    %v9173 = vadd.f32 %v9076, %v9172
    %v9174 = vpop.f32.mrb[0].mxu0
    %9175 = vmatprep.mubr.bf16.mxu0 0
    %9176 = vmatmul.mubr.bf16.gmra.mrb[0].mxu0 %v8841
    %v9177 = vpop.f32.mrb[0].mxu0
    %v9178 = vadd.f32 %v9081, %v9177
    %v9179 = vpop.f32.mrb[0].mxu0
    %v9180 = vpop.f32.mrb[0].mxu0
    %v9181 = vadd.f32 %v9084, %v9180
    %v9182 = vpop.f32.mrb[0].mxu0
    %9183 = vmatprep.mubr.bf16.mxu0 0
    %9184 = vmatmul.mubr.bf16.gmra.mrb[0].mxu0 %v8844
    %v9185 = vpop.f32.mrb[0].mxu0
    %v9186 = vadd.f32 %v9089, %v9185
    %v9187 = vpop.f32.mrb[0].mxu0
    %v9188 = vpop.f32.mrb[0].mxu0
    %v9189 = vadd.f32 %v9092, %v9188
    %v9190 = vpop.f32.mrb[0].mxu0
    %9191 = vmatprep.mubr.bf16.mxu0 0
    %9192 = vmatmul.mubr.bf16.gmra.mrb[0].mxu0 %v8847
    %v9193 = vpop.f32.mrb[0].mxu0
    %v9194 = vadd.f32 %v9097, %v9193
    %v9195 = vpop.f32.mrb[0].mxu0
    %v9196 = vpop.f32.mrb[0].mxu0
    %v9197 = vadd.f32 %v9100, %v9196
    %v9198 = vpop.f32.mrb[0].mxu0
    %9199 = vmatprep.mubr.bf16.mxu0 0
    %9200 = vmatmul.mubr.bf16.gmra.mrb[0].mxu0 %v8850
    %v9201 = vpop.f32.mrb[0].mxu0
    %v9202 = vadd.f32 %v9105, %v9201
    %v9203 = vpop.f32.mrb[0].mxu0
    %v9204 = vpop.f32.mrb[0].mxu0
    %v9205 = vadd.f32 %v9108, %v9204
    %v9206 = vpop.f32.mrb[0].mxu0
    %9207 = vmatprep.mubr.bf16.mxu0 0
    %9208 = vmatmul.mubr.bf16.gmra.mrb[0].mxu0 %v8853
    %v9209 = vpop.f32.mrb[0].mxu0
    %v9210 = vadd.f32 %v9113, %v9209
    %v9211 = vpop.f32.mrb[0].mxu0
    %v9212 = vpop.f32.mrb[0].mxu0
    %v9213 = vadd.f32 %v9116, %v9212
    %v9214 = vpop.f32.mrb[0].mxu0
    %9215 = vdwg.mxu0
    %v9216 = vld [vmem:[#allocation4] sm:$0xff]
    %v9217 = vld [vmem:[#allocation4 + $0x8] sm:$0xff]
    %v9218 = vld [vmem:[#allocation4 + $0x10] sm:$0xff]
    %v9219 = vld [vmem:[#allocation4 + $0x18] sm:$0xff]
    %v9220 = vld [vmem:[#allocation4 + $0x20] sm:$0xff]
    %v9221 = vld [vmem:[#allocation4 + $0x28] sm:$0xff]
    %v9222 = vld [vmem:[#allocation4 + $0x30] sm:$0xff]
    %v9223 = vld [vmem:[#allocation4 + $0x38] sm:$0xff]
    %v9224 = vld [vmem:[#allocation4 + $0x40] sm:$0xff]
    %v9225 = vld [vmem:[#allocation4 + $0x48] sm:$0xff]
    %v9226 = vld [vmem:[#allocation4 + $0x50] sm:$0xff]
    %v9227 = vld [vmem:[#allocation4 + $0x58] sm:$0xff]
    %v9228 = vld [vmem:[#allocation4 + $0x60] sm:$0xff]
    %v9229 = vld [vmem:[#allocation4 + $0x68] sm:$0xff]
    %v9230 = vld [vmem:[#allocation4 + $0x70] sm:$0xff]
    %v9231 = vld [vmem:[#allocation4 + $0x78] sm:$0xff]
    %v9232 = vadd.f32 %v9216, %v9154
    %v9233 = vadd.f32 %v9217, %v9157
    %v9234 = vadd.f32 %v9218, %v9162
    %v9235 = vadd.f32 %v9219, %v9165
    %v9236 = vadd.f32 %v9220, %v9170
    %v9237 = vadd.f32 %v9221, %v9173
    %v9238 = vadd.f32 %v9222, %v9178
    %v9239 = vadd.f32 %v9223, %v9181
    %v9240 = vadd.f32 %v9224, %v9186
    %v9241 = vadd.f32 %v9225, %v9189
    %v9242 = vadd.f32 %v9226, %v9194
    %v9243 = vadd.f32 %v9227, %v9197
    %v9244 = vadd.f32 %v9228, %v9202
    %v9245 = vadd.f32 %v9229, %v9205
    %v9246 = vadd.f32 %v9230, %v9210
    %v9247 = vadd.f32 %v9231, %v9213
    %9248 = vst [vmem:[#allocation4] sm:$0xff] %v9232
    %9249 = vst [vmem:[#allocation4 + $0x8] sm:$0xff] %v9233
    %9250 = vst [vmem:[#allocation4 + $0x10] sm:$0xff] %v9234
    %9251 = vst [vmem:[#allocation4 + $0x18] sm:$0xff] %v9235
    %9252 = vst [vmem:[#allocation4 + $0x20] sm:$0xff] %v9236
    %9253 = vst [vmem:[#allocation4 + $0x28] sm:$0xff] %v9237
    %9254 = vst [vmem:[#allocation4 + $0x30] sm:$0xff] %v9238
    %9255 = vst [vmem:[#allocation4 + $0x38] sm:$0xff] %v9239
    %9256 = vst [vmem:[#allocation4 + $0x40] sm:$0xff] %v9240
    %9257 = vst [vmem:[#allocation4 + $0x48] sm:$0xff] %v9241
    %9258 = vst [vmem:[#allocation4 + $0x50] sm:$0xff] %v9242
    %9259 = vst [vmem:[#allocation4 + $0x58] sm:$0xff] %v9243
    %9260 = vst [vmem:[#allocation4 + $0x60] sm:$0xff] %v9244
    %9261 = vst [vmem:[#allocation4 + $0x68] sm:$0xff] %v9245
    %9262 = vst [vmem:[#allocation4 + $0x70] sm:$0xff] %v9246
    %9263 = vst [vmem:[#allocation4 + $0x78] sm:$0xff] %v9247
    %v9264 = vld [vmem:[#allocation4] sm:$0xff]
    %v9265 = vld [vmem:[#allocation4 + $0x8] sm:$0xff]
    %v9266 = vld [vmem:[#allocation4 + $0x10] sm:$0xff]
    %v9267 = vld [vmem:[#allocation4 + $0x18] sm:$0xff]
    %v9268 = vld [vmem:[#allocation4 + $0x20] sm:$0xff]
    %v9269 = vld [vmem:[#allocation4 + $0x28] sm:$0xff]
    %v9270 = vld [vmem:[#allocation4 + $0x30] sm:$0xff]
    %v9271 = vld [vmem:[#allocation4 + $0x38] sm:$0xff]
    %v9272 = vld [vmem:[#allocation4 + $0x40] sm:$0xff]
    %v9273 = vld [vmem:[#allocation4 + $0x48] sm:$0xff]
    %v9274 = vld [vmem:[#allocation4 + $0x50] sm:$0xff]
    %v9275 = vld [vmem:[#allocation4 + $0x58] sm:$0xff]
    %v9276 = vld [vmem:[#allocation4 + $0x60] sm:$0xff]
    %v9277 = vld [vmem:[#allocation4 + $0x68] sm:$0xff]
    %v9278 = vld [vmem:[#allocation4 + $0x70] sm:$0xff]
    %v9279 = vld [vmem:[#allocation4 + $0x78] sm:$0xff]
    %v9280 = vadd.f32 %v9264, %v9265
    %v9281 = vadd.f32 %v9280, %v9266
    %v9282 = vadd.f32 %v9281, %v9267
    %v9283 = vadd.f32 %v9282, %v9268
    %v9284 = vadd.f32 %v9283, %v9269
    %v9285 = vadd.f32 %v9284, %v9270
    %v9286 = vadd.f32 %v9285, %v9271
    %v9287 = vadd.f32 %v9286, %v9272
    %v9288 = vadd.f32 %v9287, %v9273
    %v9289 = vadd.f32 %v9288, %v9274
    %v9290 = vadd.f32 %v9289, %v9275
    %v9291 = vadd.f32 %v9290, %v9276
    %v9292 = vadd.f32 %v9291, %v9277
    %v9293 = vadd.f32 %v9292, %v9278
    %v9294 = vadd.f32 %v9293, %v9279
    %v9295 = vrot.slane %v9294, 4
    %v9296 = vadd.f32 %v9294, %v9295
    %v9297 = vrot.slane %v9296, 2
    %v9298 = vadd.f32 %v9296, %v9297
    %v9299 = vrot.slane %v9298, 1
    %v9300 = vadd.f32 %v9298, %v9299
    %v9301 = vrcp.pop 128.0
    %v9302 = vmul.f32 %v9300, %v9301
    %v9303 = vsub.f32 %v9264, %v9302
    %v9304 = vsub.f32 %v9265, %v9302
    %v9305 = vsub.f32 %v9266, %v9302
    %v9306 = vsub.f32 %v9267, %v9302
    %v9307 = vsub.f32 %v9268, %v9302
    %v9308 = vsub.f32 %v9269, %v9302
    %v9309 = vsub.f32 %v9270, %v9302
    %v9310 = vsub.f32 %v9271, %v9302
    %v9311 = vsub.f32 %v9272, %v9302
    %v9312 = vsub.f32 %v9273, %v9302
    %v9313 = vsub.f32 %v9274, %v9302
    %v9314 = vsub.f32 %v9275, %v9302
    %v9315 = vsub.f32 %v9276, %v9302
    %v9316 = vsub.f32 %v9277, %v9302
    %v9317 = vsub.f32 %v9278, %v9302
    %v9318 = vsub.f32 %v9279, %v9302
    %v9319 = vmul.f32 %v9303, %v9303
    %v9320 = vmul.f32 %v9304, %v9304
    %v9321 = vmul.f32 %v9305, %v9305
    %v9322 = vmul.f32 %v9306, %v9306
    %v9323 = vmul.f32 %v9307, %v9307
    %v9324 = vmul.f32 %v9308, %v9308
    %v9325 = vmul.f32 %v9309, %v9309
    %v9326 = vmul.f32 %v9310, %v9310
    %v9327 = vmul.f32 %v9311, %v9311
    %v9328 = vmul.f32 %v9312, %v9312
    %v9329 = vmul.f32 %v9313, %v9313
    %v9330 = vmul.f32 %v9314, %v9314
    %v9331 = vmul.f32 %v9315, %v9315
    %v9332 = vmul.f32 %v9316, %v9316
    %v9333 = vmul.f32 %v9317, %v9317
    %v9334 = vmul.f32 %v9318, %v9318
    %v9335 = vadd.f32 %v9319, %v9320
    %v9336 = vadd.f32 %v9335, %v9321
    %v9337 = vadd.f32 %v9336, %v9322
    %v9338 = vadd.f32 %v9337, %v9323
    %v9339 = vadd.f32 %v9338, %v9324
    %v9340 = vadd.f32 %v9339, %v9325
    %v9341 = vadd.f32 %v9340, %v9326
    %v9342 = vadd.f32 %v9341, %v9327
    %v9343 = vadd.f32 %v9342, %v9328
    %v9344 = vadd.f32 %v9343, %v9329
    %v9345 = vadd.f32 %v9344, %v9330
    %v9346 = vadd.f32 %v9345, %v9331
    %v9347 = vadd.f32 %v9346, %v9332
    %v9348 = vadd.f32 %v9347, %v9333
    %v9349 = vadd.f32 %v9348, %v9334
    %v9350 = vrot.slane %v9349, 4
    %v9351 = vadd.f32 %v9349, %v9350
    %v9352 = vrot.slane %v9351, 2
    %v9353 = vadd.f32 %v9351, %v9352
    %v9354 = vrot.slane %v9353, 1
    %v9355 = vadd.f32 %v9353, %v9354
    %v9356 = vmul.f32 %v9355, %v9301
    %v9357 = vld [vmem:[%s5] sm:$0x1]
    %v9358 = vadd.f32 %v9356, 1e-05
    %v9359 = vrsqrt.pop %v9358
    %v9360 = vmul.f32 %v9357, %v9359
    %v9361 = vld [vmem:[%s6] sm:$0x1]
    %v9362 = vmul.f32 %v9302, %v9360
    %v9363 = vsub.f32 %v9361, %v9362
    %v9365 = vlaneseq
    %v9366 = vshrl.u32 %v9365, 7
    %v9367 = vsub.s32 0, %v9366
    %v9368 = vrot.slane %v9360, %v9367
    %v9370 = vmul.f32 %v9264, %v9368
    %v9371 = vmul.f32 %v9265, %v9368
    %v9372 = vmul.f32 %v9266, %v9368
    %v9373 = vmul.f32 %v9267, %v9368
    %v9374 = vmul.f32 %v9268, %v9368
    %v9375 = vmul.f32 %v9269, %v9368
    %v9376 = vmul.f32 %v9270, %v9368
    %v9377 = vmul.f32 %v9271, %v9368
    %v9378 = vmul.f32 %v9272, %v9368
    %v9379 = vmul.f32 %v9273, %v9368
    %v9380 = vmul.f32 %v9274, %v9368
    %v9381 = vmul.f32 %v9275, %v9368
    %v9382 = vmul.f32 %v9276, %v9368
    %v9383 = vmul.f32 %v9277, %v9368
    %v9384 = vmul.f32 %v9278, %v9368
    %v9385 = vmul.f32 %v9279, %v9368
    %v9387 = vlaneseq
    %v9388 = vshrl.u32 %v9387, 7
    %v9389 = vsub.s32 0, %v9388
    %v9390 = vrot.slane %v9363, %v9389
    %v9392 = vadd.f32 %v9370, %v9390
    %v9393 = vadd.f32 %v9371, %v9390
    %v9394 = vadd.f32 %v9372, %v9390
    %v9395 = vadd.f32 %v9373, %v9390
    %v9396 = vadd.f32 %v9374, %v9390
    %v9397 = vadd.f32 %v9375, %v9390
    %v9398 = vadd.f32 %v9376, %v9390
    %v9399 = vadd.f32 %v9377, %v9390
    %v9400 = vadd.f32 %v9378, %v9390
    %v9401 = vadd.f32 %v9379, %v9390
    %v9402 = vadd.f32 %v9380, %v9390
    %v9403 = vadd.f32 %v9381, %v9390
    %v9404 = vadd.f32 %v9382, %v9390
    %v9405 = vadd.f32 %v9383, %v9390
    %v9406 = vadd.f32 %v9384, %v9390
    %v9407 = vadd.f32 %v9385, %v9390
    %v9408 = vmax.f32 %v9392, 0.0
    %v9409 = vmax.f32 %v9393, 0.0
    %v9410 = vmax.f32 %v9394, 0.0
    %v9411 = vmax.f32 %v9395, 0.0
    %v9412 = vmax.f32 %v9396, 0.0
    %v9413 = vmax.f32 %v9397, 0.0
    %v9414 = vmax.f32 %v9398, 0.0
    %v9415 = vmax.f32 %v9399, 0.0
    %v9416 = vmax.f32 %v9400, 0.0
    %v9417 = vmax.f32 %v9401, 0.0
    %v9418 = vmax.f32 %v9402, 0.0
    %v9419 = vmax.f32 %v9403, 0.0
    %v9420 = vmax.f32 %v9404, 0.0
    %v9421 = vmax.f32 %v9405, 0.0
    %v9422 = vmax.f32 %v9406, 0.0
    %v9423 = vmax.f32 %v9407, 0.0
    %v9440 = vcombine.high %v9408, %v9408
    %v9442 = vunpack.c.l.s4 1983009808
    %v9443 = vunpack.c.0.s8 %v9442
    %v9444 = vlaneseq
    %v9445 = vshrl.u32 %v9444, 7
    %v9446 = vsub.s32 %v9443, %v9445
    %v9447 = vrot.slane %v9408, %v9446
    %v9449 = vunpack.c.l.s4 1983009808
    %v9450 = vunpack.c.0.s8 %v9449
    %v9451 = vlaneseq
    %v9452 = vshrl.u32 %v9451, 7
    %v9453 = vsub.s32 %v9450, %v9452
    %v9454 = vrot.slane %v9440, %v9453
    %v9455 = vcombine.high %v9447, %v9447
    %v9456 = vcombine.high %v9454, %v9454
    %v9457 = vcombine.high %v9409, %v9409
    %v9459 = vunpack.c.l.s4 1983009808
    %v9460 = vunpack.c.0.s8 %v9459
    %v9461 = vlaneseq
    %v9462 = vshrl.u32 %v9461, 7
    %v9463 = vsub.s32 %v9460, %v9462
    %v9464 = vrot.slane %v9409, %v9463
    %v9466 = vunpack.c.l.s4 1983009808
    %v9467 = vunpack.c.0.s8 %v9466
    %v9468 = vlaneseq
    %v9469 = vshrl.u32 %v9468, 7
    %v9470 = vsub.s32 %v9467, %v9469
    %v9471 = vrot.slane %v9457, %v9470
    %v9472 = vcombine.high %v9464, %v9464
    %v9473 = vcombine.high %v9471, %v9471
    %v9474 = vcombine.high %v9410, %v9410
    %v9476 = vunpack.c.l.s4 1983009808
    %v9477 = vunpack.c.0.s8 %v9476
    %v9478 = vlaneseq
    %v9479 = vshrl.u32 %v9478, 7
    %v9480 = vsub.s32 %v9477, %v9479
    %v9481 = vrot.slane %v9410, %v9480
    %v9483 = vunpack.c.l.s4 1983009808
    %v9484 = vunpack.c.0.s8 %v9483
    %v9485 = vlaneseq
    %v9486 = vshrl.u32 %v9485, 7
    %v9487 = vsub.s32 %v9484, %v9486
    %v9488 = vrot.slane %v9474, %v9487
    %v9489 = vcombine.high %v9481, %v9481
    %v9490 = vcombine.high %v9488, %v9488
    %v9491 = vcombine.high %v9411, %v9411
    %v9493 = vunpack.c.l.s4 1983009808
    %v9494 = vunpack.c.0.s8 %v9493
    %v9495 = vlaneseq
    %v9496 = vshrl.u32 %v9495, 7
    %v9497 = vsub.s32 %v9494, %v9496
    %v9498 = vrot.slane %v9411, %v9497
    %v9500 = vunpack.c.l.s4 1983009808
    %v9501 = vunpack.c.0.s8 %v9500
    %v9502 = vlaneseq
    %v9503 = vshrl.u32 %v9502, 7
    %v9504 = vsub.s32 %v9501, %v9503
    %v9505 = vrot.slane %v9491, %v9504
    %v9506 = vcombine.high %v9498, %v9498
    %v9507 = vcombine.high %v9505, %v9505
    %v9508 = vcombine.high %v9412, %v9412
    %v9510 = vunpack.c.l.s4 1983009808
    %v9511 = vunpack.c.0.s8 %v9510
    %v9512 = vlaneseq
    %v9513 = vshrl.u32 %v9512, 7
    %v9514 = vsub.s32 %v9511, %v9513
    %v9515 = vrot.slane %v9412, %v9514
    %v9517 = vunpack.c.l.s4 1983009808
    %v9518 = vunpack.c.0.s8 %v9517
    %v9519 = vlaneseq
    %v9520 = vshrl.u32 %v9519, 7
    %v9521 = vsub.s32 %v9518, %v9520
    %v9522 = vrot.slane %v9508, %v9521
    %v9523 = vcombine.high %v9515, %v9515
    %v9524 = vcombine.high %v9522, %v9522
    %v9525 = vcombine.high %v9413, %v9413
    %v9527 = vunpack.c.l.s4 1983009808
    %v9528 = vunpack.c.0.s8 %v9527
    %v9529 = vlaneseq
    %v9530 = vshrl.u32 %v9529, 7
    %v9531 = vsub.s32 %v9528, %v9530
    %v9532 = vrot.slane %v9413, %v9531
    %v9534 = vunpack.c.l.s4 1983009808
    %v9535 = vunpack.c.0.s8 %v9534
    %v9536 = vlaneseq
    %v9537 = vshrl.u32 %v9536, 7
    %v9538 = vsub.s32 %v9535, %v9537
    %v9539 = vrot.slane %v9525, %v9538
    %v9540 = vcombine.high %v9532, %v9532
    %v9541 = vcombine.high %v9539, %v9539
    %v9542 = vcombine.high %v9414, %v9414
    %v9544 = vunpack.c.l.s4 1983009808
    %v9545 = vunpack.c.0.s8 %v9544
    %v9546 = vlaneseq
    %v9547 = vshrl.u32 %v9546, 7
    %v9548 = vsub.s32 %v9545, %v9547
    %v9549 = vrot.slane %v9414, %v9548
    %v9551 = vunpack.c.l.s4 1983009808
    %v9552 = vunpack.c.0.s8 %v9551
    %v9553 = vlaneseq
    %v9554 = vshrl.u32 %v9553, 7
    %v9555 = vsub.s32 %v9552, %v9554
    %v9556 = vrot.slane %v9542, %v9555
    %v9557 = vcombine.high %v9549, %v9549
    %v9558 = vcombine.high %v9556, %v9556
    %v9559 = vcombine.high %v9415, %v9415
    %v9561 = vunpack.c.l.s4 1983009808
    %v9562 = vunpack.c.0.s8 %v9561
    %v9563 = vlaneseq
    %v9564 = vshrl.u32 %v9563, 7
    %v9565 = vsub.s32 %v9562, %v9564
    %v9566 = vrot.slane %v9415, %v9565
    %v9568 = vunpack.c.l.s4 1983009808
    %v9569 = vunpack.c.0.s8 %v9568
    %v9570 = vlaneseq
    %v9571 = vshrl.u32 %v9570, 7
    %v9572 = vsub.s32 %v9569, %v9571
    %v9573 = vrot.slane %v9559, %v9572
    %v9574 = vcombine.high %v9566, %v9566
    %v9575 = vcombine.high %v9573, %v9573
    %v9576 = vcombine.high %v9416, %v9416
    %v9578 = vunpack.c.l.s4 1983009808
    %v9579 = vunpack.c.0.s8 %v9578
    %v9580 = vlaneseq
    %v9581 = vshrl.u32 %v9580, 7
    %v9582 = vsub.s32 %v9579, %v9581
    %v9583 = vrot.slane %v9416, %v9582
    %v9585 = vunpack.c.l.s4 1983009808
    %v9586 = vunpack.c.0.s8 %v9585
    %v9587 = vlaneseq
    %v9588 = vshrl.u32 %v9587, 7
    %v9589 = vsub.s32 %v9586, %v9588
    %v9590 = vrot.slane %v9576, %v9589
    %v9591 = vcombine.high %v9583, %v9583
    %v9592 = vcombine.high %v9590, %v9590
    %v9593 = vcombine.high %v9417, %v9417
    %v9595 = vunpack.c.l.s4 1983009808
    %v9596 = vunpack.c.0.s8 %v9595
    %v9597 = vlaneseq
    %v9598 = vshrl.u32 %v9597, 7
    %v9599 = vsub.s32 %v9596, %v9598
    %v9600 = vrot.slane %v9417, %v9599
    %v9602 = vunpack.c.l.s4 1983009808
    %v9603 = vunpack.c.0.s8 %v9602
    %v9604 = vlaneseq
    %v9605 = vshrl.u32 %v9604, 7
    %v9606 = vsub.s32 %v9603, %v9605
    %v9607 = vrot.slane %v9593, %v9606
    %v9608 = vcombine.high %v9600, %v9600
    %v9609 = vcombine.high %v9607, %v9607
    %v9610 = vcombine.high %v9418, %v9418
    %v9612 = vunpack.c.l.s4 1983009808
    %v9613 = vunpack.c.0.s8 %v9612
    %v9614 = vlaneseq
    %v9615 = vshrl.u32 %v9614, 7
    %v9616 = vsub.s32 %v9613, %v9615
    %v9617 = vrot.slane %v9418, %v9616
    %v9619 = vunpack.c.l.s4 1983009808
    %v9620 = vunpack.c.0.s8 %v9619
    %v9621 = vlaneseq
    %v9622 = vshrl.u32 %v9621, 7
    %v9623 = vsub.s32 %v9620, %v9622
    %v9624 = vrot.slane %v9610, %v9623
    %v9625 = vcombine.high %v9617, %v9617
    %v9626 = vcombine.high %v9624, %v9624
    %v9627 = vcombine.high %v9419, %v9419
    %v9629 = vunpack.c.l.s4 1983009808
    %v9630 = vunpack.c.0.s8 %v9629
    %v9631 = vlaneseq
    %v9632 = vshrl.u32 %v9631, 7
    %v9633 = vsub.s32 %v9630, %v9632
    %v9634 = vrot.slane %v9419, %v9633
    %v9636 = vunpack.c.l.s4 1983009808
    %v9637 = vunpack.c.0.s8 %v9636
    %v9638 = vlaneseq
    %v9639 = vshrl.u32 %v9638, 7
    %v9640 = vsub.s32 %v9637, %v9639
    %v9641 = vrot.slane %v9627, %v9640
    %v9642 = vcombine.high %v9634, %v9634
    %v9643 = vcombine.high %v9641, %v9641
    %v9644 = vcombine.high %v9420, %v9420
    %v9646 = vunpack.c.l.s4 1983009808
    %v9647 = vunpack.c.0.s8 %v9646
    %v9648 = vlaneseq
    %v9649 = vshrl.u32 %v9648, 7
    %v9650 = vsub.s32 %v9647, %v9649
    %v9651 = vrot.slane %v9420, %v9650
    %v9653 = vunpack.c.l.s4 1983009808
    %v9654 = vunpack.c.0.s8 %v9653
    %v9655 = vlaneseq
    %v9656 = vshrl.u32 %v9655, 7
    %v9657 = vsub.s32 %v9654, %v9656
    %v9658 = vrot.slane %v9644, %v9657
    %v9659 = vcombine.high %v9651, %v9651
    %v9660 = vcombine.high %v9658, %v9658
    %v9661 = vcombine.high %v9421, %v9421
    %v9663 = vunpack.c.l.s4 1983009808
    %v9664 = vunpack.c.0.s8 %v9663
    %v9665 = vlaneseq
    %v9666 = vshrl.u32 %v9665, 7
    %v9667 = vsub.s32 %v9664, %v9666
    %v9668 = vrot.slane %v9421, %v9667
    %v9670 = vunpack.c.l.s4 1983009808
    %v9671 = vunpack.c.0.s8 %v9670
    %v9672 = vlaneseq
    %v9673 = vshrl.u32 %v9672, 7
    %v9674 = vsub.s32 %v9671, %v9673
    %v9675 = vrot.slane %v9661, %v9674
    %v9676 = vcombine.high %v9668, %v9668
    %v9677 = vcombine.high %v9675, %v9675
    %v9678 = vcombine.high %v9422, %v9422
    %v9680 = vunpack.c.l.s4 1983009808
    %v9681 = vunpack.c.0.s8 %v9680
    %v9682 = vlaneseq
    %v9683 = vshrl.u32 %v9682, 7
    %v9684 = vsub.s32 %v9681, %v9683
    %v9685 = vrot.slane %v9422, %v9684
    %v9687 = vunpack.c.l.s4 1983009808
    %v9688 = vunpack.c.0.s8 %v9687
    %v9689 = vlaneseq
    %v9690 = vshrl.u32 %v9689, 7
    %v9691 = vsub.s32 %v9688, %v9690
    %v9692 = vrot.slane %v9678, %v9691
    %v9693 = vcombine.high %v9685, %v9685
    %v9694 = vcombine.high %v9692, %v9692
    %v9695 = vcombine.high %v9423, %v9423
    %v9697 = vunpack.c.l.s4 1983009808
    %v9698 = vunpack.c.0.s8 %v9697
    %v9699 = vlaneseq
    %v9700 = vshrl.u32 %v9699, 7
    %v9701 = vsub.s32 %v9698, %v9700
    %v9702 = vrot.slane %v9423, %v9701
    %v9704 = vunpack.c.l.s4 1983009808
    %v9705 = vunpack.c.0.s8 %v9704
    %v9706 = vlaneseq
    %v9707 = vshrl.u32 %v9706, 7
    %v9708 = vsub.s32 %v9705, %v9707
    %v9709 = vrot.slane %v9695, %v9708
    %v9710 = vcombine.high %v9702, %v9702
    %v9711 = vcombine.high %v9709, %v9709
    %v9776 = vrot.slane %v9447, 7
    %v9777 = vrot.slane %v9776, 2
    %v9778 = vrot.slane %v9455, 7
    %v9779 = vrot.slane %v9778, 2
    %v9780 = vrot.slane %v9454, 7
    %v9781 = vrot.slane %v9780, 2
    %v9782 = vrot.slane %v9456, 7
    %v9783 = vrot.slane %v9782, 2
    %v9784 = vrot.slane %v9464, 7
    %v9785 = vrot.slane %v9784, 2
    %v9786 = vrot.slane %v9472, 7
    %v9787 = vrot.slane %v9786, 2
    %v9788 = vrot.slane %v9471, 7
    %v9789 = vrot.slane %v9788, 2
    %v9790 = vrot.slane %v9473, 7
    %v9791 = vrot.slane %v9790, 2
    %v9792 = vrot.slane %v9481, 7
    %v9793 = vrot.slane %v9792, 2
    %v9794 = vrot.slane %v9489, 7
    %v9795 = vrot.slane %v9794, 2
    %v9796 = vrot.slane %v9488, 7
    %v9797 = vrot.slane %v9796, 2
    %v9798 = vrot.slane %v9490, 7
    %v9799 = vrot.slane %v9798, 2
    %v9800 = vrot.slane %v9498, 7
    %v9801 = vrot.slane %v9800, 2
    %v9802 = vrot.slane %v9506, 7
    %v9803 = vrot.slane %v9802, 2
    %v9804 = vrot.slane %v9505, 7
    %v9805 = vrot.slane %v9804, 2
    %v9806 = vrot.slane %v9507, 7
    %v9807 = vrot.slane %v9806, 2
    %v9808 = vrot.slane %v9515, 7
    %v9809 = vrot.slane %v9808, 2
    %v9810 = vrot.slane %v9523, 7
    %v9811 = vrot.slane %v9810, 2
    %v9812 = vrot.slane %v9522, 7
    %v9813 = vrot.slane %v9812, 2
    %v9814 = vrot.slane %v9524, 7
    %v9815 = vrot.slane %v9814, 2
    %v9816 = vrot.slane %v9532, 7
    %v9817 = vrot.slane %v9816, 2
    %v9818 = vrot.slane %v9540, 7
    %v9819 = vrot.slane %v9818, 2
    %v9820 = vrot.slane %v9539, 7
    %v9821 = vrot.slane %v9820, 2
    %v9822 = vrot.slane %v9541, 7
    %v9823 = vrot.slane %v9822, 2
    %v9824 = vrot.slane %v9549, 7
    %v9825 = vrot.slane %v9824, 2
    %v9826 = vrot.slane %v9557, 7
    %v9827 = vrot.slane %v9826, 2
    %v9828 = vrot.slane %v9556, 7
    %v9829 = vrot.slane %v9828, 2
    %v9830 = vrot.slane %v9558, 7
    %v9831 = vrot.slane %v9830, 2
    %v9832 = vrot.slane %v9566, 7
    %v9833 = vrot.slane %v9832, 2
    %v9834 = vrot.slane %v9574, 7
    %v9835 = vrot.slane %v9834, 2
    %v9836 = vrot.slane %v9573, 7
    %v9837 = vrot.slane %v9836, 2
    %v9838 = vrot.slane %v9575, 7
    %v9839 = vrot.slane %v9838, 2
    %v9840 = vrot.slane %v9583, 7
    %v9841 = vrot.slane %v9840, 2
    %v9842 = vrot.slane %v9591, 7
    %v9843 = vrot.slane %v9842, 2
    %v9844 = vrot.slane %v9590, 7
    %v9845 = vrot.slane %v9844, 2
    %v9846 = vrot.slane %v9592, 7
    %v9847 = vrot.slane %v9846, 2
    %v9848 = vrot.slane %v9600, 7
    %v9849 = vrot.slane %v9848, 2
    %v9850 = vrot.slane %v9608, 7
    %v9851 = vrot.slane %v9850, 2
    %v9852 = vrot.slane %v9607, 7
    %v9853 = vrot.slane %v9852, 2
    %v9854 = vrot.slane %v9609, 7
    %v9855 = vrot.slane %v9854, 2
    %v9856 = vrot.slane %v9617, 7
    %v9857 = vrot.slane %v9856, 2
    %v9858 = vrot.slane %v9625, 7
    %v9859 = vrot.slane %v9858, 2
    %v9860 = vrot.slane %v9624, 7
    %v9861 = vrot.slane %v9860, 2
    %v9862 = vrot.slane %v9626, 7
    %v9863 = vrot.slane %v9862, 2
    %v9864 = vrot.slane %v9634, 7
    %v9865 = vrot.slane %v9864, 2
    %v9866 = vrot.slane %v9642, 7
    %v9867 = vrot.slane %v9866, 2
    %v9868 = vrot.slane %v9641, 7
    %v9869 = vrot.slane %v9868, 2
    %v9870 = vrot.slane %v9643, 7
    %v9871 = vrot.slane %v9870, 2
    %v9872 = vrot.slane %v9651, 7
    %v9873 = vrot.slane %v9872, 2
    %v9874 = vrot.slane %v9659, 7
    %v9875 = vrot.slane %v9874, 2
    %v9876 = vrot.slane %v9658, 7
    %v9877 = vrot.slane %v9876, 2
    %v9878 = vrot.slane %v9660, 7
    %v9879 = vrot.slane %v9878, 2
    %v9880 = vrot.slane %v9668, 7
    %v9881 = vrot.slane %v9880, 2
    %v9882 = vrot.slane %v9676, 7
    %v9883 = vrot.slane %v9882, 2
    %v9884 = vrot.slane %v9675, 7
    %v9885 = vrot.slane %v9884, 2
    %v9886 = vrot.slane %v9677, 7
    %v9887 = vrot.slane %v9886, 2
    %v9888 = vrot.slane %v9685, 7
    %v9889 = vrot.slane %v9888, 2
    %v9890 = vrot.slane %v9693, 7
    %v9891 = vrot.slane %v9890, 2
    %v9892 = vrot.slane %v9692, 7
    %v9893 = vrot.slane %v9892, 2
    %v9894 = vrot.slane %v9694, 7
    %v9895 = vrot.slane %v9894, 2
    %v9896 = vrot.slane %v9702, 7
    %v9897 = vrot.slane %v9896, 2
    %v9898 = vrot.slane %v9710, 7
    %v9899 = vrot.slane %v9898, 2
    %v9900 = vrot.slane %v9709, 7
    %v9901 = vrot.slane %v9900, 2
    %v9902 = vrot.slane %v9711, 7
    %v9903 = vrot.slane %v9902, 2
    %v9968 = vmax.f32 %v9447, %v9777
    %v9969 = vmax.f32 %v9455, %v9779
    %v9970 = vmax.f32 %v9454, %v9781
    %v9971 = vmax.f32 %v9456, %v9783
    %v9972 = vmax.f32 %v9464, %v9785
    %v9973 = vmax.f32 %v9472, %v9787
    %v9974 = vmax.f32 %v9471, %v9789
    %v9975 = vmax.f32 %v9473, %v9791
    %v9976 = vmax.f32 %v9481, %v9793
    %v9977 = vmax.f32 %v9489, %v9795
    %v9978 = vmax.f32 %v9488, %v9797
    %v9979 = vmax.f32 %v9490, %v9799
    %v9980 = vmax.f32 %v9498, %v9801
    %v9981 = vmax.f32 %v9506, %v9803
    %v9982 = vmax.f32 %v9505, %v9805
    %v9983 = vmax.f32 %v9507, %v9807
    %v9984 = vmax.f32 %v9515, %v9809
    %v9985 = vmax.f32 %v9523, %v9811
    %v9986 = vmax.f32 %v9522, %v9813
    %v9987 = vmax.f32 %v9524, %v9815
    %v9988 = vmax.f32 %v9532, %v9817
    %v9989 = vmax.f32 %v9540, %v9819
    %v9990 = vmax.f32 %v9539, %v9821
    %v9991 = vmax.f32 %v9541, %v9823
    %v9992 = vmax.f32 %v9549, %v9825
    %v9993 = vmax.f32 %v9557, %v9827
    %v9994 = vmax.f32 %v9556, %v9829
    %v9995 = vmax.f32 %v9558, %v9831
    %v9996 = vmax.f32 %v9566, %v9833
    %v9997 = vmax.f32 %v9574, %v9835
    %v9998 = vmax.f32 %v9573, %v9837
    %v9999 = vmax.f32 %v9575, %v9839
    %v10000 = vmax.f32 %v9583, %v9841
    %v10001 = vmax.f32 %v9591, %v9843
    %v10002 = vmax.f32 %v9590, %v9845
    %v10003 = vmax.f32 %v9592, %v9847
    %v10004 = vmax.f32 %v9600, %v9849
    %v10005 = vmax.f32 %v9608, %v9851
    %v10006 = vmax.f32 %v9607, %v9853
    %v10007 = vmax.f32 %v9609, %v9855
    %v10008 = vmax.f32 %v9617, %v9857
    %v10009 = vmax.f32 %v9625, %v9859
    %v10010 = vmax.f32 %v9624, %v9861
    %v10011 = vmax.f32 %v9626, %v9863
    %v10012 = vmax.f32 %v9634, %v9865
    %v10013 = vmax.f32 %v9642, %v9867
    %v10014 = vmax.f32 %v9641, %v9869
    %v10015 = vmax.f32 %v9643, %v9871
    %v10016 = vmax.f32 %v9651, %v9873
    %v10017 = vmax.f32 %v9659, %v9875
    %v10018 = vmax.f32 %v9658, %v9877
    %v10019 = vmax.f32 %v9660, %v9879
    %v10020 = vmax.f32 %v9668, %v9881
    %v10021 = vmax.f32 %v9676, %v9883
    %v10022 = vmax.f32 %v9675, %v9885
    %v10023 = vmax.f32 %v9677, %v9887
    %v10024 = vmax.f32 %v9685, %v9889
    %v10025 = vmax.f32 %v9693, %v9891
    %v10026 = vmax.f32 %v9692, %v9893
    %v10027 = vmax.f32 %v9694, %v9895
    %v10028 = vmax.f32 %v9702, %v9897
    %v10029 = vmax.f32 %v9710, %v9899
    %v10030 = vmax.f32 %v9709, %v9901
    %v10031 = vmax.f32 %v9711, %v9903
    %v10032 = vmax.f32 %v9968, %v9972
    %v10033 = vmax.f32 %v9969, %v9973
    %v10034 = vmax.f32 %v9970, %v9974
    %v10035 = vmax.f32 %v9971, %v9975
    %v10036 = vmax.f32 %v9976, %v9980
    %v10037 = vmax.f32 %v9977, %v9981
    %v10038 = vmax.f32 %v9978, %v9982
    %v10039 = vmax.f32 %v9979, %v9983
    %v10040 = vmax.f32 %v9984, %v9988
    %v10041 = vmax.f32 %v9985, %v9989
    %v10042 = vmax.f32 %v9986, %v9990
    %v10043 = vmax.f32 %v9987, %v9991
    %v10044 = vmax.f32 %v9992, %v9996
    %v10045 = vmax.f32 %v9993, %v9997
    %v10046 = vmax.f32 %v9994, %v9998
    %v10047 = vmax.f32 %v9995, %v9999
    %v10048 = vmax.f32 %v10000, %v10004
    %v10049 = vmax.f32 %v10001, %v10005
    %v10050 = vmax.f32 %v10002, %v10006
    %v10051 = vmax.f32 %v10003, %v10007
    %v10052 = vmax.f32 %v10008, %v10012
    %v10053 = vmax.f32 %v10009, %v10013
    %v10054 = vmax.f32 %v10010, %v10014
    %v10055 = vmax.f32 %v10011, %v10015
    %v10056 = vmax.f32 %v10016, %v10020
    %v10057 = vmax.f32 %v10017, %v10021
    %v10058 = vmax.f32 %v10018, %v10022
    %v10059 = vmax.f32 %v10019, %v10023
    %v10060 = vmax.f32 %v10024, %v10028
    %v10061 = vmax.f32 %v10025, %v10029
    %v10062 = vmax.f32 %v10026, %v10030
    %v10063 = vmax.f32 %v10027, %v10031
    %v10064 = vpack.c.bf16 %v10032, %v10032
    %v10065 = vpack.c.bf16 %v10033, %v10033
    %v10066 = vpack.c.bf16 %v10034, %v10034
    %v10067 = vpack.c.bf16 %v10035, %v10035
    %v10068 = vpack.c.bf16 %v10036, %v10036
    %v10069 = vpack.c.bf16 %v10037, %v10037
    %v10070 = vpack.c.bf16 %v10038, %v10038
    %v10071 = vpack.c.bf16 %v10039, %v10039
    %v10072 = vpack.c.bf16 %v10040, %v10040
    %v10073 = vpack.c.bf16 %v10041, %v10041
    %v10074 = vpack.c.bf16 %v10042, %v10042
    %v10075 = vpack.c.bf16 %v10043, %v10043
    %v10076 = vpack.c.bf16 %v10044, %v10044
    %v10077 = vpack.c.bf16 %v10045, %v10045
    %v10078 = vpack.c.bf16 %v10046, %v10046
    %v10079 = vpack.c.bf16 %v10047, %v10047
    %v10080 = vpack.c.bf16 %v10048, %v10048
    %v10081 = vpack.c.bf16 %v10049, %v10049
    %v10082 = vpack.c.bf16 %v10050, %v10050
    %v10083 = vpack.c.bf16 %v10051, %v10051
    %v10084 = vpack.c.bf16 %v10052, %v10052
    %v10085 = vpack.c.bf16 %v10053, %v10053
    %v10086 = vpack.c.bf16 %v10054, %v10054
    %v10087 = vpack.c.bf16 %v10055, %v10055
    %v10088 = vpack.c.bf16 %v10056, %v10056
    %v10089 = vpack.c.bf16 %v10057, %v10057
    %v10090 = vpack.c.bf16 %v10058, %v10058
    %v10091 = vpack.c.bf16 %v10059, %v10059
    %v10092 = vpack.c.bf16 %v10060, %v10060
    %v10093 = vpack.c.bf16 %v10061, %v10061
    %v10094 = vpack.c.bf16 %v10062, %v10062
    %v10095 = vpack.c.bf16 %v10063, %v10063
    %v10128 = vunpack.c.l.b16 %v10064
    %v10129 = vunpack.c.l.b16 %v10065
    %v10130 = vunpack.c.l.b16 %v10066
    %v10131 = vunpack.c.l.b16 %v10067
    %v10132 = vunpack.c.l.b16 %v10068
    %v10133 = vunpack.c.l.b16 %v10069
    %v10134 = vunpack.c.l.b16 %v10070
    %v10135 = vunpack.c.l.b16 %v10071
    %v10136 = vunpack.c.l.b16 %v10072
    %v10137 = vunpack.c.l.b16 %v10073
    %v10138 = vunpack.c.l.b16 %v10074
    %v10139 = vunpack.c.l.b16 %v10075
    %v10140 = vunpack.c.l.b16 %v10076
    %v10141 = vunpack.c.l.b16 %v10077
    %v10142 = vunpack.c.l.b16 %v10078
    %v10143 = vunpack.c.l.b16 %v10079
    %v10144 = vunpack.c.l.b16 %v10080
    %v10145 = vunpack.c.l.b16 %v10081
    %v10146 = vunpack.c.l.b16 %v10082
    %v10147 = vunpack.c.l.b16 %v10083
    %v10148 = vunpack.c.l.b16 %v10084
    %v10149 = vunpack.c.l.b16 %v10085
    %v10150 = vunpack.c.l.b16 %v10086
    %v10151 = vunpack.c.l.b16 %v10087
    %v10152 = vunpack.c.l.b16 %v10088
    %v10153 = vunpack.c.l.b16 %v10089
    %v10154 = vunpack.c.l.b16 %v10090
    %v10155 = vunpack.c.l.b16 %v10091
    %v10156 = vunpack.c.l.b16 %v10092
    %v10157 = vunpack.c.l.b16 %v10093
    %v10158 = vunpack.c.l.b16 %v10094
    %v10159 = vunpack.c.l.b16 %v10095
    %v10160 = vrot.slane %v10129, 7
    %vm10161 = vcmask 1041409
    %v10162 = vsel %vm10161, %v10160, %v10128
    %v10163 = vrot.slane %v10130, 6
    %v10164 = vsel %vm6741, %v10163, %v10162
    %v10165 = vrot.slane %v10131, 5
    %v10166 = vsel %vm6744, %v10165, %v10164
    %v10167 = vrot.slane %v10133, 7
    %v10168 = vsel %vm10161, %v10167, %v10132
    %v10169 = vrot.slane %v10134, 6
    %v10170 = vsel %vm6741, %v10169, %v10168
    %v10171 = vrot.slane %v10135, 5
    %v10172 = vsel %vm6744, %v10171, %v10170
    %v10173 = vrot.slane %v10137, 7
    %v10174 = vsel %vm10161, %v10173, %v10136
    %v10175 = vrot.slane %v10138, 6
    %v10176 = vsel %vm6741, %v10175, %v10174
    %v10177 = vrot.slane %v10139, 5
    %v10178 = vsel %vm6744, %v10177, %v10176
    %v10179 = vrot.slane %v10141, 7
    %v10180 = vsel %vm10161, %v10179, %v10140
    %v10181 = vrot.slane %v10142, 6
    %v10182 = vsel %vm6741, %v10181, %v10180
    %v10183 = vrot.slane %v10143, 5
    %v10184 = vsel %vm6744, %v10183, %v10182
    %v10185 = vrot.slane %v10145, 7
    %v10186 = vsel %vm10161, %v10185, %v10144
    %v10187 = vrot.slane %v10146, 6
    %v10188 = vsel %vm6741, %v10187, %v10186
    %v10189 = vrot.slane %v10147, 5
    %v10190 = vsel %vm6744, %v10189, %v10188
    %v10191 = vrot.slane %v10149, 7
    %v10192 = vsel %vm10161, %v10191, %v10148
    %v10193 = vrot.slane %v10150, 6
    %v10194 = vsel %vm6741, %v10193, %v10192
    %v10195 = vrot.slane %v10151, 5
    %v10196 = vsel %vm6744, %v10195, %v10194
    %v10197 = vrot.slane %v10153, 7
    %v10198 = vsel %vm10161, %v10197, %v10152
    %v10199 = vrot.slane %v10154, 6
    %v10200 = vsel %vm6741, %v10199, %v10198
    %v10201 = vrot.slane %v10155, 5
    %v10202 = vsel %vm6744, %v10201, %v10200
    %v10203 = vrot.slane %v10157, 7
    %v10204 = vsel %vm10161, %v10203, %v10156
    %v10205 = vrot.slane %v10158, 6
    %v10206 = vsel %vm6741, %v10205, %v10204
    %v10207 = vrot.slane %v10159, 5
    %v10208 = vsel %vm6744, %v10207, %v10206
    %v10209 = vpack.c.b16 %v10166, %v10166
    %v10210 = vpack.c.b16 %v10172, %v10172
    %v10211 = vpack.c.b16 %v10178, %v10178
    %v10212 = vpack.c.b16 %v10184, %v10184
    %v10213 = vpack.c.b16 %v10190, %v10190
    %v10214 = vpack.c.b16 %v10196, %v10196
    %v10215 = vpack.c.b16 %v10202, %v10202
    %v10216 = vpack.c.b16 %v10208, %v10208
    %v10225 = vsel %vm581, %v10209, 0
    %v10227 = vshll.u32 %v10213, 16
    %vm10229 = vsmask.f32 770
    %v10230 = vsel %vm10229, %v10227, %v10225
    %v10232 = vshrl.u32 %v10209, 16
    %v10234 = vsel %vm581, %v10232, 0
    %v10235 = vsel %vm10229, %v10213, %v10234
    %v10236 = vrot.slane %v10209, 1
    %v10237 = vsel %vm581, %v10236, 0
    %v10238 = vrot.slane %v10213, 1
    %v10240 = vshll.u32 %v10238, 16
    %v10242 = vsel %vm10229, %v10240, %v10237
    %v10244 = vshrl.u32 %v10236, 16
    %v10246 = vsel %vm581, %v10244, 0
    %v10247 = vsel %vm10229, %v10238, %v10246
    %v10248 = vsel %vm581, %v10210, 0
    %v10250 = vshll.u32 %v10214, 16
    %v10252 = vsel %vm10229, %v10250, %v10248
    %v10254 = vshrl.u32 %v10210, 16
    %v10256 = vsel %vm581, %v10254, 0
    %v10257 = vsel %vm10229, %v10214, %v10256
    %v10258 = vrot.slane %v10210, 1
    %v10259 = vsel %vm581, %v10258, 0
    %v10260 = vrot.slane %v10214, 1
    %v10262 = vshll.u32 %v10260, 16
    %v10264 = vsel %vm10229, %v10262, %v10259
    %v10266 = vshrl.u32 %v10258, 16
    %v10268 = vsel %vm581, %v10266, 0
    %v10269 = vsel %vm10229, %v10260, %v10268
    %v10270 = vsel %vm581, %v10211, 0
    %v10272 = vshll.u32 %v10215, 16
    %v10274 = vsel %vm10229, %v10272, %v10270
    %v10276 = vshrl.u32 %v10211, 16
    %v10278 = vsel %vm581, %v10276, 0
    %v10279 = vsel %vm10229, %v10215, %v10278
    %v10280 = vrot.slane %v10211, 1
    %v10281 = vsel %vm581, %v10280, 0
    %v10282 = vrot.slane %v10215, 1
    %v10284 = vshll.u32 %v10282, 16
    %v10286 = vsel %vm10229, %v10284, %v10281
    %v10288 = vshrl.u32 %v10280, 16
    %v10290 = vsel %vm581, %v10288, 0
    %v10291 = vsel %vm10229, %v10282, %v10290
    %v10292 = vsel %vm581, %v10212, 0
    %v10294 = vshll.u32 %v10216, 16
    %v10296 = vsel %vm10229, %v10294, %v10292
    %v10298 = vshrl.u32 %v10212, 16
    %v10300 = vsel %vm581, %v10298, 0
    %v10301 = vsel %vm10229, %v10216, %v10300
    %v10302 = vrot.slane %v10212, 1
    %v10303 = vsel %vm581, %v10302, 0
    %v10304 = vrot.slane %v10216, 1
    %v10306 = vshll.u32 %v10304, 16
    %v10308 = vsel %vm10229, %v10306, %v10303
    %v10310 = vshrl.u32 %v10302, 16
    %v10312 = vsel %vm581, %v10310, 0
    %v10313 = vsel %vm10229, %v10304, %v10312
    %v10314 = vld [vmem:[#allocation8] sm:$0xf]
    %v10315 = vld [vmem:[#allocation8 + $0x4] sm:$0xf]
    %v10316 = vld [vmem:[#allocation8 + $0x8] sm:$0xf]
    %v10317 = vld [vmem:[#allocation8 + $0xc] sm:$0xf]
    %v10318 = vld [vmem:[#allocation8 + $0x10] sm:$0xf]
    %v10319 = vld [vmem:[#allocation8 + $0x14] sm:$0xf]
    %v10320 = vld [vmem:[#allocation8 + $0x18] sm:$0xf]
    %v10321 = vld [vmem:[#allocation8 + $0x1c] sm:$0xf]
    %v10322 = vld [vmem:[#allocation8 + $0x20] sm:$0xf]
    %v10323 = vld [vmem:[#allocation8 + $0x24] sm:$0xf]
    %v10324 = vld [vmem:[#allocation8 + $0x28] sm:$0xf]
    %v10325 = vld [vmem:[#allocation8 + $0x2c] sm:$0xf]
    %v10326 = vld [vmem:[#allocation8 + $0x30] sm:$0xf]
    %v10327 = vld [vmem:[#allocation8 + $0x34] sm:$0xf]
    %v10328 = vld [vmem:[#allocation8 + $0x38] sm:$0xf]
    %v10329 = vld [vmem:[#allocation8 + $0x3c] sm:$0xf]
    %v10330 = vld [vmem:[#allocation8 + $0x40] sm:$0xf]
    %v10331 = vld [vmem:[#allocation8 + $0x44] sm:$0xf]
    %v10332 = vld [vmem:[#allocation8 + $0x48] sm:$0xf]
    %v10333 = vld [vmem:[#allocation8 + $0x4c] sm:$0xf]
    %v10334 = vld [vmem:[#allocation8 + $0x50] sm:$0xf]
    %v10335 = vld [vmem:[#allocation8 + $0x54] sm:$0xf]
    %v10336 = vld [vmem:[#allocation8 + $0x58] sm:$0xf]
    %v10337 = vld [vmem:[#allocation8 + $0x5c] sm:$0xf]
    %v10338 = vld [vmem:[#allocation8 + $0x60] sm:$0xf]
    %v10339 = vld [vmem:[#allocation8 + $0x64] sm:$0xf]
    %v10340 = vld [vmem:[#allocation8 + $0x68] sm:$0xf]
    %v10341 = vld [vmem:[#allocation8 + $0x6c] sm:$0xf]
    %v10342 = vld [vmem:[#allocation8 + $0x70] sm:$0xf]
    %v10343 = vld [vmem:[#allocation8 + $0x74] sm:$0xf]
    %v10344 = vld [vmem:[#allocation8 + $0x78] sm:$0xf]
    %v10345 = vld [vmem:[#allocation8 + $0x7c] sm:$0xf]
    %v10346 = vld [vmem:[#allocation8 + $0x80] sm:$0xf]
    %v10347 = vld [vmem:[#allocation8 + $0x84] sm:$0xf]
    %v10348 = vld [vmem:[#allocation8 + $0x88] sm:$0xf]
    %v10349 = vld [vmem:[#allocation8 + $0x8c] sm:$0xf]
    %v10350 = vld [vmem:[#allocation8 + $0x90] sm:$0xf]
    %v10351 = vld [vmem:[#allocation8 + $0x94] sm:$0xf]
    %v10352 = vld [vmem:[#allocation8 + $0x98] sm:$0xf]
    %v10353 = vld [vmem:[#allocation8 + $0x9c] sm:$0xf]
    %v10354 = vld [vmem:[#allocation8 + $0xa0] sm:$0xf]
    %v10355 = vld [vmem:[#allocation8 + $0xa4] sm:$0xf]
    %v10356 = vld [vmem:[#allocation8 + $0xa8] sm:$0xf]
    %v10357 = vld [vmem:[#allocation8 + $0xac] sm:$0xf]
    %v10358 = vld [vmem:[#allocation8 + $0xb0] sm:$0xf]
    %v10359 = vld [vmem:[#allocation8 + $0xb4] sm:$0xf]
    %v10360 = vld [vmem:[#allocation8 + $0xb8] sm:$0xf]
    %v10361 = vld [vmem:[#allocation8 + $0xbc] sm:$0xf]
    %v10362 = vld [vmem:[#allocation8 + $0xc0] sm:$0xf]
    %v10363 = vld [vmem:[#allocation8 + $0xc4] sm:$0xf]
    %v10364 = vld [vmem:[#allocation8 + $0xc8] sm:$0xf]
    %v10365 = vld [vmem:[#allocation8 + $0xcc] sm:$0xf]
    %v10366 = vld [vmem:[#allocation8 + $0xd0] sm:$0xf]
    %v10367 = vld [vmem:[#allocation8 + $0xd4] sm:$0xf]
    %v10368 = vld [vmem:[#allocation8 + $0xd8] sm:$0xf]
    %v10369 = vld [vmem:[#allocation8 + $0xdc] sm:$0xf]
    %v10370 = vld [vmem:[#allocation8 + $0xe0] sm:$0xf]
    %v10371 = vld [vmem:[#allocation8 + $0xe4] sm:$0xf]
    %v10372 = vld [vmem:[#allocation8 + $0xe8] sm:$0xf]
    %v10373 = vld [vmem:[#allocation8 + $0xec] sm:$0xf]
    %v10374 = vld [vmem:[#allocation8 + $0xf0] sm:$0xf]
    %v10375 = vld [vmem:[#allocation8 + $0xf4] sm:$0xf]
    %v10376 = vld [vmem:[#allocation8 + $0xf8] sm:$0xf]
    %v10377 = vld [vmem:[#allocation8 + $0xfc] sm:$0xf]
    %v10378 = vld [vmem:[#allocation8 + $0x100] sm:$0xf]
    %v10379 = vld [vmem:[#allocation8 + $0x104] sm:$0xf]
    %v10380 = vld [vmem:[#allocation8 + $0x108] sm:$0xf]
    %v10381 = vld [vmem:[#allocation8 + $0x10c] sm:$0xf]
    %v10382 = vld [vmem:[#allocation8 + $0x110] sm:$0xf]
    %v10383 = vld [vmem:[#allocation8 + $0x114] sm:$0xf]
    %v10384 = vld [vmem:[#allocation8 + $0x118] sm:$0xf]
    %v10385 = vld [vmem:[#allocation8 + $0x11c] sm:$0xf]
    %v10386 = vld [vmem:[#allocation8 + $0x120] sm:$0xf]
    %v10387 = vld [vmem:[#allocation8 + $0x124] sm:$0xf]
    %v10388 = vld [vmem:[#allocation8 + $0x128] sm:$0xf]
    %v10389 = vld [vmem:[#allocation8 + $0x12c] sm:$0xf]
    %v10390 = vld [vmem:[#allocation8 + $0x130] sm:$0xf]
    %v10391 = vld [vmem:[#allocation8 + $0x134] sm:$0xf]
    %v10392 = vld [vmem:[#allocation8 + $0x138] sm:$0xf]
    %v10393 = vld [vmem:[#allocation8 + $0x13c] sm:$0xf]
    %v10394 = vld [vmem:[#allocation8 + $0x140] sm:$0xf]
    %v10395 = vld [vmem:[#allocation8 + $0x144] sm:$0xf]
    %v10396 = vld [vmem:[#allocation8 + $0x148] sm:$0xf]
    %v10397 = vld [vmem:[#allocation8 + $0x14c] sm:$0xf]
    %v10398 = vld [vmem:[#allocation8 + $0x150] sm:$0xf]
    %v10399 = vld [vmem:[#allocation8 + $0x154] sm:$0xf]
    %v10400 = vld [vmem:[#allocation8 + $0x158] sm:$0xf]
    %v10401 = vld [vmem:[#allocation8 + $0x15c] sm:$0xf]
    %v10402 = vld [vmem:[#allocation8 + $0x160] sm:$0xf]
    %v10403 = vld [vmem:[#allocation8 + $0x164] sm:$0xf]
    %v10404 = vld [vmem:[#allocation8 + $0x168] sm:$0xf]
    %v10405 = vld [vmem:[#allocation8 + $0x16c] sm:$0xf]
    %v10406 = vld [vmem:[#allocation8 + $0x170] sm:$0xf]
    %v10407 = vld [vmem:[#allocation8 + $0x174] sm:$0xf]
    %v10408 = vld [vmem:[#allocation8 + $0x178] sm:$0xf]
    %v10409 = vld [vmem:[#allocation8 + $0x17c] sm:$0xf]
    %v10410 = vld [vmem:[#allocation8 + $0x180] sm:$0xf]
    %v10411 = vld [vmem:[#allocation8 + $0x184] sm:$0xf]
    %v10412 = vld [vmem:[#allocation8 + $0x188] sm:$0xf]
    %v10413 = vld [vmem:[#allocation8 + $0x18c] sm:$0xf]
    %v10414 = vld [vmem:[#allocation8 + $0x190] sm:$0xf]
    %v10415 = vld [vmem:[#allocation8 + $0x194] sm:$0xf]
    %v10416 = vld [vmem:[#allocation8 + $0x198] sm:$0xf]
    %v10417 = vld [vmem:[#allocation8 + $0x19c] sm:$0xf]
    %v10418 = vld [vmem:[#allocation8 + $0x1a0] sm:$0xf]
    %v10419 = vld [vmem:[#allocation8 + $0x1a4] sm:$0xf]
    %v10420 = vld [vmem:[#allocation8 + $0x1a8] sm:$0xf]
    %v10421 = vld [vmem:[#allocation8 + $0x1ac] sm:$0xf]
    %v10422 = vld [vmem:[#allocation8 + $0x1b0] sm:$0xf]
    %v10423 = vld [vmem:[#allocation8 + $0x1b4] sm:$0xf]
    %v10424 = vld [vmem:[#allocation8 + $0x1b8] sm:$0xf]
    %v10425 = vld [vmem:[#allocation8 + $0x1bc] sm:$0xf]
    %v10426 = vld [vmem:[#allocation8 + $0x1c0] sm:$0xf]
    %v10427 = vld [vmem:[#allocation8 + $0x1c4] sm:$0xf]
    %v10428 = vld [vmem:[#allocation8 + $0x1c8] sm:$0xf]
    %v10429 = vld [vmem:[#allocation8 + $0x1cc] sm:$0xf]
    %v10430 = vld [vmem:[#allocation8 + $0x1d0] sm:$0xf]
    %v10431 = vld [vmem:[#allocation8 + $0x1d4] sm:$0xf]
    %v10432 = vld [vmem:[#allocation8 + $0x1d8] sm:$0xf]
    %v10433 = vld [vmem:[#allocation8 + $0x1dc] sm:$0xf]
    %v10434 = vld [vmem:[#allocation8 + $0x1e0] sm:$0xf]
    %v10435 = vld [vmem:[#allocation8 + $0x1e4] sm:$0xf]
    %v10436 = vld [vmem:[#allocation8 + $0x1e8] sm:$0xf]
    %v10437 = vld [vmem:[#allocation8 + $0x1ec] sm:$0xf]
    %v10438 = vld [vmem:[#allocation8 + $0x1f0] sm:$0xf]
    %v10439 = vld [vmem:[#allocation8 + $0x1f4] sm:$0xf]
    %v10440 = vld [vmem:[#allocation8 + $0x1f8] sm:$0xf]
    %v10441 = vld [vmem:[#allocation8 + $0x1fc] sm:$0xf]
    %v10442 = vld [vmem:[#allocation8 + $0x200] sm:$0xf]
    %v10443 = vld [vmem:[#allocation8 + $0x204] sm:$0xf]
    %v10444 = vld [vmem:[#allocation8 + $0x208] sm:$0xf]
    %v10445 = vld [vmem:[#allocation8 + $0x20c] sm:$0xf]
    %v10446 = vld [vmem:[#allocation8 + $0x210] sm:$0xf]
    %v10447 = vld [vmem:[#allocation8 + $0x214] sm:$0xf]
    %v10448 = vld [vmem:[#allocation8 + $0x218] sm:$0xf]
    %v10449 = vld [vmem:[#allocation8 + $0x21c] sm:$0xf]
    %v10450 = vld [vmem:[#allocation8 + $0x220] sm:$0xf]
    %v10451 = vld [vmem:[#allocation8 + $0x224] sm:$0xf]
    %v10452 = vld [vmem:[#allocation8 + $0x228] sm:$0xf]
    %v10453 = vld [vmem:[#allocation8 + $0x22c] sm:$0xf]
    %v10454 = vld [vmem:[#allocation8 + $0x230] sm:$0xf]
    %v10455 = vld [vmem:[#allocation8 + $0x234] sm:$0xf]
    %v10456 = vld [vmem:[#allocation8 + $0x238] sm:$0xf]
    %v10457 = vld [vmem:[#allocation8 + $0x23c] sm:$0xf]
    %v10458 = vld [vmem:[#allocation8 + $0x240] sm:$0xf]
    %v10459 = vld [vmem:[#allocation8 + $0x244] sm:$0xf]
    %v10460 = vld [vmem:[#allocation8 + $0x248] sm:$0xf]
    %v10461 = vld [vmem:[#allocation8 + $0x24c] sm:$0xf]
    %v10462 = vld [vmem:[#allocation8 + $0x250] sm:$0xf]
    %v10463 = vld [vmem:[#allocation8 + $0x254] sm:$0xf]
    %v10464 = vld [vmem:[#allocation8 + $0x258] sm:$0xf]
    %v10465 = vld [vmem:[#allocation8 + $0x25c] sm:$0xf]
    %v10466 = vld [vmem:[#allocation8 + $0x260] sm:$0xf]
    %v10467 = vld [vmem:[#allocation8 + $0x264] sm:$0xf]
    %v10468 = vld [vmem:[#allocation8 + $0x268] sm:$0xf]
    %v10469 = vld [vmem:[#allocation8 + $0x26c] sm:$0xf]
    %v10470 = vld [vmem:[#allocation8 + $0x270] sm:$0xf]
    %v10471 = vld [vmem:[#allocation8 + $0x274] sm:$0xf]
    %v10472 = vld [vmem:[#allocation8 + $0x278] sm:$0xf]
    %v10473 = vld [vmem:[#allocation8 + $0x27c] sm:$0xf]
    %v10474 = vld [vmem:[#allocation8 + $0x280] sm:$0xf]
    %v10475 = vld [vmem:[#allocation8 + $0x284] sm:$0xf]
    %v10476 = vld [vmem:[#allocation8 + $0x288] sm:$0xf]
    %v10477 = vld [vmem:[#allocation8 + $0x28c] sm:$0xf]
    %v10478 = vld [vmem:[#allocation8 + $0x290] sm:$0xf]
    %v10479 = vld [vmem:[#allocation8 + $0x294] sm:$0xf]
    %v10480 = vld [vmem:[#allocation8 + $0x298] sm:$0xf]
    %v10481 = vld [vmem:[#allocation8 + $0x29c] sm:$0xf]
    %v10482 = vld [vmem:[#allocation8 + $0x2a0] sm:$0xf]
    %v10483 = vld [vmem:[#allocation8 + $0x2a4] sm:$0xf]
    %v10484 = vld [vmem:[#allocation8 + $0x2a8] sm:$0xf]
    %v10485 = vld [vmem:[#allocation8 + $0x2ac] sm:$0xf]
    %v10486 = vld [vmem:[#allocation8 + $0x2b0] sm:$0xf]
    %v10487 = vld [vmem:[#allocation8 + $0x2b4] sm:$0xf]
    %v10488 = vld [vmem:[#allocation8 + $0x2b8] sm:$0xf]
    %v10489 = vld [vmem:[#allocation8 + $0x2bc] sm:$0xf]
    %v10490 = vld [vmem:[#allocation8 + $0x2c0] sm:$0xf]
    %v10491 = vld [vmem:[#allocation8 + $0x2c4] sm:$0xf]
    %v10492 = vld [vmem:[#allocation8 + $0x2c8] sm:$0xf]
    %v10493 = vld [vmem:[#allocation8 + $0x2cc] sm:$0xf]
    %v10494 = vld [vmem:[#allocation8 + $0x2d0] sm:$0xf]
    %v10495 = vld [vmem:[#allocation8 + $0x2d4] sm:$0xf]
    %v10496 = vld [vmem:[#allocation8 + $0x2d8] sm:$0xf]
    %v10497 = vld [vmem:[#allocation8 + $0x2dc] sm:$0xf]
    %v10498 = vld [vmem:[#allocation8 + $0x2e0] sm:$0xf]
    %v10499 = vld [vmem:[#allocation8 + $0x2e4] sm:$0xf]
    %v10500 = vld [vmem:[#allocation8 + $0x2e8] sm:$0xf]
    %v10501 = vld [vmem:[#allocation8 + $0x2ec] sm:$0xf]
    %v10502 = vld [vmem:[#allocation8 + $0x2f0] sm:$0xf]
    %v10503 = vld [vmem:[#allocation8 + $0x2f4] sm:$0xf]
    %v10504 = vld [vmem:[#allocation8 + $0x2f8] sm:$0xf]
    %v10505 = vld [vmem:[#allocation8 + $0x2fc] sm:$0xf]
    %v10506 = vld [vmem:[#allocation8 + $0x300] sm:$0xf]
    %v10507 = vld [vmem:[#allocation8 + $0x304] sm:$0xf]
    %v10508 = vld [vmem:[#allocation8 + $0x308] sm:$0xf]
    %v10509 = vld [vmem:[#allocation8 + $0x30c] sm:$0xf]
    %v10510 = vld [vmem:[#allocation8 + $0x310] sm:$0xf]
    %v10511 = vld [vmem:[#allocation8 + $0x314] sm:$0xf]
    %v10512 = vld [vmem:[#allocation8 + $0x318] sm:$0xf]
    %v10513 = vld [vmem:[#allocation8 + $0x31c] sm:$0xf]
    %v10514 = vld [vmem:[#allocation8 + $0x320] sm:$0xf]
    %v10515 = vld [vmem:[#allocation8 + $0x324] sm:$0xf]
    %v10516 = vld [vmem:[#allocation8 + $0x328] sm:$0xf]
    %v10517 = vld [vmem:[#allocation8 + $0x32c] sm:$0xf]
    %v10518 = vld [vmem:[#allocation8 + $0x330] sm:$0xf]
    %v10519 = vld [vmem:[#allocation8 + $0x334] sm:$0xf]
    %v10520 = vld [vmem:[#allocation8 + $0x338] sm:$0xf]
    %v10521 = vld [vmem:[#allocation8 + $0x33c] sm:$0xf]
    %v10522 = vld [vmem:[#allocation8 + $0x340] sm:$0xf]
    %v10523 = vld [vmem:[#allocation8 + $0x344] sm:$0xf]
    %v10524 = vld [vmem:[#allocation8 + $0x348] sm:$0xf]
    %v10525 = vld [vmem:[#allocation8 + $0x34c] sm:$0xf]
    %v10526 = vld [vmem:[#allocation8 + $0x350] sm:$0xf]
    %v10527 = vld [vmem:[#allocation8 + $0x354] sm:$0xf]
    %v10528 = vld [vmem:[#allocation8 + $0x358] sm:$0xf]
    %v10529 = vld [vmem:[#allocation8 + $0x35c] sm:$0xf]
    %v10530 = vld [vmem:[#allocation8 + $0x360] sm:$0xf]
    %v10531 = vld [vmem:[#allocation8 + $0x364] sm:$0xf]
    %v10532 = vld [vmem:[#allocation8 + $0x368] sm:$0xf]
    %v10533 = vld [vmem:[#allocation8 + $0x36c] sm:$0xf]
    %v10534 = vld [vmem:[#allocation8 + $0x370] sm:$0xf]
    %v10535 = vld [vmem:[#allocation8 + $0x374] sm:$0xf]
    %v10536 = vld [vmem:[#allocation8 + $0x378] sm:$0xf]
    %v10537 = vld [vmem:[#allocation8 + $0x37c] sm:$0xf]
    %v10538 = vld [vmem:[#allocation8 + $0x380] sm:$0xf]
    %v10539 = vld [vmem:[#allocation8 + $0x384] sm:$0xf]
    %v10540 = vld [vmem:[#allocation8 + $0x388] sm:$0xf]
    %v10541 = vld [vmem:[#allocation8 + $0x38c] sm:$0xf]
    %v10542 = vld [vmem:[#allocation8 + $0x390] sm:$0xf]
    %v10543 = vld [vmem:[#allocation8 + $0x394] sm:$0xf]
    %v10544 = vld [vmem:[#allocation8 + $0x398] sm:$0xf]
    %v10545 = vld [vmem:[#allocation8 + $0x39c] sm:$0xf]
    %v10546 = vld [vmem:[#allocation8 + $0x3a0] sm:$0xf]
    %v10547 = vld [vmem:[#allocation8 + $0x3a4] sm:$0xf]
    %v10548 = vld [vmem:[#allocation8 + $0x3a8] sm:$0xf]
    %v10549 = vld [vmem:[#allocation8 + $0x3ac] sm:$0xf]
    %v10550 = vld [vmem:[#allocation8 + $0x3b0] sm:$0xf]
    %v10551 = vld [vmem:[#allocation8 + $0x3b4] sm:$0xf]
    %v10552 = vld [vmem:[#allocation8 + $0x3b8] sm:$0xf]
    %v10553 = vld [vmem:[#allocation8 + $0x3bc] sm:$0xf]
    %v10554 = vld [vmem:[#allocation8 + $0x3c0] sm:$0xf]
    %v10555 = vld [vmem:[#allocation8 + $0x3c4] sm:$0xf]
    %v10556 = vld [vmem:[#allocation8 + $0x3c8] sm:$0xf]
    %v10557 = vld [vmem:[#allocation8 + $0x3cc] sm:$0xf]
    %v10558 = vld [vmem:[#allocation8 + $0x3d0] sm:$0xf]
    %v10559 = vld [vmem:[#allocation8 + $0x3d4] sm:$0xf]
    %v10560 = vld [vmem:[#allocation8 + $0x3d8] sm:$0xf]
    %v10561 = vld [vmem:[#allocation8 + $0x3dc] sm:$0xf]
    %v10562 = vld [vmem:[#allocation8 + $0x3e0] sm:$0xf]
    %v10563 = vld [vmem:[#allocation8 + $0x3e4] sm:$0xf]
    %v10564 = vld [vmem:[#allocation8 + $0x3e8] sm:$0xf]
    %v10565 = vld [vmem:[#allocation8 + $0x3ec] sm:$0xf]
    %v10566 = vld [vmem:[#allocation8 + $0x3f0] sm:$0xf]
    %v10567 = vld [vmem:[#allocation8 + $0x3f4] sm:$0xf]
    %v10568 = vld [vmem:[#allocation8 + $0x3f8] sm:$0xf]
    %v10569 = vld [vmem:[#allocation8 + $0x3fc] sm:$0xf]
    %v10570 = vld [vmem:[%s8] sm:$0x1]
    %v10572 = vlaneseq
    %v10573 = vshrl.u32 %v10572, 7
    %v10574 = vsub.s32 0, %v10573
    %v10575 = vrot.slane %v10570, %v10574
    %v10833 = vunpack.c.l.b16 %v10314
    %v10834 = vunpack.c.l.b16 %v10315
    %v10835 = vunpack.c.l.b16 %v10316
    %v10836 = vunpack.c.l.b16 %v10317
    %v10837 = vunpack.c.l.b16 %v10318
    %v10838 = vunpack.c.l.b16 %v10319
    %v10839 = vunpack.c.l.b16 %v10320
    %v10840 = vunpack.c.l.b16 %v10321
    %v10841 = vunpack.c.l.b16 %v10322
    %v10842 = vunpack.c.l.b16 %v10323
    %v10843 = vunpack.c.l.b16 %v10324
    %v10844 = vunpack.c.l.b16 %v10325
    %v10845 = vunpack.c.l.b16 %v10326
    %v10846 = vunpack.c.l.b16 %v10327
    %v10847 = vunpack.c.l.b16 %v10328
    %v10848 = vunpack.c.l.b16 %v10329
    %v10849 = vunpack.c.l.b16 %v10330
    %v10850 = vunpack.c.l.b16 %v10331
    %v10851 = vunpack.c.l.b16 %v10332
    %v10852 = vunpack.c.l.b16 %v10333
    %v10853 = vunpack.c.l.b16 %v10334
    %v10854 = vunpack.c.l.b16 %v10335
    %v10855 = vunpack.c.l.b16 %v10336
    %v10856 = vunpack.c.l.b16 %v10337
    %v10857 = vunpack.c.l.b16 %v10338
    %v10858 = vunpack.c.l.b16 %v10339
    %v10859 = vunpack.c.l.b16 %v10340
    %v10860 = vunpack.c.l.b16 %v10341
    %v10861 = vunpack.c.l.b16 %v10342
    %v10862 = vunpack.c.l.b16 %v10343
    %v10863 = vunpack.c.l.b16 %v10344
    %v10864 = vunpack.c.l.b16 %v10345
    %v10865 = vunpack.c.l.b16 %v10346
    %v10866 = vunpack.c.l.b16 %v10347
    %v10867 = vunpack.c.l.b16 %v10348
    %v10868 = vunpack.c.l.b16 %v10349
    %v10869 = vunpack.c.l.b16 %v10350
    %v10870 = vunpack.c.l.b16 %v10351
    %v10871 = vunpack.c.l.b16 %v10352
    %v10872 = vunpack.c.l.b16 %v10353
    %v10873 = vunpack.c.l.b16 %v10354
    %v10874 = vunpack.c.l.b16 %v10355
    %v10875 = vunpack.c.l.b16 %v10356
    %v10876 = vunpack.c.l.b16 %v10357
    %v10877 = vunpack.c.l.b16 %v10358
    %v10878 = vunpack.c.l.b16 %v10359
    %v10879 = vunpack.c.l.b16 %v10360
    %v10880 = vunpack.c.l.b16 %v10361
    %v10881 = vunpack.c.l.b16 %v10362
    %v10882 = vunpack.c.l.b16 %v10363
    %v10883 = vunpack.c.l.b16 %v10364
    %v10884 = vunpack.c.l.b16 %v10365
    %v10885 = vunpack.c.l.b16 %v10366
    %v10886 = vunpack.c.l.b16 %v10367
    %v10887 = vunpack.c.l.b16 %v10368
    %v10888 = vunpack.c.l.b16 %v10369
    %v10889 = vunpack.c.l.b16 %v10370
    %v10890 = vunpack.c.l.b16 %v10371
    %v10891 = vunpack.c.l.b16 %v10372
    %v10892 = vunpack.c.l.b16 %v10373
    %v10893 = vunpack.c.l.b16 %v10374
    %v10894 = vunpack.c.l.b16 %v10375
    %v10895 = vunpack.c.l.b16 %v10376
    %v10896 = vunpack.c.l.b16 %v10377
    %v10897 = vunpack.c.l.b16 %v10378
    %v10898 = vunpack.c.l.b16 %v10379
    %v10899 = vunpack.c.l.b16 %v10380
    %v10900 = vunpack.c.l.b16 %v10381
    %v10901 = vunpack.c.l.b16 %v10382
    %v10902 = vunpack.c.l.b16 %v10383
    %v10903 = vunpack.c.l.b16 %v10384
    %v10904 = vunpack.c.l.b16 %v10385
    %v10905 = vunpack.c.l.b16 %v10386
    %v10906 = vunpack.c.l.b16 %v10387
    %v10907 = vunpack.c.l.b16 %v10388
    %v10908 = vunpack.c.l.b16 %v10389
    %v10909 = vunpack.c.l.b16 %v10390
    %v10910 = vunpack.c.l.b16 %v10391
    %v10911 = vunpack.c.l.b16 %v10392
    %v10912 = vunpack.c.l.b16 %v10393
    %v10913 = vunpack.c.l.b16 %v10394
    %v10914 = vunpack.c.l.b16 %v10395
    %v10915 = vunpack.c.l.b16 %v10396
    %v10916 = vunpack.c.l.b16 %v10397
    %v10917 = vunpack.c.l.b16 %v10398
    %v10918 = vunpack.c.l.b16 %v10399
    %v10919 = vunpack.c.l.b16 %v10400
    %v10920 = vunpack.c.l.b16 %v10401
    %v10921 = vunpack.c.l.b16 %v10402
    %v10922 = vunpack.c.l.b16 %v10403
    %v10923 = vunpack.c.l.b16 %v10404
    %v10924 = vunpack.c.l.b16 %v10405
    %v10925 = vunpack.c.l.b16 %v10406
    %v10926 = vunpack.c.l.b16 %v10407
    %v10927 = vunpack.c.l.b16 %v10408
    %v10928 = vunpack.c.l.b16 %v10409
    %v10929 = vunpack.c.l.b16 %v10410
    %v10930 = vunpack.c.l.b16 %v10411
    %v10931 = vunpack.c.l.b16 %v10412
    %v10932 = vunpack.c.l.b16 %v10413
    %v10933 = vunpack.c.l.b16 %v10414
    %v10934 = vunpack.c.l.b16 %v10415
    %v10935 = vunpack.c.l.b16 %v10416
    %v10936 = vunpack.c.l.b16 %v10417
    %v10937 = vunpack.c.l.b16 %v10418
    %v10938 = vunpack.c.l.b16 %v10419
    %v10939 = vunpack.c.l.b16 %v10420
    %v10940 = vunpack.c.l.b16 %v10421
    %v10941 = vunpack.c.l.b16 %v10422
    %v10942 = vunpack.c.l.b16 %v10423
    %v10943 = vunpack.c.l.b16 %v10424
    %v10944 = vunpack.c.l.b16 %v10425
    %v10945 = vunpack.c.l.b16 %v10426
    %v10946 = vunpack.c.l.b16 %v10427
    %v10947 = vunpack.c.l.b16 %v10428
    %v10948 = vunpack.c.l.b16 %v10429
    %v10949 = vunpack.c.l.b16 %v10430
    %v10950 = vunpack.c.l.b16 %v10431
    %v10951 = vunpack.c.l.b16 %v10432
    %v10952 = vunpack.c.l.b16 %v10433
    %v10953 = vunpack.c.l.b16 %v10434
    %v10954 = vunpack.c.l.b16 %v10435
    %v10955 = vunpack.c.l.b16 %v10436
    %v10956 = vunpack.c.l.b16 %v10437
    %v10957 = vunpack.c.l.b16 %v10438
    %v10958 = vunpack.c.l.b16 %v10439
    %v10959 = vunpack.c.l.b16 %v10440
    %v10960 = vunpack.c.l.b16 %v10441
    %v10961 = vunpack.c.l.b16 %v10442
    %v10962 = vunpack.c.l.b16 %v10443
    %v10963 = vunpack.c.l.b16 %v10444
    %v10964 = vunpack.c.l.b16 %v10445
    %v10965 = vunpack.c.l.b16 %v10446
    %v10966 = vunpack.c.l.b16 %v10447
    %v10967 = vunpack.c.l.b16 %v10448
    %v10968 = vunpack.c.l.b16 %v10449
    %v10969 = vunpack.c.l.b16 %v10450
    %v10970 = vunpack.c.l.b16 %v10451
    %v10971 = vunpack.c.l.b16 %v10452
    %v10972 = vunpack.c.l.b16 %v10453
    %v10973 = vunpack.c.l.b16 %v10454
    %v10974 = vunpack.c.l.b16 %v10455
    %v10975 = vunpack.c.l.b16 %v10456
    %v10976 = vunpack.c.l.b16 %v10457
    %v10977 = vunpack.c.l.b16 %v10458
    %v10978 = vunpack.c.l.b16 %v10459
    %v10979 = vunpack.c.l.b16 %v10460
    %v10980 = vunpack.c.l.b16 %v10461
    %v10981 = vunpack.c.l.b16 %v10462
    %v10982 = vunpack.c.l.b16 %v10463
    %v10983 = vunpack.c.l.b16 %v10464
    %v10984 = vunpack.c.l.b16 %v10465
    %v10985 = vunpack.c.l.b16 %v10466
    %v10986 = vunpack.c.l.b16 %v10467
    %v10987 = vunpack.c.l.b16 %v10468
    %v10988 = vunpack.c.l.b16 %v10469
    %v10989 = vunpack.c.l.b16 %v10470
    %v10990 = vunpack.c.l.b16 %v10471
    %v10991 = vunpack.c.l.b16 %v10472
    %v10992 = vunpack.c.l.b16 %v10473
    %v10993 = vunpack.c.l.b16 %v10474
    %v10994 = vunpack.c.l.b16 %v10475
    %v10995 = vunpack.c.l.b16 %v10476
    %v10996 = vunpack.c.l.b16 %v10477
    %v10997 = vunpack.c.l.b16 %v10478
    %v10998 = vunpack.c.l.b16 %v10479
    %v10999 = vunpack.c.l.b16 %v10480
    %v11000 = vunpack.c.l.b16 %v10481
    %v11001 = vunpack.c.l.b16 %v10482
    %v11002 = vunpack.c.l.b16 %v10483
    %v11003 = vunpack.c.l.b16 %v10484
    %v11004 = vunpack.c.l.b16 %v10485
    %v11005 = vunpack.c.l.b16 %v10486
    %v11006 = vunpack.c.l.b16 %v10487
    %v11007 = vunpack.c.l.b16 %v10488
    %v11008 = vunpack.c.l.b16 %v10489
    %v11009 = vunpack.c.l.b16 %v10490
    %v11010 = vunpack.c.l.b16 %v10491
    %v11011 = vunpack.c.l.b16 %v10492
    %v11012 = vunpack.c.l.b16 %v10493
    %v11013 = vunpack.c.l.b16 %v10494
    %v11014 = vunpack.c.l.b16 %v10495
    %v11015 = vunpack.c.l.b16 %v10496
    %v11016 = vunpack.c.l.b16 %v10497
    %v11017 = vunpack.c.l.b16 %v10498
    %v11018 = vunpack.c.l.b16 %v10499
    %v11019 = vunpack.c.l.b16 %v10500
    %v11020 = vunpack.c.l.b16 %v10501
    %v11021 = vunpack.c.l.b16 %v10502
    %v11022 = vunpack.c.l.b16 %v10503
    %v11023 = vunpack.c.l.b16 %v10504
    %v11024 = vunpack.c.l.b16 %v10505
    %v11025 = vunpack.c.l.b16 %v10506
    %v11026 = vunpack.c.l.b16 %v10507
    %v11027 = vunpack.c.l.b16 %v10508
    %v11028 = vunpack.c.l.b16 %v10509
    %v11029 = vunpack.c.l.b16 %v10510
    %v11030 = vunpack.c.l.b16 %v10511
    %v11031 = vunpack.c.l.b16 %v10512
    %v11032 = vunpack.c.l.b16 %v10513
    %v11033 = vunpack.c.l.b16 %v10514
    %v11034 = vunpack.c.l.b16 %v10515
    %v11035 = vunpack.c.l.b16 %v10516
    %v11036 = vunpack.c.l.b16 %v10517
    %v11037 = vunpack.c.l.b16 %v10518
    %v11038 = vunpack.c.l.b16 %v10519
    %v11039 = vunpack.c.l.b16 %v10520
    %v11040 = vunpack.c.l.b16 %v10521
    %v11041 = vunpack.c.l.b16 %v10522
    %v11042 = vunpack.c.l.b16 %v10523
    %v11043 = vunpack.c.l.b16 %v10524
    %v11044 = vunpack.c.l.b16 %v10525
    %v11045 = vunpack.c.l.b16 %v10526
    %v11046 = vunpack.c.l.b16 %v10527
    %v11047 = vunpack.c.l.b16 %v10528
    %v11048 = vunpack.c.l.b16 %v10529
    %v11049 = vunpack.c.l.b16 %v10530
    %v11050 = vunpack.c.l.b16 %v10531
    %v11051 = vunpack.c.l.b16 %v10532
    %v11052 = vunpack.c.l.b16 %v10533
    %v11053 = vunpack.c.l.b16 %v10534
    %v11054 = vunpack.c.l.b16 %v10535
    %v11055 = vunpack.c.l.b16 %v10536
    %v11056 = vunpack.c.l.b16 %v10537
    %v11057 = vunpack.c.l.b16 %v10538
    %v11058 = vunpack.c.l.b16 %v10539
    %v11059 = vunpack.c.l.b16 %v10540
    %v11060 = vunpack.c.l.b16 %v10541
    %v11061 = vunpack.c.l.b16 %v10542
    %v11062 = vunpack.c.l.b16 %v10543
    %v11063 = vunpack.c.l.b16 %v10544
    %v11064 = vunpack.c.l.b16 %v10545
    %v11065 = vunpack.c.l.b16 %v10546
    %v11066 = vunpack.c.l.b16 %v10547
    %v11067 = vunpack.c.l.b16 %v10548
    %v11068 = vunpack.c.l.b16 %v10549
    %v11069 = vunpack.c.l.b16 %v10550
    %v11070 = vunpack.c.l.b16 %v10551
    %v11071 = vunpack.c.l.b16 %v10552
    %v11072 = vunpack.c.l.b16 %v10553
    %v11073 = vunpack.c.l.b16 %v10554
    %v11074 = vunpack.c.l.b16 %v10555
    %v11075 = vunpack.c.l.b16 %v10556
    %v11076 = vunpack.c.l.b16 %v10557
    %v11077 = vunpack.c.l.b16 %v10558
    %v11078 = vunpack.c.l.b16 %v10559
    %v11079 = vunpack.c.l.b16 %v10560
    %v11080 = vunpack.c.l.b16 %v10561
    %v11081 = vunpack.c.l.b16 %v10562
    %v11082 = vunpack.c.l.b16 %v10563
    %v11083 = vunpack.c.l.b16 %v10564
    %v11084 = vunpack.c.l.b16 %v10565
    %v11085 = vunpack.c.l.b16 %v10566
    %v11086 = vunpack.c.l.b16 %v10567
    %v11087 = vunpack.c.l.b16 %v10568
    %v11088 = vunpack.c.l.b16 %v10569
    %v11089 = vpack.c.b16 %v10834, %v10833
    %v11090 = vpack.c.b16 %v10836, %v10835
    %v11091 = vpack.c.b16 %v10838, %v10837
    %v11092 = vpack.c.b16 %v10840, %v10839
    %v11093 = vpack.c.b16 %v10842, %v10841
    %v11094 = vpack.c.b16 %v10844, %v10843
    %v11095 = vpack.c.b16 %v10846, %v10845
    %v11096 = vpack.c.b16 %v10848, %v10847
    %v11097 = vpack.c.b16 %v10850, %v10849
    %v11098 = vpack.c.b16 %v10852, %v10851
    %v11099 = vpack.c.b16 %v10854, %v10853
    %v11100 = vpack.c.b16 %v10856, %v10855
    %v11101 = vpack.c.b16 %v10858, %v10857
    %v11102 = vpack.c.b16 %v10860, %v10859
    %v11103 = vpack.c.b16 %v10862, %v10861
    %v11104 = vpack.c.b16 %v10864, %v10863
    %v11105 = vpack.c.b16 %v10866, %v10865
    %v11106 = vpack.c.b16 %v10868, %v10867
    %v11107 = vpack.c.b16 %v10870, %v10869
    %v11108 = vpack.c.b16 %v10872, %v10871
    %v11109 = vpack.c.b16 %v10874, %v10873
    %v11110 = vpack.c.b16 %v10876, %v10875
    %v11111 = vpack.c.b16 %v10878, %v10877
    %v11112 = vpack.c.b16 %v10880, %v10879
    %v11113 = vpack.c.b16 %v10882, %v10881
    %v11114 = vpack.c.b16 %v10884, %v10883
    %v11115 = vpack.c.b16 %v10886, %v10885
    %v11116 = vpack.c.b16 %v10888, %v10887
    %v11117 = vpack.c.b16 %v10890, %v10889
    %v11118 = vpack.c.b16 %v10892, %v10891
    %v11119 = vpack.c.b16 %v10894, %v10893
    %v11120 = vpack.c.b16 %v10896, %v10895
    %v11121 = vpack.c.b16 %v10898, %v10897
    %v11122 = vpack.c.b16 %v10900, %v10899
    %v11123 = vpack.c.b16 %v10902, %v10901
    %v11124 = vpack.c.b16 %v10904, %v10903
    %v11125 = vpack.c.b16 %v10906, %v10905
    %v11126 = vpack.c.b16 %v10908, %v10907
    %v11127 = vpack.c.b16 %v10910, %v10909
    %v11128 = vpack.c.b16 %v10912, %v10911
    %v11129 = vpack.c.b16 %v10914, %v10913
    %v11130 = vpack.c.b16 %v10916, %v10915
    %v11131 = vpack.c.b16 %v10918, %v10917
    %v11132 = vpack.c.b16 %v10920, %v10919
    %v11133 = vpack.c.b16 %v10922, %v10921
    %v11134 = vpack.c.b16 %v10924, %v10923
    %v11135 = vpack.c.b16 %v10926, %v10925
    %v11136 = vpack.c.b16 %v10928, %v10927
    %v11137 = vpack.c.b16 %v10930, %v10929
    %v11138 = vpack.c.b16 %v10932, %v10931
    %v11139 = vpack.c.b16 %v10934, %v10933
    %v11140 = vpack.c.b16 %v10936, %v10935
    %v11141 = vpack.c.b16 %v10938, %v10937
    %v11142 = vpack.c.b16 %v10940, %v10939
    %v11143 = vpack.c.b16 %v10942, %v10941
    %v11144 = vpack.c.b16 %v10944, %v10943
    %v11145 = vpack.c.b16 %v10946, %v10945
    %v11146 = vpack.c.b16 %v10948, %v10947
    %v11147 = vpack.c.b16 %v10950, %v10949
    %v11148 = vpack.c.b16 %v10952, %v10951
    %v11149 = vpack.c.b16 %v10954, %v10953
    %v11150 = vpack.c.b16 %v10956, %v10955
    %v11151 = vpack.c.b16 %v10958, %v10957
    %v11152 = vpack.c.b16 %v10960, %v10959
    %v11153 = vpack.c.b16 %v10962, %v10961
    %v11154 = vpack.c.b16 %v10964, %v10963
    %v11155 = vpack.c.b16 %v10966, %v10965
    %v11156 = vpack.c.b16 %v10968, %v10967
    %v11157 = vpack.c.b16 %v10970, %v10969
    %v11158 = vpack.c.b16 %v10972, %v10971
    %v11159 = vpack.c.b16 %v10974, %v10973
    %v11160 = vpack.c.b16 %v10976, %v10975
    %v11161 = vpack.c.b16 %v10978, %v10977
    %v11162 = vpack.c.b16 %v10980, %v10979
    %v11163 = vpack.c.b16 %v10982, %v10981
    %v11164 = vpack.c.b16 %v10984, %v10983
    %v11165 = vpack.c.b16 %v10986, %v10985
    %v11166 = vpack.c.b16 %v10988, %v10987
    %v11167 = vpack.c.b16 %v10990, %v10989
    %v11168 = vpack.c.b16 %v10992, %v10991
    %v11169 = vpack.c.b16 %v10994, %v10993
    %v11170 = vpack.c.b16 %v10996, %v10995
    %v11171 = vpack.c.b16 %v10998, %v10997
    %v11172 = vpack.c.b16 %v11000, %v10999
    %v11173 = vpack.c.b16 %v11002, %v11001
    %v11174 = vpack.c.b16 %v11004, %v11003
    %v11175 = vpack.c.b16 %v11006, %v11005
    %v11176 = vpack.c.b16 %v11008, %v11007
    %v11177 = vpack.c.b16 %v11010, %v11009
    %v11178 = vpack.c.b16 %v11012, %v11011
    %v11179 = vpack.c.b16 %v11014, %v11013
    %v11180 = vpack.c.b16 %v11016, %v11015
    %v11181 = vpack.c.b16 %v11018, %v11017
    %v11182 = vpack.c.b16 %v11020, %v11019
    %v11183 = vpack.c.b16 %v11022, %v11021
    %v11184 = vpack.c.b16 %v11024, %v11023
    %v11185 = vpack.c.b16 %v11026, %v11025
    %v11186 = vpack.c.b16 %v11028, %v11027
    %v11187 = vpack.c.b16 %v11030, %v11029
    %v11188 = vpack.c.b16 %v11032, %v11031
    %v11189 = vpack.c.b16 %v11034, %v11033
    %v11190 = vpack.c.b16 %v11036, %v11035
    %v11191 = vpack.c.b16 %v11038, %v11037
    %v11192 = vpack.c.b16 %v11040, %v11039
    %v11193 = vpack.c.b16 %v11042, %v11041
    %v11194 = vpack.c.b16 %v11044, %v11043
    %v11195 = vpack.c.b16 %v11046, %v11045
    %v11196 = vpack.c.b16 %v11048, %v11047
    %v11197 = vpack.c.b16 %v11050, %v11049
    %v11198 = vpack.c.b16 %v11052, %v11051
    %v11199 = vpack.c.b16 %v11054, %v11053
    %v11200 = vpack.c.b16 %v11056, %v11055
    %v11201 = vpack.c.b16 %v11058, %v11057
    %v11202 = vpack.c.b16 %v11060, %v11059
    %v11203 = vpack.c.b16 %v11062, %v11061
    %v11204 = vpack.c.b16 %v11064, %v11063
    %v11205 = vpack.c.b16 %v11066, %v11065
    %v11206 = vpack.c.b16 %v11068, %v11067
    %v11207 = vpack.c.b16 %v11070, %v11069
    %v11208 = vpack.c.b16 %v11072, %v11071
    %v11209 = vpack.c.b16 %v11074, %v11073
    %v11210 = vpack.c.b16 %v11076, %v11075
    %v11211 = vpack.c.b16 %v11078, %v11077
    %v11212 = vpack.c.b16 %v11080, %v11079
    %v11213 = vpack.c.b16 %v11082, %v11081
    %v11214 = vpack.c.b16 %v11084, %v11083
    %v11215 = vpack.c.b16 %v11086, %v11085
    %v11216 = vpack.c.b16 %v11088, %v11087
    %11345 = vmatprep.subr.bf16.mxu0 0
    %11346 = vmatpush1.bf16.msra.mxu0 %v11089
    %11347 = vmatprep.subr.bf16.mxu0 0
    %11348 = vmatpush1.bf16.msra.mxu0 %v11090
    %11349 = vmatprep.subr.bf16.mxu0 0
    %11350 = vmatpush1.bf16.msra.mxu0 %v11091
    %11351 = vmatprep.subr.bf16.mxu0 0
    %11352 = vmatpush1.bf16.msra.mxu0 %v11092
    %11353 = vmatprep.subr.bf16.mxu0 0
    %11354 = vmatpush1.bf16.msra.mxu0 %v11093
    %11355 = vmatprep.subr.bf16.mxu0 0
    %11356 = vmatpush1.bf16.msra.mxu0 %v11094
    %11357 = vmatprep.subr.bf16.mxu0 0
    %11358 = vmatpush1.bf16.msra.mxu0 %v11095
    %11359 = vmatprep.subr.bf16.mxu0 0
    %11360 = vmatpush1.bf16.msra.mxu0 %v11096
    %11361 = vmatprep.subr.bf16.mxu0 0
    %11362 = vmatpush1.bf16.msra.mxu0 %v11097
    %11363 = vmatprep.subr.bf16.mxu0 0
    %11364 = vmatpush1.bf16.msra.mxu0 %v11098
    %11365 = vmatprep.subr.bf16.mxu0 0
    %11366 = vmatpush1.bf16.msra.mxu0 %v11099
    %11367 = vmatprep.subr.bf16.mxu0 0
    %11368 = vmatpush1.bf16.msra.mxu0 %v11100
    %11369 = vmatprep.subr.bf16.mxu0 0
    %11370 = vmatpush1.bf16.msra.mxu0 %v11101
    %11371 = vmatprep.subr.bf16.mxu0 0
    %11372 = vmatpush1.bf16.msra.mxu0 %v11102
    %11373 = vmatprep.subr.bf16.mxu0 0
    %11374 = vmatpush1.bf16.msra.mxu0 %v11103
    %11375 = vmatprep.subr.bf16.mxu0 0
    %11376 = vmatpush1.bf16.msra.mxu0 %v11104
    %11377 = vmatprep.mubr.bf16.mxu0 %v10235
    %11378 = vmatmul.mubr.bf16.gmra.mrb[0].mxu0 %v10230
    %v11379 = vpop.f32.mrb[0].mxu0
    %v11380 = vadd.f32 %v10575, %v11379
    %v11381 = vpop.f32.mrb[0].mxu0
    %v11382 = vpop.f32.mrb[0].mxu0
    %v11383 = vpop.f32.mrb[0].mxu0
    %11384 = vdwg.mxu0
    %11385 = vmatprep.subr.bf16.mxu0 0
    %11386 = vmatpush1.bf16.msra.mxu0 %v11105
    %11387 = vmatprep.subr.bf16.mxu0 0
    %11388 = vmatpush1.bf16.msra.mxu0 %v11106
    %11389 = vmatprep.subr.bf16.mxu0 0
    %11390 = vmatpush1.bf16.msra.mxu0 %v11107
    %11391 = vmatprep.subr.bf16.mxu0 0
    %11392 = vmatpush1.bf16.msra.mxu0 %v11108
    %11393 = vmatprep.subr.bf16.mxu0 0
    %11394 = vmatpush1.bf16.msra.mxu0 %v11109
    %11395 = vmatprep.subr.bf16.mxu0 0
    %11396 = vmatpush1.bf16.msra.mxu0 %v11110
    %11397 = vmatprep.subr.bf16.mxu0 0
    %11398 = vmatpush1.bf16.msra.mxu0 %v11111
    %11399 = vmatprep.subr.bf16.mxu0 0
    %11400 = vmatpush1.bf16.msra.mxu0 %v11112
    %11401 = vmatprep.subr.bf16.mxu0 0
    %11402 = vmatpush1.bf16.msra.mxu0 %v11113
    %11403 = vmatprep.subr.bf16.mxu0 0
    %11404 = vmatpush1.bf16.msra.mxu0 %v11114
    %11405 = vmatprep.subr.bf16.mxu0 0
    %11406 = vmatpush1.bf16.msra.mxu0 %v11115
    %11407 = vmatprep.subr.bf16.mxu0 0
    %11408 = vmatpush1.bf16.msra.mxu0 %v11116
    %11409 = vmatprep.subr.bf16.mxu0 0
    %11410 = vmatpush1.bf16.msra.mxu0 %v11117
    %11411 = vmatprep.subr.bf16.mxu0 0
    %11412 = vmatpush1.bf16.msra.mxu0 %v11118
    %11413 = vmatprep.subr.bf16.mxu0 0
    %11414 = vmatpush1.bf16.msra.mxu0 %v11119
    %11415 = vmatprep.subr.bf16.mxu0 0
    %11416 = vmatpush1.bf16.msra.mxu0 %v11120
    %11417 = vmatprep.mubr.bf16.mxu0 %v10247
    %11418 = vmatmul.mubr.bf16.gmra.mrb[0].mxu0 %v10242
    %v11419 = vpop.f32.mrb[0].mxu0
    %v11420 = vadd.f32 %v11380, %v11419
    %v11421 = vpop.f32.mrb[0].mxu0
    %v11422 = vpop.f32.mrb[0].mxu0
    %v11423 = vpop.f32.mrb[0].mxu0
    %11424 = vdwg.mxu0
    %11425 = vmatprep.subr.bf16.mxu0 0
    %11426 = vmatpush1.bf16.msra.mxu0 %v11121
    %11427 = vmatprep.subr.bf16.mxu0 0
    %11428 = vmatpush1.bf16.msra.mxu0 %v11122
    %11429 = vmatprep.subr.bf16.mxu0 0
    %11430 = vmatpush1.bf16.msra.mxu0 %v11123
    %11431 = vmatprep.subr.bf16.mxu0 0
    %11432 = vmatpush1.bf16.msra.mxu0 %v11124
    %11433 = vmatprep.subr.bf16.mxu0 0
    %11434 = vmatpush1.bf16.msra.mxu0 %v11125
    %11435 = vmatprep.subr.bf16.mxu0 0
    %11436 = vmatpush1.bf16.msra.mxu0 %v11126
    %11437 = vmatprep.subr.bf16.mxu0 0
    %11438 = vmatpush1.bf16.msra.mxu0 %v11127
    %11439 = vmatprep.subr.bf16.mxu0 0
    %11440 = vmatpush1.bf16.msra.mxu0 %v11128
    %11441 = vmatprep.subr.bf16.mxu0 0
    %11442 = vmatpush1.bf16.msra.mxu0 %v11129
    %11443 = vmatprep.subr.bf16.mxu0 0
    %11444 = vmatpush1.bf16.msra.mxu0 %v11130
    %11445 = vmatprep.subr.bf16.mxu0 0
    %11446 = vmatpush1.bf16.msra.mxu0 %v11131
    %11447 = vmatprep.subr.bf16.mxu0 0
    %11448 = vmatpush1.bf16.msra.mxu0 %v11132
    %11449 = vmatprep.subr.bf16.mxu0 0
    %11450 = vmatpush1.bf16.msra.mxu0 %v11133
    %11451 = vmatprep.subr.bf16.mxu0 0
    %11452 = vmatpush1.bf16.msra.mxu0 %v11134
    %11453 = vmatprep.subr.bf16.mxu0 0
    %11454 = vmatpush1.bf16.msra.mxu0 %v11135
    %11455 = vmatprep.subr.bf16.mxu0 0
    %11456 = vmatpush1.bf16.msra.mxu0 %v11136
    %11457 = vmatprep.mubr.bf16.mxu0 %v10257
    %11458 = vmatmul.mubr.bf16.gmra.mrb[0].mxu0 %v10252
    %v11459 = vpop.f32.mrb[0].mxu0
    %v11460 = vadd.f32 %v11420, %v11459
    %v11461 = vpop.f32.mrb[0].mxu0
    %v11462 = vpop.f32.mrb[0].mxu0
    %v11463 = vpop.f32.mrb[0].mxu0
    %11464 = vdwg.mxu0
    %11465 = vmatprep.subr.bf16.mxu0 0
    %11466 = vmatpush1.bf16.msra.mxu0 %v11137
    %11467 = vmatprep.subr.bf16.mxu0 0
    %11468 = vmatpush1.bf16.msra.mxu0 %v11138
    %11469 = vmatprep.subr.bf16.mxu0 0
    %11470 = vmatpush1.bf16.msra.mxu0 %v11139
    %11471 = vmatprep.subr.bf16.mxu0 0
    %11472 = vmatpush1.bf16.msra.mxu0 %v11140
    %11473 = vmatprep.subr.bf16.mxu0 0
    %11474 = vmatpush1.bf16.msra.mxu0 %v11141
    %11475 = vmatprep.subr.bf16.mxu0 0
    %11476 = vmatpush1.bf16.msra.mxu0 %v11142
    %11477 = vmatprep.subr.bf16.mxu0 0
    %11478 = vmatpush1.bf16.msra.mxu0 %v11143
    %11479 = vmatprep.subr.bf16.mxu0 0
    %11480 = vmatpush1.bf16.msra.mxu0 %v11144
    %11481 = vmatprep.subr.bf16.mxu0 0
    %11482 = vmatpush1.bf16.msra.mxu0 %v11145
    %11483 = vmatprep.subr.bf16.mxu0 0
    %11484 = vmatpush1.bf16.msra.mxu0 %v11146
    %11485 = vmatprep.subr.bf16.mxu0 0
    %11486 = vmatpush1.bf16.msra.mxu0 %v11147
    %11487 = vmatprep.subr.bf16.mxu0 0
    %11488 = vmatpush1.bf16.msra.mxu0 %v11148
    %11489 = vmatprep.subr.bf16.mxu0 0
    %11490 = vmatpush1.bf16.msra.mxu0 %v11149
    %11491 = vmatprep.subr.bf16.mxu0 0
    %11492 = vmatpush1.bf16.msra.mxu0 %v11150
    %11493 = vmatprep.subr.bf16.mxu0 0
    %11494 = vmatpush1.bf16.msra.mxu0 %v11151
    %11495 = vmatprep.subr.bf16.mxu0 0
    %11496 = vmatpush1.bf16.msra.mxu0 %v11152
    %11497 = vmatprep.mubr.bf16.mxu0 %v10269
    %11498 = vmatmul.mubr.bf16.gmra.mrb[0].mxu0 %v10264
    %v11499 = vpop.f32.mrb[0].mxu0
    %v11500 = vadd.f32 %v11460, %v11499
    %v11501 = vpop.f32.mrb[0].mxu0
    %v11502 = vpop.f32.mrb[0].mxu0
    %v11503 = vpop.f32.mrb[0].mxu0
    %11504 = vdwg.mxu0
    %11505 = vmatprep.subr.bf16.mxu0 0
    %11506 = vmatpush1.bf16.msra.mxu0 %v11153
    %11507 = vmatprep.subr.bf16.mxu0 0
    %11508 = vmatpush1.bf16.msra.mxu0 %v11154
    %11509 = vmatprep.subr.bf16.mxu0 0
    %11510 = vmatpush1.bf16.msra.mxu0 %v11155
    %11511 = vmatprep.subr.bf16.mxu0 0
    %11512 = vmatpush1.bf16.msra.mxu0 %v11156
    %11513 = vmatprep.subr.bf16.mxu0 0
    %11514 = vmatpush1.bf16.msra.mxu0 %v11157
    %11515 = vmatprep.subr.bf16.mxu0 0
    %11516 = vmatpush1.bf16.msra.mxu0 %v11158
    %11517 = vmatprep.subr.bf16.mxu0 0
    %11518 = vmatpush1.bf16.msra.mxu0 %v11159
    %11519 = vmatprep.subr.bf16.mxu0 0
    %11520 = vmatpush1.bf16.msra.mxu0 %v11160
    %11521 = vmatprep.subr.bf16.mxu0 0
    %11522 = vmatpush1.bf16.msra.mxu0 %v11161
    %11523 = vmatprep.subr.bf16.mxu0 0
    %11524 = vmatpush1.bf16.msra.mxu0 %v11162
    %11525 = vmatprep.subr.bf16.mxu0 0
    %11526 = vmatpush1.bf16.msra.mxu0 %v11163
    %11527 = vmatprep.subr.bf16.mxu0 0
    %11528 = vmatpush1.bf16.msra.mxu0 %v11164
    %11529 = vmatprep.subr.bf16.mxu0 0
    %11530 = vmatpush1.bf16.msra.mxu0 %v11165
    %11531 = vmatprep.subr.bf16.mxu0 0
    %11532 = vmatpush1.bf16.msra.mxu0 %v11166
    %11533 = vmatprep.subr.bf16.mxu0 0
    %11534 = vmatpush1.bf16.msra.mxu0 %v11167
    %11535 = vmatprep.subr.bf16.mxu0 0
    %11536 = vmatpush1.bf16.msra.mxu0 %v11168
    %11537 = vmatprep.mubr.bf16.mxu0 %v10279
    %11538 = vmatmul.mubr.bf16.gmra.mrb[0].mxu0 %v10274
    %v11539 = vpop.f32.mrb[0].mxu0
    %v11540 = vadd.f32 %v11500, %v11539
    %v11541 = vpop.f32.mrb[0].mxu0
    %v11542 = vpop.f32.mrb[0].mxu0
    %v11543 = vpop.f32.mrb[0].mxu0
    %11544 = vdwg.mxu0
    %11545 = vmatprep.subr.bf16.mxu0 0
    %11546 = vmatpush1.bf16.msra.mxu0 %v11169
    %11547 = vmatprep.subr.bf16.mxu0 0
    %11548 = vmatpush1.bf16.msra.mxu0 %v11170
    %11549 = vmatprep.subr.bf16.mxu0 0
    %11550 = vmatpush1.bf16.msra.mxu0 %v11171
    %11551 = vmatprep.subr.bf16.mxu0 0
    %11552 = vmatpush1.bf16.msra.mxu0 %v11172
    %11553 = vmatprep.subr.bf16.mxu0 0
    %11554 = vmatpush1.bf16.msra.mxu0 %v11173
    %11555 = vmatprep.subr.bf16.mxu0 0
    %11556 = vmatpush1.bf16.msra.mxu0 %v11174
    %11557 = vmatprep.subr.bf16.mxu0 0
    %11558 = vmatpush1.bf16.msra.mxu0 %v11175
    %11559 = vmatprep.subr.bf16.mxu0 0
    %11560 = vmatpush1.bf16.msra.mxu0 %v11176
    %11561 = vmatprep.subr.bf16.mxu0 0
    %11562 = vmatpush1.bf16.msra.mxu0 %v11177
    %11563 = vmatprep.subr.bf16.mxu0 0
    %11564 = vmatpush1.bf16.msra.mxu0 %v11178
    %11565 = vmatprep.subr.bf16.mxu0 0
    %11566 = vmatpush1.bf16.msra.mxu0 %v11179
    %11567 = vmatprep.subr.bf16.mxu0 0
    %11568 = vmatpush1.bf16.msra.mxu0 %v11180
    %11569 = vmatprep.subr.bf16.mxu0 0
    %11570 = vmatpush1.bf16.msra.mxu0 %v11181
    %11571 = vmatprep.subr.bf16.mxu0 0
    %11572 = vmatpush1.bf16.msra.mxu0 %v11182
    %11573 = vmatprep.subr.bf16.mxu0 0
    %11574 = vmatpush1.bf16.msra.mxu0 %v11183
    %11575 = vmatprep.subr.bf16.mxu0 0
    %11576 = vmatpush1.bf16.msra.mxu0 %v11184
    %11577 = vmatprep.mubr.bf16.mxu0 %v10291
    %11578 = vmatmul.mubr.bf16.gmra.mrb[0].mxu0 %v10286
    %v11579 = vpop.f32.mrb[0].mxu0
    %v11580 = vadd.f32 %v11540, %v11579
    %v11581 = vpop.f32.mrb[0].mxu0
    %v11582 = vpop.f32.mrb[0].mxu0
    %v11583 = vpop.f32.mrb[0].mxu0
    %11584 = vdwg.mxu0
    %11585 = vmatprep.subr.bf16.mxu0 0
    %11586 = vmatpush1.bf16.msra.mxu0 %v11185
    %11587 = vmatprep.subr.bf16.mxu0 0
    %11588 = vmatpush1.bf16.msra.mxu0 %v11186
    %11589 = vmatprep.subr.bf16.mxu0 0
    %11590 = vmatpush1.bf16.msra.mxu0 %v11187
    %11591 = vmatprep.subr.bf16.mxu0 0
    %11592 = vmatpush1.bf16.msra.mxu0 %v11188
    %11593 = vmatprep.subr.bf16.mxu0 0
    %11594 = vmatpush1.bf16.msra.mxu0 %v11189
    %11595 = vmatprep.subr.bf16.mxu0 0
    %11596 = vmatpush1.bf16.msra.mxu0 %v11190
    %11597 = vmatprep.subr.bf16.mxu0 0
    %11598 = vmatpush1.bf16.msra.mxu0 %v11191
    %11599 = vmatprep.subr.bf16.mxu0 0
    %11600 = vmatpush1.bf16.msra.mxu0 %v11192
    %11601 = vmatprep.subr.bf16.mxu0 0
    %11602 = vmatpush1.bf16.msra.mxu0 %v11193
    %11603 = vmatprep.subr.bf16.mxu0 0
    %11604 = vmatpush1.bf16.msra.mxu0 %v11194
    %11605 = vmatprep.subr.bf16.mxu0 0
    %11606 = vmatpush1.bf16.msra.mxu0 %v11195
    %11607 = vmatprep.subr.bf16.mxu0 0
    %11608 = vmatpush1.bf16.msra.mxu0 %v11196
    %11609 = vmatprep.subr.bf16.mxu0 0
    %11610 = vmatpush1.bf16.msra.mxu0 %v11197
    %11611 = vmatprep.subr.bf16.mxu0 0
    %11612 = vmatpush1.bf16.msra.mxu0 %v11198
    %11613 = vmatprep.subr.bf16.mxu0 0
    %11614 = vmatpush1.bf16.msra.mxu0 %v11199
    %11615 = vmatprep.subr.bf16.mxu0 0
    %11616 = vmatpush1.bf16.msra.mxu0 %v11200
    %11617 = vmatprep.mubr.bf16.mxu0 %v10301
    %11618 = vmatmul.mubr.bf16.gmra.mrb[0].mxu0 %v10296
    %v11619 = vpop.f32.mrb[0].mxu0
    %v11620 = vadd.f32 %v11580, %v11619
    %v11621 = vpop.f32.mrb[0].mxu0
    %v11622 = vpop.f32.mrb[0].mxu0
    %v11623 = vpop.f32.mrb[0].mxu0
    %11624 = vdwg.mxu0
    %11625 = vmatprep.subr.bf16.mxu0 0
    %11626 = vmatpush1.bf16.msra.mxu0 %v11201
    %11627 = vmatprep.subr.bf16.mxu0 0
    %11628 = vmatpush1.bf16.msra.mxu0 %v11202
    %11629 = vmatprep.subr.bf16.mxu0 0
    %11630 = vmatpush1.bf16.msra.mxu0 %v11203
    %11631 = vmatprep.subr.bf16.mxu0 0
    %11632 = vmatpush1.bf16.msra.mxu0 %v11204
    %11633 = vmatprep.subr.bf16.mxu0 0
    %11634 = vmatpush1.bf16.msra.mxu0 %v11205
    %11635 = vmatprep.subr.bf16.mxu0 0
    %11636 = vmatpush1.bf16.msra.mxu0 %v11206
    %11637 = vmatprep.subr.bf16.mxu0 0
    %11638 = vmatpush1.bf16.msra.mxu0 %v11207
    %11639 = vmatprep.subr.bf16.mxu0 0
    %11640 = vmatpush1.bf16.msra.mxu0 %v11208
    %11641 = vmatprep.subr.bf16.mxu0 0
    %11642 = vmatpush1.bf16.msra.mxu0 %v11209
    %11643 = vmatprep.subr.bf16.mxu0 0
    %11644 = vmatpush1.bf16.msra.mxu0 %v11210
    %11645 = vmatprep.subr.bf16.mxu0 0
    %11646 = vmatpush1.bf16.msra.mxu0 %v11211
    %11647 = vmatprep.subr.bf16.mxu0 0
    %11648 = vmatpush1.bf16.msra.mxu0 %v11212
    %11649 = vmatprep.subr.bf16.mxu0 0
    %11650 = vmatpush1.bf16.msra.mxu0 %v11213
    %11651 = vmatprep.subr.bf16.mxu0 0
    %11652 = vmatpush1.bf16.msra.mxu0 %v11214
    %11653 = vmatprep.subr.bf16.mxu0 0
    %11654 = vmatpush1.bf16.msra.mxu0 %v11215
    %11655 = vmatprep.subr.bf16.mxu0 0
    %11656 = vmatpush1.bf16.msra.mxu0 %v11216
    %11657 = vmatprep.mubr.bf16.mxu0 %v10313
    %11658 = vmatmul.mubr.bf16.gmra.mrb[0].mxu0 %v10308
    %v11659 = vpop.f32.mrb[0].mxu0
    %v11660 = vadd.f32 %v11620, %v11659
    %v11661 = vpop.f32.mrb[0].mxu0
    %v11662 = vpop.f32.mrb[0].mxu0
    %v11663 = vpop.f32.mrb[0].mxu0
    %11664 = vdwg.mxu0
    %v11665 = vmax.f32 %v11660, 0.0
    %v11666 = vpack.c.bf16 %v11665, %v11665
    %v11667 = vld [vmem:[%s9] sm:$0xf]
    %v11668 = vld [vmem:[%s9 + $0x4] sm:$0xf]
    %v11669 = vld [vmem:[%s9 + $0x8] sm:$0xf]
    %v11670 = vld [vmem:[%s9 + $0xc] sm:$0xf]
    %v11671 = vld [vmem:[%s9 + $0x10] sm:$0xf]
    %v11672 = vld [vmem:[%s9 + $0x14] sm:$0xf]
    %v11673 = vld [vmem:[%s9 + $0x18] sm:$0xf]
    %v11674 = vld [vmem:[%s9 + $0x1c] sm:$0xf]
    %v11675 = vld [vmem:[%s9 + $0x20] sm:$0xf]
    %v11676 = vld [vmem:[%s9 + $0x24] sm:$0xf]
    %v11677 = vld [vmem:[%s9 + $0x28] sm:$0xf]
    %v11678 = vld [vmem:[%s9 + $0x2c] sm:$0xf]
    %v11679 = vld [vmem:[%s9 + $0x30] sm:$0xf]
    %v11680 = vld [vmem:[%s9 + $0x34] sm:$0xf]
    %v11681 = vld [vmem:[%s9 + $0x38] sm:$0xf]
    %v11682 = vld [vmem:[%s9 + $0x3c] sm:$0xf]
    %v11683 = vld [vmem:[%s10] sm:$0x1]
    %v11685 = vlaneseq
    %v11686 = vshrl.u32 %v11685, 7
    %v11687 = vsub.s32 0, %v11686
    %v11688 = vrot.slane %v11683, %v11687
    %v11706 = vunpack.c.l.b16 %v11667
    %v11707 = vunpack.c.l.b16 %v11668
    %v11708 = vunpack.c.l.b16 %v11669
    %v11709 = vunpack.c.l.b16 %v11670
    %v11710 = vunpack.c.l.b16 %v11671
    %v11711 = vunpack.c.l.b16 %v11672
    %v11712 = vunpack.c.l.b16 %v11673
    %v11713 = vunpack.c.l.b16 %v11674
    %v11714 = vunpack.c.l.b16 %v11675
    %v11715 = vunpack.c.l.b16 %v11676
    %v11716 = vunpack.c.l.b16 %v11677
    %v11717 = vunpack.c.l.b16 %v11678
    %v11718 = vunpack.c.l.b16 %v11679
    %v11719 = vunpack.c.l.b16 %v11680
    %v11720 = vunpack.c.l.b16 %v11681
    %v11721 = vunpack.c.l.b16 %v11682
    %v11722 = vpack.c.b16 %v11707, %v11706
    %v11723 = vpack.c.b16 %v11709, %v11708
    %v11724 = vpack.c.b16 %v11711, %v11710
    %v11725 = vpack.c.b16 %v11713, %v11712
    %v11726 = vpack.c.b16 %v11715, %v11714
    %v11727 = vpack.c.b16 %v11717, %v11716
    %v11728 = vpack.c.b16 %v11719, %v11718
    %v11729 = vpack.c.b16 %v11721, %v11720
    %11738 = vmatprep.subr.bf16.mxu0 0
    %11739 = vmatpush1.bf16.msra.mxu0 %v11722
    %11740 = vmatprep.subr.bf16.mxu0 0
    %11741 = vmatpush1.bf16.msra.mxu0 %v11723
    %11742 = vmatprep.subr.bf16.mxu0 0
    %11743 = vmatpush1.bf16.msra.mxu0 %v11724
    %11744 = vmatprep.subr.bf16.mxu0 0
    %11745 = vmatpush1.bf16.msra.mxu0 %v11725
    %11746 = vmatprep.subr.bf16.mxu0 0
    %11747 = vmatpush1.bf16.msra.mxu0 %v11726
    %11748 = vmatprep.subr.bf16.mxu0 0
    %11749 = vmatpush1.bf16.msra.mxu0 %v11727
    %11750 = vmatprep.subr.bf16.mxu0 0
    %11751 = vmatpush1.bf16.msra.mxu0 %v11728
    %11752 = vmatprep.subr.bf16.mxu0 0
    %11753 = vmatpush1.bf16.msra.mxu0 %v11729
    %11754 = vmatprep.subr.bf16.mxu0 0
    %11755 = vmatpush1.bf16.msra.mxu0 0
    %11756 = vmatprep.subr.bf16.mxu0 0
    %11757 = vmatpush1.bf16.msra.mxu0 0
    %11758 = vmatprep.subr.bf16.mxu0 0
    %11759 = vmatpush1.bf16.msra.mxu0 0
    %11760 = vmatprep.subr.bf16.mxu0 0
    %11761 = vmatpush1.bf16.msra.mxu0 0
    %11762 = vmatprep.subr.bf16.mxu0 0
    %11763 = vmatpush1.bf16.msra.mxu0 0
    %11764 = vmatprep.subr.bf16.mxu0 0
    %11765 = vmatpush1.bf16.msra.mxu0 0
    %11766 = vmatprep.subr.bf16.mxu0 0
    %11767 = vmatpush1.bf16.msra.mxu0 0
    %11768 = vmatprep.subr.bf16.mxu0 0
    %11769 = vmatpush1.bf16.msra.mxu0 0
    %11770 = vmatprep.mubr.bf16.mxu0 0
    %11771 = vmatmul.mubr.bf16.gmra.mrb[0].mxu0 %v11666
    %v11772 = vpop.f32.mrb[0].mxu0
    %v11773 = vadd.f32 %v11688, %v11772
    %v11774 = vpop.f32.mrb[0].mxu0
    %v11775 = vpop.f32.mrb[0].mxu0
    %v11776 = vpop.f32.mrb[0].mxu0
    %11777 = vdwg.mxu0
    %11778 = vst [vmem:[#allocation10] sm:$0x3] %v11773
    // Predicated region
    $region54: #{_lambda_.1} parent=1 // pred_check
      _
    $region55: #{_lambda_.1} parent=1 // pred_check_branch
      %11780 = sbr.rel (0) target = $region57
    $region56: #{_lambda_.1} parent=1 // pred_region
      %s11782 = ssub.s32 32, 32
      %11783 = vsyncadd [#allocation7], %s11782
      %s11785 = sshll.u32 [#allocation10], 4
      %s11786 = int_to_ptr.vmem [resolvable:$true] %s11785
      %11788 = dma.vmem_to_hbm [thread:$0]  %s11786, 32, %s11, [#allocation7]
    $region57: #{_lambda_.1} parent=1 // pred_fallthru
      _
    // Predicated region
    $region58: #{_lambda_.1} parent=1 // pred_check
      _
    $region59: #{_lambda_.1} parent=1 // pred_check_branch
      %11790 = sbr.rel (0) target = $region61
    $region60: #{_lambda_.1} parent=1 // pred_region
      %11791 = dma.done [#allocation7], 32
    $region61: #{_lambda_.1} parent=1 // pred_fallthru
      _
    %11792 = vsyncpa [#allocation6], 1
    %11793 = vsyncpa [#allocation9], 1
    %11794 = vsyncpa [#allocation7], 1

</llo_original>
